<compile_context>
chip_gen: v5e
topology: v5e:2x2
jax: 0.10.0
libtpu: 0.0.40
codegen_flags: <defaults>
</compile_context>

<pallas_src>
import jax
import jax.numpy as jnp
from jax import lax
from jax.experimental import pallas as pl
from jax.experimental.pallas import tpu as pltpu


# ---------------------------------------------------------------------------
# Fused ResBlock kernel (one batch element per grid step).
#   x_ref : (1, H, W, C)  f32   input tile (also the residual)
#   w*_ref: (9, C, C)     bf16  BN-folded conv weights, index = ky*3+kx
#   b*_ref: (1, C)        f32   BN-folded bias
#   o_ref : (1, H, W, C)  f32   output tile
#   xpad/ypad: (H+2, W+2, C) f32 VMEM scratch (zero-padded conv inputs)
# ---------------------------------------------------------------------------
def resblock_kernel(x_ref, w1_ref, b1_ref, w2_ref, b2_ref, o_ref, xpad, ypad):
    _, H, W, C = x_ref.shape
    TR = 8 if H % 8 == 0 else H          # image rows per matmul chunk (M = TR*W)
    n_chunks = H // TR

    # --- (re)zero only the 1-wide halo ring of both padded buffers ---------
    zrow = jnp.zeros((1, W + 2, C), xpad.dtype)
    zcol = jnp.zeros((H, 1, C), xpad.dtype)
    for pad in (xpad, ypad):
        pad[pl.ds(0, 1), :, :] = zrow
        pad[pl.ds(H + 1, 1), :, :] = zrow
        pad[pl.ds(1, H), pl.ds(0, 1), :] = zcol
        pad[pl.ds(1, H), pl.ds(W + 1, 1), :] = zcol

    # --- fill xpad interior, chunked to bound live vreg pressure -----------
    for ci in range(n_chunks):
        r0 = ci * TR
        xc = x_ref[pl.ds(0, 1), pl.ds(r0, TR), :, :].reshape(TR, W, C)
        xpad[pl.ds(1 + r0, TR), pl.ds(1, W), :] = xc

    # --- 3x3 conv on TR output rows: 9 shifted (TR*W,C)x(C,C) MXU matmuls --
    def conv3x3_chunk(pad, w_ref, bias, r0):
        # bias (1, C) f32 initializes the accumulator (no separate bias add).
        acc = jnp.broadcast_to(bias, (TR * W, C))
        for dy in range(3):
            # One slab load per dy; dx shifts are in-register value slices.
            slab = pad[pl.ds(r0 + dy, TR), :, :]            # (TR, W+2, C) f32
            for dx in range(3):
                patch = slab[:, dx:dx + W, :].reshape(TR * W, C)
                acc = acc + jnp.dot(patch.astype(jnp.bfloat16),
                                    w_ref[dy * 3 + dx],
                                    preferred_element_type=jnp.float32)
        return acc                                           # (TR*W, C) f32

    # --- block 1: conv + folded BN + ReLU -> ypad interior ------------------
    b1 = b1_ref[...]
    for ci in range(n_chunks):
        r0 = ci * TR
        y1 = jnp.maximum(conv3x3_chunk(xpad, w1_ref, b1, r0), 0.0)
        ypad[pl.ds(1 + r0, TR), pl.ds(1, W), :] = y1.reshape(TR, W, C)

    # --- block 2: conv + folded BN, residual add, write output --------------
    b2 = b2_ref[...]
    for ci in range(n_chunks):
        r0 = ci * TR
        y2 = conv3x3_chunk(ypad, w2_ref, b2, r0)
        res = x_ref[pl.ds(0, 1), pl.ds(r0, TR), :, :].reshape(TR * W, C)
        out = (y2 + res).reshape(1, TR, W, C).astype(o_ref.dtype)
        o_ref[pl.ds(0, 1), pl.ds(r0, TR), :, :] = out


# ---------------------------------------------------------------------------
# Wrapper: one-time BN fold + bf16 weight cast; NHWC in, NHWC out (no
# layout transposes on the hot path).
# ---------------------------------------------------------------------------
def _fold_bn_into_conv(w_oihw, b, gamma, beta, mean, var, eps):
    scale = gamma / jnp.sqrt(var + eps)                       # (Cout,)
    w = jnp.transpose(w_oihw, (2, 3, 1, 0)) * scale           # (KH,KW,Cin,Cout)
    bias = (b - mean) * scale + beta
    kh, kw, cin, cout = w.shape
    return (w.reshape(kh * kw, cin, cout).astype(jnp.bfloat16),
            bias.reshape(1, cout).astype(jnp.float32))


def resblock_forward_nhwc(x_nhwc, params, eps=1e-5):
    x = x_nhwc.astype(jnp.float32)
    N, H, W, C = x.shape

    w1, b1 = _fold_bn_into_conv(params["conv1_w"], params["conv1_b"],
                                params["bn1_gamma"], params["bn1_beta"],
                                params["bn1_mean"], params["bn1_var"], eps)
    w2, b2 = _fold_bn_into_conv(params["conv2_w"], params["conv2_b"],
                                params["bn2_gamma"], params["bn2_beta"],
                                params["bn2_mean"], params["bn2_var"], eps)

    return pl.pallas_call(
        resblock_kernel,
        out_shape=jax.ShapeDtypeStruct((N, H, W, C), jnp.float32),
        grid=(N,),
        in_specs=[
            pl.BlockSpec((1, H, W, C), lambda n: (n, 0, 0, 0)),
            pl.BlockSpec((9, C, C), lambda n: (0, 0, 0)),
            pl.BlockSpec((1, C), lambda n: (0, 0)),
            pl.BlockSpec((9, C, C), lambda n: (0, 0, 0)),
            pl.BlockSpec((1, C), lambda n: (0, 0)),
        ],
        out_specs=pl.BlockSpec((1, H, W, C), lambda n: (n, 0, 0, 0)),
        scratch_shapes=[
            pltpu.VMEM((H + 2, W + 2, C), jnp.float32),   # padded x
            pltpu.VMEM((H + 2, W + 2, C), jnp.float32),   # padded y1
        ],
        compiler_params=pltpu.CompilerParams(
            dimension_semantics=("parallel",)),
    )(x, w1, b1, w2, b2)


def resblock_forward_nchw(x_nchw, params, eps=1e-5):
    # Compatibility wrapper for the PyTorch NCHW interface.  Production code
    # should stay NHWC end-to-end and call resblock_forward_nhwc directly
    # (each transpose here is a full-tensor HBM round trip).
    x = jnp.transpose(x_nchw, (0, 2, 3, 1))
    out = resblock_forward_nhwc(x, params, eps)
    return jnp.transpose(out, (0, 3, 1, 2))


# ---------------------------------------------------------------------------
# Pure-JAX f32 NHWC reference (lax conv) for verification.
# ---------------------------------------------------------------------------
def reference_forward_nhwc(x_nhwc, params, eps=1e-5):
    def conv_bn(x, w_oihw, b, gamma, beta, mean, var, relu):
        w_hwio = jnp.transpose(w_oihw, (2, 3, 1, 0))
        y = lax.conv_general_dilated(
            x, w_hwio, window_strides=(1, 1), padding=((1, 1), (1, 1)),
            dimension_numbers=("NHWC", "HWIO", "NHWC"),
            precision=lax.Precision.HIGHEST)
        y = y + b.reshape(1, 1, 1, -1)
        scale = (gamma / jnp.sqrt(var + eps)).reshape(1, 1, 1, -1)
        y = (y - mean.reshape(1, 1, 1, -1)) * scale + beta.reshape(1, 1, 1, -1)
        return jnp.maximum(y, 0.0) if relu else y

    y = conv_bn(x_nhwc, params["conv1_w"], params["conv1_b"],
                params["bn1_gamma"], params["bn1_beta"],
                params["bn1_mean"], params["bn1_var"], True)
    y = conv_bn(y, params["conv2_w"], params["conv2_b"],
                params["bn2_gamma"], params["bn2_beta"],
                params["bn2_mean"], params["bn2_var"], False)
    return y + x_nhwc


def init_params(key, dim):
    ks = jax.random.split(key, 12)
    std = (2.0 / (9 * dim)) ** 0.5          # kaiming-style init
    return {
        "conv1_w": jax.random.normal(ks[0], (dim, dim, 3, 3), jnp.float32) * std,
        "conv1_b": 0.05 * jax.random.normal(ks[1], (dim,), jnp.float32),
        "bn1_gamma": 1.0 + 0.1 * jax.random.normal(ks[2], (dim,), jnp.float32),
        "bn1_beta": 0.05 * jax.random.normal(ks[3], (dim,), jnp.float32),
        "bn1_mean": 0.05 * jax.random.normal(ks[4], (dim,), jnp.float32),
        "bn1_var": 1.0 + 0.1 * jnp.abs(jax.random.normal(ks[5], (dim,), jnp.float32)),
        "conv2_w": jax.random.normal(ks[6], (dim, dim, 3, 3), jnp.float32) * std,
        "conv2_b": 0.05 * jax.random.normal(ks[7], (dim,), jnp.float32),
        "bn2_gamma": 1.0 + 0.1 * jax.random.normal(ks[8], (dim,), jnp.float32),
        "bn2_beta": 0.05 * jax.random.normal(ks[9], (dim,), jnp.float32),
        "bn2_mean": 0.05 * jax.random.normal(ks[10], (dim,), jnp.float32),
        "bn2_var": 1.0 + 0.1 * jnp.abs(jax.random.normal(ks[11], (dim,), jnp.float32)),
    }


if __name__ == "__main__":
    key = jax.random.PRNGKey(0)
    k_params, k_x = jax.random.split(key)

    N, H, W, C = 2, 16, 16, 128              # NHWC; C=128 -> lane-dense
    params = init_params(k_params, C)
    x = jax.random.normal(k_x, (N, H, W, C), jnp.float32)

    out = jax.jit(resblock_forward_nhwc)(x, params)
    out = jax.block_until_ready(out)

    ref = reference_forward_nhwc(x, params)
    assert out.shape == ref.shape == (N, H, W, C), (out.shape, ref.shape)

    max_err = float(jnp.max(jnp.abs(out - ref)))
    ref_mag = float(jnp.max(jnp.abs(ref)))
    # bf16 matmul operands with f32 accumulation vs f32 HIGHEST reference.
    assert max_err <= 3e-2 * ref_mag + 1e-2, (max_err, ref_mag)

    print("KERNEL_OK")
</pallas_src>

<mosaic_0001>
module attributes {stable_mosaic.version = 11 : i64} {
  func.func @resblock_kernel(%arg0: i32, %arg1: memref<1x16x16x128xf32, #tpu.memory_space<vmem>>, %arg2: memref<9x128x128xbf16, #tpu.memory_space<vmem>>, %arg3: memref<1x128xf32, #tpu.memory_space<vmem>>, %arg4: memref<9x128x128xbf16, #tpu.memory_space<vmem>>, %arg5: memref<1x128xf32, #tpu.memory_space<vmem>>, %arg6: memref<1x16x16x128xf32, #tpu.memory_space<vmem>>, %arg7: memref<18x18x128xf32, #tpu.memory_space<vmem>>, %arg8: memref<18x18x128xf32, #tpu.memory_space<vmem>>) attributes {dimension_semantics = [#tpu.dimension_semantics<parallel>], iteration_bounds = array<i64: 2>, scalar_prefetch = 0 : i64, scratch_operands = 2 : i64, tpu.core_type = #tpu.core_type<tc>, window_params = [{transform_indices = @transform_0, window_bounds = array<i64: 1, 16, 16, 128>}, {pipeline_mode = #tpu.pipeline_mode<synchronous>, transform_indices = @transform_1, window_bounds = array<i64: 9, 128, 128>}, {pipeline_mode = #tpu.pipeline_mode<synchronous>, transform_indices = @transform_2, window_bounds = array<i64: 1, 128>}, {pipeline_mode = #tpu.pipeline_mode<synchronous>, transform_indices = @transform_3, window_bounds = array<i64: 9, 128, 128>}, {pipeline_mode = #tpu.pipeline_mode<synchronous>, transform_indices = @transform_4, window_bounds = array<i64: 1, 128>}, {transform_indices = @transform_5, window_bounds = array<i64: 1, 16, 16, 128>}]} {
    %cst = arith.constant 0.000000e+00 : f32
    %0 = vector.broadcast %cst : f32 to vector<1x18x128xf32>
    %cst_0 = arith.constant 0.000000e+00 : f32
    %1 = vector.broadcast %cst_0 : f32 to vector<16x1x128xf32>
    %c0 = arith.constant 0 : index
    %c0_1 = arith.constant 0 : index
    %c0_2 = arith.constant 0 : index
    %2 = vector.load %arg7[%c0, %c0_1, %c0_2] : memref<18x18x128xf32, #tpu.memory_space<vmem>>, vector<1x18x128xf32>
    tpu.vector_store %arg7[%c0, %c0_1, %c0_2], %0 {strides = array<i32>} : memref<18x18x128xf32, #tpu.memory_space<vmem>>, vector<1x18x128xf32>,
    %c17 = arith.constant 17 : index
    %c0_3 = arith.constant 0 : index
    %c0_4 = arith.constant 0 : index
    %3 = vector.load %arg7[%c17, %c0_3, %c0_4] : memref<18x18x128xf32, #tpu.memory_space<vmem>>, vector<1x18x128xf32>
    tpu.vector_store %arg7[%c17, %c0_3, %c0_4], %0 {strides = array<i32>} : memref<18x18x128xf32, #tpu.memory_space<vmem>>, vector<1x18x128xf32>,
    %c1 = arith.constant 1 : index
    %c0_5 = arith.constant 0 : index
    %c0_6 = arith.constant 0 : index
    %4 = vector.load %arg7[%c1, %c0_5, %c0_6] : memref<18x18x128xf32, #tpu.memory_space<vmem>>, vector<16x1x128xf32>
    tpu.vector_store %arg7[%c1, %c0_5, %c0_6], %1 {strides = array<i32>} : memref<18x18x128xf32, #tpu.memory_space<vmem>>, vector<16x1x128xf32>,
    %c1_7 = arith.constant 1 : index
    %c17_8 = arith.constant 17 : index
    %c0_9 = arith.constant 0 : index
    %5 = vector.load %arg7[%c1_7, %c17_8, %c0_9] : memref<18x18x128xf32, #tpu.memory_space<vmem>>, vector<16x1x128xf32>
    tpu.vector_store %arg7[%c1_7, %c17_8, %c0_9], %1 {strides = array<i32>} : memref<18x18x128xf32, #tpu.memory_space<vmem>>, vector<16x1x128xf32>,
    %c0_10 = arith.constant 0 : index
    %c0_11 = arith.constant 0 : index
    %c0_12 = arith.constant 0 : index
    %6 = vector.load %arg8[%c0_10, %c0_11, %c0_12] : memref<18x18x128xf32, #tpu.memory_space<vmem>>, vector<1x18x128xf32>
    tpu.vector_store %arg8[%c0_10, %c0_11, %c0_12], %0 {strides = array<i32>} : memref<18x18x128xf32, #tpu.memory_space<vmem>>, vector<1x18x128xf32>,
    %c17_13 = arith.constant 17 : index
    %c0_14 = arith.constant 0 : index
    %c0_15 = arith.constant 0 : index
    %7 = vector.load %arg8[%c17_13, %c0_14, %c0_15] : memref<18x18x128xf32, #tpu.memory_space<vmem>>, vector<1x18x128xf32>
    tpu.vector_store %arg8[%c17_13, %c0_14, %c0_15], %0 {strides = array<i32>} : memref<18x18x128xf32, #tpu.memory_space<vmem>>, vector<1x18x128xf32>,
    %c1_16 = arith.constant 1 : index
    %c0_17 = arith.constant 0 : index
    %c0_18 = arith.constant 0 : index
    %8 = vector.load %arg8[%c1_16, %c0_17, %c0_18] : memref<18x18x128xf32, #tpu.memory_space<vmem>>, vector<16x1x128xf32>
    tpu.vector_store %arg8[%c1_16, %c0_17, %c0_18], %1 {strides = array<i32>} : memref<18x18x128xf32, #tpu.memory_space<vmem>>, vector<16x1x128xf32>,
    %c1_19 = arith.constant 1 : index
    %c17_20 = arith.constant 17 : index
    %c0_21 = arith.constant 0 : index
    %9 = vector.load %arg8[%c1_19, %c17_20, %c0_21] : memref<18x18x128xf32, #tpu.memory_space<vmem>>, vector<16x1x128xf32>
    tpu.vector_store %arg8[%c1_19, %c17_20, %c0_21], %1 {strides = array<i32>} : memref<18x18x128xf32, #tpu.memory_space<vmem>>, vector<16x1x128xf32>,
    %c0_22 = arith.constant 0 : index
    %c0_23 = arith.constant 0 : index
    %c0_24 = arith.constant 0 : index
    %c0_25 = arith.constant 0 : index
    %10 = vector.load %arg1[%c0_22, %c0_23, %c0_24, %c0_25] : memref<1x16x16x128xf32, #tpu.memory_space<vmem>>, vector<1x8x16x128xf32>
    %11 = vector.shape_cast %10 : vector<1x8x16x128xf32> to vector<8x16x128xf32>
    %c1_26 = arith.constant 1 : index
    %c1_27 = arith.constant 1 : index
    %c0_28 = arith.constant 0 : index
    %12 = vector.load %arg7[%c1_26, %c1_27, %c0_28] : memref<18x18x128xf32, #tpu.memory_space<vmem>>, vector<8x16x128xf32>
    tpu.vector_store %arg7[%c1_26, %c1_27, %c0_28], %11 {strides = array<i32>} : memref<18x18x128xf32, #tpu.memory_space<vmem>>, vector<8x16x128xf32>,
    %c0_29 = arith.constant 0 : index
    %c8 = arith.constant 8 : index
    %c0_30 = arith.constant 0 : index
    %c0_31 = arith.constant 0 : index
    %13 = vector.load %arg1[%c0_29, %c8, %c0_30, %c0_31] : memref<1x16x16x128xf32, #tpu.memory_space<vmem>>, vector<1x8x16x128xf32>
    %14 = vector.shape_cast %13 : vector<1x8x16x128xf32> to vector<8x16x128xf32>
    %c9 = arith.constant 9 : index
    %c1_32 = arith.constant 1 : index
    %c0_33 = arith.constant 0 : index
    %15 = vector.load %arg7[%c9, %c1_32, %c0_33] : memref<18x18x128xf32, #tpu.memory_space<vmem>>, vector<8x16x128xf32>
    tpu.vector_store %arg7[%c9, %c1_32, %c0_33], %14 {strides = array<i32>} : memref<18x18x128xf32, #tpu.memory_space<vmem>>, vector<8x16x128xf32>,
    %c0_34 = arith.constant 0 : index
    %c0_35 = arith.constant 0 : index
    %16 = vector.load %arg3[%c0_34, %c0_35] : memref<1x128xf32, #tpu.memory_space<vmem>>, vector<1x128xf32>
    %17 = vector.shape_cast %16 : vector<1x128xf32> to vector<1x128xf32>
    %18 = vector.broadcast %17 : vector<1x128xf32> to vector<128x128xf32>
    %c0_36 = arith.constant 0 : index
    %c0_37 = arith.constant 0 : index
    %c0_38 = arith.constant 0 : index
    %19 = vector.load %arg7[%c0_36, %c0_37, %c0_38] : memref<18x18x128xf32, #tpu.memory_space<vmem>>, vector<8x18x128xf32>
    %20 = vector.extract_strided_slice %19 {offsets = [0, 0, 0], sizes = [8, 16, 128], strides = [1, 1, 1]} : vector<8x18x128xf32> to vector<8x16x128xf32>
    %21 = vector.shape_cast %20 : vector<8x16x128xf32> to vector<128x128xf32>
    %22 = arith.truncf %21 : vector<128x128xf32> to vector<128x128xbf16>
    %c0_39 = arith.constant 0 : index
    %c0_40 = arith.constant 0 : index
    %c0_41 = arith.constant 0 : index
    %23 = vector.load %arg2[%c0_39, %c0_40, %c0_41] : memref<9x128x128xbf16, #tpu.memory_space<vmem>>, vector<1x128x128xbf16>
    %24 = vector.shape_cast %23 : vector<1x128x128xbf16> to vector<128x128xbf16>
    %cst_42 = arith.constant dense<0.000000e+00> : vector<128x128xf32>
    %25 = tpu.matmul %22, %24, %cst_42 {dimension_numbers = #tpu.dot_dimension_numbers<[1], [0], [0], [1], [0, 0, 1, 1], [], []>} : vector<128x128xbf16>, vector<128x128xbf16>, vector<128x128xf32> -> vector<128x128xf32>
    %26 = arith.addf %18, %25 : vector<128x128xf32>
    %27 = vector.extract_strided_slice %19 {offsets = [0, 1, 0], sizes = [8, 16, 128], strides = [1, 1, 1]} : vector<8x18x128xf32> to vector<8x16x128xf32>
    %28 = vector.shape_cast %27 : vector<8x16x128xf32> to vector<128x128xf32>
    %29 = arith.truncf %28 : vector<128x128xf32> to vector<128x128xbf16>
    %c1_43 = arith.constant 1 : index
    %c0_44 = arith.constant 0 : index
    %c0_45 = arith.constant 0 : index
    %30 = vector.load %arg2[%c1_43, %c0_44, %c0_45] : memref<9x128x128xbf16, #tpu.memory_space<vmem>>, vector<1x128x128xbf16>
    %31 = vector.shape_cast %30 : vector<1x128x128xbf16> to vector<128x128xbf16>
    %cst_46 = arith.constant dense<0.000000e+00> : vector<128x128xf32>
    %32 = tpu.matmul %29, %31, %cst_46 {dimension_numbers = #tpu.dot_dimension_numbers<[1], [0], [0], [1], [0, 0, 1, 1], [], []>} : vector<128x128xbf16>, vector<128x128xbf16>, vector<128x128xf32> -> vector<128x128xf32>
    %33 = arith.addf %26, %32 : vector<128x128xf32>
    %34 = vector.extract_strided_slice %19 {offsets = [0, 2, 0], sizes = [8, 16, 128], strides = [1, 1, 1]} : vector<8x18x128xf32> to vector<8x16x128xf32>
    %35 = vector.shape_cast %34 : vector<8x16x128xf32> to vector<128x128xf32>
    %36 = arith.truncf %35 : vector<128x128xf32> to vector<128x128xbf16>
    %c2 = arith.constant 2 : index
    %c0_47 = arith.constant 0 : index
    %c0_48 = arith.constant 0 : index
    %37 = vector.load %arg2[%c2, %c0_47, %c0_48] : memref<9x128x128xbf16, #tpu.memory_space<vmem>>, vector<1x128x128xbf16>
    %38 = vector.shape_cast %37 : vector<1x128x128xbf16> to vector<128x128xbf16>
    %cst_49 = arith.constant dense<0.000000e+00> : vector<128x128xf32>
    %39 = tpu.matmul %36, %38, %cst_49 {dimension_numbers = #tpu.dot_dimension_numbers<[1], [0], [0], [1], [0, 0, 1, 1], [], []>} : vector<128x128xbf16>, vector<128x128xbf16>, vector<128x128xf32> -> vector<128x128xf32>
    %40 = arith.addf %33, %39 : vector<128x128xf32>
    %c1_50 = arith.constant 1 : index
    %c0_51 = arith.constant 0 : index
    %c0_52 = arith.constant 0 : index
    %41 = vector.load %arg7[%c1_50, %c0_51, %c0_52] : memref<18x18x128xf32, #tpu.memory_space<vmem>>, vector<8x18x128xf32>
    %42 = vector.extract_strided_slice %41 {offsets = [0, 0, 0], sizes = [8, 16, 128], strides = [1, 1, 1]} : vector<8x18x128xf32> to vector<8x16x128xf32>
    %43 = vector.shape_cast %42 : vector<8x16x128xf32> to vector<128x128xf32>
    %44 = arith.truncf %43 : vector<128x128xf32> to vector<128x128xbf16>
    %c3 = arith.constant 3 : index
    %c0_53 = arith.constant 0 : index
    %c0_54 = arith.constant 0 : index
    %45 = vector.load %arg2[%c3, %c0_53, %c0_54] : memref<9x128x128xbf16, #tpu.memory_space<vmem>>, vector<1x128x128xbf16>
    %46 = vector.shape_cast %45 : vector<1x128x128xbf16> to vector<128x128xbf16>
    %cst_55 = arith.constant dense<0.000000e+00> : vector<128x128xf32>
    %47 = tpu.matmul %44, %46, %cst_55 {dimension_numbers = #tpu.dot_dimension_numbers<[1], [0], [0], [1], [0, 0, 1, 1], [], []>} : vector<128x128xbf16>, vector<128x128xbf16>, vector<128x128xf32> -> vector<128x128xf32>
    %48 = arith.addf %40, %47 : vector<128x128xf32>
    %49 = vector.extract_strided_slice %41 {offsets = [0, 1, 0], sizes = [8, 16, 128], strides = [1, 1, 1]} : vector<8x18x128xf32> to vector<8x16x128xf32>
    %50 = vector.shape_cast %49 : vector<8x16x128xf32> to vector<128x128xf32>
    %51 = arith.truncf %50 : vector<128x128xf32> to vector<128x128xbf16>
    %c4 = arith.constant 4 : index
    %c0_56 = arith.constant 0 : index
    %c0_57 = arith.constant 0 : index
    %52 = vector.load %arg2[%c4, %c0_56, %c0_57] : memref<9x128x128xbf16, #tpu.memory_space<vmem>>, vector<1x128x128xbf16>
    %53 = vector.shape_cast %52 : vector<1x128x128xbf16> to vector<128x128xbf16>
    %cst_58 = arith.constant dense<0.000000e+00> : vector<128x128xf32>
    %54 = tpu.matmul %51, %53, %cst_58 {dimension_numbers = #tpu.dot_dimension_numbers<[1], [0], [0], [1], [0, 0, 1, 1], [], []>} : vector<128x128xbf16>, vector<128x128xbf16>, vector<128x128xf32> -> vector<128x128xf32>
    %55 = arith.addf %48, %54 : vector<128x128xf32>
    %56 = vector.extract_strided_slice %41 {offsets = [0, 2, 0], sizes = [8, 16, 128], strides = [1, 1, 1]} : vector<8x18x128xf32> to vector<8x16x128xf32>
    %57 = vector.shape_cast %56 : vector<8x16x128xf32> to vector<128x128xf32>
    %58 = arith.truncf %57 : vector<128x128xf32> to vector<128x128xbf16>
    %c5 = arith.constant 5 : index
    %c0_59 = arith.constant 0 : index
    %c0_60 = arith.constant 0 : index
    %59 = vector.load %arg2[%c5, %c0_59, %c0_60] : memref<9x128x128xbf16, #tpu.memory_space<vmem>>, vector<1x128x128xbf16>
    %60 = vector.shape_cast %59 : vector<1x128x128xbf16> to vector<128x128xbf16>
    %cst_61 = arith.constant dense<0.000000e+00> : vector<128x128xf32>
    %61 = tpu.matmul %58, %60, %cst_61 {dimension_numbers = #tpu.dot_dimension_numbers<[1], [0], [0], [1], [0, 0, 1, 1], [], []>} : vector<128x128xbf16>, vector<128x128xbf16>, vector<128x128xf32> -> vector<128x128xf32>
    %62 = arith.addf %55, %61 : vector<128x128xf32>
    %c2_62 = arith.constant 2 : index
    %c0_63 = arith.constant 0 : index
    %c0_64 = arith.constant 0 : index
    %63 = vector.load %arg7[%c2_62, %c0_63, %c0_64] : memref<18x18x128xf32, #tpu.memory_space<vmem>>, vector<8x18x128xf32>
    %64 = vector.extract_strided_slice %63 {offsets = [0, 0, 0], sizes = [8, 16, 128], strides = [1, 1, 1]} : vector<8x18x128xf32> to vector<8x16x128xf32>
    %65 = vector.shape_cast %64 : vector<8x16x128xf32> to vector<128x128xf32>
    %66 = arith.truncf %65 : vector<128x128xf32> to vector<128x128xbf16>
    %c6 = arith.constant 6 : index
    %c0_65 = arith.constant 0 : index
    %c0_66 = arith.constant 0 : index
    %67 = vector.load %arg2[%c6, %c0_65, %c0_66] : memref<9x128x128xbf16, #tpu.memory_space<vmem>>, vector<1x128x128xbf16>
    %68 = vector.shape_cast %67 : vector<1x128x128xbf16> to vector<128x128xbf16>
    %cst_67 = arith.constant dense<0.000000e+00> : vector<128x128xf32>
    %69 = tpu.matmul %66, %68, %cst_67 {dimension_numbers = #tpu.dot_dimension_numbers<[1], [0], [0], [1], [0, 0, 1, 1], [], []>} : vector<128x128xbf16>, vector<128x128xbf16>, vector<128x128xf32> -> vector<128x128xf32>
    %70 = arith.addf %62, %69 : vector<128x128xf32>
    %71 = vector.extract_strided_slice %63 {offsets = [0, 1, 0], sizes = [8, 16, 128], strides = [1, 1, 1]} : vector<8x18x128xf32> to vector<8x16x128xf32>
    %72 = vector.shape_cast %71 : vector<8x16x128xf32> to vector<128x128xf32>
    %73 = arith.truncf %72 : vector<128x128xf32> to vector<128x128xbf16>
    %c7 = arith.constant 7 : index
    %c0_68 = arith.constant 0 : index
    %c0_69 = arith.constant 0 : index
    %74 = vector.load %arg2[%c7, %c0_68, %c0_69] : memref<9x128x128xbf16, #tpu.memory_space<vmem>>, vector<1x128x128xbf16>
    %75 = vector.shape_cast %74 : vector<1x128x128xbf16> to vector<128x128xbf16>
    %cst_70 = arith.constant dense<0.000000e+00> : vector<128x128xf32>
    %76 = tpu.matmul %73, %75, %cst_70 {dimension_numbers = #tpu.dot_dimension_numbers<[1], [0], [0], [1], [0, 0, 1, 1], [], []>} : vector<128x128xbf16>, vector<128x128xbf16>, vector<128x128xf32> -> vector<128x128xf32>
    %77 = arith.addf %70, %76 : vector<128x128xf32>
    %78 = vector.extract_strided_slice %63 {offsets = [0, 2, 0], sizes = [8, 16, 128], strides = [1, 1, 1]} : vector<8x18x128xf32> to vector<8x16x128xf32>
    %79 = vector.shape_cast %78 : vector<8x16x128xf32> to vector<128x128xf32>
    %80 = arith.truncf %79 : vector<128x128xf32> to vector<128x128xbf16>
    %c8_71 = arith.constant 8 : index
    %c0_72 = arith.constant 0 : index
    %c0_73 = arith.constant 0 : index
    %81 = vector.load %arg2[%c8_71, %c0_72, %c0_73] : memref<9x128x128xbf16, #tpu.memory_space<vmem>>, vector<1x128x128xbf16>
    %82 = vector.shape_cast %81 : vector<1x128x128xbf16> to vector<128x128xbf16>
    %cst_74 = arith.constant dense<0.000000e+00> : vector<128x128xf32>
    %83 = tpu.matmul %80, %82, %cst_74 {dimension_numbers = #tpu.dot_dimension_numbers<[1], [0], [0], [1], [0, 0, 1, 1], [], []>} : vector<128x128xbf16>, vector<128x128xbf16>, vector<128x128xf32> -> vector<128x128xf32>
    %84 = arith.addf %77, %83 : vector<128x128xf32>
    %cst_75 = arith.constant 0.000000e+00 : f32
    %85 = vector.broadcast %cst_75 : f32 to vector<128x128xf32>
    %86 = arith.maximumf %84, %85 : vector<128x128xf32>
    %87 = vector.shape_cast %86 : vector<128x128xf32> to vector<8x16x128xf32>
    %c1_76 = arith.constant 1 : index
    %c1_77 = arith.constant 1 : index
    %c0_78 = arith.constant 0 : index
    %88 = vector.load %arg8[%c1_76, %c1_77, %c0_78] : memref<18x18x128xf32, #tpu.memory_space<vmem>>, vector<8x16x128xf32>
    tpu.vector_store %arg8[%c1_76, %c1_77, %c0_78], %87 {strides = array<i32>} : memref<18x18x128xf32, #tpu.memory_space<vmem>>, vector<8x16x128xf32>,
    %89 = vector.shape_cast %16 : vector<1x128xf32> to vector<1x128xf32>
    %90 = vector.broadcast %89 : vector<1x128xf32> to vector<128x128xf32>
    %c8_79 = arith.constant 8 : index
    %c0_80 = arith.constant 0 : index
    %c0_81 = arith.constant 0 : index
    %91 = vector.load %arg7[%c8_79, %c0_80, %c0_81] : memref<18x18x128xf32, #tpu.memory_space<vmem>>, vector<8x18x128xf32>
    %92 = vector.extract_strided_slice %91 {offsets = [0, 0, 0], sizes = [8, 16, 128], strides = [1, 1, 1]} : vector<8x18x128xf32> to vector<8x16x128xf32>
    %93 = vector.shape_cast %92 : vector<8x16x128xf32> to vector<128x128xf32>
    %94 = arith.truncf %93 : vector<128x128xf32> to vector<128x128xbf16>
    %c0_82 = arith.constant 0 : index
    %c0_83 = arith.constant 0 : index
    %c0_84 = arith.constant 0 : index
    %95 = vector.load %arg2[%c0_82, %c0_83, %c0_84] : memref<9x128x128xbf16, #tpu.memory_space<vmem>>, vector<1x128x128xbf16>
    %96 = vector.shape_cast %95 : vector<1x128x128xbf16> to vector<128x128xbf16>
    %cst_85 = arith.constant dense<0.000000e+00> : vector<128x128xf32>
    %97 = tpu.matmul %94, %96, %cst_85 {dimension_numbers = #tpu.dot_dimension_numbers<[1], [0], [0], [1], [0, 0, 1, 1], [], []>} : vector<128x128xbf16>, vector<128x128xbf16>, vector<128x128xf32> -> vector<128x128xf32>
    %98 = arith.addf %90, %97 : vector<128x128xf32>
    %99 = vector.extract_strided_slice %91 {offsets = [0, 1, 0], sizes = [8, 16, 128], strides = [1, 1, 1]} : vector<8x18x128xf32> to vector<8x16x128xf32>
    %100 = vector.shape_cast %99 : vector<8x16x128xf32> to vector<128x128xf32>
    %101 = arith.truncf %100 : vector<128x128xf32> to vector<128x128xbf16>
    %c1_86 = arith.constant 1 : index
    %c0_87 = arith.constant 0 : index
    %c0_88 = arith.constant 0 : index
    %102 = vector.load %arg2[%c1_86, %c0_87, %c0_88] : memref<9x128x128xbf16, #tpu.memory_space<vmem>>, vector<1x128x128xbf16>
    %103 = vector.shape_cast %102 : vector<1x128x128xbf16> to vector<128x128xbf16>
    %cst_89 = arith.constant dense<0.000000e+00> : vector<128x128xf32>
    %104 = tpu.matmul %101, %103, %cst_89 {dimension_numbers = #tpu.dot_dimension_numbers<[1], [0], [0], [1], [0, 0, 1, 1], [], []>} : vector<128x128xbf16>, vector<128x128xbf16>, vector<128x128xf32> -> vector<128x128xf32>
    %105 = arith.addf %98, %104 : vector<128x128xf32>
    %106 = vector.extract_strided_slice %91 {offsets = [0, 2, 0], sizes = [8, 16, 128], strides = [1, 1, 1]} : vector<8x18x128xf32> to vector<8x16x128xf32>
    %107 = vector.shape_cast %106 : vector<8x16x128xf32> to vector<128x128xf32>
    %108 = arith.truncf %107 : vector<128x128xf32> to vector<128x128xbf16>
    %c2_90 = arith.constant 2 : index
    %c0_91 = arith.constant 0 : index
    %c0_92 = arith.constant 0 : index
    %109 = vector.load %arg2[%c2_90, %c0_91, %c0_92] : memref<9x128x128xbf16, #tpu.memory_space<vmem>>, vector<1x128x128xbf16>
    %110 = vector.shape_cast %109 : vector<1x128x128xbf16> to vector<128x128xbf16>
    %cst_93 = arith.constant dense<0.000000e+00> : vector<128x128xf32>
    %111 = tpu.matmul %108, %110, %cst_93 {dimension_numbers = #tpu.dot_dimension_numbers<[1], [0], [0], [1], [0, 0, 1, 1], [], []>} : vector<128x128xbf16>, vector<128x128xbf16>, vector<128x128xf32> -> vector<128x128xf32>
    %112 = arith.addf %105, %111 : vector<128x128xf32>
    %c9_94 = arith.constant 9 : index
    %c0_95 = arith.constant 0 : index
    %c0_96 = arith.constant 0 : index
    %113 = vector.load %arg7[%c9_94, %c0_95, %c0_96] : memref<18x18x128xf32, #tpu.memory_space<vmem>>, vector<8x18x128xf32>
    %114 = vector.extract_strided_slice %113 {offsets = [0, 0, 0], sizes = [8, 16, 128], strides = [1, 1, 1]} : vector<8x18x128xf32> to vector<8x16x128xf32>
    %115 = vector.shape_cast %114 : vector<8x16x128xf32> to vector<128x128xf32>
    %116 = arith.truncf %115 : vector<128x128xf32> to vector<128x128xbf16>
    %c3_97 = arith.constant 3 : index
    %c0_98 = arith.constant 0 : index
    %c0_99 = arith.constant 0 : index
    %117 = vector.load %arg2[%c3_97, %c0_98, %c0_99] : memref<9x128x128xbf16, #tpu.memory_space<vmem>>, vector<1x128x128xbf16>
    %118 = vector.shape_cast %117 : vector<1x128x128xbf16> to vector<128x128xbf16>
    %cst_100 = arith.constant dense<0.000000e+00> : vector<128x128xf32>
    %119 = tpu.matmul %116, %118, %cst_100 {dimension_numbers = #tpu.dot_dimension_numbers<[1], [0], [0], [1], [0, 0, 1, 1], [], []>} : vector<128x128xbf16>, vector<128x128xbf16>, vector<128x128xf32> -> vector<128x128xf32>
    %120 = arith.addf %112, %119 : vector<128x128xf32>
    %121 = vector.extract_strided_slice %113 {offsets = [0, 1, 0], sizes = [8, 16, 128], strides = [1, 1, 1]} : vector<8x18x128xf32> to vector<8x16x128xf32>
    %122 = vector.shape_cast %121 : vector<8x16x128xf32> to vector<128x128xf32>
    %123 = arith.truncf %122 : vector<128x128xf32> to vector<128x128xbf16>
    %c4_101 = arith.constant 4 : index
    %c0_102 = arith.constant 0 : index
    %c0_103 = arith.constant 0 : index
    %124 = vector.load %arg2[%c4_101, %c0_102, %c0_103] : memref<9x128x128xbf16, #tpu.memory_space<vmem>>, vector<1x128x128xbf16>
    %125 = vector.shape_cast %124 : vector<1x128x128xbf16> to vector<128x128xbf16>
    %cst_104 = arith.constant dense<0.000000e+00> : vector<128x128xf32>
    %126 = tpu.matmul %123, %125, %cst_104 {dimension_numbers = #tpu.dot_dimension_numbers<[1], [0], [0], [1], [0, 0, 1, 1], [], []>} : vector<128x128xbf16>, vector<128x128xbf16>, vector<128x128xf32> -> vector<128x128xf32>
    %127 = arith.addf %120, %126 : vector<128x128xf32>
    %128 = vector.extract_strided_slice %113 {offsets = [0, 2, 0], sizes = [8, 16, 128], strides = [1, 1, 1]} : vector<8x18x128xf32> to vector<8x16x128xf32>
    %129 = vector.shape_cast %128 : vector<8x16x128xf32> to vector<128x128xf32>
    %130 = arith.truncf %129 : vector<128x128xf32> to vector<128x128xbf16>
    %c5_105 = arith.constant 5 : index
    %c0_106 = arith.constant 0 : index
    %c0_107 = arith.constant 0 : index
    %131 = vector.load %arg2[%c5_105, %c0_106, %c0_107] : memref<9x128x128xbf16, #tpu.memory_space<vmem>>, vector<1x128x128xbf16>
    %132 = vector.shape_cast %131 : vector<1x128x128xbf16> to vector<128x128xbf16>
    %cst_108 = arith.constant dense<0.000000e+00> : vector<128x128xf32>
    %133 = tpu.matmul %130, %132, %cst_108 {dimension_numbers = #tpu.dot_dimension_numbers<[1], [0], [0], [1], [0, 0, 1, 1], [], []>} : vector<128x128xbf16>, vector<128x128xbf16>, vector<128x128xf32> -> vector<128x128xf32>
    %134 = arith.addf %127, %133 : vector<128x128xf32>
    %c10 = arith.constant 10 : index
    %c0_109 = arith.constant 0 : index
    %c0_110 = arith.constant 0 : index
    %135 = vector.load %arg7[%c10, %c0_109, %c0_110] : memref<18x18x128xf32, #tpu.memory_space<vmem>>, vector<8x18x128xf32>
    %136 = vector.extract_strided_slice %135 {offsets = [0, 0, 0], sizes = [8, 16, 128], strides = [1, 1, 1]} : vector<8x18x128xf32> to vector<8x16x128xf32>
    %137 = vector.shape_cast %136 : vector<8x16x128xf32> to vector<128x128xf32>
    %138 = arith.truncf %137 : vector<128x128xf32> to vector<128x128xbf16>
    %c6_111 = arith.constant 6 : index
    %c0_112 = arith.constant 0 : index
    %c0_113 = arith.constant 0 : index
    %139 = vector.load %arg2[%c6_111, %c0_112, %c0_113] : memref<9x128x128xbf16, #tpu.memory_space<vmem>>, vector<1x128x128xbf16>
    %140 = vector.shape_cast %139 : vector<1x128x128xbf16> to vector<128x128xbf16>
    %cst_114 = arith.constant dense<0.000000e+00> : vector<128x128xf32>
    %141 = tpu.matmul %138, %140, %cst_114 {dimension_numbers = #tpu.dot_dimension_numbers<[1], [0], [0], [1], [0, 0, 1, 1], [], []>} : vector<128x128xbf16>, vector<128x128xbf16>, vector<128x128xf32> -> vector<128x128xf32>
    %142 = arith.addf %134, %141 : vector<128x128xf32>
    %143 = vector.extract_strided_slice %135 {offsets = [0, 1, 0], sizes = [8, 16, 128], strides = [1, 1, 1]} : vector<8x18x128xf32> to vector<8x16x128xf32>
    %144 = vector.shape_cast %143 : vector<8x16x128xf32> to vector<128x128xf32>
    %145 = arith.truncf %144 : vector<128x128xf32> to vector<128x128xbf16>
    %c7_115 = arith.constant 7 : index
    %c0_116 = arith.constant 0 : index
    %c0_117 = arith.constant 0 : index
    %146 = vector.load %arg2[%c7_115, %c0_116, %c0_117] : memref<9x128x128xbf16, #tpu.memory_space<vmem>>, vector<1x128x128xbf16>
    %147 = vector.shape_cast %146 : vector<1x128x128xbf16> to vector<128x128xbf16>
    %cst_118 = arith.constant dense<0.000000e+00> : vector<128x128xf32>
    %148 = tpu.matmul %145, %147, %cst_118 {dimension_numbers = #tpu.dot_dimension_numbers<[1], [0], [0], [1], [0, 0, 1, 1], [], []>} : vector<128x128xbf16>, vector<128x128xbf16>, vector<128x128xf32> -> vector<128x128xf32>
    %149 = arith.addf %142, %148 : vector<128x128xf32>
    %150 = vector.extract_strided_slice %135 {offsets = [0, 2, 0], sizes = [8, 16, 128], strides = [1, 1, 1]} : vector<8x18x128xf32> to vector<8x16x128xf32>
    %151 = vector.shape_cast %150 : vector<8x16x128xf32> to vector<128x128xf32>
    %152 = arith.truncf %151 : vector<128x128xf32> to vector<128x128xbf16>
    %c8_119 = arith.constant 8 : index
    %c0_120 = arith.constant 0 : index
    %c0_121 = arith.constant 0 : index
    %153 = vector.load %arg2[%c8_119, %c0_120, %c0_121] : memref<9x128x128xbf16, #tpu.memory_space<vmem>>, vector<1x128x128xbf16>
    %154 = vector.shape_cast %153 : vector<1x128x128xbf16> to vector<128x128xbf16>
    %cst_122 = arith.constant dense<0.000000e+00> : vector<128x128xf32>
    %155 = tpu.matmul %152, %154, %cst_122 {dimension_numbers = #tpu.dot_dimension_numbers<[1], [0], [0], [1], [0, 0, 1, 1], [], []>} : vector<128x128xbf16>, vector<128x128xbf16>, vector<128x128xf32> -> vector<128x128xf32>
    %156 = arith.addf %149, %155 : vector<128x128xf32>
    %cst_123 = arith.constant 0.000000e+00 : f32
    %157 = vector.broadcast %cst_123 : f32 to vector<128x128xf32>
    %158 = arith.maximumf %156, %157 : vector<128x128xf32>
    %159 = vector.shape_cast %158 : vector<128x128xf32> to vector<8x16x128xf32>
    %c9_124 = arith.constant 9 : index
    %c1_125 = arith.constant 1 : index
    %c0_126 = arith.constant 0 : index
    %160 = vector.load %arg8[%c9_124, %c1_125, %c0_126] : memref<18x18x128xf32, #tpu.memory_space<vmem>>, vector<8x16x128xf32>
    tpu.vector_store %arg8[%c9_124, %c1_125, %c0_126], %159 {strides = array<i32>} : memref<18x18x128xf32, #tpu.memory_space<vmem>>, vector<8x16x128xf32>,
    %c0_127 = arith.constant 0 : index
    %c0_128 = arith.constant 0 : index
    %161 = vector.load %arg5[%c0_127, %c0_128] : memref<1x128xf32, #tpu.memory_space<vmem>>, vector<1x128xf32>
    %162 = vector.shape_cast %161 : vector<1x128xf32> to vector<1x128xf32>
    %163 = vector.broadcast %162 : vector<1x128xf32> to vector<128x128xf32>
    %c0_129 = arith.constant 0 : index
    %c0_130 = arith.constant 0 : index
    %c0_131 = arith.constant 0 : index
    %164 = vector.load %arg8[%c0_129, %c0_130, %c0_131] : memref<18x18x128xf32, #tpu.memory_space<vmem>>, vector<8x18x128xf32>
    %165 = vector.extract_strided_slice %164 {offsets = [0, 0, 0], sizes = [8, 16, 128], strides = [1, 1, 1]} : vector<8x18x128xf32> to vector<8x16x128xf32>
    %166 = vector.shape_cast %165 : vector<8x16x128xf32> to vector<128x128xf32>
    %167 = arith.truncf %166 : vector<128x128xf32> to vector<128x128xbf16>
    %c0_132 = arith.constant 0 : index
    %c0_133 = arith.constant 0 : index
    %c0_134 = arith.constant 0 : index
    %168 = vector.load %arg4[%c0_132, %c0_133, %c0_134] : memref<9x128x128xbf16, #tpu.memory_space<vmem>>, vector<1x128x128xbf16>
    %169 = vector.shape_cast %168 : vector<1x128x128xbf16> to vector<128x128xbf16>
    %cst_135 = arith.constant dense<0.000000e+00> : vector<128x128xf32>
    %170 = tpu.matmul %167, %169, %cst_135 {dimension_numbers = #tpu.dot_dimension_numbers<[1], [0], [0], [1], [0, 0, 1, 1], [], []>} : vector<128x128xbf16>, vector<128x128xbf16>, vector<128x128xf32> -> vector<128x128xf32>
    %171 = arith.addf %163, %170 : vector<128x128xf32>
    %172 = vector.extract_strided_slice %164 {offsets = [0, 1, 0], sizes = [8, 16, 128], strides = [1, 1, 1]} : vector<8x18x128xf32> to vector<8x16x128xf32>
    %173 = vector.shape_cast %172 : vector<8x16x128xf32> to vector<128x128xf32>
    %174 = arith.truncf %173 : vector<128x128xf32> to vector<128x128xbf16>
    %c1_136 = arith.constant 1 : index
    %c0_137 = arith.constant 0 : index
    %c0_138 = arith.constant 0 : index
    %175 = vector.load %arg4[%c1_136, %c0_137, %c0_138] : memref<9x128x128xbf16, #tpu.memory_space<vmem>>, vector<1x128x128xbf16>
    %176 = vector.shape_cast %175 : vector<1x128x128xbf16> to vector<128x128xbf16>
    %cst_139 = arith.constant dense<0.000000e+00> : vector<128x128xf32>
    %177 = tpu.matmul %174, %176, %cst_139 {dimension_numbers = #tpu.dot_dimension_numbers<[1], [0], [0], [1], [0, 0, 1, 1], [], []>} : vector<128x128xbf16>, vector<128x128xbf16>, vector<128x128xf32> -> vector<128x128xf32>
    %178 = arith.addf %171, %177 : vector<128x128xf32>
    %179 = vector.extract_strided_slice %164 {offsets = [0, 2, 0], sizes = [8, 16, 128], strides = [1, 1, 1]} : vector<8x18x128xf32> to vector<8x16x128xf32>
    %180 = vector.shape_cast %179 : vector<8x16x128xf32> to vector<128x128xf32>
    %181 = arith.truncf %180 : vector<128x128xf32> to vector<128x128xbf16>
    %c2_140 = arith.constant 2 : index
    %c0_141 = arith.constant 0 : index
    %c0_142 = arith.constant 0 : index
    %182 = vector.load %arg4[%c2_140, %c0_141, %c0_142] : memref<9x128x128xbf16, #tpu.memory_space<vmem>>, vector<1x128x128xbf16>
    %183 = vector.shape_cast %182 : vector<1x128x128xbf16> to vector<128x128xbf16>
    %cst_143 = arith.constant dense<0.000000e+00> : vector<128x128xf32>
    %184 = tpu.matmul %181, %183, %cst_143 {dimension_numbers = #tpu.dot_dimension_numbers<[1], [0], [0], [1], [0, 0, 1, 1], [], []>} : vector<128x128xbf16>, vector<128x128xbf16>, vector<128x128xf32> -> vector<128x128xf32>
    %185 = arith.addf %178, %184 : vector<128x128xf32>
    %c1_144 = arith.constant 1 : index
    %c0_145 = arith.constant 0 : index
    %c0_146 = arith.constant 0 : index
    %186 = vector.load %arg8[%c1_144, %c0_145, %c0_146] : memref<18x18x128xf32, #tpu.memory_space<vmem>>, vector<8x18x128xf32>
    %187 = vector.extract_strided_slice %186 {offsets = [0, 0, 0], sizes = [8, 16, 128], strides = [1, 1, 1]} : vector<8x18x128xf32> to vector<8x16x128xf32>
    %188 = vector.shape_cast %187 : vector<8x16x128xf32> to vector<128x128xf32>
    %189 = arith.truncf %188 : vector<128x128xf32> to vector<128x128xbf16>
    %c3_147 = arith.constant 3 : index
    %c0_148 = arith.constant 0 : index
    %c0_149 = arith.constant 0 : index
    %190 = vector.load %arg4[%c3_147, %c0_148, %c0_149] : memref<9x128x128xbf16, #tpu.memory_space<vmem>>, vector<1x128x128xbf16>
    %191 = vector.shape_cast %190 : vector<1x128x128xbf16> to vector<128x128xbf16>
    %cst_150 = arith.constant dense<0.000000e+00> : vector<128x128xf32>
    %192 = tpu.matmul %189, %191, %cst_150 {dimension_numbers = #tpu.dot_dimension_numbers<[1], [0], [0], [1], [0, 0, 1, 1], [], []>} : vector<128x128xbf16>, vector<128x128xbf16>, vector<128x128xf32> -> vector<128x128xf32>
    %193 = arith.addf %185, %192 : vector<128x128xf32>
    %194 = vector.extract_strided_slice %186 {offsets = [0, 1, 0], sizes = [8, 16, 128], strides = [1, 1, 1]} : vector<8x18x128xf32> to vector<8x16x128xf32>
    %195 = vector.shape_cast %194 : vector<8x16x128xf32> to vector<128x128xf32>
    %196 = arith.truncf %195 : vector<128x128xf32> to vector<128x128xbf16>
    %c4_151 = arith.constant 4 : index
    %c0_152 = arith.constant 0 : index
    %c0_153 = arith.constant 0 : index
    %197 = vector.load %arg4[%c4_151, %c0_152, %c0_153] : memref<9x128x128xbf16, #tpu.memory_space<vmem>>, vector<1x128x128xbf16>
    %198 = vector.shape_cast %197 : vector<1x128x128xbf16> to vector<128x128xbf16>
    %cst_154 = arith.constant dense<0.000000e+00> : vector<128x128xf32>
    %199 = tpu.matmul %196, %198, %cst_154 {dimension_numbers = #tpu.dot_dimension_numbers<[1], [0], [0], [1], [0, 0, 1, 1], [], []>} : vector<128x128xbf16>, vector<128x128xbf16>, vector<128x128xf32> -> vector<128x128xf32>
    %200 = arith.addf %193, %199 : vector<128x128xf32>
    %201 = vector.extract_strided_slice %186 {offsets = [0, 2, 0], sizes = [8, 16, 128], strides = [1, 1, 1]} : vector<8x18x128xf32> to vector<8x16x128xf32>
    %202 = vector.shape_cast %201 : vector<8x16x128xf32> to vector<128x128xf32>
    %203 = arith.truncf %202 : vector<128x128xf32> to vector<128x128xbf16>
    %c5_155 = arith.constant 5 : index
    %c0_156 = arith.constant 0 : index
    %c0_157 = arith.constant 0 : index
    %204 = vector.load %arg4[%c5_155, %c0_156, %c0_157] : memref<9x128x128xbf16, #tpu.memory_space<vmem>>, vector<1x128x128xbf16>
    %205 = vector.shape_cast %204 : vector<1x128x128xbf16> to vector<128x128xbf16>
    %cst_158 = arith.constant dense<0.000000e+00> : vector<128x128xf32>
    %206 = tpu.matmul %203, %205, %cst_158 {dimension_numbers = #tpu.dot_dimension_numbers<[1], [0], [0], [1], [0, 0, 1, 1], [], []>} : vector<128x128xbf16>, vector<128x128xbf16>, vector<128x128xf32> -> vector<128x128xf32>
    %207 = arith.addf %200, %206 : vector<128x128xf32>
    %c2_159 = arith.constant 2 : index
    %c0_160 = arith.constant 0 : index
    %c0_161 = arith.constant 0 : index
    %208 = vector.load %arg8[%c2_159, %c0_160, %c0_161] : memref<18x18x128xf32, #tpu.memory_space<vmem>>, vector<8x18x128xf32>
    %209 = vector.extract_strided_slice %208 {offsets = [0, 0, 0], sizes = [8, 16, 128], strides = [1, 1, 1]} : vector<8x18x128xf32> to vector<8x16x128xf32>
    %210 = vector.shape_cast %209 : vector<8x16x128xf32> to vector<128x128xf32>
    %211 = arith.truncf %210 : vector<128x128xf32> to vector<128x128xbf16>
    %c6_162 = arith.constant 6 : index
    %c0_163 = arith.constant 0 : index
    %c0_164 = arith.constant 0 : index
    %212 = vector.load %arg4[%c6_162, %c0_163, %c0_164] : memref<9x128x128xbf16, #tpu.memory_space<vmem>>, vector<1x128x128xbf16>
    %213 = vector.shape_cast %212 : vector<1x128x128xbf16> to vector<128x128xbf16>
    %cst_165 = arith.constant dense<0.000000e+00> : vector<128x128xf32>
    %214 = tpu.matmul %211, %213, %cst_165 {dimension_numbers = #tpu.dot_dimension_numbers<[1], [0], [0], [1], [0, 0, 1, 1], [], []>} : vector<128x128xbf16>, vector<128x128xbf16>, vector<128x128xf32> -> vector<128x128xf32>
    %215 = arith.addf %207, %214 : vector<128x128xf32>
    %216 = vector.extract_strided_slice %208 {offsets = [0, 1, 0], sizes = [8, 16, 128], strides = [1, 1, 1]} : vector<8x18x128xf32> to vector<8x16x128xf32>
    %217 = vector.shape_cast %216 : vector<8x16x128xf32> to vector<128x128xf32>
    %218 = arith.truncf %217 : vector<128x128xf32> to vector<128x128xbf16>
    %c7_166 = arith.constant 7 : index
    %c0_167 = arith.constant 0 : index
    %c0_168 = arith.constant 0 : index
    %219 = vector.load %arg4[%c7_166, %c0_167, %c0_168] : memref<9x128x128xbf16, #tpu.memory_space<vmem>>, vector<1x128x128xbf16>
    %220 = vector.shape_cast %219 : vector<1x128x128xbf16> to vector<128x128xbf16>
    %cst_169 = arith.constant dense<0.000000e+00> : vector<128x128xf32>
    %221 = tpu.matmul %218, %220, %cst_169 {dimension_numbers = #tpu.dot_dimension_numbers<[1], [0], [0], [1], [0, 0, 1, 1], [], []>} : vector<128x128xbf16>, vector<128x128xbf16>, vector<128x128xf32> -> vector<128x128xf32>
    %222 = arith.addf %215, %221 : vector<128x128xf32>
    %223 = vector.extract_strided_slice %208 {offsets = [0, 2, 0], sizes = [8, 16, 128], strides = [1, 1, 1]} : vector<8x18x128xf32> to vector<8x16x128xf32>
    %224 = vector.shape_cast %223 : vector<8x16x128xf32> to vector<128x128xf32>
    %225 = arith.truncf %224 : vector<128x128xf32> to vector<128x128xbf16>
    %c8_170 = arith.constant 8 : index
    %c0_171 = arith.constant 0 : index
    %c0_172 = arith.constant 0 : index
    %226 = vector.load %arg4[%c8_170, %c0_171, %c0_172] : memref<9x128x128xbf16, #tpu.memory_space<vmem>>, vector<1x128x128xbf16>
    %227 = vector.shape_cast %226 : vector<1x128x128xbf16> to vector<128x128xbf16>
    %cst_173 = arith.constant dense<0.000000e+00> : vector<128x128xf32>
    %228 = tpu.matmul %225, %227, %cst_173 {dimension_numbers = #tpu.dot_dimension_numbers<[1], [0], [0], [1], [0, 0, 1, 1], [], []>} : vector<128x128xbf16>, vector<128x128xbf16>, vector<128x128xf32> -> vector<128x128xf32>
    %229 = arith.addf %222, %228 : vector<128x128xf32>
    %c0_174 = arith.constant 0 : index
    %c0_175 = arith.constant 0 : index
    %c0_176 = arith.constant 0 : index
    %c0_177 = arith.constant 0 : index
    %230 = vector.load %arg1[%c0_174, %c0_175, %c0_176, %c0_177] : memref<1x16x16x128xf32, #tpu.memory_space<vmem>>, vector<1x8x16x128xf32>
    %231 = vector.shape_cast %230 : vector<1x8x16x128xf32> to vector<128x128xf32>
    %232 = arith.addf %229, %231 : vector<128x128xf32>
    %233 = vector.shape_cast %232 : vector<128x128xf32> to vector<1x8x16x128xf32>
    %c0_178 = arith.constant 0 : index
    %c0_179 = arith.constant 0 : index
    %c0_180 = arith.constant 0 : index
    %c0_181 = arith.constant 0 : index
    %234 = vector.load %arg6[%c0_178, %c0_179, %c0_180, %c0_181] : memref<1x16x16x128xf32, #tpu.memory_space<vmem>>, vector<1x8x16x128xf32>
    tpu.vector_store %arg6[%c0_178, %c0_179, %c0_180, %c0_181], %233 {strides = array<i32>} : memref<1x16x16x128xf32, #tpu.memory_space<vmem>>, vector<1x8x16x128xf32>,
    %235 = vector.shape_cast %161 : vector<1x128xf32> to vector<1x128xf32>
    %236 = vector.broadcast %235 : vector<1x128xf32> to vector<128x128xf32>
    %c8_182 = arith.constant 8 : index
    %c0_183 = arith.constant 0 : index
    %c0_184 = arith.constant 0 : index
    %237 = vector.load %arg8[%c8_182, %c0_183, %c0_184] : memref<18x18x128xf32, #tpu.memory_space<vmem>>, vector<8x18x128xf32>
    %238 = vector.extract_strided_slice %237 {offsets = [0, 0, 0], sizes = [8, 16, 128], strides = [1, 1, 1]} : vector<8x18x128xf32> to vector<8x16x128xf32>
    %239 = vector.shape_cast %238 : vector<8x16x128xf32> to vector<128x128xf32>
    %240 = arith.truncf %239 : vector<128x128xf32> to vector<128x128xbf16>
    %c0_185 = arith.constant 0 : index
    %c0_186 = arith.constant 0 : index
    %c0_187 = arith.constant 0 : index
    %241 = vector.load %arg4[%c0_185, %c0_186, %c0_187] : memref<9x128x128xbf16, #tpu.memory_space<vmem>>, vector<1x128x128xbf16>
    %242 = vector.shape_cast %241 : vector<1x128x128xbf16> to vector<128x128xbf16>
    %cst_188 = arith.constant dense<0.000000e+00> : vector<128x128xf32>
    %243 = tpu.matmul %240, %242, %cst_188 {dimension_numbers = #tpu.dot_dimension_numbers<[1], [0], [0], [1], [0, 0, 1, 1], [], []>} : vector<128x128xbf16>, vector<128x128xbf16>, vector<128x128xf32> -> vector<128x128xf32>
    %244 = arith.addf %236, %243 : vector<128x128xf32>
    %245 = vector.extract_strided_slice %237 {offsets = [0, 1, 0], sizes = [8, 16, 128], strides = [1, 1, 1]} : vector<8x18x128xf32> to vector<8x16x128xf32>
    %246 = vector.shape_cast %245 : vector<8x16x128xf32> to vector<128x128xf32>
    %247 = arith.truncf %246 : vector<128x128xf32> to vector<128x128xbf16>
    %c1_189 = arith.constant 1 : index
    %c0_190 = arith.constant 0 : index
    %c0_191 = arith.constant 0 : index
    %248 = vector.load %arg4[%c1_189, %c0_190, %c0_191] : memref<9x128x128xbf16, #tpu.memory_space<vmem>>, vector<1x128x128xbf16>
    %249 = vector.shape_cast %248 : vector<1x128x128xbf16> to vector<128x128xbf16>
    %cst_192 = arith.constant dense<0.000000e+00> : vector<128x128xf32>
    %250 = tpu.matmul %247, %249, %cst_192 {dimension_numbers = #tpu.dot_dimension_numbers<[1], [0], [0], [1], [0, 0, 1, 1], [], []>} : vector<128x128xbf16>, vector<128x128xbf16>, vector<128x128xf32> -> vector<128x128xf32>
    %251 = arith.addf %244, %250 : vector<128x128xf32>
    %252 = vector.extract_strided_slice %237 {offsets = [0, 2, 0], sizes = [8, 16, 128], strides = [1, 1, 1]} : vector<8x18x128xf32> to vector<8x16x128xf32>
    %253 = vector.shape_cast %252 : vector<8x16x128xf32> to vector<128x128xf32>
    %254 = arith.truncf %253 : vector<128x128xf32> to vector<128x128xbf16>
    %c2_193 = arith.constant 2 : index
    %c0_194 = arith.constant 0 : index
    %c0_195 = arith.constant 0 : index
    %255 = vector.load %arg4[%c2_193, %c0_194, %c0_195] : memref<9x128x128xbf16, #tpu.memory_space<vmem>>, vector<1x128x128xbf16>
    %256 = vector.shape_cast %255 : vector<1x128x128xbf16> to vector<128x128xbf16>
    %cst_196 = arith.constant dense<0.000000e+00> : vector<128x128xf32>
    %257 = tpu.matmul %254, %256, %cst_196 {dimension_numbers = #tpu.dot_dimension_numbers<[1], [0], [0], [1], [0, 0, 1, 1], [], []>} : vector<128x128xbf16>, vector<128x128xbf16>, vector<128x128xf32> -> vector<128x128xf32>
    %258 = arith.addf %251, %257 : vector<128x128xf32>
    %c9_197 = arith.constant 9 : index
    %c0_198 = arith.constant 0 : index
    %c0_199 = arith.constant 0 : index
    %259 = vector.load %arg8[%c9_197, %c0_198, %c0_199] : memref<18x18x128xf32, #tpu.memory_space<vmem>>, vector<8x18x128xf32>
    %260 = vector.extract_strided_slice %259 {offsets = [0, 0, 0], sizes = [8, 16, 128], strides = [1, 1, 1]} : vector<8x18x128xf32> to vector<8x16x128xf32>
    %261 = vector.shape_cast %260 : vector<8x16x128xf32> to vector<128x128xf32>
    %262 = arith.truncf %261 : vector<128x128xf32> to vector<128x128xbf16>
    %c3_200 = arith.constant 3 : index
    %c0_201 = arith.constant 0 : index
    %c0_202 = arith.constant 0 : index
    %263 = vector.load %arg4[%c3_200, %c0_201, %c0_202] : memref<9x128x128xbf16, #tpu.memory_space<vmem>>, vector<1x128x128xbf16>
    %264 = vector.shape_cast %263 : vector<1x128x128xbf16> to vector<128x128xbf16>
    %cst_203 = arith.constant dense<0.000000e+00> : vector<128x128xf32>
    %265 = tpu.matmul %262, %264, %cst_203 {dimension_numbers = #tpu.dot_dimension_numbers<[1], [0], [0], [1], [0, 0, 1, 1], [], []>} : vector<128x128xbf16>, vector<128x128xbf16>, vector<128x128xf32> -> vector<128x128xf32>
    %266 = arith.addf %258, %265 : vector<128x128xf32>
    %267 = vector.extract_strided_slice %259 {offsets = [0, 1, 0], sizes = [8, 16, 128], strides = [1, 1, 1]} : vector<8x18x128xf32> to vector<8x16x128xf32>
    %268 = vector.shape_cast %267 : vector<8x16x128xf32> to vector<128x128xf32>
    %269 = arith.truncf %268 : vector<128x128xf32> to vector<128x128xbf16>
    %c4_204 = arith.constant 4 : index
    %c0_205 = arith.constant 0 : index
    %c0_206 = arith.constant 0 : index
    %270 = vector.load %arg4[%c4_204, %c0_205, %c0_206] : memref<9x128x128xbf16, #tpu.memory_space<vmem>>, vector<1x128x128xbf16>
    %271 = vector.shape_cast %270 : vector<1x128x128xbf16> to vector<128x128xbf16>
    %cst_207 = arith.constant dense<0.000000e+00> : vector<128x128xf32>
    %272 = tpu.matmul %269, %271, %cst_207 {dimension_numbers = #tpu.dot_dimension_numbers<[1], [0], [0], [1], [0, 0, 1, 1], [], []>} : vector<128x128xbf16>, vector<128x128xbf16>, vector<128x128xf32> -> vector<128x128xf32>
    %273 = arith.addf %266, %272 : vector<128x128xf32>
    %274 = vector.extract_strided_slice %259 {offsets = [0, 2, 0], sizes = [8, 16, 128], strides = [1, 1, 1]} : vector<8x18x128xf32> to vector<8x16x128xf32>
    %275 = vector.shape_cast %274 : vector<8x16x128xf32> to vector<128x128xf32>
    %276 = arith.truncf %275 : vector<128x128xf32> to vector<128x128xbf16>
    %c5_208 = arith.constant 5 : index
    %c0_209 = arith.constant 0 : index
    %c0_210 = arith.constant 0 : index
    %277 = vector.load %arg4[%c5_208, %c0_209, %c0_210] : memref<9x128x128xbf16, #tpu.memory_space<vmem>>, vector<1x128x128xbf16>
    %278 = vector.shape_cast %277 : vector<1x128x128xbf16> to vector<128x128xbf16>
    %cst_211 = arith.constant dense<0.000000e+00> : vector<128x128xf32>
    %279 = tpu.matmul %276, %278, %cst_211 {dimension_numbers = #tpu.dot_dimension_numbers<[1], [0], [0], [1], [0, 0, 1, 1], [], []>} : vector<128x128xbf16>, vector<128x128xbf16>, vector<128x128xf32> -> vector<128x128xf32>
    %280 = arith.addf %273, %279 : vector<128x128xf32>
    %c10_212 = arith.constant 10 : index
    %c0_213 = arith.constant 0 : index
    %c0_214 = arith.constant 0 : index
    %281 = vector.load %arg8[%c10_212, %c0_213, %c0_214] : memref<18x18x128xf32, #tpu.memory_space<vmem>>, vector<8x18x128xf32>
    %282 = vector.extract_strided_slice %281 {offsets = [0, 0, 0], sizes = [8, 16, 128], strides = [1, 1, 1]} : vector<8x18x128xf32> to vector<8x16x128xf32>
    %283 = vector.shape_cast %282 : vector<8x16x128xf32> to vector<128x128xf32>
    %284 = arith.truncf %283 : vector<128x128xf32> to vector<128x128xbf16>
    %c6_215 = arith.constant 6 : index
    %c0_216 = arith.constant 0 : index
    %c0_217 = arith.constant 0 : index
    %285 = vector.load %arg4[%c6_215, %c0_216, %c0_217] : memref<9x128x128xbf16, #tpu.memory_space<vmem>>, vector<1x128x128xbf16>
    %286 = vector.shape_cast %285 : vector<1x128x128xbf16> to vector<128x128xbf16>
    %cst_218 = arith.constant dense<0.000000e+00> : vector<128x128xf32>
    %287 = tpu.matmul %284, %286, %cst_218 {dimension_numbers = #tpu.dot_dimension_numbers<[1], [0], [0], [1], [0, 0, 1, 1], [], []>} : vector<128x128xbf16>, vector<128x128xbf16>, vector<128x128xf32> -> vector<128x128xf32>
    %288 = arith.addf %280, %287 : vector<128x128xf32>
    %289 = vector.extract_strided_slice %281 {offsets = [0, 1, 0], sizes = [8, 16, 128], strides = [1, 1, 1]} : vector<8x18x128xf32> to vector<8x16x128xf32>
    %290 = vector.shape_cast %289 : vector<8x16x128xf32> to vector<128x128xf32>
    %291 = arith.truncf %290 : vector<128x128xf32> to vector<128x128xbf16>
    %c7_219 = arith.constant 7 : index
    %c0_220 = arith.constant 0 : index
    %c0_221 = arith.constant 0 : index
    %292 = vector.load %arg4[%c7_219, %c0_220, %c0_221] : memref<9x128x128xbf16, #tpu.memory_space<vmem>>, vector<1x128x128xbf16>
    %293 = vector.shape_cast %292 : vector<1x128x128xbf16> to vector<128x128xbf16>
    %cst_222 = arith.constant dense<0.000000e+00> : vector<128x128xf32>
    %294 = tpu.matmul %291, %293, %cst_222 {dimension_numbers = #tpu.dot_dimension_numbers<[1], [0], [0], [1], [0, 0, 1, 1], [], []>} : vector<128x128xbf16>, vector<128x128xbf16>, vector<128x128xf32> -> vector<128x128xf32>
    %295 = arith.addf %288, %294 : vector<128x128xf32>
    %296 = vector.extract_strided_slice %281 {offsets = [0, 2, 0], sizes = [8, 16, 128], strides = [1, 1, 1]} : vector<8x18x128xf32> to vector<8x16x128xf32>
    %297 = vector.shape_cast %296 : vector<8x16x128xf32> to vector<128x128xf32>
    %298 = arith.truncf %297 : vector<128x128xf32> to vector<128x128xbf16>
    %c8_223 = arith.constant 8 : index
    %c0_224 = arith.constant 0 : index
    %c0_225 = arith.constant 0 : index
    %299 = vector.load %arg4[%c8_223, %c0_224, %c0_225] : memref<9x128x128xbf16, #tpu.memory_space<vmem>>, vector<1x128x128xbf16>
    %300 = vector.shape_cast %299 : vector<1x128x128xbf16> to vector<128x128xbf16>
    %cst_226 = arith.constant dense<0.000000e+00> : vector<128x128xf32>
    %301 = tpu.matmul %298, %300, %cst_226 {dimension_numbers = #tpu.dot_dimension_numbers<[1], [0], [0], [1], [0, 0, 1, 1], [], []>} : vector<128x128xbf16>, vector<128x128xbf16>, vector<128x128xf32> -> vector<128x128xf32>
    %302 = arith.addf %295, %301 : vector<128x128xf32>
    %c0_227 = arith.constant 0 : index
    %c8_228 = arith.constant 8 : index
    %c0_229 = arith.constant 0 : index
    %c0_230 = arith.constant 0 : index
    %303 = vector.load %arg1[%c0_227, %c8_228, %c0_229, %c0_230] : memref<1x16x16x128xf32, #tpu.memory_space<vmem>>, vector<1x8x16x128xf32>
    %304 = vector.shape_cast %303 : vector<1x8x16x128xf32> to vector<128x128xf32>
    %305 = arith.addf %302, %304 : vector<128x128xf32>
    %306 = vector.shape_cast %305 : vector<128x128xf32> to vector<1x8x16x128xf32>
    %c0_231 = arith.constant 0 : index
    %c8_232 = arith.constant 8 : index
    %c0_233 = arith.constant 0 : index
    %c0_234 = arith.constant 0 : index
    %307 = vector.load %arg6[%c0_231, %c8_232, %c0_233, %c0_234] : memref<1x16x16x128xf32, #tpu.memory_space<vmem>>, vector<1x8x16x128xf32>
    tpu.vector_store %arg6[%c0_231, %c8_232, %c0_233, %c0_234], %306 {strides = array<i32>} : memref<1x16x16x128xf32, #tpu.memory_space<vmem>>, vector<1x8x16x128xf32>,
    return
  }
  func.func @transform_0(%arg0: i32) -> (i32, i32, i32, i32) {
    %c0_i32 = arith.constant 0 : i32
    %c0_i32_0 = arith.constant 0 : i32
    %c0_i32_1 = arith.constant 0 : i32
    %c0_i32_2 = arith.constant 0 : i32
    return %arg0, %c0_i32, %c0_i32_0, %c0_i32_1 : i32, i32, i32, i32
  }
  func.func @transform_1(%arg0: i32) -> (i32, i32, i32) {
    %c0_i32 = arith.constant 0 : i32
    %c0_i32_0 = arith.constant 0 : i32
    %c0_i32_1 = arith.constant 0 : i32
    %c0_i32_2 = arith.constant 0 : i32
    return %c0_i32, %c0_i32_0, %c0_i32_1 : i32, i32, i32
  }
  func.func @transform_2(%arg0: i32) -> (i32, i32) {
    %c0_i32 = arith.constant 0 : i32
    %c0_i32_0 = arith.constant 0 : i32
    %c0_i32_1 = arith.constant 0 : i32
    return %c0_i32, %c0_i32_0 : i32, i32
  }
  func.func @transform_3(%arg0: i32) -> (i32, i32, i32) {
    %c0_i32 = arith.constant 0 : i32
    %c0_i32_0 = arith.constant 0 : i32
    %c0_i32_1 = arith.constant 0 : i32
    %c0_i32_2 = arith.constant 0 : i32
    return %c0_i32, %c0_i32_0, %c0_i32_1 : i32, i32, i32
  }
  func.func @transform_4(%arg0: i32) -> (i32, i32) {
    %c0_i32 = arith.constant 0 : i32
    %c0_i32_0 = arith.constant 0 : i32
    %c0_i32_1 = arith.constant 0 : i32
    return %c0_i32, %c0_i32_0 : i32, i32
  }
  func.func @transform_5(%arg0: i32) -> (i32, i32, i32, i32) {
    %c0_i32 = arith.constant 0 : i32
    %c0_i32_0 = arith.constant 0 : i32
    %c0_i32_1 = arith.constant 0 : i32
    %c0_i32_2 = arith.constant 0 : i32
    return %arg0, %c0_i32, %c0_i32_0, %c0_i32_1 : i32, i32, i32, i32
  }
}

</mosaic_0001>

<llo_original>
// kernel: resblock_forward_nhwc.1
$region0: #{resblock_forward_nhwc.1}
  #allocation0 [shape = 'u32[]', space=smem, size = 0x4, offset = 0x4, fixed_abs, tag = 'smem constant byte address 0x4 - core index']
  #allocation1 [shape = 'u32[72,128]{1,0:T(1,128)}', space=vmem, size = 0x9000, scoped, tag = 'internal scratch']
  #allocation2 [shape = 'f32[18,18,128]{2,1,0:T(8,128)}', space=vmem, size = 0x36000, scoped, tag = 'scratch operand']
  #allocation3 [shape = 'f32[18,18,128]{2,1,0:T(8,128)}', space=vmem, size = 0x36000, scoped, tag = 'scratch operand']
  %s0 = inlined_call_operand.vmem [shape: f32[2,16,16,128], index: 0, kind: input, shape index: {}]
  %s1 = inlined_call_operand.vmem [shape: bf16[9,128,128], index: 1, kind: input, shape index: {}]
  %s2 = inlined_call_operand.vmem [shape: f32[1,128], index: 2, kind: input, shape index: {}]
  %s3 = inlined_call_operand.vmem [shape: bf16[9,128,128], index: 3, kind: input, shape index: {}]
  %s4 = inlined_call_operand.vmem [shape: f32[1,128], index: 4, kind: input, shape index: {}]
  %s5 = inlined_call_operand.hbm [shape: f32[2,16,16,128], index: 5, kind: output, shape index: {}]
  %s6 = sld [smem:[#allocation0]]
  $region53: #{resblock_forward_nhwc.1} parent=0
    _
  %s8 = ssub.s32 1, %s6
  %s9 = scalar_select 0, %s8, %s6
  $region1: #{resblock_forward_nhwc.1} parent=0
    #allocation4 [shape = 'u8[262144]{0}', space=vmem, size = 0x40000, scoped, tag = 'output window, operand 0']
    #allocation5 [shape = 's32[2]{0}', space=sflag, size = 0x8, scoped, tag = 'scoped memory for resblock_forward_nhwc.1']
    %10 = vsyncpa [#allocation5], 0
    %s11 = scalar_lea.sflag [#allocation5], 1
    %12 = vsyncpa %s11, 0
    loop: start=0, step=1, limit=4
    $region2: #{resblock_forward_nhwc.1} parent=1 // loop_pre_header
      _
    $region3: #{resblock_forward_nhwc.1} parent=1 // loop_header
      %s14 = sphi 0, %s18
      %p15 = scmp.ge.s32.totalorder %s14, 4
      %s24 = sphi 0, %s26
      %s27 = sphi 0, %s24
      %s28 = sphi 0, %s27
      %s44 = sphi 0, %s28
      %s48 = sphi 0, %s48
      %s50 = sphi 0, %s48
      %s51 = sphi 0, %s50
      %s65 = sphi 0, %s51
      %s69 = sphi 0, %s69
      %s71 = sphi 0, %s69
      %s72 = sphi 0, %s71
      %s86 = sphi 0, %s72
      %s90 = sphi 0, %s90
      %s92 = sphi 0, %s90
      %s93 = sphi 0, %s92
      %s107 = sphi 0, %s93
      %s111 = sphi 0, %s111
      %s113 = sphi 0, %s111
      %s114 = sphi 0, %s113
      %s128 = sphi 0, %s114
      %s134 = sphi 0, %s136
      %s137 = sphi 0, %s134
      %s138 = sphi 0, %s137
      %s154 = sphi 0, %s138
    $region4: #{resblock_forward_nhwc.1} parent=1 // loop_header_branch
      %17 = sbr.rel (%p15) target = $region8
    $region5: #{resblock_forward_nhwc.1} parent=1 // loop_body
      %s19 = ssub.s32 %s14, 1
      %s20 = ssub.s32 %s14, 2
      %s21 = sadd.s32 %s14, 1
      %s22 = ssub.s32 %s14, %s21
      %p23 = scmp.eq.s32.totalorder %s22, 0
      %s25 = sadd.s32 %s24, 1
      %s26 = scalar_select %p23, %s24, %s25
      %p29 = pneg %p23
      %p30 = scmp.eq.s32.totalorder %s14, 1
      %p31 = por %p29, %p30
      %p32 = scmp.ne.s32.totalorder %s24, %s27
      %p33 = scmp.eq.s32.totalorder %s14, 0
      %p34 = por %p32, %p33
      %p35 = scmp.ne.s32.totalorder %s24, %s27
      %p36 = scmp.eq.s32.totalorder %s19, 1
      %p37 = por %p35, %p36
      %p38 = scmp.ne.s32.totalorder %s27, %s28
      %p39 = scmp.eq.s32.totalorder %s19, 0
      %p40 = por %p38, %p39
      %p41 = scmp.ne.s32.totalorder %s27, %s28
      %p42 = scmp.eq.s32.totalorder %s20, 1
      %p43 = por %p41, %p42
      %p45 = scmp.ne.s32.totalorder %s28, %s44
      %p46 = scmp.eq.s32.totalorder %s20, 0
      %p47 = por %p45, %p46
      %s49 = sadd.s32 %s48, 1
      %p52 = scmp.eq.s32.totalorder %s14, 1
      %p53 = scmp.ne.s32.totalorder %s48, %s50
      %p54 = scmp.eq.s32.totalorder %s14, 0
      %p55 = por %p53, %p54
      %p56 = scmp.ne.s32.totalorder %s48, %s50
      %p57 = scmp.eq.s32.totalorder %s19, 1
      %p58 = por %p56, %p57
      %p59 = scmp.ne.s32.totalorder %s50, %s51
      %p60 = scmp.eq.s32.totalorder %s19, 0
      %p61 = por %p59, %p60
      %p62 = scmp.ne.s32.totalorder %s50, %s51
      %p63 = scmp.eq.s32.totalorder %s20, 1
      %p64 = por %p62, %p63
      %p66 = scmp.ne.s32.totalorder %s51, %s65
      %p67 = scmp.eq.s32.totalorder %s20, 0
      %p68 = por %p66, %p67
      %s70 = sadd.s32 %s69, 1
      %p73 = scmp.eq.s32.totalorder %s14, 1
      %p74 = scmp.ne.s32.totalorder %s69, %s71
      %p75 = scmp.eq.s32.totalorder %s14, 0
      %p76 = por %p74, %p75
      %p77 = scmp.ne.s32.totalorder %s69, %s71
      %p78 = scmp.eq.s32.totalorder %s19, 1
      %p79 = por %p77, %p78
      %p80 = scmp.ne.s32.totalorder %s71, %s72
      %p81 = scmp.eq.s32.totalorder %s19, 0
      %p82 = por %p80, %p81
      %p83 = scmp.ne.s32.totalorder %s71, %s72
      %p84 = scmp.eq.s32.totalorder %s20, 1
      %p85 = por %p83, %p84
      %p87 = scmp.ne.s32.totalorder %s72, %s86
      %p88 = scmp.eq.s32.totalorder %s20, 0
      %p89 = por %p87, %p88
      %s91 = sadd.s32 %s90, 1
      %p94 = scmp.eq.s32.totalorder %s14, 1
      %p95 = scmp.ne.s32.totalorder %s90, %s92
      %p96 = scmp.eq.s32.totalorder %s14, 0
      %p97 = por %p95, %p96
      %p98 = scmp.ne.s32.totalorder %s90, %s92
      %p99 = scmp.eq.s32.totalorder %s19, 1
      %p100 = por %p98, %p99
      %p101 = scmp.ne.s32.totalorder %s92, %s93
      %p102 = scmp.eq.s32.totalorder %s19, 0
      %p103 = por %p101, %p102
      %p104 = scmp.ne.s32.totalorder %s92, %s93
      %p105 = scmp.eq.s32.totalorder %s20, 1
      %p106 = por %p104, %p105
      %p108 = scmp.ne.s32.totalorder %s93, %s107
      %p109 = scmp.eq.s32.totalorder %s20, 0
      %p110 = por %p108, %p109
      %s112 = sadd.s32 %s111, 1
      %p115 = scmp.eq.s32.totalorder %s14, 1
      %p116 = scmp.ne.s32.totalorder %s111, %s113
      %p117 = scmp.eq.s32.totalorder %s14, 0
      %p118 = por %p116, %p117
      %p119 = scmp.ne.s32.totalorder %s111, %s113
      %p120 = scmp.eq.s32.totalorder %s19, 1
      %p121 = por %p119, %p120
      %p122 = scmp.ne.s32.totalorder %s113, %s114
      %p123 = scmp.eq.s32.totalorder %s19, 0
      %p124 = por %p122, %p123
      %p125 = scmp.ne.s32.totalorder %s113, %s114
      %p126 = scmp.eq.s32.totalorder %s20, 1
      %p127 = por %p125, %p126
      %p129 = scmp.ne.s32.totalorder %s114, %s128
      %p130 = scmp.eq.s32.totalorder %s20, 0
      %p131 = por %p129, %p130
      %s132 = ssub.s32 %s14, %s21
      %p133 = scmp.eq.s32.totalorder %s132, 0
      %s135 = sadd.s32 %s134, 1
      %s136 = scalar_select %p133, %s134, %s135
      %p139 = pneg %p133
      %p140 = scmp.eq.s32.totalorder %s14, 1
      %p141 = por %p139, %p140
      %p142 = scmp.ne.s32.totalorder %s134, %s137
      %p143 = scmp.eq.s32.totalorder %s14, 0
      %p144 = por %p142, %p143
      %p145 = scmp.ne.s32.totalorder %s134, %s137
      %p146 = scmp.eq.s32.totalorder %s19, 1
      %p147 = por %p145, %p146
      %p148 = scmp.ne.s32.totalorder %s137, %s138
      %p149 = scmp.eq.s32.totalorder %s19, 0
      %p150 = por %p148, %p149
      %p151 = scmp.ne.s32.totalorder %s137, %s138
      %p152 = scmp.eq.s32.totalorder %s20, 1
      %p153 = por %p151, %p152
      %p155 = scmp.ne.s32.totalorder %s138, %s154
      %p156 = scmp.eq.s32.totalorder %s20, 0
      %p157 = por %p155, %p156
      %p158 = scmp.le.s32.totalorder 1, %s14
      %p159 = scmp.lt.s32.totalorder %s14, 3
      %p160 = pnand %p158, %p159
      %p161 = pneg %p160
      // Predicated region
      $region9: #{resblock_forward_nhwc.1} parent=5 // pred_check
        _
      $region10: #{resblock_forward_nhwc.1} parent=5 // pred_check_branch
        %163 = sbr.rel (%p160) target = $region12
      $region11: #{resblock_forward_nhwc.1} parent=5 // pred_region
        %s164 = ssub.s32 %s14, 1
        // Predicated region
        $region13: #{resblock_forward_nhwc.1} parent=11 // pred_check
          %p165 = pneg %p61
        $region14: #{resblock_forward_nhwc.1} parent=11 // pred_check_branch
          %167 = sbr.rel (%p165) target = $region16
        $region15: #{resblock_forward_nhwc.1} parent=11 // pred_region
          _
        $region16: #{resblock_forward_nhwc.1} parent=11 // pred_fallthru
          _
        // Predicated region
        $region17: #{resblock_forward_nhwc.1} parent=11 // pred_check
          %p168 = pneg %p82
        $region18: #{resblock_forward_nhwc.1} parent=11 // pred_check_branch
          %170 = sbr.rel (%p168) target = $region20
        $region19: #{resblock_forward_nhwc.1} parent=11 // pred_region
          _
        $region20: #{resblock_forward_nhwc.1} parent=11 // pred_fallthru
          _
        // Predicated region
        $region21: #{resblock_forward_nhwc.1} parent=11 // pred_check
          %p171 = pneg %p103
        $region22: #{resblock_forward_nhwc.1} parent=11 // pred_check_branch
          %173 = sbr.rel (%p171) target = $region24
        $region23: #{resblock_forward_nhwc.1} parent=11 // pred_region
          _
        $region24: #{resblock_forward_nhwc.1} parent=11 // pred_fallthru
          _
        // Predicated region
        $region25: #{resblock_forward_nhwc.1} parent=11 // pred_check
          %p174 = pneg %p124
        $region26: #{resblock_forward_nhwc.1} parent=11 // pred_check_branch
          %176 = sbr.rel (%p174) target = $region28
        $region27: #{resblock_forward_nhwc.1} parent=11 // pred_region
          _
        $region28: #{resblock_forward_nhwc.1} parent=11 // pred_fallthru
          _
      $region12: #{resblock_forward_nhwc.1} parent=5 // pred_fallthru
        _
      %p177 = scmp.lt.s32.totalorder %s14, 2
      // Predicated region
      $region29: #{resblock_forward_nhwc.1} parent=5 // pred_check
        %p178 = pneg %p177
      $region30: #{resblock_forward_nhwc.1} parent=5 // pred_check_branch
        %180 = sbr.rel (%p178) target = $region32
      $region31: #{resblock_forward_nhwc.1} parent=5 // pred_region
        // Predicated region
        $region33: #{resblock_forward_nhwc.1} parent=31 // pred_check
          %p181 = pneg %p34
        $region34: #{resblock_forward_nhwc.1} parent=31 // pred_check_branch
          %183 = sbr.rel (%p181) target = $region36
        $region35: #{resblock_forward_nhwc.1} parent=31 // pred_region
          %p184 = scmp.lt.s32.totalorder %s14, 1
          %s185 = scalar_select %p184, %s14, 1
          %s186 = smul.addr %s185, 32
          %s187 = smul.addr %s186, 8
          %s188 = scalar_lea.vmem %s0, %s187
        $region36: #{resblock_forward_nhwc.1} parent=31 // pred_fallthru
          _
      $region32: #{resblock_forward_nhwc.1} parent=5 // pred_fallthru
        _
      %p189 = scmp.le.s32.totalorder 1, %s14
      %p190 = scmp.lt.s32.totalorder %s14, 3
      %p191 = pnand %p189, %p190
      %p192 = pneg %p191
      // Predicated region
      $region37: #{resblock_forward_nhwc.1} parent=5 // pred_check
        _
      $region38: #{resblock_forward_nhwc.1} parent=5 // pred_check_branch
        %194 = sbr.rel (%p191) target = $region40
      $region39: #{resblock_forward_nhwc.1} parent=5 // pred_region
        %s195 = ssub.s32 %s14, 1
        %p196 = scmp.lt.s32.totalorder %s19, 1
        %s197 = scalar_select %p196, %s19, 1
        %s198 = smul.addr %s197, 32
        %s199 = smul.addr %s198, 8
        %s200 = scalar_lea.vmem %s0, %s199
        %p201 = pneg %p40
        %p202 = pneg %p37
        %p203 = pneg %p61
        %p204 = pneg %p58
        %p205 = pneg %p82
        %p206 = pneg %p79
        %p207 = pneg %p103
        %p208 = pneg %p100
        %p209 = pneg %p124
        %p210 = pneg %p121
        %p211 = pneg %p150
        %p212 = pneg %p147
        %s213 = sand.u32 %s137, 1
        %s214 = scalar_lea.sflag [#allocation5], %s213
        %s215 = sand.u32 %s137, 1
        %s216 = smul.addr %s215, 256
        %s217 = scalar_lea.vmem [#allocation4], %s216
        %p218 = scmp.lt.s32.totalorder %s19, 1
        %s219 = scalar_select %p218, %s19, 1
        %s220 = smul.addr %s219, 32
        %s221 = smul.addr %s220, 8
        %s222 = scalar_lea.vmem %s0, %s221
        %223 = vst [vmem:[#allocation2] sm:$0xff] 0.0
        %224 = vst [vmem:[#allocation2 + $0x8] sm:$0xff] 0.0
        %225 = vst [vmem:[#allocation2 + $0x10] sm:$0x3] 0.0
        %s226 = scalar_lea.vmem [#allocation2], 408
        %227 = vst [vmem:[%s226] sm:$0xff] 0.0
        %228 = vst [vmem:[%s226 + $0x8] sm:$0xff] 0.0
        %229 = vst [vmem:[%s226 + $0x10] sm:$0x3] 0.0
        %s230 = scalar_lea.vmem [#allocation2], 24
        %231 = vst [vmem:[%s230] sm:$0x1] 0.0
        %232 = vst [vmem:[%s230 + $0x18] sm:$0x1] 0.0
        %233 = vst [vmem:[%s230 + $0x30] sm:$0x1] 0.0
        %234 = vst [vmem:[%s230 + $0x48] sm:$0x1] 0.0
        %235 = vst [vmem:[%s230 + $0x60] sm:$0x1] 0.0
        %236 = vst [vmem:[%s230 + $0x78] sm:$0x1] 0.0
        %237 = vst [vmem:[%s230 + $0x90] sm:$0x1] 0.0
        %238 = vst [vmem:[%s230 + $0xa8] sm:$0x1] 0.0
        %239 = vst [vmem:[%s230 + $0xc0] sm:$0x1] 0.0
        %240 = vst [vmem:[%s230 + $0xd8] sm:$0x1] 0.0
        %241 = vst [vmem:[%s230 + $0xf0] sm:$0x1] 0.0
        %242 = vst [vmem:[%s230 + $0x108] sm:$0x1] 0.0
        %243 = vst [vmem:[%s230 + $0x120] sm:$0x1] 0.0
        %244 = vst [vmem:[%s230 + $0x138] sm:$0x1] 0.0
        %245 = vst [vmem:[%s230 + $0x150] sm:$0x1] 0.0
        %246 = vst [vmem:[%s230 + $0x168] sm:$0x1] 0.0
        %247 = vst [vmem:[%s230 + $0x11] sm:$0x1] 0.0
        %248 = vst [vmem:[%s230 + $0x29] sm:$0x1] 0.0
        %249 = vst [vmem:[%s230 + $0x41] sm:$0x1] 0.0
        %250 = vst [vmem:[%s230 + $0x59] sm:$0x1] 0.0
        %251 = vst [vmem:[%s230 + $0x71] sm:$0x1] 0.0
        %252 = vst [vmem:[%s230 + $0x89] sm:$0x1] 0.0
        %253 = vst [vmem:[%s230 + $0xa1] sm:$0x1] 0.0
        %254 = vst [vmem:[%s230 + $0xb9] sm:$0x1] 0.0
        %255 = vst [vmem:[%s230 + $0xd1] sm:$0x1] 0.0
        %256 = vst [vmem:[%s230 + $0xe9] sm:$0x1] 0.0
        %257 = vst [vmem:[%s230 + $0x101] sm:$0x1] 0.0
        %258 = vst [vmem:[%s230 + $0x119] sm:$0x1] 0.0
        %259 = vst [vmem:[%s230 + $0x131] sm:$0x1] 0.0
        %260 = vst [vmem:[%s230 + $0x149] sm:$0x1] 0.0
        %261 = vst [vmem:[%s230 + $0x161] sm:$0x1] 0.0
        %262 = vst [vmem:[%s230 + $0x179] sm:$0x1] 0.0
        %263 = vst [vmem:[#allocation3] sm:$0xff] 0.0
        %264 = vst [vmem:[#allocation3 + $0x8] sm:$0xff] 0.0
        %265 = vst [vmem:[#allocation3 + $0x10] sm:$0x3] 0.0
        %s266 = scalar_lea.vmem [#allocation3], 408
        %267 = vst [vmem:[%s266] sm:$0xff] 0.0
        %268 = vst [vmem:[%s266 + $0x8] sm:$0xff] 0.0
        %269 = vst [vmem:[%s266 + $0x10] sm:$0x3] 0.0
        %s270 = scalar_lea.vmem [#allocation3], 24
        %271 = vst [vmem:[%s270] sm:$0x1] 0.0
        %272 = vst [vmem:[%s270 + $0x18] sm:$0x1] 0.0
        %273 = vst [vmem:[%s270 + $0x30] sm:$0x1] 0.0
        %274 = vst [vmem:[%s270 + $0x48] sm:$0x1] 0.0
        %275 = vst [vmem:[%s270 + $0x60] sm:$0x1] 0.0
        %276 = vst [vmem:[%s270 + $0x78] sm:$0x1] 0.0
        %277 = vst [vmem:[%s270 + $0x90] sm:$0x1] 0.0
        %278 = vst [vmem:[%s270 + $0xa8] sm:$0x1] 0.0
        %279 = vst [vmem:[%s270 + $0xc0] sm:$0x1] 0.0
        %280 = vst [vmem:[%s270 + $0xd8] sm:$0x1] 0.0
        %281 = vst [vmem:[%s270 + $0xf0] sm:$0x1] 0.0
        %282 = vst [vmem:[%s270 + $0x108] sm:$0x1] 0.0
        %283 = vst [vmem:[%s270 + $0x120] sm:$0x1] 0.0
        %284 = vst [vmem:[%s270 + $0x138] sm:$0x1] 0.0
        %285 = vst [vmem:[%s270 + $0x150] sm:$0x1] 0.0
        %286 = vst [vmem:[%s270 + $0x168] sm:$0x1] 0.0
        %287 = vst [vmem:[%s270 + $0x11] sm:$0x1] 0.0
        %288 = vst [vmem:[%s270 + $0x29] sm:$0x1] 0.0
        %289 = vst [vmem:[%s270 + $0x41] sm:$0x1] 0.0
        %290 = vst [vmem:[%s270 + $0x59] sm:$0x1] 0.0
        %291 = vst [vmem:[%s270 + $0x71] sm:$0x1] 0.0
        %292 = vst [vmem:[%s270 + $0x89] sm:$0x1] 0.0
        %293 = vst [vmem:[%s270 + $0xa1] sm:$0x1] 0.0
        %294 = vst [vmem:[%s270 + $0xb9] sm:$0x1] 0.0
        %295 = vst [vmem:[%s270 + $0xd1] sm:$0x1] 0.0
        %296 = vst [vmem:[%s270 + $0xe9] sm:$0x1] 0.0
        %297 = vst [vmem:[%s270 + $0x101] sm:$0x1] 0.0
        %298 = vst [vmem:[%s270 + $0x119] sm:$0x1] 0.0
        %299 = vst [vmem:[%s270 + $0x131] sm:$0x1] 0.0
        %300 = vst [vmem:[%s270 + $0x149] sm:$0x1] 0.0
        %301 = vst [vmem:[%s270 + $0x161] sm:$0x1] 0.0
        %302 = vst [vmem:[%s270 + $0x179] sm:$0x1] 0.0
        %v303 = vld [vmem:[%s222] sm:$0xff]
        %v304 = vld [vmem:[%s222 + $0x8] sm:$0xff]
        %v305 = vld [vmem:[%s222 + $0x10] sm:$0xff]
        %v306 = vld [vmem:[%s222 + $0x18] sm:$0xff]
        %v307 = vld [vmem:[%s222 + $0x20] sm:$0xff]
        %v308 = vld [vmem:[%s222 + $0x28] sm:$0xff]
        %v309 = vld [vmem:[%s222 + $0x30] sm:$0xff]
        %v310 = vld [vmem:[%s222 + $0x38] sm:$0xff]
        %v311 = vld [vmem:[%s222 + $0x40] sm:$0xff]
        %v312 = vld [vmem:[%s222 + $0x48] sm:$0xff]
        %v313 = vld [vmem:[%s222 + $0x50] sm:$0xff]
        %v314 = vld [vmem:[%s222 + $0x58] sm:$0xff]
        %v315 = vld [vmem:[%s222 + $0x60] sm:$0xff]
        %v316 = vld [vmem:[%s222 + $0x68] sm:$0xff]
        %v317 = vld [vmem:[%s222 + $0x70] sm:$0xff]
        %v318 = vld [vmem:[%s222 + $0x78] sm:$0xff]
        %319 = vst [vmem:[%s230 + $0x1] sm:$0xff] %v303
        %320 = vst [vmem:[%s230 + $0x9] sm:$0xff] %v304
        %321 = vst [vmem:[%s230 + $0x19] sm:$0xff] %v305
        %322 = vst [vmem:[%s230 + $0x21] sm:$0xff] %v306
        %323 = vst [vmem:[%s230 + $0x31] sm:$0xff] %v307
        %324 = vst [vmem:[%s230 + $0x39] sm:$0xff] %v308
        %325 = vst [vmem:[%s230 + $0x49] sm:$0xff] %v309
        %326 = vst [vmem:[%s230 + $0x51] sm:$0xff] %v310
        %327 = vst [vmem:[%s230 + $0x61] sm:$0xff] %v311
        %328 = vst [vmem:[%s230 + $0x69] sm:$0xff] %v312
        %329 = vst [vmem:[%s230 + $0x79] sm:$0xff] %v313
        %330 = vst [vmem:[%s230 + $0x81] sm:$0xff] %v314
        %331 = vst [vmem:[%s230 + $0x91] sm:$0xff] %v315
        %332 = vst [vmem:[%s230 + $0x99] sm:$0xff] %v316
        %333 = vst [vmem:[%s230 + $0xa9] sm:$0xff] %v317
        %334 = vst [vmem:[%s230 + $0xb1] sm:$0xff] %v318
        %s335 = scalar_lea.vmem %s222, 128
        %v336 = vld [vmem:[%s335] sm:$0xff]
        %v337 = vld [vmem:[%s335 + $0x8] sm:$0xff]
        %v338 = vld [vmem:[%s335 + $0x10] sm:$0xff]
        %v339 = vld [vmem:[%s335 + $0x18] sm:$0xff]
        %v340 = vld [vmem:[%s335 + $0x20] sm:$0xff]
        %v341 = vld [vmem:[%s335 + $0x28] sm:$0xff]
        %v342 = vld [vmem:[%s335 + $0x30] sm:$0xff]
        %v343 = vld [vmem:[%s335 + $0x38] sm:$0xff]
        %v344 = vld [vmem:[%s335 + $0x40] sm:$0xff]
        %v345 = vld [vmem:[%s335 + $0x48] sm:$0xff]
        %v346 = vld [vmem:[%s335 + $0x50] sm:$0xff]
        %v347 = vld [vmem:[%s335 + $0x58] sm:$0xff]
        %v348 = vld [vmem:[%s335 + $0x60] sm:$0xff]
        %v349 = vld [vmem:[%s335 + $0x68] sm:$0xff]
        %v350 = vld [vmem:[%s335 + $0x70] sm:$0xff]
        %v351 = vld [vmem:[%s335 + $0x78] sm:$0xff]
        %s352 = scalar_lea.vmem [#allocation2], 216
        %353 = vst [vmem:[%s352 + $0x1] sm:$0xff] %v336
        %354 = vst [vmem:[%s352 + $0x9] sm:$0xff] %v337
        %355 = vst [vmem:[%s352 + $0x19] sm:$0xff] %v338
        %356 = vst [vmem:[%s352 + $0x21] sm:$0xff] %v339
        %357 = vst [vmem:[%s352 + $0x31] sm:$0xff] %v340
        %358 = vst [vmem:[%s352 + $0x39] sm:$0xff] %v341
        %359 = vst [vmem:[%s352 + $0x49] sm:$0xff] %v342
        %360 = vst [vmem:[%s352 + $0x51] sm:$0xff] %v343
        %361 = vst [vmem:[%s352 + $0x61] sm:$0xff] %v344
        %362 = vst [vmem:[%s352 + $0x69] sm:$0xff] %v345
        %363 = vst [vmem:[%s352 + $0x79] sm:$0xff] %v346
        %364 = vst [vmem:[%s352 + $0x81] sm:$0xff] %v347
        %365 = vst [vmem:[%s352 + $0x91] sm:$0xff] %v348
        %366 = vst [vmem:[%s352 + $0x99] sm:$0xff] %v349
        %367 = vst [vmem:[%s352 + $0xa9] sm:$0xff] %v350
        %368 = vst [vmem:[%s352 + $0xb1] sm:$0xff] %v351
        %v369 = vld [vmem:[%s2] sm:$0x1]
        %v371 = vperm.slane %v369, 0
        %v373 = vld [vmem:[#allocation2] sm:$0xff]
        %v374 = vld [vmem:[#allocation2 + $0x8] sm:$0xff]
        %v375 = vld [vmem:[#allocation2 + $0x10] sm:$0x3]
        %v376 = vld [vmem:[#allocation2 + $0x18] sm:$0xff]
        %v377 = vld [vmem:[#allocation2 + $0x20] sm:$0xff]
        %v378 = vld [vmem:[#allocation2 + $0x28] sm:$0x3]
        %v379 = vld [vmem:[#allocation2 + $0x30] sm:$0xff]
        %v380 = vld [vmem:[#allocation2 + $0x38] sm:$0xff]
        %v381 = vld [vmem:[#allocation2 + $0x40] sm:$0x3]
        %v382 = vld [vmem:[#allocation2 + $0x48] sm:$0xff]
        %v383 = vld [vmem:[#allocation2 + $0x50] sm:$0xff]
        %v384 = vld [vmem:[#allocation2 + $0x58] sm:$0x3]
        %v385 = vld [vmem:[#allocation2 + $0x60] sm:$0xff]
        %v386 = vld [vmem:[#allocation2 + $0x68] sm:$0xff]
        %v387 = vld [vmem:[#allocation2 + $0x70] sm:$0x3]
        %v388 = vld [vmem:[#allocation2 + $0x78] sm:$0xff]
        %v389 = vld [vmem:[#allocation2 + $0x80] sm:$0xff]
        %v390 = vld [vmem:[#allocation2 + $0x88] sm:$0x3]
        %v391 = vld [vmem:[#allocation2 + $0x90] sm:$0xff]
        %v392 = vld [vmem:[#allocation2 + $0x98] sm:$0xff]
        %v393 = vld [vmem:[#allocation2 + $0xa0] sm:$0x3]
        %v394 = vld [vmem:[#allocation2 + $0xa8] sm:$0xff]
        %v395 = vld [vmem:[#allocation2 + $0xb0] sm:$0xff]
        %v396 = vld [vmem:[#allocation2 + $0xb8] sm:$0x3]
        %v397 = vpack.c.bf16 %v374, %v373
        %v398 = vpack.c.bf16 %v377, %v376
        %v399 = vpack.c.bf16 %v380, %v379
        %v400 = vpack.c.bf16 %v383, %v382
        %v401 = vpack.c.bf16 %v386, %v385
        %v402 = vpack.c.bf16 %v389, %v388
        %v403 = vpack.c.bf16 %v392, %v391
        %v404 = vpack.c.bf16 %v395, %v394
        %v405 = vld [vmem:[%s1] sm:$0xf]
        %v406 = vld [vmem:[%s1 + $0x4] sm:$0xf]
        %v407 = vld [vmem:[%s1 + $0x8] sm:$0xf]
        %v408 = vld [vmem:[%s1 + $0xc] sm:$0xf]
        %v409 = vld [vmem:[%s1 + $0x10] sm:$0xf]
        %v410 = vld [vmem:[%s1 + $0x14] sm:$0xf]
        %v411 = vld [vmem:[%s1 + $0x18] sm:$0xf]
        %v412 = vld [vmem:[%s1 + $0x1c] sm:$0xf]
        %v413 = vld [vmem:[%s1 + $0x20] sm:$0xf]
        %v414 = vld [vmem:[%s1 + $0x24] sm:$0xf]
        %v415 = vld [vmem:[%s1 + $0x28] sm:$0xf]
        %v416 = vld [vmem:[%s1 + $0x2c] sm:$0xf]
        %v417 = vld [vmem:[%s1 + $0x30] sm:$0xf]
        %v418 = vld [vmem:[%s1 + $0x34] sm:$0xf]
        %v419 = vld [vmem:[%s1 + $0x38] sm:$0xf]
        %v420 = vld [vmem:[%s1 + $0x3c] sm:$0xf]
        %v437 = vunpack.c.l.b16 %v405
        %v438 = vunpack.c.l.b16 %v406
        %v439 = vunpack.c.l.b16 %v407
        %v440 = vunpack.c.l.b16 %v408
        %v441 = vunpack.c.l.b16 %v409
        %v442 = vunpack.c.l.b16 %v410
        %v443 = vunpack.c.l.b16 %v411
        %v444 = vunpack.c.l.b16 %v412
        %v445 = vunpack.c.l.b16 %v413
        %v446 = vunpack.c.l.b16 %v414
        %v447 = vunpack.c.l.b16 %v415
        %v448 = vunpack.c.l.b16 %v416
        %v449 = vunpack.c.l.b16 %v417
        %v450 = vunpack.c.l.b16 %v418
        %v451 = vunpack.c.l.b16 %v419
        %v452 = vunpack.c.l.b16 %v420
        %v453 = vpack.c.b16 %v438, %v437
        %v454 = vpack.c.b16 %v440, %v439
        %v455 = vpack.c.b16 %v442, %v441
        %v456 = vpack.c.b16 %v444, %v443
        %v457 = vpack.c.b16 %v446, %v445
        %v458 = vpack.c.b16 %v448, %v447
        %v459 = vpack.c.b16 %v450, %v449
        %v460 = vpack.c.b16 %v452, %v451
        %469 = vmatpush.bf16.msra.mxu0 %v460
        %470 = vmatpush.bf16.msra.mxu0 %v459
        %471 = vmatpush.bf16.msra.mxu0 %v458
        %472 = vmatpush.bf16.msra.mxu0 %v457
        %473 = vmatpush.bf16.msra.mxu0 %v456
        %474 = vmatpush.bf16.msra.mxu0 %v455
        %475 = vmatpush.bf16.msra.mxu0 %v454
        %476 = vmatpush.bf16.msra.mxu0 %v453
        %477 = vmatmul.bf16.gmra.mxu0 %v397
        %v478 = vpop.f32.mrf.mxu0
        %v479 = vadd.f32 0.0, %v478
        %v480 = vpop.f32.mrf.mxu0
        %v481 = vadd.f32 0.0, %v480
        %482 = vmatmul.bf16.gmra.mxu0 %v398
        %v483 = vpop.f32.mrf.mxu0
        %v484 = vadd.f32 0.0, %v483
        %v485 = vpop.f32.mrf.mxu0
        %v486 = vadd.f32 0.0, %v485
        %487 = vmatmul.bf16.gmra.mxu0 %v399
        %v488 = vpop.f32.mrf.mxu0
        %v489 = vadd.f32 0.0, %v488
        %v490 = vpop.f32.mrf.mxu0
        %v491 = vadd.f32 0.0, %v490
        %492 = vmatmul.bf16.gmra.mxu0 %v400
        %v493 = vpop.f32.mrf.mxu0
        %v494 = vadd.f32 0.0, %v493
        %v495 = vpop.f32.mrf.mxu0
        %v496 = vadd.f32 0.0, %v495
        %497 = vmatmul.bf16.gmra.mxu0 %v401
        %v498 = vpop.f32.mrf.mxu0
        %v499 = vadd.f32 0.0, %v498
        %v500 = vpop.f32.mrf.mxu0
        %v501 = vadd.f32 0.0, %v500
        %502 = vmatmul.bf16.gmra.mxu0 %v402
        %v503 = vpop.f32.mrf.mxu0
        %v504 = vadd.f32 0.0, %v503
        %v505 = vpop.f32.mrf.mxu0
        %v506 = vadd.f32 0.0, %v505
        %507 = vmatmul.bf16.gmra.mxu0 %v403
        %v508 = vpop.f32.mrf.mxu0
        %v509 = vadd.f32 0.0, %v508
        %v510 = vpop.f32.mrf.mxu0
        %v511 = vadd.f32 0.0, %v510
        %512 = vmatmul.bf16.gmra.mxu0 %v404
        %v513 = vpop.f32.mrf.mxu0
        %v514 = vadd.f32 0.0, %v513
        %v515 = vpop.f32.mrf.mxu0
        %v516 = vadd.f32 0.0, %v515
        %517 = vdwg.mxu0
        %v518 = vadd.f32 %v371, %v479
        %v519 = vadd.f32 %v371, %v481
        %v520 = vadd.f32 %v371, %v484
        %v521 = vadd.f32 %v371, %v486
        %v522 = vadd.f32 %v371, %v489
        %v523 = vadd.f32 %v371, %v491
        %v524 = vadd.f32 %v371, %v494
        %v525 = vadd.f32 %v371, %v496
        %v526 = vadd.f32 %v371, %v499
        %v527 = vadd.f32 %v371, %v501
        %v528 = vadd.f32 %v371, %v504
        %v529 = vadd.f32 %v371, %v506
        %v530 = vadd.f32 %v371, %v509
        %v531 = vadd.f32 %v371, %v511
        %v532 = vadd.f32 %v371, %v514
        %v533 = vadd.f32 %v371, %v516
        %vm558 = vcmask 1046528
        %v559 = vrot.slane %v373, 1
        %v560 = vrot.slane %v374, 1
        %v561 = vsel %vm558, %v559, %v560
        %v562 = vrot.slane %v375, 1
        %v563 = vsel %vm558, %v560, %v562
        %v564 = vrot.slane %v376, 1
        %v565 = vrot.slane %v377, 1
        %v566 = vsel %vm558, %v564, %v565
        %v567 = vrot.slane %v378, 1
        %v568 = vsel %vm558, %v565, %v567
        %v569 = vrot.slane %v379, 1
        %v570 = vrot.slane %v380, 1
        %v571 = vsel %vm558, %v569, %v570
        %v572 = vrot.slane %v381, 1
        %v573 = vsel %vm558, %v570, %v572
        %v574 = vrot.slane %v382, 1
        %v575 = vrot.slane %v383, 1
        %v576 = vsel %vm558, %v574, %v575
        %v577 = vrot.slane %v384, 1
        %v578 = vsel %vm558, %v575, %v577
        %v579 = vrot.slane %v385, 1
        %v580 = vrot.slane %v386, 1
        %v581 = vsel %vm558, %v579, %v580
        %v582 = vrot.slane %v387, 1
        %v583 = vsel %vm558, %v580, %v582
        %v584 = vrot.slane %v388, 1
        %v585 = vrot.slane %v389, 1
        %v586 = vsel %vm558, %v584, %v585
        %v587 = vrot.slane %v390, 1
        %v588 = vsel %vm558, %v585, %v587
        %v589 = vrot.slane %v391, 1
        %v590 = vrot.slane %v392, 1
        %v591 = vsel %vm558, %v589, %v590
        %v592 = vrot.slane %v393, 1
        %v593 = vsel %vm558, %v590, %v592
        %v594 = vrot.slane %v394, 1
        %v595 = vrot.slane %v395, 1
        %v596 = vsel %vm558, %v594, %v595
        %v597 = vrot.slane %v396, 1
        %v598 = vsel %vm558, %v595, %v597
        %v615 = vpack.c.bf16 %v563, %v561
        %v616 = vpack.c.bf16 %v568, %v566
        %v617 = vpack.c.bf16 %v573, %v571
        %v618 = vpack.c.bf16 %v578, %v576
        %v619 = vpack.c.bf16 %v583, %v581
        %v620 = vpack.c.bf16 %v588, %v586
        %v621 = vpack.c.bf16 %v593, %v591
        %v622 = vpack.c.bf16 %v598, %v596
        %s623 = scalar_lea.vmem %s1, 64
        %v624 = vld [vmem:[%s623] sm:$0xf]
        %v625 = vld [vmem:[%s623 + $0x4] sm:$0xf]
        %v626 = vld [vmem:[%s623 + $0x8] sm:$0xf]
        %v627 = vld [vmem:[%s623 + $0xc] sm:$0xf]
        %v628 = vld [vmem:[%s623 + $0x10] sm:$0xf]
        %v629 = vld [vmem:[%s623 + $0x14] sm:$0xf]
        %v630 = vld [vmem:[%s623 + $0x18] sm:$0xf]
        %v631 = vld [vmem:[%s623 + $0x1c] sm:$0xf]
        %v632 = vld [vmem:[%s623 + $0x20] sm:$0xf]
        %v633 = vld [vmem:[%s623 + $0x24] sm:$0xf]
        %v634 = vld [vmem:[%s623 + $0x28] sm:$0xf]
        %v635 = vld [vmem:[%s623 + $0x2c] sm:$0xf]
        %v636 = vld [vmem:[%s623 + $0x30] sm:$0xf]
        %v637 = vld [vmem:[%s623 + $0x34] sm:$0xf]
        %v638 = vld [vmem:[%s623 + $0x38] sm:$0xf]
        %v639 = vld [vmem:[%s623 + $0x3c] sm:$0xf]
        %v656 = vunpack.c.l.b16 %v624
        %v657 = vunpack.c.l.b16 %v625
        %v658 = vunpack.c.l.b16 %v626
        %v659 = vunpack.c.l.b16 %v627
        %v660 = vunpack.c.l.b16 %v628
        %v661 = vunpack.c.l.b16 %v629
        %v662 = vunpack.c.l.b16 %v630
        %v663 = vunpack.c.l.b16 %v631
        %v664 = vunpack.c.l.b16 %v632
        %v665 = vunpack.c.l.b16 %v633
        %v666 = vunpack.c.l.b16 %v634
        %v667 = vunpack.c.l.b16 %v635
        %v668 = vunpack.c.l.b16 %v636
        %v669 = vunpack.c.l.b16 %v637
        %v670 = vunpack.c.l.b16 %v638
        %v671 = vunpack.c.l.b16 %v639
        %v672 = vpack.c.b16 %v657, %v656
        %v673 = vpack.c.b16 %v659, %v658
        %v674 = vpack.c.b16 %v661, %v660
        %v675 = vpack.c.b16 %v663, %v662
        %v676 = vpack.c.b16 %v665, %v664
        %v677 = vpack.c.b16 %v667, %v666
        %v678 = vpack.c.b16 %v669, %v668
        %v679 = vpack.c.b16 %v671, %v670
        %688 = vmatpush.bf16.msra.mxu0 %v679
        %689 = vmatpush.bf16.msra.mxu0 %v678
        %690 = vmatpush.bf16.msra.mxu0 %v677
        %691 = vmatpush.bf16.msra.mxu0 %v676
        %692 = vmatpush.bf16.msra.mxu0 %v675
        %693 = vmatpush.bf16.msra.mxu0 %v674
        %694 = vmatpush.bf16.msra.mxu0 %v673
        %695 = vmatpush.bf16.msra.mxu0 %v672
        %696 = vmatmul.bf16.gmra.mxu0 %v615
        %v697 = vpop.f32.mrf.mxu0
        %v698 = vadd.f32 0.0, %v697
        %v699 = vpop.f32.mrf.mxu0
        %v700 = vadd.f32 0.0, %v699
        %701 = vmatmul.bf16.gmra.mxu0 %v616
        %v702 = vpop.f32.mrf.mxu0
        %v703 = vadd.f32 0.0, %v702
        %v704 = vpop.f32.mrf.mxu0
        %v705 = vadd.f32 0.0, %v704
        %706 = vmatmul.bf16.gmra.mxu0 %v617
        %v707 = vpop.f32.mrf.mxu0
        %v708 = vadd.f32 0.0, %v707
        %v709 = vpop.f32.mrf.mxu0
        %v710 = vadd.f32 0.0, %v709
        %711 = vmatmul.bf16.gmra.mxu0 %v618
        %v712 = vpop.f32.mrf.mxu0
        %v713 = vadd.f32 0.0, %v712
        %v714 = vpop.f32.mrf.mxu0
        %v715 = vadd.f32 0.0, %v714
        %716 = vmatmul.bf16.gmra.mxu0 %v619
        %v717 = vpop.f32.mrf.mxu0
        %v718 = vadd.f32 0.0, %v717
        %v719 = vpop.f32.mrf.mxu0
        %v720 = vadd.f32 0.0, %v719
        %721 = vmatmul.bf16.gmra.mxu0 %v620
        %v722 = vpop.f32.mrf.mxu0
        %v723 = vadd.f32 0.0, %v722
        %v724 = vpop.f32.mrf.mxu0
        %v725 = vadd.f32 0.0, %v724
        %726 = vmatmul.bf16.gmra.mxu0 %v621
        %v727 = vpop.f32.mrf.mxu0
        %v728 = vadd.f32 0.0, %v727
        %v729 = vpop.f32.mrf.mxu0
        %v730 = vadd.f32 0.0, %v729
        %731 = vmatmul.bf16.gmra.mxu0 %v622
        %v732 = vpop.f32.mrf.mxu0
        %v733 = vadd.f32 0.0, %v732
        %v734 = vpop.f32.mrf.mxu0
        %v735 = vadd.f32 0.0, %v734
        %736 = vdwg.mxu0
        %v737 = vadd.f32 %v518, %v698
        %v738 = vadd.f32 %v519, %v700
        %v739 = vadd.f32 %v520, %v703
        %v740 = vadd.f32 %v521, %v705
        %v741 = vadd.f32 %v522, %v708
        %v742 = vadd.f32 %v523, %v710
        %v743 = vadd.f32 %v524, %v713
        %v744 = vadd.f32 %v525, %v715
        %v745 = vadd.f32 %v526, %v718
        %v746 = vadd.f32 %v527, %v720
        %v747 = vadd.f32 %v528, %v723
        %v748 = vadd.f32 %v529, %v725
        %v749 = vadd.f32 %v530, %v728
        %v750 = vadd.f32 %v531, %v730
        %v751 = vadd.f32 %v532, %v733
        %v752 = vadd.f32 %v533, %v735
        %vm753 = vcmask 1045504
        %v754 = vrot.slane %v373, 2
        %v755 = vrot.slane %v374, 2
        %v756 = vsel %vm753, %v754, %v755
        %v757 = vrot.slane %v375, 2
        %v758 = vsel %vm753, %v755, %v757
        %v759 = vrot.slane %v376, 2
        %v760 = vrot.slane %v377, 2
        %v761 = vsel %vm753, %v759, %v760
        %v762 = vrot.slane %v378, 2
        %v763 = vsel %vm753, %v760, %v762
        %v764 = vrot.slane %v379, 2
        %v765 = vrot.slane %v380, 2
        %v766 = vsel %vm753, %v764, %v765
        %v767 = vrot.slane %v381, 2
        %v768 = vsel %vm753, %v765, %v767
        %v769 = vrot.slane %v382, 2
        %v770 = vrot.slane %v383, 2
        %v771 = vsel %vm753, %v769, %v770
        %v772 = vrot.slane %v384, 2
        %v773 = vsel %vm753, %v770, %v772
        %v774 = vrot.slane %v385, 2
        %v775 = vrot.slane %v386, 2
        %v776 = vsel %vm753, %v774, %v775
        %v777 = vrot.slane %v387, 2
        %v778 = vsel %vm753, %v775, %v777
        %v779 = vrot.slane %v388, 2
        %v780 = vrot.slane %v389, 2
        %v781 = vsel %vm753, %v779, %v780
        %v782 = vrot.slane %v390, 2
        %v783 = vsel %vm753, %v780, %v782
        %v784 = vrot.slane %v391, 2
        %v785 = vrot.slane %v392, 2
        %v786 = vsel %vm753, %v784, %v785
        %v787 = vrot.slane %v393, 2
        %v788 = vsel %vm753, %v785, %v787
        %v789 = vrot.slane %v394, 2
        %v790 = vrot.slane %v395, 2
        %v791 = vsel %vm753, %v789, %v790
        %v792 = vrot.slane %v396, 2
        %v793 = vsel %vm753, %v790, %v792
        %v810 = vpack.c.bf16 %v758, %v756
        %v811 = vpack.c.bf16 %v763, %v761
        %v812 = vpack.c.bf16 %v768, %v766
        %v813 = vpack.c.bf16 %v773, %v771
        %v814 = vpack.c.bf16 %v778, %v776
        %v815 = vpack.c.bf16 %v783, %v781
        %v816 = vpack.c.bf16 %v788, %v786
        %v817 = vpack.c.bf16 %v793, %v791
        %s818 = scalar_lea.vmem %s1, 128
        %v819 = vld [vmem:[%s818] sm:$0xf]
        %v820 = vld [vmem:[%s818 + $0x4] sm:$0xf]
        %v821 = vld [vmem:[%s818 + $0x8] sm:$0xf]
        %v822 = vld [vmem:[%s818 + $0xc] sm:$0xf]
        %v823 = vld [vmem:[%s818 + $0x10] sm:$0xf]
        %v824 = vld [vmem:[%s818 + $0x14] sm:$0xf]
        %v825 = vld [vmem:[%s818 + $0x18] sm:$0xf]
        %v826 = vld [vmem:[%s818 + $0x1c] sm:$0xf]
        %v827 = vld [vmem:[%s818 + $0x20] sm:$0xf]
        %v828 = vld [vmem:[%s818 + $0x24] sm:$0xf]
        %v829 = vld [vmem:[%s818 + $0x28] sm:$0xf]
        %v830 = vld [vmem:[%s818 + $0x2c] sm:$0xf]
        %v831 = vld [vmem:[%s818 + $0x30] sm:$0xf]
        %v832 = vld [vmem:[%s818 + $0x34] sm:$0xf]
        %v833 = vld [vmem:[%s818 + $0x38] sm:$0xf]
        %v834 = vld [vmem:[%s818 + $0x3c] sm:$0xf]
        %v851 = vunpack.c.l.b16 %v819
        %v852 = vunpack.c.l.b16 %v820
        %v853 = vunpack.c.l.b16 %v821
        %v854 = vunpack.c.l.b16 %v822
        %v855 = vunpack.c.l.b16 %v823
        %v856 = vunpack.c.l.b16 %v824
        %v857 = vunpack.c.l.b16 %v825
        %v858 = vunpack.c.l.b16 %v826
        %v859 = vunpack.c.l.b16 %v827
        %v860 = vunpack.c.l.b16 %v828
        %v861 = vunpack.c.l.b16 %v829
        %v862 = vunpack.c.l.b16 %v830
        %v863 = vunpack.c.l.b16 %v831
        %v864 = vunpack.c.l.b16 %v832
        %v865 = vunpack.c.l.b16 %v833
        %v866 = vunpack.c.l.b16 %v834
        %v867 = vpack.c.b16 %v852, %v851
        %v868 = vpack.c.b16 %v854, %v853
        %v869 = vpack.c.b16 %v856, %v855
        %v870 = vpack.c.b16 %v858, %v857
        %v871 = vpack.c.b16 %v860, %v859
        %v872 = vpack.c.b16 %v862, %v861
        %v873 = vpack.c.b16 %v864, %v863
        %v874 = vpack.c.b16 %v866, %v865
        %883 = vmatpush.bf16.msra.mxu0 %v874
        %884 = vmatpush.bf16.msra.mxu0 %v873
        %885 = vmatpush.bf16.msra.mxu0 %v872
        %886 = vmatpush.bf16.msra.mxu0 %v871
        %887 = vmatpush.bf16.msra.mxu0 %v870
        %888 = vmatpush.bf16.msra.mxu0 %v869
        %889 = vmatpush.bf16.msra.mxu0 %v868
        %890 = vmatpush.bf16.msra.mxu0 %v867
        %891 = vmatmul.bf16.gmra.mxu0 %v810
        %v892 = vpop.f32.mrf.mxu0
        %v893 = vadd.f32 0.0, %v892
        %v894 = vpop.f32.mrf.mxu0
        %v895 = vadd.f32 0.0, %v894
        %896 = vmatmul.bf16.gmra.mxu0 %v811
        %v897 = vpop.f32.mrf.mxu0
        %v898 = vadd.f32 0.0, %v897
        %v899 = vpop.f32.mrf.mxu0
        %v900 = vadd.f32 0.0, %v899
        %901 = vmatmul.bf16.gmra.mxu0 %v812
        %v902 = vpop.f32.mrf.mxu0
        %v903 = vadd.f32 0.0, %v902
        %v904 = vpop.f32.mrf.mxu0
        %v905 = vadd.f32 0.0, %v904
        %906 = vmatmul.bf16.gmra.mxu0 %v813
        %v907 = vpop.f32.mrf.mxu0
        %v908 = vadd.f32 0.0, %v907
        %v909 = vpop.f32.mrf.mxu0
        %v910 = vadd.f32 0.0, %v909
        %911 = vmatmul.bf16.gmra.mxu0 %v814
        %v912 = vpop.f32.mrf.mxu0
        %v913 = vadd.f32 0.0, %v912
        %v914 = vpop.f32.mrf.mxu0
        %v915 = vadd.f32 0.0, %v914
        %916 = vmatmul.bf16.gmra.mxu0 %v815
        %v917 = vpop.f32.mrf.mxu0
        %v918 = vadd.f32 0.0, %v917
        %v919 = vpop.f32.mrf.mxu0
        %v920 = vadd.f32 0.0, %v919
        %921 = vmatmul.bf16.gmra.mxu0 %v816
        %v922 = vpop.f32.mrf.mxu0
        %v923 = vadd.f32 0.0, %v922
        %v924 = vpop.f32.mrf.mxu0
        %v925 = vadd.f32 0.0, %v924
        %926 = vmatmul.bf16.gmra.mxu0 %v817
        %v927 = vpop.f32.mrf.mxu0
        %v928 = vadd.f32 0.0, %v927
        %v929 = vpop.f32.mrf.mxu0
        %v930 = vadd.f32 0.0, %v929
        %931 = vdwg.mxu0
        %v932 = vadd.f32 %v737, %v893
        %v933 = vadd.f32 %v738, %v895
        %v934 = vadd.f32 %v739, %v898
        %v935 = vadd.f32 %v740, %v900
        %v936 = vadd.f32 %v741, %v903
        %v937 = vadd.f32 %v742, %v905
        %v938 = vadd.f32 %v743, %v908
        %v939 = vadd.f32 %v744, %v910
        %v940 = vadd.f32 %v745, %v913
        %v941 = vadd.f32 %v746, %v915
        %v942 = vadd.f32 %v747, %v918
        %v943 = vadd.f32 %v748, %v920
        %v944 = vadd.f32 %v749, %v923
        %v945 = vadd.f32 %v750, %v925
        %v946 = vadd.f32 %v751, %v928
        %v947 = vadd.f32 %v752, %v930
        %v948 = vld [vmem:[%s230] sm:$0xff]
        %v949 = vld [vmem:[%s230 + $0x8] sm:$0xff]
        %v950 = vld [vmem:[%s230 + $0x10] sm:$0x3]
        %v951 = vld [vmem:[%s230 + $0x18] sm:$0xff]
        %v952 = vld [vmem:[%s230 + $0x20] sm:$0xff]
        %v953 = vld [vmem:[%s230 + $0x28] sm:$0x3]
        %v954 = vld [vmem:[%s230 + $0x30] sm:$0xff]
        %v955 = vld [vmem:[%s230 + $0x38] sm:$0xff]
        %v956 = vld [vmem:[%s230 + $0x40] sm:$0x3]
        %v957 = vld [vmem:[%s230 + $0x48] sm:$0xff]
        %v958 = vld [vmem:[%s230 + $0x50] sm:$0xff]
        %v959 = vld [vmem:[%s230 + $0x58] sm:$0x3]
        %v960 = vld [vmem:[%s230 + $0x60] sm:$0xff]
        %v961 = vld [vmem:[%s230 + $0x68] sm:$0xff]
        %v962 = vld [vmem:[%s230 + $0x70] sm:$0x3]
        %v963 = vld [vmem:[%s230 + $0x78] sm:$0xff]
        %v964 = vld [vmem:[%s230 + $0x80] sm:$0xff]
        %v965 = vld [vmem:[%s230 + $0x88] sm:$0x3]
        %v966 = vld [vmem:[%s230 + $0x90] sm:$0xff]
        %v967 = vld [vmem:[%s230 + $0x98] sm:$0xff]
        %v968 = vld [vmem:[%s230 + $0xa0] sm:$0x3]
        %v969 = vld [vmem:[%s230 + $0xa8] sm:$0xff]
        %v970 = vld [vmem:[%s230 + $0xb0] sm:$0xff]
        %v971 = vld [vmem:[%s230 + $0xb8] sm:$0x3]
        %v972 = vpack.c.bf16 %v949, %v948
        %v973 = vpack.c.bf16 %v952, %v951
        %v974 = vpack.c.bf16 %v955, %v954
        %v975 = vpack.c.bf16 %v958, %v957
        %v976 = vpack.c.bf16 %v961, %v960
        %v977 = vpack.c.bf16 %v964, %v963
        %v978 = vpack.c.bf16 %v967, %v966
        %v979 = vpack.c.bf16 %v970, %v969
        %s980 = scalar_lea.vmem %s1, 192
        %v981 = vld [vmem:[%s980] sm:$0xf]
        %v982 = vld [vmem:[%s980 + $0x4] sm:$0xf]
        %v983 = vld [vmem:[%s980 + $0x8] sm:$0xf]
        %v984 = vld [vmem:[%s980 + $0xc] sm:$0xf]
        %v985 = vld [vmem:[%s980 + $0x10] sm:$0xf]
        %v986 = vld [vmem:[%s980 + $0x14] sm:$0xf]
        %v987 = vld [vmem:[%s980 + $0x18] sm:$0xf]
        %v988 = vld [vmem:[%s980 + $0x1c] sm:$0xf]
        %v989 = vld [vmem:[%s980 + $0x20] sm:$0xf]
        %v990 = vld [vmem:[%s980 + $0x24] sm:$0xf]
        %v991 = vld [vmem:[%s980 + $0x28] sm:$0xf]
        %v992 = vld [vmem:[%s980 + $0x2c] sm:$0xf]
        %v993 = vld [vmem:[%s980 + $0x30] sm:$0xf]
        %v994 = vld [vmem:[%s980 + $0x34] sm:$0xf]
        %v995 = vld [vmem:[%s980 + $0x38] sm:$0xf]
        %v996 = vld [vmem:[%s980 + $0x3c] sm:$0xf]
        %v1013 = vunpack.c.l.b16 %v981
        %v1014 = vunpack.c.l.b16 %v982
        %v1015 = vunpack.c.l.b16 %v983
        %v1016 = vunpack.c.l.b16 %v984
        %v1017 = vunpack.c.l.b16 %v985
        %v1018 = vunpack.c.l.b16 %v986
        %v1019 = vunpack.c.l.b16 %v987
        %v1020 = vunpack.c.l.b16 %v988
        %v1021 = vunpack.c.l.b16 %v989
        %v1022 = vunpack.c.l.b16 %v990
        %v1023 = vunpack.c.l.b16 %v991
        %v1024 = vunpack.c.l.b16 %v992
        %v1025 = vunpack.c.l.b16 %v993
        %v1026 = vunpack.c.l.b16 %v994
        %v1027 = vunpack.c.l.b16 %v995
        %v1028 = vunpack.c.l.b16 %v996
        %v1029 = vpack.c.b16 %v1014, %v1013
        %v1030 = vpack.c.b16 %v1016, %v1015
        %v1031 = vpack.c.b16 %v1018, %v1017
        %v1032 = vpack.c.b16 %v1020, %v1019
        %v1033 = vpack.c.b16 %v1022, %v1021
        %v1034 = vpack.c.b16 %v1024, %v1023
        %v1035 = vpack.c.b16 %v1026, %v1025
        %v1036 = vpack.c.b16 %v1028, %v1027
        %1045 = vmatpush.bf16.msra.mxu0 %v1036
        %1046 = vmatpush.bf16.msra.mxu0 %v1035
        %1047 = vmatpush.bf16.msra.mxu0 %v1034
        %1048 = vmatpush.bf16.msra.mxu0 %v1033
        %1049 = vmatpush.bf16.msra.mxu0 %v1032
        %1050 = vmatpush.bf16.msra.mxu0 %v1031
        %1051 = vmatpush.bf16.msra.mxu0 %v1030
        %1052 = vmatpush.bf16.msra.mxu0 %v1029
        %1053 = vmatmul.bf16.gmra.mxu0 %v972
        %v1054 = vpop.f32.mrf.mxu0
        %v1055 = vadd.f32 0.0, %v1054
        %v1056 = vpop.f32.mrf.mxu0
        %v1057 = vadd.f32 0.0, %v1056
        %1058 = vmatmul.bf16.gmra.mxu0 %v973
        %v1059 = vpop.f32.mrf.mxu0
        %v1060 = vadd.f32 0.0, %v1059
        %v1061 = vpop.f32.mrf.mxu0
        %v1062 = vadd.f32 0.0, %v1061
        %1063 = vmatmul.bf16.gmra.mxu0 %v974
        %v1064 = vpop.f32.mrf.mxu0
        %v1065 = vadd.f32 0.0, %v1064
        %v1066 = vpop.f32.mrf.mxu0
        %v1067 = vadd.f32 0.0, %v1066
        %1068 = vmatmul.bf16.gmra.mxu0 %v975
        %v1069 = vpop.f32.mrf.mxu0
        %v1070 = vadd.f32 0.0, %v1069
        %v1071 = vpop.f32.mrf.mxu0
        %v1072 = vadd.f32 0.0, %v1071
        %1073 = vmatmul.bf16.gmra.mxu0 %v976
        %v1074 = vpop.f32.mrf.mxu0
        %v1075 = vadd.f32 0.0, %v1074
        %v1076 = vpop.f32.mrf.mxu0
        %v1077 = vadd.f32 0.0, %v1076
        %1078 = vmatmul.bf16.gmra.mxu0 %v977
        %v1079 = vpop.f32.mrf.mxu0
        %v1080 = vadd.f32 0.0, %v1079
        %v1081 = vpop.f32.mrf.mxu0
        %v1082 = vadd.f32 0.0, %v1081
        %1083 = vmatmul.bf16.gmra.mxu0 %v978
        %v1084 = vpop.f32.mrf.mxu0
        %v1085 = vadd.f32 0.0, %v1084
        %v1086 = vpop.f32.mrf.mxu0
        %v1087 = vadd.f32 0.0, %v1086
        %1088 = vmatmul.bf16.gmra.mxu0 %v979
        %v1089 = vpop.f32.mrf.mxu0
        %v1090 = vadd.f32 0.0, %v1089
        %v1091 = vpop.f32.mrf.mxu0
        %v1092 = vadd.f32 0.0, %v1091
        %1093 = vdwg.mxu0
        %v1094 = vadd.f32 %v932, %v1055
        %v1095 = vadd.f32 %v933, %v1057
        %v1096 = vadd.f32 %v934, %v1060
        %v1097 = vadd.f32 %v935, %v1062
        %v1098 = vadd.f32 %v936, %v1065
        %v1099 = vadd.f32 %v937, %v1067
        %v1100 = vadd.f32 %v938, %v1070
        %v1101 = vadd.f32 %v939, %v1072
        %v1102 = vadd.f32 %v940, %v1075
        %v1103 = vadd.f32 %v941, %v1077
        %v1104 = vadd.f32 %v942, %v1080
        %v1105 = vadd.f32 %v943, %v1082
        %v1106 = vadd.f32 %v944, %v1085
        %v1107 = vadd.f32 %v945, %v1087
        %v1108 = vadd.f32 %v946, %v1090
        %v1109 = vadd.f32 %v947, %v1092
        %v1134 = vrot.slane %v948, 1
        %v1135 = vrot.slane %v949, 1
        %v1136 = vsel %vm558, %v1134, %v1135
        %v1137 = vrot.slane %v950, 1
        %v1138 = vsel %vm558, %v1135, %v1137
        %v1139 = vrot.slane %v951, 1
        %v1140 = vrot.slane %v952, 1
        %v1141 = vsel %vm558, %v1139, %v1140
        %v1142 = vrot.slane %v953, 1
        %v1143 = vsel %vm558, %v1140, %v1142
        %v1144 = vrot.slane %v954, 1
        %v1145 = vrot.slane %v955, 1
        %v1146 = vsel %vm558, %v1144, %v1145
        %v1147 = vrot.slane %v956, 1
        %v1148 = vsel %vm558, %v1145, %v1147
        %v1149 = vrot.slane %v957, 1
        %v1150 = vrot.slane %v958, 1
        %v1151 = vsel %vm558, %v1149, %v1150
        %v1152 = vrot.slane %v959, 1
        %v1153 = vsel %vm558, %v1150, %v1152
        %v1154 = vrot.slane %v960, 1
        %v1155 = vrot.slane %v961, 1
        %v1156 = vsel %vm558, %v1154, %v1155
        %v1157 = vrot.slane %v962, 1
        %v1158 = vsel %vm558, %v1155, %v1157
        %v1159 = vrot.slane %v963, 1
        %v1160 = vrot.slane %v964, 1
        %v1161 = vsel %vm558, %v1159, %v1160
        %v1162 = vrot.slane %v965, 1
        %v1163 = vsel %vm558, %v1160, %v1162
        %v1164 = vrot.slane %v966, 1
        %v1165 = vrot.slane %v967, 1
        %v1166 = vsel %vm558, %v1164, %v1165
        %v1167 = vrot.slane %v968, 1
        %v1168 = vsel %vm558, %v1165, %v1167
        %v1169 = vrot.slane %v969, 1
        %v1170 = vrot.slane %v970, 1
        %v1171 = vsel %vm558, %v1169, %v1170
        %v1172 = vrot.slane %v971, 1
        %v1173 = vsel %vm558, %v1170, %v1172
        %v1190 = vpack.c.bf16 %v1138, %v1136
        %v1191 = vpack.c.bf16 %v1143, %v1141
        %v1192 = vpack.c.bf16 %v1148, %v1146
        %v1193 = vpack.c.bf16 %v1153, %v1151
        %v1194 = vpack.c.bf16 %v1158, %v1156
        %v1195 = vpack.c.bf16 %v1163, %v1161
        %v1196 = vpack.c.bf16 %v1168, %v1166
        %v1197 = vpack.c.bf16 %v1173, %v1171
        %s1198 = scalar_lea.vmem %s1, 256
        %v1199 = vld [vmem:[%s1198] sm:$0xf]
        %v1200 = vld [vmem:[%s1198 + $0x4] sm:$0xf]
        %v1201 = vld [vmem:[%s1198 + $0x8] sm:$0xf]
        %v1202 = vld [vmem:[%s1198 + $0xc] sm:$0xf]
        %v1203 = vld [vmem:[%s1198 + $0x10] sm:$0xf]
        %v1204 = vld [vmem:[%s1198 + $0x14] sm:$0xf]
        %v1205 = vld [vmem:[%s1198 + $0x18] sm:$0xf]
        %v1206 = vld [vmem:[%s1198 + $0x1c] sm:$0xf]
        %v1207 = vld [vmem:[%s1198 + $0x20] sm:$0xf]
        %v1208 = vld [vmem:[%s1198 + $0x24] sm:$0xf]
        %v1209 = vld [vmem:[%s1198 + $0x28] sm:$0xf]
        %v1210 = vld [vmem:[%s1198 + $0x2c] sm:$0xf]
        %v1211 = vld [vmem:[%s1198 + $0x30] sm:$0xf]
        %v1212 = vld [vmem:[%s1198 + $0x34] sm:$0xf]
        %v1213 = vld [vmem:[%s1198 + $0x38] sm:$0xf]
        %v1214 = vld [vmem:[%s1198 + $0x3c] sm:$0xf]
        %v1231 = vunpack.c.l.b16 %v1199
        %v1232 = vunpack.c.l.b16 %v1200
        %v1233 = vunpack.c.l.b16 %v1201
        %v1234 = vunpack.c.l.b16 %v1202
        %v1235 = vunpack.c.l.b16 %v1203
        %v1236 = vunpack.c.l.b16 %v1204
        %v1237 = vunpack.c.l.b16 %v1205
        %v1238 = vunpack.c.l.b16 %v1206
        %v1239 = vunpack.c.l.b16 %v1207
        %v1240 = vunpack.c.l.b16 %v1208
        %v1241 = vunpack.c.l.b16 %v1209
        %v1242 = vunpack.c.l.b16 %v1210
        %v1243 = vunpack.c.l.b16 %v1211
        %v1244 = vunpack.c.l.b16 %v1212
        %v1245 = vunpack.c.l.b16 %v1213
        %v1246 = vunpack.c.l.b16 %v1214
        %v1247 = vpack.c.b16 %v1232, %v1231
        %v1248 = vpack.c.b16 %v1234, %v1233
        %v1249 = vpack.c.b16 %v1236, %v1235
        %v1250 = vpack.c.b16 %v1238, %v1237
        %v1251 = vpack.c.b16 %v1240, %v1239
        %v1252 = vpack.c.b16 %v1242, %v1241
        %v1253 = vpack.c.b16 %v1244, %v1243
        %v1254 = vpack.c.b16 %v1246, %v1245
        %1263 = vmatpush.bf16.msra.mxu0 %v1254
        %1264 = vmatpush.bf16.msra.mxu0 %v1253
        %1265 = vmatpush.bf16.msra.mxu0 %v1252
        %1266 = vmatpush.bf16.msra.mxu0 %v1251
        %1267 = vmatpush.bf16.msra.mxu0 %v1250
        %1268 = vmatpush.bf16.msra.mxu0 %v1249
        %1269 = vmatpush.bf16.msra.mxu0 %v1248
        %1270 = vmatpush.bf16.msra.mxu0 %v1247
        %1271 = vmatmul.bf16.gmra.mxu0 %v1190
        %v1272 = vpop.f32.mrf.mxu0
        %v1273 = vadd.f32 0.0, %v1272
        %v1274 = vpop.f32.mrf.mxu0
        %v1275 = vadd.f32 0.0, %v1274
        %1276 = vmatmul.bf16.gmra.mxu0 %v1191
        %v1277 = vpop.f32.mrf.mxu0
        %v1278 = vadd.f32 0.0, %v1277
        %v1279 = vpop.f32.mrf.mxu0
        %v1280 = vadd.f32 0.0, %v1279
        %1281 = vmatmul.bf16.gmra.mxu0 %v1192
        %v1282 = vpop.f32.mrf.mxu0
        %v1283 = vadd.f32 0.0, %v1282
        %v1284 = vpop.f32.mrf.mxu0
        %v1285 = vadd.f32 0.0, %v1284
        %1286 = vmatmul.bf16.gmra.mxu0 %v1193
        %v1287 = vpop.f32.mrf.mxu0
        %v1288 = vadd.f32 0.0, %v1287
        %v1289 = vpop.f32.mrf.mxu0
        %v1290 = vadd.f32 0.0, %v1289
        %1291 = vmatmul.bf16.gmra.mxu0 %v1194
        %v1292 = vpop.f32.mrf.mxu0
        %v1293 = vadd.f32 0.0, %v1292
        %v1294 = vpop.f32.mrf.mxu0
        %v1295 = vadd.f32 0.0, %v1294
        %1296 = vmatmul.bf16.gmra.mxu0 %v1195
        %v1297 = vpop.f32.mrf.mxu0
        %v1298 = vadd.f32 0.0, %v1297
        %v1299 = vpop.f32.mrf.mxu0
        %v1300 = vadd.f32 0.0, %v1299
        %1301 = vmatmul.bf16.gmra.mxu0 %v1196
        %v1302 = vpop.f32.mrf.mxu0
        %v1303 = vadd.f32 0.0, %v1302
        %v1304 = vpop.f32.mrf.mxu0
        %v1305 = vadd.f32 0.0, %v1304
        %1306 = vmatmul.bf16.gmra.mxu0 %v1197
        %v1307 = vpop.f32.mrf.mxu0
        %v1308 = vadd.f32 0.0, %v1307
        %v1309 = vpop.f32.mrf.mxu0
        %v1310 = vadd.f32 0.0, %v1309
        %1311 = vdwg.mxu0
        %v1312 = vadd.f32 %v1094, %v1273
        %v1313 = vadd.f32 %v1095, %v1275
        %v1314 = vadd.f32 %v1096, %v1278
        %v1315 = vadd.f32 %v1097, %v1280
        %v1316 = vadd.f32 %v1098, %v1283
        %v1317 = vadd.f32 %v1099, %v1285
        %v1318 = vadd.f32 %v1100, %v1288
        %v1319 = vadd.f32 %v1101, %v1290
        %v1320 = vadd.f32 %v1102, %v1293
        %v1321 = vadd.f32 %v1103, %v1295
        %v1322 = vadd.f32 %v1104, %v1298
        %v1323 = vadd.f32 %v1105, %v1300
        %v1324 = vadd.f32 %v1106, %v1303
        %v1325 = vadd.f32 %v1107, %v1305
        %v1326 = vadd.f32 %v1108, %v1308
        %v1327 = vadd.f32 %v1109, %v1310
        %v1328 = vrot.slane %v948, 2
        %v1329 = vrot.slane %v949, 2
        %v1330 = vsel %vm753, %v1328, %v1329
        %v1331 = vrot.slane %v950, 2
        %v1332 = vsel %vm753, %v1329, %v1331
        %v1333 = vrot.slane %v951, 2
        %v1334 = vrot.slane %v952, 2
        %v1335 = vsel %vm753, %v1333, %v1334
        %v1336 = vrot.slane %v953, 2
        %v1337 = vsel %vm753, %v1334, %v1336
        %v1338 = vrot.slane %v954, 2
        %v1339 = vrot.slane %v955, 2
        %v1340 = vsel %vm753, %v1338, %v1339
        %v1341 = vrot.slane %v956, 2
        %v1342 = vsel %vm753, %v1339, %v1341
        %v1343 = vrot.slane %v957, 2
        %v1344 = vrot.slane %v958, 2
        %v1345 = vsel %vm753, %v1343, %v1344
        %v1346 = vrot.slane %v959, 2
        %v1347 = vsel %vm753, %v1344, %v1346
        %v1348 = vrot.slane %v960, 2
        %v1349 = vrot.slane %v961, 2
        %v1350 = vsel %vm753, %v1348, %v1349
        %v1351 = vrot.slane %v962, 2
        %v1352 = vsel %vm753, %v1349, %v1351
        %v1353 = vrot.slane %v963, 2
        %v1354 = vrot.slane %v964, 2
        %v1355 = vsel %vm753, %v1353, %v1354
        %v1356 = vrot.slane %v965, 2
        %v1357 = vsel %vm753, %v1354, %v1356
        %v1358 = vrot.slane %v966, 2
        %v1359 = vrot.slane %v967, 2
        %v1360 = vsel %vm753, %v1358, %v1359
        %v1361 = vrot.slane %v968, 2
        %v1362 = vsel %vm753, %v1359, %v1361
        %v1363 = vrot.slane %v969, 2
        %v1364 = vrot.slane %v970, 2
        %v1365 = vsel %vm753, %v1363, %v1364
        %v1366 = vrot.slane %v971, 2
        %v1367 = vsel %vm753, %v1364, %v1366
        %v1384 = vpack.c.bf16 %v1332, %v1330
        %v1385 = vpack.c.bf16 %v1337, %v1335
        %v1386 = vpack.c.bf16 %v1342, %v1340
        %v1387 = vpack.c.bf16 %v1347, %v1345
        %v1388 = vpack.c.bf16 %v1352, %v1350
        %v1389 = vpack.c.bf16 %v1357, %v1355
        %v1390 = vpack.c.bf16 %v1362, %v1360
        %v1391 = vpack.c.bf16 %v1367, %v1365
        %s1392 = scalar_lea.vmem %s1, 320
        %v1393 = vld [vmem:[%s1392] sm:$0xf]
        %v1394 = vld [vmem:[%s1392 + $0x4] sm:$0xf]
        %v1395 = vld [vmem:[%s1392 + $0x8] sm:$0xf]
        %v1396 = vld [vmem:[%s1392 + $0xc] sm:$0xf]
        %v1397 = vld [vmem:[%s1392 + $0x10] sm:$0xf]
        %v1398 = vld [vmem:[%s1392 + $0x14] sm:$0xf]
        %v1399 = vld [vmem:[%s1392 + $0x18] sm:$0xf]
        %v1400 = vld [vmem:[%s1392 + $0x1c] sm:$0xf]
        %v1401 = vld [vmem:[%s1392 + $0x20] sm:$0xf]
        %v1402 = vld [vmem:[%s1392 + $0x24] sm:$0xf]
        %v1403 = vld [vmem:[%s1392 + $0x28] sm:$0xf]
        %v1404 = vld [vmem:[%s1392 + $0x2c] sm:$0xf]
        %v1405 = vld [vmem:[%s1392 + $0x30] sm:$0xf]
        %v1406 = vld [vmem:[%s1392 + $0x34] sm:$0xf]
        %v1407 = vld [vmem:[%s1392 + $0x38] sm:$0xf]
        %v1408 = vld [vmem:[%s1392 + $0x3c] sm:$0xf]
        %v1425 = vunpack.c.l.b16 %v1393
        %v1426 = vunpack.c.l.b16 %v1394
        %v1427 = vunpack.c.l.b16 %v1395
        %v1428 = vunpack.c.l.b16 %v1396
        %v1429 = vunpack.c.l.b16 %v1397
        %v1430 = vunpack.c.l.b16 %v1398
        %v1431 = vunpack.c.l.b16 %v1399
        %v1432 = vunpack.c.l.b16 %v1400
        %v1433 = vunpack.c.l.b16 %v1401
        %v1434 = vunpack.c.l.b16 %v1402
        %v1435 = vunpack.c.l.b16 %v1403
        %v1436 = vunpack.c.l.b16 %v1404
        %v1437 = vunpack.c.l.b16 %v1405
        %v1438 = vunpack.c.l.b16 %v1406
        %v1439 = vunpack.c.l.b16 %v1407
        %v1440 = vunpack.c.l.b16 %v1408
        %v1441 = vpack.c.b16 %v1426, %v1425
        %v1442 = vpack.c.b16 %v1428, %v1427
        %v1443 = vpack.c.b16 %v1430, %v1429
        %v1444 = vpack.c.b16 %v1432, %v1431
        %v1445 = vpack.c.b16 %v1434, %v1433
        %v1446 = vpack.c.b16 %v1436, %v1435
        %v1447 = vpack.c.b16 %v1438, %v1437
        %v1448 = vpack.c.b16 %v1440, %v1439
        %1457 = vmatpush.bf16.msra.mxu0 %v1448
        %1458 = vmatpush.bf16.msra.mxu0 %v1447
        %1459 = vmatpush.bf16.msra.mxu0 %v1446
        %1460 = vmatpush.bf16.msra.mxu0 %v1445
        %1461 = vmatpush.bf16.msra.mxu0 %v1444
        %1462 = vmatpush.bf16.msra.mxu0 %v1443
        %1463 = vmatpush.bf16.msra.mxu0 %v1442
        %1464 = vmatpush.bf16.msra.mxu0 %v1441
        %1465 = vmatmul.bf16.gmra.mxu0 %v1384
        %v1466 = vpop.f32.mrf.mxu0
        %v1467 = vadd.f32 0.0, %v1466
        %v1468 = vpop.f32.mrf.mxu0
        %v1469 = vadd.f32 0.0, %v1468
        %1470 = vmatmul.bf16.gmra.mxu0 %v1385
        %v1471 = vpop.f32.mrf.mxu0
        %v1472 = vadd.f32 0.0, %v1471
        %v1473 = vpop.f32.mrf.mxu0
        %v1474 = vadd.f32 0.0, %v1473
        %1475 = vmatmul.bf16.gmra.mxu0 %v1386
        %v1476 = vpop.f32.mrf.mxu0
        %v1477 = vadd.f32 0.0, %v1476
        %v1478 = vpop.f32.mrf.mxu0
        %v1479 = vadd.f32 0.0, %v1478
        %1480 = vmatmul.bf16.gmra.mxu0 %v1387
        %v1481 = vpop.f32.mrf.mxu0
        %v1482 = vadd.f32 0.0, %v1481
        %v1483 = vpop.f32.mrf.mxu0
        %v1484 = vadd.f32 0.0, %v1483
        %1485 = vmatmul.bf16.gmra.mxu0 %v1388
        %v1486 = vpop.f32.mrf.mxu0
        %v1487 = vadd.f32 0.0, %v1486
        %v1488 = vpop.f32.mrf.mxu0
        %v1489 = vadd.f32 0.0, %v1488
        %1490 = vmatmul.bf16.gmra.mxu0 %v1389
        %v1491 = vpop.f32.mrf.mxu0
        %v1492 = vadd.f32 0.0, %v1491
        %v1493 = vpop.f32.mrf.mxu0
        %v1494 = vadd.f32 0.0, %v1493
        %1495 = vmatmul.bf16.gmra.mxu0 %v1390
        %v1496 = vpop.f32.mrf.mxu0
        %v1497 = vadd.f32 0.0, %v1496
        %v1498 = vpop.f32.mrf.mxu0
        %v1499 = vadd.f32 0.0, %v1498
        %1500 = vmatmul.bf16.gmra.mxu0 %v1391
        %v1501 = vpop.f32.mrf.mxu0
        %v1502 = vadd.f32 0.0, %v1501
        %v1503 = vpop.f32.mrf.mxu0
        %v1504 = vadd.f32 0.0, %v1503
        %1505 = vdwg.mxu0
        %v1506 = vadd.f32 %v1312, %v1467
        %v1507 = vadd.f32 %v1313, %v1469
        %v1508 = vadd.f32 %v1314, %v1472
        %v1509 = vadd.f32 %v1315, %v1474
        %v1510 = vadd.f32 %v1316, %v1477
        %v1511 = vadd.f32 %v1317, %v1479
        %v1512 = vadd.f32 %v1318, %v1482
        %v1513 = vadd.f32 %v1319, %v1484
        %v1514 = vadd.f32 %v1320, %v1487
        %v1515 = vadd.f32 %v1321, %v1489
        %v1516 = vadd.f32 %v1322, %v1492
        %v1517 = vadd.f32 %v1323, %v1494
        %v1518 = vadd.f32 %v1324, %v1497
        %v1519 = vadd.f32 %v1325, %v1499
        %v1520 = vadd.f32 %v1326, %v1502
        %v1521 = vadd.f32 %v1327, %v1504
        %s1522 = scalar_lea.vmem [#allocation2], 48
        %v1523 = vld [vmem:[%s1522] sm:$0xff]
        %v1524 = vld [vmem:[%s1522 + $0x8] sm:$0xff]
        %v1525 = vld [vmem:[%s1522 + $0x10] sm:$0x3]
        %v1526 = vld [vmem:[%s1522 + $0x18] sm:$0xff]
        %v1527 = vld [vmem:[%s1522 + $0x20] sm:$0xff]
        %v1528 = vld [vmem:[%s1522 + $0x28] sm:$0x3]
        %v1529 = vld [vmem:[%s1522 + $0x30] sm:$0xff]
        %v1530 = vld [vmem:[%s1522 + $0x38] sm:$0xff]
        %v1531 = vld [vmem:[%s1522 + $0x40] sm:$0x3]
        %v1532 = vld [vmem:[%s1522 + $0x48] sm:$0xff]
        %v1533 = vld [vmem:[%s1522 + $0x50] sm:$0xff]
        %v1534 = vld [vmem:[%s1522 + $0x58] sm:$0x3]
        %v1535 = vld [vmem:[%s1522 + $0x60] sm:$0xff]
        %v1536 = vld [vmem:[%s1522 + $0x68] sm:$0xff]
        %v1537 = vld [vmem:[%s1522 + $0x70] sm:$0x3]
        %v1538 = vld [vmem:[%s1522 + $0x78] sm:$0xff]
        %v1539 = vld [vmem:[%s1522 + $0x80] sm:$0xff]
        %v1540 = vld [vmem:[%s1522 + $0x88] sm:$0x3]
        %v1541 = vld [vmem:[%s1522 + $0x90] sm:$0xff]
        %v1542 = vld [vmem:[%s1522 + $0x98] sm:$0xff]
        %v1543 = vld [vmem:[%s1522 + $0xa0] sm:$0x3]
        %v1544 = vld [vmem:[%s1522 + $0xa8] sm:$0xff]
        %v1545 = vld [vmem:[%s1522 + $0xb0] sm:$0xff]
        %v1546 = vld [vmem:[%s1522 + $0xb8] sm:$0x3]
        %v1547 = vpack.c.bf16 %v1524, %v1523
        %v1548 = vpack.c.bf16 %v1527, %v1526
        %v1549 = vpack.c.bf16 %v1530, %v1529
        %v1550 = vpack.c.bf16 %v1533, %v1532
        %v1551 = vpack.c.bf16 %v1536, %v1535
        %v1552 = vpack.c.bf16 %v1539, %v1538
        %v1553 = vpack.c.bf16 %v1542, %v1541
        %v1554 = vpack.c.bf16 %v1545, %v1544
        %s1555 = scalar_lea.vmem %s1, 384
        %v1556 = vld [vmem:[%s1555] sm:$0xf]
        %v1557 = vld [vmem:[%s1555 + $0x4] sm:$0xf]
        %v1558 = vld [vmem:[%s1555 + $0x8] sm:$0xf]
        %v1559 = vld [vmem:[%s1555 + $0xc] sm:$0xf]
        %v1560 = vld [vmem:[%s1555 + $0x10] sm:$0xf]
        %v1561 = vld [vmem:[%s1555 + $0x14] sm:$0xf]
        %v1562 = vld [vmem:[%s1555 + $0x18] sm:$0xf]
        %v1563 = vld [vmem:[%s1555 + $0x1c] sm:$0xf]
        %v1564 = vld [vmem:[%s1555 + $0x20] sm:$0xf]
        %v1565 = vld [vmem:[%s1555 + $0x24] sm:$0xf]
        %v1566 = vld [vmem:[%s1555 + $0x28] sm:$0xf]
        %v1567 = vld [vmem:[%s1555 + $0x2c] sm:$0xf]
        %v1568 = vld [vmem:[%s1555 + $0x30] sm:$0xf]
        %v1569 = vld [vmem:[%s1555 + $0x34] sm:$0xf]
        %v1570 = vld [vmem:[%s1555 + $0x38] sm:$0xf]
        %v1571 = vld [vmem:[%s1555 + $0x3c] sm:$0xf]
        %v1588 = vunpack.c.l.b16 %v1556
        %v1589 = vunpack.c.l.b16 %v1557
        %v1590 = vunpack.c.l.b16 %v1558
        %v1591 = vunpack.c.l.b16 %v1559
        %v1592 = vunpack.c.l.b16 %v1560
        %v1593 = vunpack.c.l.b16 %v1561
        %v1594 = vunpack.c.l.b16 %v1562
        %v1595 = vunpack.c.l.b16 %v1563
        %v1596 = vunpack.c.l.b16 %v1564
        %v1597 = vunpack.c.l.b16 %v1565
        %v1598 = vunpack.c.l.b16 %v1566
        %v1599 = vunpack.c.l.b16 %v1567
        %v1600 = vunpack.c.l.b16 %v1568
        %v1601 = vunpack.c.l.b16 %v1569
        %v1602 = vunpack.c.l.b16 %v1570
        %v1603 = vunpack.c.l.b16 %v1571
        %v1604 = vpack.c.b16 %v1589, %v1588
        %v1605 = vpack.c.b16 %v1591, %v1590
        %v1606 = vpack.c.b16 %v1593, %v1592
        %v1607 = vpack.c.b16 %v1595, %v1594
        %v1608 = vpack.c.b16 %v1597, %v1596
        %v1609 = vpack.c.b16 %v1599, %v1598
        %v1610 = vpack.c.b16 %v1601, %v1600
        %v1611 = vpack.c.b16 %v1603, %v1602
        %1620 = vmatpush.bf16.msra.mxu0 %v1611
        %1621 = vmatpush.bf16.msra.mxu0 %v1610
        %1622 = vmatpush.bf16.msra.mxu0 %v1609
        %1623 = vmatpush.bf16.msra.mxu0 %v1608
        %1624 = vmatpush.bf16.msra.mxu0 %v1607
        %1625 = vmatpush.bf16.msra.mxu0 %v1606
        %1626 = vmatpush.bf16.msra.mxu0 %v1605
        %1627 = vmatpush.bf16.msra.mxu0 %v1604
        %1628 = vmatmul.bf16.gmra.mxu0 %v1547
        %v1629 = vpop.f32.mrf.mxu0
        %v1630 = vadd.f32 0.0, %v1629
        %v1631 = vpop.f32.mrf.mxu0
        %v1632 = vadd.f32 0.0, %v1631
        %1633 = vmatmul.bf16.gmra.mxu0 %v1548
        %v1634 = vpop.f32.mrf.mxu0
        %v1635 = vadd.f32 0.0, %v1634
        %v1636 = vpop.f32.mrf.mxu0
        %v1637 = vadd.f32 0.0, %v1636
        %1638 = vmatmul.bf16.gmra.mxu0 %v1549
        %v1639 = vpop.f32.mrf.mxu0
        %v1640 = vadd.f32 0.0, %v1639
        %v1641 = vpop.f32.mrf.mxu0
        %v1642 = vadd.f32 0.0, %v1641
        %1643 = vmatmul.bf16.gmra.mxu0 %v1550
        %v1644 = vpop.f32.mrf.mxu0
        %v1645 = vadd.f32 0.0, %v1644
        %v1646 = vpop.f32.mrf.mxu0
        %v1647 = vadd.f32 0.0, %v1646
        %1648 = vmatmul.bf16.gmra.mxu0 %v1551
        %v1649 = vpop.f32.mrf.mxu0
        %v1650 = vadd.f32 0.0, %v1649
        %v1651 = vpop.f32.mrf.mxu0
        %v1652 = vadd.f32 0.0, %v1651
        %1653 = vmatmul.bf16.gmra.mxu0 %v1552
        %v1654 = vpop.f32.mrf.mxu0
        %v1655 = vadd.f32 0.0, %v1654
        %v1656 = vpop.f32.mrf.mxu0
        %v1657 = vadd.f32 0.0, %v1656
        %1658 = vmatmul.bf16.gmra.mxu0 %v1553
        %v1659 = vpop.f32.mrf.mxu0
        %v1660 = vadd.f32 0.0, %v1659
        %v1661 = vpop.f32.mrf.mxu0
        %v1662 = vadd.f32 0.0, %v1661
        %1663 = vmatmul.bf16.gmra.mxu0 %v1554
        %v1664 = vpop.f32.mrf.mxu0
        %v1665 = vadd.f32 0.0, %v1664
        %v1666 = vpop.f32.mrf.mxu0
        %v1667 = vadd.f32 0.0, %v1666
        %1668 = vdwg.mxu0
        %v1669 = vadd.f32 %v1506, %v1630
        %v1670 = vadd.f32 %v1507, %v1632
        %v1671 = vadd.f32 %v1508, %v1635
        %v1672 = vadd.f32 %v1509, %v1637
        %v1673 = vadd.f32 %v1510, %v1640
        %v1674 = vadd.f32 %v1511, %v1642
        %v1675 = vadd.f32 %v1512, %v1645
        %v1676 = vadd.f32 %v1513, %v1647
        %v1677 = vadd.f32 %v1514, %v1650
        %v1678 = vadd.f32 %v1515, %v1652
        %v1679 = vadd.f32 %v1516, %v1655
        %v1680 = vadd.f32 %v1517, %v1657
        %v1681 = vadd.f32 %v1518, %v1660
        %v1682 = vadd.f32 %v1519, %v1662
        %v1683 = vadd.f32 %v1520, %v1665
        %v1684 = vadd.f32 %v1521, %v1667
        %v1709 = vrot.slane %v1523, 1
        %v1710 = vrot.slane %v1524, 1
        %v1711 = vsel %vm558, %v1709, %v1710
        %v1712 = vrot.slane %v1525, 1
        %v1713 = vsel %vm558, %v1710, %v1712
        %v1714 = vrot.slane %v1526, 1
        %v1715 = vrot.slane %v1527, 1
        %v1716 = vsel %vm558, %v1714, %v1715
        %v1717 = vrot.slane %v1528, 1
        %v1718 = vsel %vm558, %v1715, %v1717
        %v1719 = vrot.slane %v1529, 1
        %v1720 = vrot.slane %v1530, 1
        %v1721 = vsel %vm558, %v1719, %v1720
        %v1722 = vrot.slane %v1531, 1
        %v1723 = vsel %vm558, %v1720, %v1722
        %v1724 = vrot.slane %v1532, 1
        %v1725 = vrot.slane %v1533, 1
        %v1726 = vsel %vm558, %v1724, %v1725
        %v1727 = vrot.slane %v1534, 1
        %v1728 = vsel %vm558, %v1725, %v1727
        %v1729 = vrot.slane %v1535, 1
        %v1730 = vrot.slane %v1536, 1
        %v1731 = vsel %vm558, %v1729, %v1730
        %v1732 = vrot.slane %v1537, 1
        %v1733 = vsel %vm558, %v1730, %v1732
        %v1734 = vrot.slane %v1538, 1
        %v1735 = vrot.slane %v1539, 1
        %v1736 = vsel %vm558, %v1734, %v1735
        %v1737 = vrot.slane %v1540, 1
        %v1738 = vsel %vm558, %v1735, %v1737
        %v1739 = vrot.slane %v1541, 1
        %v1740 = vrot.slane %v1542, 1
        %v1741 = vsel %vm558, %v1739, %v1740
        %v1742 = vrot.slane %v1543, 1
        %v1743 = vsel %vm558, %v1740, %v1742
        %v1744 = vrot.slane %v1544, 1
        %v1745 = vrot.slane %v1545, 1
        %v1746 = vsel %vm558, %v1744, %v1745
        %v1747 = vrot.slane %v1546, 1
        %v1748 = vsel %vm558, %v1745, %v1747
        %v1765 = vpack.c.bf16 %v1713, %v1711
        %v1766 = vpack.c.bf16 %v1718, %v1716
        %v1767 = vpack.c.bf16 %v1723, %v1721
        %v1768 = vpack.c.bf16 %v1728, %v1726
        %v1769 = vpack.c.bf16 %v1733, %v1731
        %v1770 = vpack.c.bf16 %v1738, %v1736
        %v1771 = vpack.c.bf16 %v1743, %v1741
        %v1772 = vpack.c.bf16 %v1748, %v1746
        %s1773 = scalar_lea.vmem %s1, 448
        %v1774 = vld [vmem:[%s1773] sm:$0xf]
        %v1775 = vld [vmem:[%s1773 + $0x4] sm:$0xf]
        %v1776 = vld [vmem:[%s1773 + $0x8] sm:$0xf]
        %v1777 = vld [vmem:[%s1773 + $0xc] sm:$0xf]
        %v1778 = vld [vmem:[%s1773 + $0x10] sm:$0xf]
        %v1779 = vld [vmem:[%s1773 + $0x14] sm:$0xf]
        %v1780 = vld [vmem:[%s1773 + $0x18] sm:$0xf]
        %v1781 = vld [vmem:[%s1773 + $0x1c] sm:$0xf]
        %v1782 = vld [vmem:[%s1773 + $0x20] sm:$0xf]
        %v1783 = vld [vmem:[%s1773 + $0x24] sm:$0xf]
        %v1784 = vld [vmem:[%s1773 + $0x28] sm:$0xf]
        %v1785 = vld [vmem:[%s1773 + $0x2c] sm:$0xf]
        %v1786 = vld [vmem:[%s1773 + $0x30] sm:$0xf]
        %v1787 = vld [vmem:[%s1773 + $0x34] sm:$0xf]
        %v1788 = vld [vmem:[%s1773 + $0x38] sm:$0xf]
        %v1789 = vld [vmem:[%s1773 + $0x3c] sm:$0xf]
        %v1806 = vunpack.c.l.b16 %v1774
        %v1807 = vunpack.c.l.b16 %v1775
        %v1808 = vunpack.c.l.b16 %v1776
        %v1809 = vunpack.c.l.b16 %v1777
        %v1810 = vunpack.c.l.b16 %v1778
        %v1811 = vunpack.c.l.b16 %v1779
        %v1812 = vunpack.c.l.b16 %v1780
        %v1813 = vunpack.c.l.b16 %v1781
        %v1814 = vunpack.c.l.b16 %v1782
        %v1815 = vunpack.c.l.b16 %v1783
        %v1816 = vunpack.c.l.b16 %v1784
        %v1817 = vunpack.c.l.b16 %v1785
        %v1818 = vunpack.c.l.b16 %v1786
        %v1819 = vunpack.c.l.b16 %v1787
        %v1820 = vunpack.c.l.b16 %v1788
        %v1821 = vunpack.c.l.b16 %v1789
        %v1822 = vpack.c.b16 %v1807, %v1806
        %v1823 = vpack.c.b16 %v1809, %v1808
        %v1824 = vpack.c.b16 %v1811, %v1810
        %v1825 = vpack.c.b16 %v1813, %v1812
        %v1826 = vpack.c.b16 %v1815, %v1814
        %v1827 = vpack.c.b16 %v1817, %v1816
        %v1828 = vpack.c.b16 %v1819, %v1818
        %v1829 = vpack.c.b16 %v1821, %v1820
        %1838 = vmatpush.bf16.msra.mxu0 %v1829
        %1839 = vmatpush.bf16.msra.mxu0 %v1828
        %1840 = vmatpush.bf16.msra.mxu0 %v1827
        %1841 = vmatpush.bf16.msra.mxu0 %v1826
        %1842 = vmatpush.bf16.msra.mxu0 %v1825
        %1843 = vmatpush.bf16.msra.mxu0 %v1824
        %1844 = vmatpush.bf16.msra.mxu0 %v1823
        %1845 = vmatpush.bf16.msra.mxu0 %v1822
        %1846 = vmatmul.bf16.gmra.mxu0 %v1765
        %v1847 = vpop.f32.mrf.mxu0
        %v1848 = vadd.f32 0.0, %v1847
        %v1849 = vpop.f32.mrf.mxu0
        %v1850 = vadd.f32 0.0, %v1849
        %1851 = vmatmul.bf16.gmra.mxu0 %v1766
        %v1852 = vpop.f32.mrf.mxu0
        %v1853 = vadd.f32 0.0, %v1852
        %v1854 = vpop.f32.mrf.mxu0
        %v1855 = vadd.f32 0.0, %v1854
        %1856 = vmatmul.bf16.gmra.mxu0 %v1767
        %v1857 = vpop.f32.mrf.mxu0
        %v1858 = vadd.f32 0.0, %v1857
        %v1859 = vpop.f32.mrf.mxu0
        %v1860 = vadd.f32 0.0, %v1859
        %1861 = vmatmul.bf16.gmra.mxu0 %v1768
        %v1862 = vpop.f32.mrf.mxu0
        %v1863 = vadd.f32 0.0, %v1862
        %v1864 = vpop.f32.mrf.mxu0
        %v1865 = vadd.f32 0.0, %v1864
        %1866 = vmatmul.bf16.gmra.mxu0 %v1769
        %v1867 = vpop.f32.mrf.mxu0
        %v1868 = vadd.f32 0.0, %v1867
        %v1869 = vpop.f32.mrf.mxu0
        %v1870 = vadd.f32 0.0, %v1869
        %1871 = vmatmul.bf16.gmra.mxu0 %v1770
        %v1872 = vpop.f32.mrf.mxu0
        %v1873 = vadd.f32 0.0, %v1872
        %v1874 = vpop.f32.mrf.mxu0
        %v1875 = vadd.f32 0.0, %v1874
        %1876 = vmatmul.bf16.gmra.mxu0 %v1771
        %v1877 = vpop.f32.mrf.mxu0
        %v1878 = vadd.f32 0.0, %v1877
        %v1879 = vpop.f32.mrf.mxu0
        %v1880 = vadd.f32 0.0, %v1879
        %1881 = vmatmul.bf16.gmra.mxu0 %v1772
        %v1882 = vpop.f32.mrf.mxu0
        %v1883 = vadd.f32 0.0, %v1882
        %v1884 = vpop.f32.mrf.mxu0
        %v1885 = vadd.f32 0.0, %v1884
        %1886 = vdwg.mxu0
        %v1887 = vadd.f32 %v1669, %v1848
        %v1888 = vadd.f32 %v1670, %v1850
        %v1889 = vadd.f32 %v1671, %v1853
        %v1890 = vadd.f32 %v1672, %v1855
        %v1891 = vadd.f32 %v1673, %v1858
        %v1892 = vadd.f32 %v1674, %v1860
        %v1893 = vadd.f32 %v1675, %v1863
        %v1894 = vadd.f32 %v1676, %v1865
        %v1895 = vadd.f32 %v1677, %v1868
        %v1896 = vadd.f32 %v1678, %v1870
        %v1897 = vadd.f32 %v1679, %v1873
        %v1898 = vadd.f32 %v1680, %v1875
        %v1899 = vadd.f32 %v1681, %v1878
        %v1900 = vadd.f32 %v1682, %v1880
        %v1901 = vadd.f32 %v1683, %v1883
        %v1902 = vadd.f32 %v1684, %v1885
        %v1903 = vrot.slane %v1523, 2
        %v1904 = vrot.slane %v1524, 2
        %v1905 = vsel %vm753, %v1903, %v1904
        %v1906 = vrot.slane %v1525, 2
        %v1907 = vsel %vm753, %v1904, %v1906
        %v1908 = vrot.slane %v1526, 2
        %v1909 = vrot.slane %v1527, 2
        %v1910 = vsel %vm753, %v1908, %v1909
        %v1911 = vrot.slane %v1528, 2
        %v1912 = vsel %vm753, %v1909, %v1911
        %v1913 = vrot.slane %v1529, 2
        %v1914 = vrot.slane %v1530, 2
        %v1915 = vsel %vm753, %v1913, %v1914
        %v1916 = vrot.slane %v1531, 2
        %v1917 = vsel %vm753, %v1914, %v1916
        %v1918 = vrot.slane %v1532, 2
        %v1919 = vrot.slane %v1533, 2
        %v1920 = vsel %vm753, %v1918, %v1919
        %v1921 = vrot.slane %v1534, 2
        %v1922 = vsel %vm753, %v1919, %v1921
        %v1923 = vrot.slane %v1535, 2
        %v1924 = vrot.slane %v1536, 2
        %v1925 = vsel %vm753, %v1923, %v1924
        %v1926 = vrot.slane %v1537, 2
        %v1927 = vsel %vm753, %v1924, %v1926
        %v1928 = vrot.slane %v1538, 2
        %v1929 = vrot.slane %v1539, 2
        %v1930 = vsel %vm753, %v1928, %v1929
        %v1931 = vrot.slane %v1540, 2
        %v1932 = vsel %vm753, %v1929, %v1931
        %v1933 = vrot.slane %v1541, 2
        %v1934 = vrot.slane %v1542, 2
        %v1935 = vsel %vm753, %v1933, %v1934
        %v1936 = vrot.slane %v1543, 2
        %v1937 = vsel %vm753, %v1934, %v1936
        %v1938 = vrot.slane %v1544, 2
        %v1939 = vrot.slane %v1545, 2
        %v1940 = vsel %vm753, %v1938, %v1939
        %v1941 = vrot.slane %v1546, 2
        %v1942 = vsel %vm753, %v1939, %v1941
        %v1959 = vpack.c.bf16 %v1907, %v1905
        %v1960 = vpack.c.bf16 %v1912, %v1910
        %v1961 = vpack.c.bf16 %v1917, %v1915
        %v1962 = vpack.c.bf16 %v1922, %v1920
        %v1963 = vpack.c.bf16 %v1927, %v1925
        %v1964 = vpack.c.bf16 %v1932, %v1930
        %v1965 = vpack.c.bf16 %v1937, %v1935
        %v1966 = vpack.c.bf16 %v1942, %v1940
        %s1967 = scalar_lea.vmem %s1, 512
        %v1968 = vld [vmem:[%s1967] sm:$0xf]
        %v1969 = vld [vmem:[%s1967 + $0x4] sm:$0xf]
        %v1970 = vld [vmem:[%s1967 + $0x8] sm:$0xf]
        %v1971 = vld [vmem:[%s1967 + $0xc] sm:$0xf]
        %v1972 = vld [vmem:[%s1967 + $0x10] sm:$0xf]
        %v1973 = vld [vmem:[%s1967 + $0x14] sm:$0xf]
        %v1974 = vld [vmem:[%s1967 + $0x18] sm:$0xf]
        %v1975 = vld [vmem:[%s1967 + $0x1c] sm:$0xf]
        %v1976 = vld [vmem:[%s1967 + $0x20] sm:$0xf]
        %v1977 = vld [vmem:[%s1967 + $0x24] sm:$0xf]
        %v1978 = vld [vmem:[%s1967 + $0x28] sm:$0xf]
        %v1979 = vld [vmem:[%s1967 + $0x2c] sm:$0xf]
        %v1980 = vld [vmem:[%s1967 + $0x30] sm:$0xf]
        %v1981 = vld [vmem:[%s1967 + $0x34] sm:$0xf]
        %v1982 = vld [vmem:[%s1967 + $0x38] sm:$0xf]
        %v1983 = vld [vmem:[%s1967 + $0x3c] sm:$0xf]
        %v2000 = vunpack.c.l.b16 %v1968
        %v2001 = vunpack.c.l.b16 %v1969
        %v2002 = vunpack.c.l.b16 %v1970
        %v2003 = vunpack.c.l.b16 %v1971
        %v2004 = vunpack.c.l.b16 %v1972
        %v2005 = vunpack.c.l.b16 %v1973
        %v2006 = vunpack.c.l.b16 %v1974
        %v2007 = vunpack.c.l.b16 %v1975
        %v2008 = vunpack.c.l.b16 %v1976
        %v2009 = vunpack.c.l.b16 %v1977
        %v2010 = vunpack.c.l.b16 %v1978
        %v2011 = vunpack.c.l.b16 %v1979
        %v2012 = vunpack.c.l.b16 %v1980
        %v2013 = vunpack.c.l.b16 %v1981
        %v2014 = vunpack.c.l.b16 %v1982
        %v2015 = vunpack.c.l.b16 %v1983
        %v2016 = vpack.c.b16 %v2001, %v2000
        %v2017 = vpack.c.b16 %v2003, %v2002
        %v2018 = vpack.c.b16 %v2005, %v2004
        %v2019 = vpack.c.b16 %v2007, %v2006
        %v2020 = vpack.c.b16 %v2009, %v2008
        %v2021 = vpack.c.b16 %v2011, %v2010
        %v2022 = vpack.c.b16 %v2013, %v2012
        %v2023 = vpack.c.b16 %v2015, %v2014
        %2032 = vmatpush.bf16.msra.mxu0 %v2023
        %2033 = vmatpush.bf16.msra.mxu0 %v2022
        %2034 = vmatpush.bf16.msra.mxu0 %v2021
        %2035 = vmatpush.bf16.msra.mxu0 %v2020
        %2036 = vmatpush.bf16.msra.mxu0 %v2019
        %2037 = vmatpush.bf16.msra.mxu0 %v2018
        %2038 = vmatpush.bf16.msra.mxu0 %v2017
        %2039 = vmatpush.bf16.msra.mxu0 %v2016
        %2040 = vmatmul.bf16.gmra.mxu0 %v1959
        %v2041 = vpop.f32.mrf.mxu0
        %v2042 = vadd.f32 0.0, %v2041
        %v2043 = vpop.f32.mrf.mxu0
        %v2044 = vadd.f32 0.0, %v2043
        %2045 = vmatmul.bf16.gmra.mxu0 %v1960
        %v2046 = vpop.f32.mrf.mxu0
        %v2047 = vadd.f32 0.0, %v2046
        %v2048 = vpop.f32.mrf.mxu0
        %v2049 = vadd.f32 0.0, %v2048
        %2050 = vmatmul.bf16.gmra.mxu0 %v1961
        %v2051 = vpop.f32.mrf.mxu0
        %v2052 = vadd.f32 0.0, %v2051
        %v2053 = vpop.f32.mrf.mxu0
        %v2054 = vadd.f32 0.0, %v2053
        %2055 = vmatmul.bf16.gmra.mxu0 %v1962
        %v2056 = vpop.f32.mrf.mxu0
        %v2057 = vadd.f32 0.0, %v2056
        %v2058 = vpop.f32.mrf.mxu0
        %v2059 = vadd.f32 0.0, %v2058
        %2060 = vmatmul.bf16.gmra.mxu0 %v1963
        %v2061 = vpop.f32.mrf.mxu0
        %v2062 = vadd.f32 0.0, %v2061
        %v2063 = vpop.f32.mrf.mxu0
        %v2064 = vadd.f32 0.0, %v2063
        %2065 = vmatmul.bf16.gmra.mxu0 %v1964
        %v2066 = vpop.f32.mrf.mxu0
        %v2067 = vadd.f32 0.0, %v2066
        %v2068 = vpop.f32.mrf.mxu0
        %v2069 = vadd.f32 0.0, %v2068
        %2070 = vmatmul.bf16.gmra.mxu0 %v1965
        %v2071 = vpop.f32.mrf.mxu0
        %v2072 = vadd.f32 0.0, %v2071
        %v2073 = vpop.f32.mrf.mxu0
        %v2074 = vadd.f32 0.0, %v2073
        %2075 = vmatmul.bf16.gmra.mxu0 %v1966
        %v2076 = vpop.f32.mrf.mxu0
        %v2077 = vadd.f32 0.0, %v2076
        %v2078 = vpop.f32.mrf.mxu0
        %v2079 = vadd.f32 0.0, %v2078
        %2080 = vdwg.mxu0
        %v2081 = vadd.f32 %v1887, %v2042
        %v2082 = vadd.f32 %v1888, %v2044
        %v2083 = vadd.f32 %v1889, %v2047
        %v2084 = vadd.f32 %v1890, %v2049
        %v2085 = vadd.f32 %v1891, %v2052
        %v2086 = vadd.f32 %v1892, %v2054
        %v2087 = vadd.f32 %v1893, %v2057
        %v2088 = vadd.f32 %v1894, %v2059
        %v2089 = vadd.f32 %v1895, %v2062
        %v2090 = vadd.f32 %v1896, %v2064
        %v2091 = vadd.f32 %v1897, %v2067
        %v2092 = vadd.f32 %v1898, %v2069
        %v2093 = vadd.f32 %v1899, %v2072
        %v2094 = vadd.f32 %v1900, %v2074
        %v2095 = vadd.f32 %v1901, %v2077
        %v2096 = vadd.f32 %v1902, %v2079
        %v2097 = vmax.f32 %v2081, 0.0
        %v2098 = vmax.f32 %v2082, 0.0
        %v2099 = vmax.f32 %v2083, 0.0
        %v2100 = vmax.f32 %v2084, 0.0
        %v2101 = vmax.f32 %v2085, 0.0
        %v2102 = vmax.f32 %v2086, 0.0
        %v2103 = vmax.f32 %v2087, 0.0
        %v2104 = vmax.f32 %v2088, 0.0
        %v2105 = vmax.f32 %v2089, 0.0
        %v2106 = vmax.f32 %v2090, 0.0
        %v2107 = vmax.f32 %v2091, 0.0
        %v2108 = vmax.f32 %v2092, 0.0
        %v2109 = vmax.f32 %v2093, 0.0
        %v2110 = vmax.f32 %v2094, 0.0
        %v2111 = vmax.f32 %v2095, 0.0
        %v2112 = vmax.f32 %v2096, 0.0
        %2113 = vst [vmem:[%s270 + $0x1] sm:$0xff] %v2097
        %2114 = vst [vmem:[%s270 + $0x9] sm:$0xff] %v2098
        %2115 = vst [vmem:[%s270 + $0x19] sm:$0xff] %v2099
        %2116 = vst [vmem:[%s270 + $0x21] sm:$0xff] %v2100
        %2117 = vst [vmem:[%s270 + $0x31] sm:$0xff] %v2101
        %2118 = vst [vmem:[%s270 + $0x39] sm:$0xff] %v2102
        %2119 = vst [vmem:[%s270 + $0x49] sm:$0xff] %v2103
        %2120 = vst [vmem:[%s270 + $0x51] sm:$0xff] %v2104
        %2121 = vst [vmem:[%s270 + $0x61] sm:$0xff] %v2105
        %2122 = vst [vmem:[%s270 + $0x69] sm:$0xff] %v2106
        %2123 = vst [vmem:[%s270 + $0x79] sm:$0xff] %v2107
        %2124 = vst [vmem:[%s270 + $0x81] sm:$0xff] %v2108
        %2125 = vst [vmem:[%s270 + $0x91] sm:$0xff] %v2109
        %2126 = vst [vmem:[%s270 + $0x99] sm:$0xff] %v2110
        %2127 = vst [vmem:[%s270 + $0xa9] sm:$0xff] %v2111
        %2128 = vst [vmem:[%s270 + $0xb1] sm:$0xff] %v2112
        %s2129 = scalar_lea.vmem [#allocation2], 192
        %v2130 = vld [vmem:[%s2129] sm:$0xff]
        %v2131 = vld [vmem:[%s2129 + $0x8] sm:$0xff]
        %v2132 = vld [vmem:[%s2129 + $0x10] sm:$0x3]
        %v2133 = vld [vmem:[%s2129 + $0x18] sm:$0xff]
        %v2134 = vld [vmem:[%s2129 + $0x20] sm:$0xff]
        %v2135 = vld [vmem:[%s2129 + $0x28] sm:$0x3]
        %v2136 = vld [vmem:[%s2129 + $0x30] sm:$0xff]
        %v2137 = vld [vmem:[%s2129 + $0x38] sm:$0xff]
        %v2138 = vld [vmem:[%s2129 + $0x40] sm:$0x3]
        %v2139 = vld [vmem:[%s2129 + $0x48] sm:$0xff]
        %v2140 = vld [vmem:[%s2129 + $0x50] sm:$0xff]
        %v2141 = vld [vmem:[%s2129 + $0x58] sm:$0x3]
        %v2142 = vld [vmem:[%s2129 + $0x60] sm:$0xff]
        %v2143 = vld [vmem:[%s2129 + $0x68] sm:$0xff]
        %v2144 = vld [vmem:[%s2129 + $0x70] sm:$0x3]
        %v2145 = vld [vmem:[%s2129 + $0x78] sm:$0xff]
        %v2146 = vld [vmem:[%s2129 + $0x80] sm:$0xff]
        %v2147 = vld [vmem:[%s2129 + $0x88] sm:$0x3]
        %v2148 = vld [vmem:[%s2129 + $0x90] sm:$0xff]
        %v2149 = vld [vmem:[%s2129 + $0x98] sm:$0xff]
        %v2150 = vld [vmem:[%s2129 + $0xa0] sm:$0x3]
        %v2151 = vld [vmem:[%s2129 + $0xa8] sm:$0xff]
        %v2152 = vld [vmem:[%s2129 + $0xb0] sm:$0xff]
        %v2153 = vld [vmem:[%s2129 + $0xb8] sm:$0x3]
        %v2154 = vpack.c.bf16 %v2131, %v2130
        %v2155 = vpack.c.bf16 %v2134, %v2133
        %v2156 = vpack.c.bf16 %v2137, %v2136
        %v2157 = vpack.c.bf16 %v2140, %v2139
        %v2158 = vpack.c.bf16 %v2143, %v2142
        %v2159 = vpack.c.bf16 %v2146, %v2145
        %v2160 = vpack.c.bf16 %v2149, %v2148
        %v2161 = vpack.c.bf16 %v2152, %v2151
        %v2162 = vld [vmem:[%s1] sm:$0xf]
        %v2163 = vld [vmem:[%s1 + $0x4] sm:$0xf]
        %v2164 = vld [vmem:[%s1 + $0x8] sm:$0xf]
        %v2165 = vld [vmem:[%s1 + $0xc] sm:$0xf]
        %v2166 = vld [vmem:[%s1 + $0x10] sm:$0xf]
        %v2167 = vld [vmem:[%s1 + $0x14] sm:$0xf]
        %v2168 = vld [vmem:[%s1 + $0x18] sm:$0xf]
        %v2169 = vld [vmem:[%s1 + $0x1c] sm:$0xf]
        %v2170 = vld [vmem:[%s1 + $0x20] sm:$0xf]
        %v2171 = vld [vmem:[%s1 + $0x24] sm:$0xf]
        %v2172 = vld [vmem:[%s1 + $0x28] sm:$0xf]
        %v2173 = vld [vmem:[%s1 + $0x2c] sm:$0xf]
        %v2174 = vld [vmem:[%s1 + $0x30] sm:$0xf]
        %v2175 = vld [vmem:[%s1 + $0x34] sm:$0xf]
        %v2176 = vld [vmem:[%s1 + $0x38] sm:$0xf]
        %v2177 = vld [vmem:[%s1 + $0x3c] sm:$0xf]
        %v2194 = vunpack.c.l.b16 %v2162
        %v2195 = vunpack.c.l.b16 %v2163
        %v2196 = vunpack.c.l.b16 %v2164
        %v2197 = vunpack.c.l.b16 %v2165
        %v2198 = vunpack.c.l.b16 %v2166
        %v2199 = vunpack.c.l.b16 %v2167
        %v2200 = vunpack.c.l.b16 %v2168
        %v2201 = vunpack.c.l.b16 %v2169
        %v2202 = vunpack.c.l.b16 %v2170
        %v2203 = vunpack.c.l.b16 %v2171
        %v2204 = vunpack.c.l.b16 %v2172
        %v2205 = vunpack.c.l.b16 %v2173
        %v2206 = vunpack.c.l.b16 %v2174
        %v2207 = vunpack.c.l.b16 %v2175
        %v2208 = vunpack.c.l.b16 %v2176
        %v2209 = vunpack.c.l.b16 %v2177
        %v2210 = vpack.c.b16 %v2195, %v2194
        %v2211 = vpack.c.b16 %v2197, %v2196
        %v2212 = vpack.c.b16 %v2199, %v2198
        %v2213 = vpack.c.b16 %v2201, %v2200
        %v2214 = vpack.c.b16 %v2203, %v2202
        %v2215 = vpack.c.b16 %v2205, %v2204
        %v2216 = vpack.c.b16 %v2207, %v2206
        %v2217 = vpack.c.b16 %v2209, %v2208
        %2226 = vmatpush.bf16.msra.mxu0 %v2217
        %2227 = vmatpush.bf16.msra.mxu0 %v2216
        %2228 = vmatpush.bf16.msra.mxu0 %v2215
        %2229 = vmatpush.bf16.msra.mxu0 %v2214
        %2230 = vmatpush.bf16.msra.mxu0 %v2213
        %2231 = vmatpush.bf16.msra.mxu0 %v2212
        %2232 = vmatpush.bf16.msra.mxu0 %v2211
        %2233 = vmatpush.bf16.msra.mxu0 %v2210
        %2234 = vmatmul.bf16.gmra.mxu0 %v2154
        %v2235 = vpop.f32.mrf.mxu0
        %v2236 = vadd.f32 0.0, %v2235
        %v2237 = vpop.f32.mrf.mxu0
        %v2238 = vadd.f32 0.0, %v2237
        %2239 = vmatmul.bf16.gmra.mxu0 %v2155
        %v2240 = vpop.f32.mrf.mxu0
        %v2241 = vadd.f32 0.0, %v2240
        %v2242 = vpop.f32.mrf.mxu0
        %v2243 = vadd.f32 0.0, %v2242
        %2244 = vmatmul.bf16.gmra.mxu0 %v2156
        %v2245 = vpop.f32.mrf.mxu0
        %v2246 = vadd.f32 0.0, %v2245
        %v2247 = vpop.f32.mrf.mxu0
        %v2248 = vadd.f32 0.0, %v2247
        %2249 = vmatmul.bf16.gmra.mxu0 %v2157
        %v2250 = vpop.f32.mrf.mxu0
        %v2251 = vadd.f32 0.0, %v2250
        %v2252 = vpop.f32.mrf.mxu0
        %v2253 = vadd.f32 0.0, %v2252
        %2254 = vmatmul.bf16.gmra.mxu0 %v2158
        %v2255 = vpop.f32.mrf.mxu0
        %v2256 = vadd.f32 0.0, %v2255
        %v2257 = vpop.f32.mrf.mxu0
        %v2258 = vadd.f32 0.0, %v2257
        %2259 = vmatmul.bf16.gmra.mxu0 %v2159
        %v2260 = vpop.f32.mrf.mxu0
        %v2261 = vadd.f32 0.0, %v2260
        %v2262 = vpop.f32.mrf.mxu0
        %v2263 = vadd.f32 0.0, %v2262
        %2264 = vmatmul.bf16.gmra.mxu0 %v2160
        %v2265 = vpop.f32.mrf.mxu0
        %v2266 = vadd.f32 0.0, %v2265
        %v2267 = vpop.f32.mrf.mxu0
        %v2268 = vadd.f32 0.0, %v2267
        %2269 = vmatmul.bf16.gmra.mxu0 %v2161
        %v2270 = vpop.f32.mrf.mxu0
        %v2271 = vadd.f32 0.0, %v2270
        %v2272 = vpop.f32.mrf.mxu0
        %v2273 = vadd.f32 0.0, %v2272
        %2274 = vdwg.mxu0
        %v2275 = vadd.f32 %v371, %v2236
        %v2276 = vadd.f32 %v371, %v2238
        %v2277 = vadd.f32 %v371, %v2241
        %v2278 = vadd.f32 %v371, %v2243
        %v2279 = vadd.f32 %v371, %v2246
        %v2280 = vadd.f32 %v371, %v2248
        %v2281 = vadd.f32 %v371, %v2251
        %v2282 = vadd.f32 %v371, %v2253
        %v2283 = vadd.f32 %v371, %v2256
        %v2284 = vadd.f32 %v371, %v2258
        %v2285 = vadd.f32 %v371, %v2261
        %v2286 = vadd.f32 %v371, %v2263
        %v2287 = vadd.f32 %v371, %v2266
        %v2288 = vadd.f32 %v371, %v2268
        %v2289 = vadd.f32 %v371, %v2271
        %v2290 = vadd.f32 %v371, %v2273
        %v2315 = vrot.slane %v2130, 1
        %v2316 = vrot.slane %v2131, 1
        %v2317 = vsel %vm558, %v2315, %v2316
        %v2318 = vrot.slane %v2132, 1
        %v2319 = vsel %vm558, %v2316, %v2318
        %v2320 = vrot.slane %v2133, 1
        %v2321 = vrot.slane %v2134, 1
        %v2322 = vsel %vm558, %v2320, %v2321
        %v2323 = vrot.slane %v2135, 1
        %v2324 = vsel %vm558, %v2321, %v2323
        %v2325 = vrot.slane %v2136, 1
        %v2326 = vrot.slane %v2137, 1
        %v2327 = vsel %vm558, %v2325, %v2326
        %v2328 = vrot.slane %v2138, 1
        %v2329 = vsel %vm558, %v2326, %v2328
        %v2330 = vrot.slane %v2139, 1
        %v2331 = vrot.slane %v2140, 1
        %v2332 = vsel %vm558, %v2330, %v2331
        %v2333 = vrot.slane %v2141, 1
        %v2334 = vsel %vm558, %v2331, %v2333
        %v2335 = vrot.slane %v2142, 1
        %v2336 = vrot.slane %v2143, 1
        %v2337 = vsel %vm558, %v2335, %v2336
        %v2338 = vrot.slane %v2144, 1
        %v2339 = vsel %vm558, %v2336, %v2338
        %v2340 = vrot.slane %v2145, 1
        %v2341 = vrot.slane %v2146, 1
        %v2342 = vsel %vm558, %v2340, %v2341
        %v2343 = vrot.slane %v2147, 1
        %v2344 = vsel %vm558, %v2341, %v2343
        %v2345 = vrot.slane %v2148, 1
        %v2346 = vrot.slane %v2149, 1
        %v2347 = vsel %vm558, %v2345, %v2346
        %v2348 = vrot.slane %v2150, 1
        %v2349 = vsel %vm558, %v2346, %v2348
        %v2350 = vrot.slane %v2151, 1
        %v2351 = vrot.slane %v2152, 1
        %v2352 = vsel %vm558, %v2350, %v2351
        %v2353 = vrot.slane %v2153, 1
        %v2354 = vsel %vm558, %v2351, %v2353
        %v2371 = vpack.c.bf16 %v2319, %v2317
        %v2372 = vpack.c.bf16 %v2324, %v2322
        %v2373 = vpack.c.bf16 %v2329, %v2327
        %v2374 = vpack.c.bf16 %v2334, %v2332
        %v2375 = vpack.c.bf16 %v2339, %v2337
        %v2376 = vpack.c.bf16 %v2344, %v2342
        %v2377 = vpack.c.bf16 %v2349, %v2347
        %v2378 = vpack.c.bf16 %v2354, %v2352
        %v2379 = vld [vmem:[%s623] sm:$0xf]
        %v2380 = vld [vmem:[%s623 + $0x4] sm:$0xf]
        %v2381 = vld [vmem:[%s623 + $0x8] sm:$0xf]
        %v2382 = vld [vmem:[%s623 + $0xc] sm:$0xf]
        %v2383 = vld [vmem:[%s623 + $0x10] sm:$0xf]
        %v2384 = vld [vmem:[%s623 + $0x14] sm:$0xf]
        %v2385 = vld [vmem:[%s623 + $0x18] sm:$0xf]
        %v2386 = vld [vmem:[%s623 + $0x1c] sm:$0xf]
        %v2387 = vld [vmem:[%s623 + $0x20] sm:$0xf]
        %v2388 = vld [vmem:[%s623 + $0x24] sm:$0xf]
        %v2389 = vld [vmem:[%s623 + $0x28] sm:$0xf]
        %v2390 = vld [vmem:[%s623 + $0x2c] sm:$0xf]
        %v2391 = vld [vmem:[%s623 + $0x30] sm:$0xf]
        %v2392 = vld [vmem:[%s623 + $0x34] sm:$0xf]
        %v2393 = vld [vmem:[%s623 + $0x38] sm:$0xf]
        %v2394 = vld [vmem:[%s623 + $0x3c] sm:$0xf]
        %v2411 = vunpack.c.l.b16 %v2379
        %v2412 = vunpack.c.l.b16 %v2380
        %v2413 = vunpack.c.l.b16 %v2381
        %v2414 = vunpack.c.l.b16 %v2382
        %v2415 = vunpack.c.l.b16 %v2383
        %v2416 = vunpack.c.l.b16 %v2384
        %v2417 = vunpack.c.l.b16 %v2385
        %v2418 = vunpack.c.l.b16 %v2386
        %v2419 = vunpack.c.l.b16 %v2387
        %v2420 = vunpack.c.l.b16 %v2388
        %v2421 = vunpack.c.l.b16 %v2389
        %v2422 = vunpack.c.l.b16 %v2390
        %v2423 = vunpack.c.l.b16 %v2391
        %v2424 = vunpack.c.l.b16 %v2392
        %v2425 = vunpack.c.l.b16 %v2393
        %v2426 = vunpack.c.l.b16 %v2394
        %v2427 = vpack.c.b16 %v2412, %v2411
        %v2428 = vpack.c.b16 %v2414, %v2413
        %v2429 = vpack.c.b16 %v2416, %v2415
        %v2430 = vpack.c.b16 %v2418, %v2417
        %v2431 = vpack.c.b16 %v2420, %v2419
        %v2432 = vpack.c.b16 %v2422, %v2421
        %v2433 = vpack.c.b16 %v2424, %v2423
        %v2434 = vpack.c.b16 %v2426, %v2425
        %2443 = vmatpush.bf16.msra.mxu0 %v2434
        %2444 = vmatpush.bf16.msra.mxu0 %v2433
        %2445 = vmatpush.bf16.msra.mxu0 %v2432
        %2446 = vmatpush.bf16.msra.mxu0 %v2431
        %2447 = vmatpush.bf16.msra.mxu0 %v2430
        %2448 = vmatpush.bf16.msra.mxu0 %v2429
        %2449 = vmatpush.bf16.msra.mxu0 %v2428
        %2450 = vmatpush.bf16.msra.mxu0 %v2427
        %2451 = vmatmul.bf16.gmra.mxu0 %v2371
        %v2452 = vpop.f32.mrf.mxu0
        %v2453 = vadd.f32 0.0, %v2452
        %v2454 = vpop.f32.mrf.mxu0
        %v2455 = vadd.f32 0.0, %v2454
        %2456 = vmatmul.bf16.gmra.mxu0 %v2372
        %v2457 = vpop.f32.mrf.mxu0
        %v2458 = vadd.f32 0.0, %v2457
        %v2459 = vpop.f32.mrf.mxu0
        %v2460 = vadd.f32 0.0, %v2459
        %2461 = vmatmul.bf16.gmra.mxu0 %v2373
        %v2462 = vpop.f32.mrf.mxu0
        %v2463 = vadd.f32 0.0, %v2462
        %v2464 = vpop.f32.mrf.mxu0
        %v2465 = vadd.f32 0.0, %v2464
        %2466 = vmatmul.bf16.gmra.mxu0 %v2374
        %v2467 = vpop.f32.mrf.mxu0
        %v2468 = vadd.f32 0.0, %v2467
        %v2469 = vpop.f32.mrf.mxu0
        %v2470 = vadd.f32 0.0, %v2469
        %2471 = vmatmul.bf16.gmra.mxu0 %v2375
        %v2472 = vpop.f32.mrf.mxu0
        %v2473 = vadd.f32 0.0, %v2472
        %v2474 = vpop.f32.mrf.mxu0
        %v2475 = vadd.f32 0.0, %v2474
        %2476 = vmatmul.bf16.gmra.mxu0 %v2376
        %v2477 = vpop.f32.mrf.mxu0
        %v2478 = vadd.f32 0.0, %v2477
        %v2479 = vpop.f32.mrf.mxu0
        %v2480 = vadd.f32 0.0, %v2479
        %2481 = vmatmul.bf16.gmra.mxu0 %v2377
        %v2482 = vpop.f32.mrf.mxu0
        %v2483 = vadd.f32 0.0, %v2482
        %v2484 = vpop.f32.mrf.mxu0
        %v2485 = vadd.f32 0.0, %v2484
        %2486 = vmatmul.bf16.gmra.mxu0 %v2378
        %v2487 = vpop.f32.mrf.mxu0
        %v2488 = vadd.f32 0.0, %v2487
        %v2489 = vpop.f32.mrf.mxu0
        %v2490 = vadd.f32 0.0, %v2489
        %2491 = vdwg.mxu0
        %v2492 = vadd.f32 %v2275, %v2453
        %v2493 = vadd.f32 %v2276, %v2455
        %v2494 = vadd.f32 %v2277, %v2458
        %v2495 = vadd.f32 %v2278, %v2460
        %v2496 = vadd.f32 %v2279, %v2463
        %v2497 = vadd.f32 %v2280, %v2465
        %v2498 = vadd.f32 %v2281, %v2468
        %v2499 = vadd.f32 %v2282, %v2470
        %v2500 = vadd.f32 %v2283, %v2473
        %v2501 = vadd.f32 %v2284, %v2475
        %v2502 = vadd.f32 %v2285, %v2478
        %v2503 = vadd.f32 %v2286, %v2480
        %v2504 = vadd.f32 %v2287, %v2483
        %v2505 = vadd.f32 %v2288, %v2485
        %v2506 = vadd.f32 %v2289, %v2488
        %v2507 = vadd.f32 %v2290, %v2490
        %v2508 = vrot.slane %v2130, 2
        %v2509 = vrot.slane %v2131, 2
        %v2510 = vsel %vm753, %v2508, %v2509
        %v2511 = vrot.slane %v2132, 2
        %v2512 = vsel %vm753, %v2509, %v2511
        %v2513 = vrot.slane %v2133, 2
        %v2514 = vrot.slane %v2134, 2
        %v2515 = vsel %vm753, %v2513, %v2514
        %v2516 = vrot.slane %v2135, 2
        %v2517 = vsel %vm753, %v2514, %v2516
        %v2518 = vrot.slane %v2136, 2
        %v2519 = vrot.slane %v2137, 2
        %v2520 = vsel %vm753, %v2518, %v2519
        %v2521 = vrot.slane %v2138, 2
        %v2522 = vsel %vm753, %v2519, %v2521
        %v2523 = vrot.slane %v2139, 2
        %v2524 = vrot.slane %v2140, 2
        %v2525 = vsel %vm753, %v2523, %v2524
        %v2526 = vrot.slane %v2141, 2
        %v2527 = vsel %vm753, %v2524, %v2526
        %v2528 = vrot.slane %v2142, 2
        %v2529 = vrot.slane %v2143, 2
        %v2530 = vsel %vm753, %v2528, %v2529
        %v2531 = vrot.slane %v2144, 2
        %v2532 = vsel %vm753, %v2529, %v2531
        %v2533 = vrot.slane %v2145, 2
        %v2534 = vrot.slane %v2146, 2
        %v2535 = vsel %vm753, %v2533, %v2534
        %v2536 = vrot.slane %v2147, 2
        %v2537 = vsel %vm753, %v2534, %v2536
        %v2538 = vrot.slane %v2148, 2
        %v2539 = vrot.slane %v2149, 2
        %v2540 = vsel %vm753, %v2538, %v2539
        %v2541 = vrot.slane %v2150, 2
        %v2542 = vsel %vm753, %v2539, %v2541
        %v2543 = vrot.slane %v2151, 2
        %v2544 = vrot.slane %v2152, 2
        %v2545 = vsel %vm753, %v2543, %v2544
        %v2546 = vrot.slane %v2153, 2
        %v2547 = vsel %vm753, %v2544, %v2546
        %v2564 = vpack.c.bf16 %v2512, %v2510
        %v2565 = vpack.c.bf16 %v2517, %v2515
        %v2566 = vpack.c.bf16 %v2522, %v2520
        %v2567 = vpack.c.bf16 %v2527, %v2525
        %v2568 = vpack.c.bf16 %v2532, %v2530
        %v2569 = vpack.c.bf16 %v2537, %v2535
        %v2570 = vpack.c.bf16 %v2542, %v2540
        %v2571 = vpack.c.bf16 %v2547, %v2545
        %v2572 = vld [vmem:[%s818] sm:$0xf]
        %v2573 = vld [vmem:[%s818 + $0x4] sm:$0xf]
        %v2574 = vld [vmem:[%s818 + $0x8] sm:$0xf]
        %v2575 = vld [vmem:[%s818 + $0xc] sm:$0xf]
        %v2576 = vld [vmem:[%s818 + $0x10] sm:$0xf]
        %v2577 = vld [vmem:[%s818 + $0x14] sm:$0xf]
        %v2578 = vld [vmem:[%s818 + $0x18] sm:$0xf]
        %v2579 = vld [vmem:[%s818 + $0x1c] sm:$0xf]
        %v2580 = vld [vmem:[%s818 + $0x20] sm:$0xf]
        %v2581 = vld [vmem:[%s818 + $0x24] sm:$0xf]
        %v2582 = vld [vmem:[%s818 + $0x28] sm:$0xf]
        %v2583 = vld [vmem:[%s818 + $0x2c] sm:$0xf]
        %v2584 = vld [vmem:[%s818 + $0x30] sm:$0xf]
        %v2585 = vld [vmem:[%s818 + $0x34] sm:$0xf]
        %v2586 = vld [vmem:[%s818 + $0x38] sm:$0xf]
        %v2587 = vld [vmem:[%s818 + $0x3c] sm:$0xf]
        %v2604 = vunpack.c.l.b16 %v2572
        %v2605 = vunpack.c.l.b16 %v2573
        %v2606 = vunpack.c.l.b16 %v2574
        %v2607 = vunpack.c.l.b16 %v2575
        %v2608 = vunpack.c.l.b16 %v2576
        %v2609 = vunpack.c.l.b16 %v2577
        %v2610 = vunpack.c.l.b16 %v2578
        %v2611 = vunpack.c.l.b16 %v2579
        %v2612 = vunpack.c.l.b16 %v2580
        %v2613 = vunpack.c.l.b16 %v2581
        %v2614 = vunpack.c.l.b16 %v2582
        %v2615 = vunpack.c.l.b16 %v2583
        %v2616 = vunpack.c.l.b16 %v2584
        %v2617 = vunpack.c.l.b16 %v2585
        %v2618 = vunpack.c.l.b16 %v2586
        %v2619 = vunpack.c.l.b16 %v2587
        %v2620 = vpack.c.b16 %v2605, %v2604
        %v2621 = vpack.c.b16 %v2607, %v2606
        %v2622 = vpack.c.b16 %v2609, %v2608
        %v2623 = vpack.c.b16 %v2611, %v2610
        %v2624 = vpack.c.b16 %v2613, %v2612
        %v2625 = vpack.c.b16 %v2615, %v2614
        %v2626 = vpack.c.b16 %v2617, %v2616
        %v2627 = vpack.c.b16 %v2619, %v2618
        %2636 = vmatpush.bf16.msra.mxu0 %v2627
        %2637 = vmatpush.bf16.msra.mxu0 %v2626
        %2638 = vmatpush.bf16.msra.mxu0 %v2625
        %2639 = vmatpush.bf16.msra.mxu0 %v2624
        %2640 = vmatpush.bf16.msra.mxu0 %v2623
        %2641 = vmatpush.bf16.msra.mxu0 %v2622
        %2642 = vmatpush.bf16.msra.mxu0 %v2621
        %2643 = vmatpush.bf16.msra.mxu0 %v2620
        %2644 = vmatmul.bf16.gmra.mxu0 %v2564
        %v2645 = vpop.f32.mrf.mxu0
        %v2646 = vadd.f32 0.0, %v2645
        %v2647 = vpop.f32.mrf.mxu0
        %v2648 = vadd.f32 0.0, %v2647
        %2649 = vmatmul.bf16.gmra.mxu0 %v2565
        %v2650 = vpop.f32.mrf.mxu0
        %v2651 = vadd.f32 0.0, %v2650
        %v2652 = vpop.f32.mrf.mxu0
        %v2653 = vadd.f32 0.0, %v2652
        %2654 = vmatmul.bf16.gmra.mxu0 %v2566
        %v2655 = vpop.f32.mrf.mxu0
        %v2656 = vadd.f32 0.0, %v2655
        %v2657 = vpop.f32.mrf.mxu0
        %v2658 = vadd.f32 0.0, %v2657
        %2659 = vmatmul.bf16.gmra.mxu0 %v2567
        %v2660 = vpop.f32.mrf.mxu0
        %v2661 = vadd.f32 0.0, %v2660
        %v2662 = vpop.f32.mrf.mxu0
        %v2663 = vadd.f32 0.0, %v2662
        %2664 = vmatmul.bf16.gmra.mxu0 %v2568
        %v2665 = vpop.f32.mrf.mxu0
        %v2666 = vadd.f32 0.0, %v2665
        %v2667 = vpop.f32.mrf.mxu0
        %v2668 = vadd.f32 0.0, %v2667
        %2669 = vmatmul.bf16.gmra.mxu0 %v2569
        %v2670 = vpop.f32.mrf.mxu0
        %v2671 = vadd.f32 0.0, %v2670
        %v2672 = vpop.f32.mrf.mxu0
        %v2673 = vadd.f32 0.0, %v2672
        %2674 = vmatmul.bf16.gmra.mxu0 %v2570
        %v2675 = vpop.f32.mrf.mxu0
        %v2676 = vadd.f32 0.0, %v2675
        %v2677 = vpop.f32.mrf.mxu0
        %v2678 = vadd.f32 0.0, %v2677
        %2679 = vmatmul.bf16.gmra.mxu0 %v2571
        %v2680 = vpop.f32.mrf.mxu0
        %v2681 = vadd.f32 0.0, %v2680
        %v2682 = vpop.f32.mrf.mxu0
        %v2683 = vadd.f32 0.0, %v2682
        %2684 = vdwg.mxu0
        %v2685 = vadd.f32 %v2492, %v2646
        %v2686 = vadd.f32 %v2493, %v2648
        %v2687 = vadd.f32 %v2494, %v2651
        %v2688 = vadd.f32 %v2495, %v2653
        %v2689 = vadd.f32 %v2496, %v2656
        %v2690 = vadd.f32 %v2497, %v2658
        %v2691 = vadd.f32 %v2498, %v2661
        %v2692 = vadd.f32 %v2499, %v2663
        %v2693 = vadd.f32 %v2500, %v2666
        %v2694 = vadd.f32 %v2501, %v2668
        %v2695 = vadd.f32 %v2502, %v2671
        %v2696 = vadd.f32 %v2503, %v2673
        %v2697 = vadd.f32 %v2504, %v2676
        %v2698 = vadd.f32 %v2505, %v2678
        %v2699 = vadd.f32 %v2506, %v2681
        %v2700 = vadd.f32 %v2507, %v2683
        %v2701 = vld [vmem:[%s352] sm:$0xff]
        %v2702 = vld [vmem:[%s352 + $0x8] sm:$0xff]
        %v2703 = vld [vmem:[%s352 + $0x10] sm:$0x3]
        %v2704 = vld [vmem:[%s352 + $0x18] sm:$0xff]
        %v2705 = vld [vmem:[%s352 + $0x20] sm:$0xff]
        %v2706 = vld [vmem:[%s352 + $0x28] sm:$0x3]
        %v2707 = vld [vmem:[%s352 + $0x30] sm:$0xff]
        %v2708 = vld [vmem:[%s352 + $0x38] sm:$0xff]
        %v2709 = vld [vmem:[%s352 + $0x40] sm:$0x3]
        %v2710 = vld [vmem:[%s352 + $0x48] sm:$0xff]
        %v2711 = vld [vmem:[%s352 + $0x50] sm:$0xff]
        %v2712 = vld [vmem:[%s352 + $0x58] sm:$0x3]
        %v2713 = vld [vmem:[%s352 + $0x60] sm:$0xff]
        %v2714 = vld [vmem:[%s352 + $0x68] sm:$0xff]
        %v2715 = vld [vmem:[%s352 + $0x70] sm:$0x3]
        %v2716 = vld [vmem:[%s352 + $0x78] sm:$0xff]
        %v2717 = vld [vmem:[%s352 + $0x80] sm:$0xff]
        %v2718 = vld [vmem:[%s352 + $0x88] sm:$0x3]
        %v2719 = vld [vmem:[%s352 + $0x90] sm:$0xff]
        %v2720 = vld [vmem:[%s352 + $0x98] sm:$0xff]
        %v2721 = vld [vmem:[%s352 + $0xa0] sm:$0x3]
        %v2722 = vld [vmem:[%s352 + $0xa8] sm:$0xff]
        %v2723 = vld [vmem:[%s352 + $0xb0] sm:$0xff]
        %v2724 = vld [vmem:[%s352 + $0xb8] sm:$0x3]
        %v2725 = vpack.c.bf16 %v2702, %v2701
        %v2726 = vpack.c.bf16 %v2705, %v2704
        %v2727 = vpack.c.bf16 %v2708, %v2707
        %v2728 = vpack.c.bf16 %v2711, %v2710
        %v2729 = vpack.c.bf16 %v2714, %v2713
        %v2730 = vpack.c.bf16 %v2717, %v2716
        %v2731 = vpack.c.bf16 %v2720, %v2719
        %v2732 = vpack.c.bf16 %v2723, %v2722
        %v2733 = vld [vmem:[%s980] sm:$0xf]
        %v2734 = vld [vmem:[%s980 + $0x4] sm:$0xf]
        %v2735 = vld [vmem:[%s980 + $0x8] sm:$0xf]
        %v2736 = vld [vmem:[%s980 + $0xc] sm:$0xf]
        %v2737 = vld [vmem:[%s980 + $0x10] sm:$0xf]
        %v2738 = vld [vmem:[%s980 + $0x14] sm:$0xf]
        %v2739 = vld [vmem:[%s980 + $0x18] sm:$0xf]
        %v2740 = vld [vmem:[%s980 + $0x1c] sm:$0xf]
        %v2741 = vld [vmem:[%s980 + $0x20] sm:$0xf]
        %v2742 = vld [vmem:[%s980 + $0x24] sm:$0xf]
        %v2743 = vld [vmem:[%s980 + $0x28] sm:$0xf]
        %v2744 = vld [vmem:[%s980 + $0x2c] sm:$0xf]
        %v2745 = vld [vmem:[%s980 + $0x30] sm:$0xf]
        %v2746 = vld [vmem:[%s980 + $0x34] sm:$0xf]
        %v2747 = vld [vmem:[%s980 + $0x38] sm:$0xf]
        %v2748 = vld [vmem:[%s980 + $0x3c] sm:$0xf]
        %v2765 = vunpack.c.l.b16 %v2733
        %v2766 = vunpack.c.l.b16 %v2734
        %v2767 = vunpack.c.l.b16 %v2735
        %v2768 = vunpack.c.l.b16 %v2736
        %v2769 = vunpack.c.l.b16 %v2737
        %v2770 = vunpack.c.l.b16 %v2738
        %v2771 = vunpack.c.l.b16 %v2739
        %v2772 = vunpack.c.l.b16 %v2740
        %v2773 = vunpack.c.l.b16 %v2741
        %v2774 = vunpack.c.l.b16 %v2742
        %v2775 = vunpack.c.l.b16 %v2743
        %v2776 = vunpack.c.l.b16 %v2744
        %v2777 = vunpack.c.l.b16 %v2745
        %v2778 = vunpack.c.l.b16 %v2746
        %v2779 = vunpack.c.l.b16 %v2747
        %v2780 = vunpack.c.l.b16 %v2748
        %v2781 = vpack.c.b16 %v2766, %v2765
        %v2782 = vpack.c.b16 %v2768, %v2767
        %v2783 = vpack.c.b16 %v2770, %v2769
        %v2784 = vpack.c.b16 %v2772, %v2771
        %v2785 = vpack.c.b16 %v2774, %v2773
        %v2786 = vpack.c.b16 %v2776, %v2775
        %v2787 = vpack.c.b16 %v2778, %v2777
        %v2788 = vpack.c.b16 %v2780, %v2779
        %2797 = vmatpush.bf16.msra.mxu0 %v2788
        %2798 = vmatpush.bf16.msra.mxu0 %v2787
        %2799 = vmatpush.bf16.msra.mxu0 %v2786
        %2800 = vmatpush.bf16.msra.mxu0 %v2785
        %2801 = vmatpush.bf16.msra.mxu0 %v2784
        %2802 = vmatpush.bf16.msra.mxu0 %v2783
        %2803 = vmatpush.bf16.msra.mxu0 %v2782
        %2804 = vmatpush.bf16.msra.mxu0 %v2781
        %2805 = vmatmul.bf16.gmra.mxu0 %v2725
        %v2806 = vpop.f32.mrf.mxu0
        %v2807 = vadd.f32 0.0, %v2806
        %v2808 = vpop.f32.mrf.mxu0
        %v2809 = vadd.f32 0.0, %v2808
        %2810 = vmatmul.bf16.gmra.mxu0 %v2726
        %v2811 = vpop.f32.mrf.mxu0
        %v2812 = vadd.f32 0.0, %v2811
        %v2813 = vpop.f32.mrf.mxu0
        %v2814 = vadd.f32 0.0, %v2813
        %2815 = vmatmul.bf16.gmra.mxu0 %v2727
        %v2816 = vpop.f32.mrf.mxu0
        %v2817 = vadd.f32 0.0, %v2816
        %v2818 = vpop.f32.mrf.mxu0
        %v2819 = vadd.f32 0.0, %v2818
        %2820 = vmatmul.bf16.gmra.mxu0 %v2728
        %v2821 = vpop.f32.mrf.mxu0
        %v2822 = vadd.f32 0.0, %v2821
        %v2823 = vpop.f32.mrf.mxu0
        %v2824 = vadd.f32 0.0, %v2823
        %2825 = vmatmul.bf16.gmra.mxu0 %v2729
        %v2826 = vpop.f32.mrf.mxu0
        %v2827 = vadd.f32 0.0, %v2826
        %v2828 = vpop.f32.mrf.mxu0
        %v2829 = vadd.f32 0.0, %v2828
        %2830 = vmatmul.bf16.gmra.mxu0 %v2730
        %v2831 = vpop.f32.mrf.mxu0
        %v2832 = vadd.f32 0.0, %v2831
        %v2833 = vpop.f32.mrf.mxu0
        %v2834 = vadd.f32 0.0, %v2833
        %2835 = vmatmul.bf16.gmra.mxu0 %v2731
        %v2836 = vpop.f32.mrf.mxu0
        %v2837 = vadd.f32 0.0, %v2836
        %v2838 = vpop.f32.mrf.mxu0
        %v2839 = vadd.f32 0.0, %v2838
        %2840 = vmatmul.bf16.gmra.mxu0 %v2732
        %v2841 = vpop.f32.mrf.mxu0
        %v2842 = vadd.f32 0.0, %v2841
        %v2843 = vpop.f32.mrf.mxu0
        %v2844 = vadd.f32 0.0, %v2843
        %2845 = vdwg.mxu0
        %v2846 = vadd.f32 %v2685, %v2807
        %v2847 = vadd.f32 %v2686, %v2809
        %v2848 = vadd.f32 %v2687, %v2812
        %v2849 = vadd.f32 %v2688, %v2814
        %v2850 = vadd.f32 %v2689, %v2817
        %v2851 = vadd.f32 %v2690, %v2819
        %v2852 = vadd.f32 %v2691, %v2822
        %v2853 = vadd.f32 %v2692, %v2824
        %v2854 = vadd.f32 %v2693, %v2827
        %v2855 = vadd.f32 %v2694, %v2829
        %v2856 = vadd.f32 %v2695, %v2832
        %v2857 = vadd.f32 %v2696, %v2834
        %v2858 = vadd.f32 %v2697, %v2837
        %v2859 = vadd.f32 %v2698, %v2839
        %v2860 = vadd.f32 %v2699, %v2842
        %v2861 = vadd.f32 %v2700, %v2844
        %v2886 = vrot.slane %v2701, 1
        %v2887 = vrot.slane %v2702, 1
        %v2888 = vsel %vm558, %v2886, %v2887
        %v2889 = vrot.slane %v2703, 1
        %v2890 = vsel %vm558, %v2887, %v2889
        %v2891 = vrot.slane %v2704, 1
        %v2892 = vrot.slane %v2705, 1
        %v2893 = vsel %vm558, %v2891, %v2892
        %v2894 = vrot.slane %v2706, 1
        %v2895 = vsel %vm558, %v2892, %v2894
        %v2896 = vrot.slane %v2707, 1
        %v2897 = vrot.slane %v2708, 1
        %v2898 = vsel %vm558, %v2896, %v2897
        %v2899 = vrot.slane %v2709, 1
        %v2900 = vsel %vm558, %v2897, %v2899
        %v2901 = vrot.slane %v2710, 1
        %v2902 = vrot.slane %v2711, 1
        %v2903 = vsel %vm558, %v2901, %v2902
        %v2904 = vrot.slane %v2712, 1
        %v2905 = vsel %vm558, %v2902, %v2904
        %v2906 = vrot.slane %v2713, 1
        %v2907 = vrot.slane %v2714, 1
        %v2908 = vsel %vm558, %v2906, %v2907
        %v2909 = vrot.slane %v2715, 1
        %v2910 = vsel %vm558, %v2907, %v2909
        %v2911 = vrot.slane %v2716, 1
        %v2912 = vrot.slane %v2717, 1
        %v2913 = vsel %vm558, %v2911, %v2912
        %v2914 = vrot.slane %v2718, 1
        %v2915 = vsel %vm558, %v2912, %v2914
        %v2916 = vrot.slane %v2719, 1
        %v2917 = vrot.slane %v2720, 1
        %v2918 = vsel %vm558, %v2916, %v2917
        %v2919 = vrot.slane %v2721, 1
        %v2920 = vsel %vm558, %v2917, %v2919
        %v2921 = vrot.slane %v2722, 1
        %v2922 = vrot.slane %v2723, 1
        %v2923 = vsel %vm558, %v2921, %v2922
        %v2924 = vrot.slane %v2724, 1
        %v2925 = vsel %vm558, %v2922, %v2924
        %v2942 = vpack.c.bf16 %v2890, %v2888
        %v2943 = vpack.c.bf16 %v2895, %v2893
        %v2944 = vpack.c.bf16 %v2900, %v2898
        %v2945 = vpack.c.bf16 %v2905, %v2903
        %v2946 = vpack.c.bf16 %v2910, %v2908
        %v2947 = vpack.c.bf16 %v2915, %v2913
        %v2948 = vpack.c.bf16 %v2920, %v2918
        %v2949 = vpack.c.bf16 %v2925, %v2923
        %v2950 = vld [vmem:[%s1198] sm:$0xf]
        %v2951 = vld [vmem:[%s1198 + $0x4] sm:$0xf]
        %v2952 = vld [vmem:[%s1198 + $0x8] sm:$0xf]
        %v2953 = vld [vmem:[%s1198 + $0xc] sm:$0xf]
        %v2954 = vld [vmem:[%s1198 + $0x10] sm:$0xf]
        %v2955 = vld [vmem:[%s1198 + $0x14] sm:$0xf]
        %v2956 = vld [vmem:[%s1198 + $0x18] sm:$0xf]
        %v2957 = vld [vmem:[%s1198 + $0x1c] sm:$0xf]
        %v2958 = vld [vmem:[%s1198 + $0x20] sm:$0xf]
        %v2959 = vld [vmem:[%s1198 + $0x24] sm:$0xf]
        %v2960 = vld [vmem:[%s1198 + $0x28] sm:$0xf]
        %v2961 = vld [vmem:[%s1198 + $0x2c] sm:$0xf]
        %v2962 = vld [vmem:[%s1198 + $0x30] sm:$0xf]
        %v2963 = vld [vmem:[%s1198 + $0x34] sm:$0xf]
        %v2964 = vld [vmem:[%s1198 + $0x38] sm:$0xf]
        %v2965 = vld [vmem:[%s1198 + $0x3c] sm:$0xf]
        %v2982 = vunpack.c.l.b16 %v2950
        %v2983 = vunpack.c.l.b16 %v2951
        %v2984 = vunpack.c.l.b16 %v2952
        %v2985 = vunpack.c.l.b16 %v2953
        %v2986 = vunpack.c.l.b16 %v2954
        %v2987 = vunpack.c.l.b16 %v2955
        %v2988 = vunpack.c.l.b16 %v2956
        %v2989 = vunpack.c.l.b16 %v2957
        %v2990 = vunpack.c.l.b16 %v2958
        %v2991 = vunpack.c.l.b16 %v2959
        %v2992 = vunpack.c.l.b16 %v2960
        %v2993 = vunpack.c.l.b16 %v2961
        %v2994 = vunpack.c.l.b16 %v2962
        %v2995 = vunpack.c.l.b16 %v2963
        %v2996 = vunpack.c.l.b16 %v2964
        %v2997 = vunpack.c.l.b16 %v2965
        %v2998 = vpack.c.b16 %v2983, %v2982
        %v2999 = vpack.c.b16 %v2985, %v2984
        %v3000 = vpack.c.b16 %v2987, %v2986
        %v3001 = vpack.c.b16 %v2989, %v2988
        %v3002 = vpack.c.b16 %v2991, %v2990
        %v3003 = vpack.c.b16 %v2993, %v2992
        %v3004 = vpack.c.b16 %v2995, %v2994
        %v3005 = vpack.c.b16 %v2997, %v2996
        %3014 = vmatpush.bf16.msra.mxu0 %v3005
        %3015 = vmatpush.bf16.msra.mxu0 %v3004
        %3016 = vmatpush.bf16.msra.mxu0 %v3003
        %3017 = vmatpush.bf16.msra.mxu0 %v3002
        %3018 = vmatpush.bf16.msra.mxu0 %v3001
        %3019 = vmatpush.bf16.msra.mxu0 %v3000
        %3020 = vmatpush.bf16.msra.mxu0 %v2999
        %3021 = vmatpush.bf16.msra.mxu0 %v2998
        %3022 = vmatmul.bf16.gmra.mxu0 %v2942
        %v3023 = vpop.f32.mrf.mxu0
        %v3024 = vadd.f32 0.0, %v3023
        %v3025 = vpop.f32.mrf.mxu0
        %v3026 = vadd.f32 0.0, %v3025
        %3027 = vmatmul.bf16.gmra.mxu0 %v2943
        %v3028 = vpop.f32.mrf.mxu0
        %v3029 = vadd.f32 0.0, %v3028
        %v3030 = vpop.f32.mrf.mxu0
        %v3031 = vadd.f32 0.0, %v3030
        %3032 = vmatmul.bf16.gmra.mxu0 %v2944
        %v3033 = vpop.f32.mrf.mxu0
        %v3034 = vadd.f32 0.0, %v3033
        %v3035 = vpop.f32.mrf.mxu0
        %v3036 = vadd.f32 0.0, %v3035
        %3037 = vmatmul.bf16.gmra.mxu0 %v2945
        %v3038 = vpop.f32.mrf.mxu0
        %v3039 = vadd.f32 0.0, %v3038
        %v3040 = vpop.f32.mrf.mxu0
        %v3041 = vadd.f32 0.0, %v3040
        %3042 = vmatmul.bf16.gmra.mxu0 %v2946
        %v3043 = vpop.f32.mrf.mxu0
        %v3044 = vadd.f32 0.0, %v3043
        %v3045 = vpop.f32.mrf.mxu0
        %v3046 = vadd.f32 0.0, %v3045
        %3047 = vmatmul.bf16.gmra.mxu0 %v2947
        %v3048 = vpop.f32.mrf.mxu0
        %v3049 = vadd.f32 0.0, %v3048
        %v3050 = vpop.f32.mrf.mxu0
        %v3051 = vadd.f32 0.0, %v3050
        %3052 = vmatmul.bf16.gmra.mxu0 %v2948
        %v3053 = vpop.f32.mrf.mxu0
        %v3054 = vadd.f32 0.0, %v3053
        %v3055 = vpop.f32.mrf.mxu0
        %v3056 = vadd.f32 0.0, %v3055
        %3057 = vmatmul.bf16.gmra.mxu0 %v2949
        %v3058 = vpop.f32.mrf.mxu0
        %v3059 = vadd.f32 0.0, %v3058
        %v3060 = vpop.f32.mrf.mxu0
        %v3061 = vadd.f32 0.0, %v3060
        %3062 = vdwg.mxu0
        %v3063 = vadd.f32 %v2846, %v3024
        %v3064 = vadd.f32 %v2847, %v3026
        %v3065 = vadd.f32 %v2848, %v3029
        %v3066 = vadd.f32 %v2849, %v3031
        %v3067 = vadd.f32 %v2850, %v3034
        %v3068 = vadd.f32 %v2851, %v3036
        %v3069 = vadd.f32 %v2852, %v3039
        %v3070 = vadd.f32 %v2853, %v3041
        %v3071 = vadd.f32 %v2854, %v3044
        %v3072 = vadd.f32 %v2855, %v3046
        %v3073 = vadd.f32 %v2856, %v3049
        %v3074 = vadd.f32 %v2857, %v3051
        %v3075 = vadd.f32 %v2858, %v3054
        %v3076 = vadd.f32 %v2859, %v3056
        %v3077 = vadd.f32 %v2860, %v3059
        %v3078 = vadd.f32 %v2861, %v3061
        %v3079 = vrot.slane %v2701, 2
        %v3080 = vrot.slane %v2702, 2
        %v3081 = vsel %vm753, %v3079, %v3080
        %v3082 = vrot.slane %v2703, 2
        %v3083 = vsel %vm753, %v3080, %v3082
        %v3084 = vrot.slane %v2704, 2
        %v3085 = vrot.slane %v2705, 2
        %v3086 = vsel %vm753, %v3084, %v3085
        %v3087 = vrot.slane %v2706, 2
        %v3088 = vsel %vm753, %v3085, %v3087
        %v3089 = vrot.slane %v2707, 2
        %v3090 = vrot.slane %v2708, 2
        %v3091 = vsel %vm753, %v3089, %v3090
        %v3092 = vrot.slane %v2709, 2
        %v3093 = vsel %vm753, %v3090, %v3092
        %v3094 = vrot.slane %v2710, 2
        %v3095 = vrot.slane %v2711, 2
        %v3096 = vsel %vm753, %v3094, %v3095
        %v3097 = vrot.slane %v2712, 2
        %v3098 = vsel %vm753, %v3095, %v3097
        %v3099 = vrot.slane %v2713, 2
        %v3100 = vrot.slane %v2714, 2
        %v3101 = vsel %vm753, %v3099, %v3100
        %v3102 = vrot.slane %v2715, 2
        %v3103 = vsel %vm753, %v3100, %v3102
        %v3104 = vrot.slane %v2716, 2
        %v3105 = vrot.slane %v2717, 2
        %v3106 = vsel %vm753, %v3104, %v3105
        %v3107 = vrot.slane %v2718, 2
        %v3108 = vsel %vm753, %v3105, %v3107
        %v3109 = vrot.slane %v2719, 2
        %v3110 = vrot.slane %v2720, 2
        %v3111 = vsel %vm753, %v3109, %v3110
        %v3112 = vrot.slane %v2721, 2
        %v3113 = vsel %vm753, %v3110, %v3112
        %v3114 = vrot.slane %v2722, 2
        %v3115 = vrot.slane %v2723, 2
        %v3116 = vsel %vm753, %v3114, %v3115
        %v3117 = vrot.slane %v2724, 2
        %v3118 = vsel %vm753, %v3115, %v3117
        %v3135 = vpack.c.bf16 %v3083, %v3081
        %v3136 = vpack.c.bf16 %v3088, %v3086
        %v3137 = vpack.c.bf16 %v3093, %v3091
        %v3138 = vpack.c.bf16 %v3098, %v3096
        %v3139 = vpack.c.bf16 %v3103, %v3101
        %v3140 = vpack.c.bf16 %v3108, %v3106
        %v3141 = vpack.c.bf16 %v3113, %v3111
        %v3142 = vpack.c.bf16 %v3118, %v3116
        %v3143 = vld [vmem:[%s1392] sm:$0xf]
        %v3144 = vld [vmem:[%s1392 + $0x4] sm:$0xf]
        %v3145 = vld [vmem:[%s1392 + $0x8] sm:$0xf]
        %v3146 = vld [vmem:[%s1392 + $0xc] sm:$0xf]
        %v3147 = vld [vmem:[%s1392 + $0x10] sm:$0xf]
        %v3148 = vld [vmem:[%s1392 + $0x14] sm:$0xf]
        %v3149 = vld [vmem:[%s1392 + $0x18] sm:$0xf]
        %v3150 = vld [vmem:[%s1392 + $0x1c] sm:$0xf]
        %v3151 = vld [vmem:[%s1392 + $0x20] sm:$0xf]
        %v3152 = vld [vmem:[%s1392 + $0x24] sm:$0xf]
        %v3153 = vld [vmem:[%s1392 + $0x28] sm:$0xf]
        %v3154 = vld [vmem:[%s1392 + $0x2c] sm:$0xf]
        %v3155 = vld [vmem:[%s1392 + $0x30] sm:$0xf]
        %v3156 = vld [vmem:[%s1392 + $0x34] sm:$0xf]
        %v3157 = vld [vmem:[%s1392 + $0x38] sm:$0xf]
        %v3158 = vld [vmem:[%s1392 + $0x3c] sm:$0xf]
        %v3175 = vunpack.c.l.b16 %v3143
        %v3176 = vunpack.c.l.b16 %v3144
        %v3177 = vunpack.c.l.b16 %v3145
        %v3178 = vunpack.c.l.b16 %v3146
        %v3179 = vunpack.c.l.b16 %v3147
        %v3180 = vunpack.c.l.b16 %v3148
        %v3181 = vunpack.c.l.b16 %v3149
        %v3182 = vunpack.c.l.b16 %v3150
        %v3183 = vunpack.c.l.b16 %v3151
        %v3184 = vunpack.c.l.b16 %v3152
        %v3185 = vunpack.c.l.b16 %v3153
        %v3186 = vunpack.c.l.b16 %v3154
        %v3187 = vunpack.c.l.b16 %v3155
        %v3188 = vunpack.c.l.b16 %v3156
        %v3189 = vunpack.c.l.b16 %v3157
        %v3190 = vunpack.c.l.b16 %v3158
        %v3191 = vpack.c.b16 %v3176, %v3175
        %v3192 = vpack.c.b16 %v3178, %v3177
        %v3193 = vpack.c.b16 %v3180, %v3179
        %v3194 = vpack.c.b16 %v3182, %v3181
        %v3195 = vpack.c.b16 %v3184, %v3183
        %v3196 = vpack.c.b16 %v3186, %v3185
        %v3197 = vpack.c.b16 %v3188, %v3187
        %v3198 = vpack.c.b16 %v3190, %v3189
        %3207 = vmatpush.bf16.msra.mxu0 %v3198
        %3208 = vmatpush.bf16.msra.mxu0 %v3197
        %3209 = vmatpush.bf16.msra.mxu0 %v3196
        %3210 = vmatpush.bf16.msra.mxu0 %v3195
        %3211 = vmatpush.bf16.msra.mxu0 %v3194
        %3212 = vmatpush.bf16.msra.mxu0 %v3193
        %3213 = vmatpush.bf16.msra.mxu0 %v3192
        %3214 = vmatpush.bf16.msra.mxu0 %v3191
        %3215 = vmatmul.bf16.gmra.mxu0 %v3135
        %v3216 = vpop.f32.mrf.mxu0
        %v3217 = vadd.f32 0.0, %v3216
        %v3218 = vpop.f32.mrf.mxu0
        %v3219 = vadd.f32 0.0, %v3218
        %3220 = vmatmul.bf16.gmra.mxu0 %v3136
        %v3221 = vpop.f32.mrf.mxu0
        %v3222 = vadd.f32 0.0, %v3221
        %v3223 = vpop.f32.mrf.mxu0
        %v3224 = vadd.f32 0.0, %v3223
        %3225 = vmatmul.bf16.gmra.mxu0 %v3137
        %v3226 = vpop.f32.mrf.mxu0
        %v3227 = vadd.f32 0.0, %v3226
        %v3228 = vpop.f32.mrf.mxu0
        %v3229 = vadd.f32 0.0, %v3228
        %3230 = vmatmul.bf16.gmra.mxu0 %v3138
        %v3231 = vpop.f32.mrf.mxu0
        %v3232 = vadd.f32 0.0, %v3231
        %v3233 = vpop.f32.mrf.mxu0
        %v3234 = vadd.f32 0.0, %v3233
        %3235 = vmatmul.bf16.gmra.mxu0 %v3139
        %v3236 = vpop.f32.mrf.mxu0
        %v3237 = vadd.f32 0.0, %v3236
        %v3238 = vpop.f32.mrf.mxu0
        %v3239 = vadd.f32 0.0, %v3238
        %3240 = vmatmul.bf16.gmra.mxu0 %v3140
        %v3241 = vpop.f32.mrf.mxu0
        %v3242 = vadd.f32 0.0, %v3241
        %v3243 = vpop.f32.mrf.mxu0
        %v3244 = vadd.f32 0.0, %v3243
        %3245 = vmatmul.bf16.gmra.mxu0 %v3141
        %v3246 = vpop.f32.mrf.mxu0
        %v3247 = vadd.f32 0.0, %v3246
        %v3248 = vpop.f32.mrf.mxu0
        %v3249 = vadd.f32 0.0, %v3248
        %3250 = vmatmul.bf16.gmra.mxu0 %v3142
        %v3251 = vpop.f32.mrf.mxu0
        %v3252 = vadd.f32 0.0, %v3251
        %v3253 = vpop.f32.mrf.mxu0
        %v3254 = vadd.f32 0.0, %v3253
        %3255 = vdwg.mxu0
        %v3256 = vadd.f32 %v3063, %v3217
        %v3257 = vadd.f32 %v3064, %v3219
        %v3258 = vadd.f32 %v3065, %v3222
        %v3259 = vadd.f32 %v3066, %v3224
        %v3260 = vadd.f32 %v3067, %v3227
        %v3261 = vadd.f32 %v3068, %v3229
        %v3262 = vadd.f32 %v3069, %v3232
        %v3263 = vadd.f32 %v3070, %v3234
        %v3264 = vadd.f32 %v3071, %v3237
        %v3265 = vadd.f32 %v3072, %v3239
        %v3266 = vadd.f32 %v3073, %v3242
        %v3267 = vadd.f32 %v3074, %v3244
        %v3268 = vadd.f32 %v3075, %v3247
        %v3269 = vadd.f32 %v3076, %v3249
        %v3270 = vadd.f32 %v3077, %v3252
        %v3271 = vadd.f32 %v3078, %v3254
        %s3272 = scalar_lea.vmem [#allocation2], 240
        %v3273 = vld [vmem:[%s3272] sm:$0xff]
        %v3274 = vld [vmem:[%s3272 + $0x8] sm:$0xff]
        %v3275 = vld [vmem:[%s3272 + $0x10] sm:$0x3]
        %v3276 = vld [vmem:[%s3272 + $0x18] sm:$0xff]
        %v3277 = vld [vmem:[%s3272 + $0x20] sm:$0xff]
        %v3278 = vld [vmem:[%s3272 + $0x28] sm:$0x3]
        %v3279 = vld [vmem:[%s3272 + $0x30] sm:$0xff]
        %v3280 = vld [vmem:[%s3272 + $0x38] sm:$0xff]
        %v3281 = vld [vmem:[%s3272 + $0x40] sm:$0x3]
        %v3282 = vld [vmem:[%s3272 + $0x48] sm:$0xff]
        %v3283 = vld [vmem:[%s3272 + $0x50] sm:$0xff]
        %v3284 = vld [vmem:[%s3272 + $0x58] sm:$0x3]
        %v3285 = vld [vmem:[%s3272 + $0x60] sm:$0xff]
        %v3286 = vld [vmem:[%s3272 + $0x68] sm:$0xff]
        %v3287 = vld [vmem:[%s3272 + $0x70] sm:$0x3]
        %v3288 = vld [vmem:[%s3272 + $0x78] sm:$0xff]
        %v3289 = vld [vmem:[%s3272 + $0x80] sm:$0xff]
        %v3290 = vld [vmem:[%s3272 + $0x88] sm:$0x3]
        %v3291 = vld [vmem:[%s3272 + $0x90] sm:$0xff]
        %v3292 = vld [vmem:[%s3272 + $0x98] sm:$0xff]
        %v3293 = vld [vmem:[%s3272 + $0xa0] sm:$0x3]
        %v3294 = vld [vmem:[%s3272 + $0xa8] sm:$0xff]
        %v3295 = vld [vmem:[%s3272 + $0xb0] sm:$0xff]
        %v3296 = vld [vmem:[%s3272 + $0xb8] sm:$0x3]
        %v3297 = vpack.c.bf16 %v3274, %v3273
        %v3298 = vpack.c.bf16 %v3277, %v3276
        %v3299 = vpack.c.bf16 %v3280, %v3279
        %v3300 = vpack.c.bf16 %v3283, %v3282
        %v3301 = vpack.c.bf16 %v3286, %v3285
        %v3302 = vpack.c.bf16 %v3289, %v3288
        %v3303 = vpack.c.bf16 %v3292, %v3291
        %v3304 = vpack.c.bf16 %v3295, %v3294
        %v3305 = vld [vmem:[%s1555] sm:$0xf]
        %v3306 = vld [vmem:[%s1555 + $0x4] sm:$0xf]
        %v3307 = vld [vmem:[%s1555 + $0x8] sm:$0xf]
        %v3308 = vld [vmem:[%s1555 + $0xc] sm:$0xf]
        %v3309 = vld [vmem:[%s1555 + $0x10] sm:$0xf]
        %v3310 = vld [vmem:[%s1555 + $0x14] sm:$0xf]
        %v3311 = vld [vmem:[%s1555 + $0x18] sm:$0xf]
        %v3312 = vld [vmem:[%s1555 + $0x1c] sm:$0xf]
        %v3313 = vld [vmem:[%s1555 + $0x20] sm:$0xf]
        %v3314 = vld [vmem:[%s1555 + $0x24] sm:$0xf]
        %v3315 = vld [vmem:[%s1555 + $0x28] sm:$0xf]
        %v3316 = vld [vmem:[%s1555 + $0x2c] sm:$0xf]
        %v3317 = vld [vmem:[%s1555 + $0x30] sm:$0xf]
        %v3318 = vld [vmem:[%s1555 + $0x34] sm:$0xf]
        %v3319 = vld [vmem:[%s1555 + $0x38] sm:$0xf]
        %v3320 = vld [vmem:[%s1555 + $0x3c] sm:$0xf]
        %v3337 = vunpack.c.l.b16 %v3305
        %v3338 = vunpack.c.l.b16 %v3306
        %v3339 = vunpack.c.l.b16 %v3307
        %v3340 = vunpack.c.l.b16 %v3308
        %v3341 = vunpack.c.l.b16 %v3309
        %v3342 = vunpack.c.l.b16 %v3310
        %v3343 = vunpack.c.l.b16 %v3311
        %v3344 = vunpack.c.l.b16 %v3312
        %v3345 = vunpack.c.l.b16 %v3313
        %v3346 = vunpack.c.l.b16 %v3314
        %v3347 = vunpack.c.l.b16 %v3315
        %v3348 = vunpack.c.l.b16 %v3316
        %v3349 = vunpack.c.l.b16 %v3317
        %v3350 = vunpack.c.l.b16 %v3318
        %v3351 = vunpack.c.l.b16 %v3319
        %v3352 = vunpack.c.l.b16 %v3320
        %v3353 = vpack.c.b16 %v3338, %v3337
        %v3354 = vpack.c.b16 %v3340, %v3339
        %v3355 = vpack.c.b16 %v3342, %v3341
        %v3356 = vpack.c.b16 %v3344, %v3343
        %v3357 = vpack.c.b16 %v3346, %v3345
        %v3358 = vpack.c.b16 %v3348, %v3347
        %v3359 = vpack.c.b16 %v3350, %v3349
        %v3360 = vpack.c.b16 %v3352, %v3351
        %3369 = vmatpush.bf16.msra.mxu0 %v3360
        %3370 = vmatpush.bf16.msra.mxu0 %v3359
        %3371 = vmatpush.bf16.msra.mxu0 %v3358
        %3372 = vmatpush.bf16.msra.mxu0 %v3357
        %3373 = vmatpush.bf16.msra.mxu0 %v3356
        %3374 = vmatpush.bf16.msra.mxu0 %v3355
        %3375 = vmatpush.bf16.msra.mxu0 %v3354
        %3376 = vmatpush.bf16.msra.mxu0 %v3353
        %3377 = vmatmul.bf16.gmra.mxu0 %v3297
        %v3378 = vpop.f32.mrf.mxu0
        %v3379 = vadd.f32 0.0, %v3378
        %v3380 = vpop.f32.mrf.mxu0
        %v3381 = vadd.f32 0.0, %v3380
        %3382 = vmatmul.bf16.gmra.mxu0 %v3298
        %v3383 = vpop.f32.mrf.mxu0
        %v3384 = vadd.f32 0.0, %v3383
        %v3385 = vpop.f32.mrf.mxu0
        %v3386 = vadd.f32 0.0, %v3385
        %3387 = vmatmul.bf16.gmra.mxu0 %v3299
        %v3388 = vpop.f32.mrf.mxu0
        %v3389 = vadd.f32 0.0, %v3388
        %v3390 = vpop.f32.mrf.mxu0
        %v3391 = vadd.f32 0.0, %v3390
        %3392 = vmatmul.bf16.gmra.mxu0 %v3300
        %v3393 = vpop.f32.mrf.mxu0
        %v3394 = vadd.f32 0.0, %v3393
        %v3395 = vpop.f32.mrf.mxu0
        %v3396 = vadd.f32 0.0, %v3395
        %3397 = vmatmul.bf16.gmra.mxu0 %v3301
        %v3398 = vpop.f32.mrf.mxu0
        %v3399 = vadd.f32 0.0, %v3398
        %v3400 = vpop.f32.mrf.mxu0
        %v3401 = vadd.f32 0.0, %v3400
        %3402 = vmatmul.bf16.gmra.mxu0 %v3302
        %v3403 = vpop.f32.mrf.mxu0
        %v3404 = vadd.f32 0.0, %v3403
        %v3405 = vpop.f32.mrf.mxu0
        %v3406 = vadd.f32 0.0, %v3405
        %3407 = vmatmul.bf16.gmra.mxu0 %v3303
        %v3408 = vpop.f32.mrf.mxu0
        %v3409 = vadd.f32 0.0, %v3408
        %v3410 = vpop.f32.mrf.mxu0
        %v3411 = vadd.f32 0.0, %v3410
        %3412 = vmatmul.bf16.gmra.mxu0 %v3304
        %v3413 = vpop.f32.mrf.mxu0
        %v3414 = vadd.f32 0.0, %v3413
        %v3415 = vpop.f32.mrf.mxu0
        %v3416 = vadd.f32 0.0, %v3415
        %3417 = vdwg.mxu0
        %v3418 = vadd.f32 %v3256, %v3379
        %v3419 = vadd.f32 %v3257, %v3381
        %v3420 = vadd.f32 %v3258, %v3384
        %v3421 = vadd.f32 %v3259, %v3386
        %v3422 = vadd.f32 %v3260, %v3389
        %v3423 = vadd.f32 %v3261, %v3391
        %v3424 = vadd.f32 %v3262, %v3394
        %v3425 = vadd.f32 %v3263, %v3396
        %v3426 = vadd.f32 %v3264, %v3399
        %v3427 = vadd.f32 %v3265, %v3401
        %v3428 = vadd.f32 %v3266, %v3404
        %v3429 = vadd.f32 %v3267, %v3406
        %v3430 = vadd.f32 %v3268, %v3409
        %v3431 = vadd.f32 %v3269, %v3411
        %v3432 = vadd.f32 %v3270, %v3414
        %v3433 = vadd.f32 %v3271, %v3416
        %v3458 = vrot.slane %v3273, 1
        %v3459 = vrot.slane %v3274, 1
        %v3460 = vsel %vm558, %v3458, %v3459
        %v3461 = vrot.slane %v3275, 1
        %v3462 = vsel %vm558, %v3459, %v3461
        %v3463 = vrot.slane %v3276, 1
        %v3464 = vrot.slane %v3277, 1
        %v3465 = vsel %vm558, %v3463, %v3464
        %v3466 = vrot.slane %v3278, 1
        %v3467 = vsel %vm558, %v3464, %v3466
        %v3468 = vrot.slane %v3279, 1
        %v3469 = vrot.slane %v3280, 1
        %v3470 = vsel %vm558, %v3468, %v3469
        %v3471 = vrot.slane %v3281, 1
        %v3472 = vsel %vm558, %v3469, %v3471
        %v3473 = vrot.slane %v3282, 1
        %v3474 = vrot.slane %v3283, 1
        %v3475 = vsel %vm558, %v3473, %v3474
        %v3476 = vrot.slane %v3284, 1
        %v3477 = vsel %vm558, %v3474, %v3476
        %v3478 = vrot.slane %v3285, 1
        %v3479 = vrot.slane %v3286, 1
        %v3480 = vsel %vm558, %v3478, %v3479
        %v3481 = vrot.slane %v3287, 1
        %v3482 = vsel %vm558, %v3479, %v3481
        %v3483 = vrot.slane %v3288, 1
        %v3484 = vrot.slane %v3289, 1
        %v3485 = vsel %vm558, %v3483, %v3484
        %v3486 = vrot.slane %v3290, 1
        %v3487 = vsel %vm558, %v3484, %v3486
        %v3488 = vrot.slane %v3291, 1
        %v3489 = vrot.slane %v3292, 1
        %v3490 = vsel %vm558, %v3488, %v3489
        %v3491 = vrot.slane %v3293, 1
        %v3492 = vsel %vm558, %v3489, %v3491
        %v3493 = vrot.slane %v3294, 1
        %v3494 = vrot.slane %v3295, 1
        %v3495 = vsel %vm558, %v3493, %v3494
        %v3496 = vrot.slane %v3296, 1
        %v3497 = vsel %vm558, %v3494, %v3496
        %v3514 = vpack.c.bf16 %v3462, %v3460
        %v3515 = vpack.c.bf16 %v3467, %v3465
        %v3516 = vpack.c.bf16 %v3472, %v3470
        %v3517 = vpack.c.bf16 %v3477, %v3475
        %v3518 = vpack.c.bf16 %v3482, %v3480
        %v3519 = vpack.c.bf16 %v3487, %v3485
        %v3520 = vpack.c.bf16 %v3492, %v3490
        %v3521 = vpack.c.bf16 %v3497, %v3495
        %v3522 = vld [vmem:[%s1773] sm:$0xf]
        %v3523 = vld [vmem:[%s1773 + $0x4] sm:$0xf]
        %v3524 = vld [vmem:[%s1773 + $0x8] sm:$0xf]
        %v3525 = vld [vmem:[%s1773 + $0xc] sm:$0xf]
        %v3526 = vld [vmem:[%s1773 + $0x10] sm:$0xf]
        %v3527 = vld [vmem:[%s1773 + $0x14] sm:$0xf]
        %v3528 = vld [vmem:[%s1773 + $0x18] sm:$0xf]
        %v3529 = vld [vmem:[%s1773 + $0x1c] sm:$0xf]
        %v3530 = vld [vmem:[%s1773 + $0x20] sm:$0xf]
        %v3531 = vld [vmem:[%s1773 + $0x24] sm:$0xf]
        %v3532 = vld [vmem:[%s1773 + $0x28] sm:$0xf]
        %v3533 = vld [vmem:[%s1773 + $0x2c] sm:$0xf]
        %v3534 = vld [vmem:[%s1773 + $0x30] sm:$0xf]
        %v3535 = vld [vmem:[%s1773 + $0x34] sm:$0xf]
        %v3536 = vld [vmem:[%s1773 + $0x38] sm:$0xf]
        %v3537 = vld [vmem:[%s1773 + $0x3c] sm:$0xf]
        %v3554 = vunpack.c.l.b16 %v3522
        %v3555 = vunpack.c.l.b16 %v3523
        %v3556 = vunpack.c.l.b16 %v3524
        %v3557 = vunpack.c.l.b16 %v3525
        %v3558 = vunpack.c.l.b16 %v3526
        %v3559 = vunpack.c.l.b16 %v3527
        %v3560 = vunpack.c.l.b16 %v3528
        %v3561 = vunpack.c.l.b16 %v3529
        %v3562 = vunpack.c.l.b16 %v3530
        %v3563 = vunpack.c.l.b16 %v3531
        %v3564 = vunpack.c.l.b16 %v3532
        %v3565 = vunpack.c.l.b16 %v3533
        %v3566 = vunpack.c.l.b16 %v3534
        %v3567 = vunpack.c.l.b16 %v3535
        %v3568 = vunpack.c.l.b16 %v3536
        %v3569 = vunpack.c.l.b16 %v3537
        %v3570 = vpack.c.b16 %v3555, %v3554
        %v3571 = vpack.c.b16 %v3557, %v3556
        %v3572 = vpack.c.b16 %v3559, %v3558
        %v3573 = vpack.c.b16 %v3561, %v3560
        %v3574 = vpack.c.b16 %v3563, %v3562
        %v3575 = vpack.c.b16 %v3565, %v3564
        %v3576 = vpack.c.b16 %v3567, %v3566
        %v3577 = vpack.c.b16 %v3569, %v3568
        %3586 = vmatpush.bf16.msra.mxu0 %v3577
        %3587 = vmatpush.bf16.msra.mxu0 %v3576
        %3588 = vmatpush.bf16.msra.mxu0 %v3575
        %3589 = vmatpush.bf16.msra.mxu0 %v3574
        %3590 = vmatpush.bf16.msra.mxu0 %v3573
        %3591 = vmatpush.bf16.msra.mxu0 %v3572
        %3592 = vmatpush.bf16.msra.mxu0 %v3571
        %3593 = vmatpush.bf16.msra.mxu0 %v3570
        %3594 = vmatmul.bf16.gmra.mxu0 %v3514
        %v3595 = vpop.f32.mrf.mxu0
        %v3596 = vadd.f32 0.0, %v3595
        %v3597 = vpop.f32.mrf.mxu0
        %v3598 = vadd.f32 0.0, %v3597
        %3599 = vmatmul.bf16.gmra.mxu0 %v3515
        %v3600 = vpop.f32.mrf.mxu0
        %v3601 = vadd.f32 0.0, %v3600
        %v3602 = vpop.f32.mrf.mxu0
        %v3603 = vadd.f32 0.0, %v3602
        %3604 = vmatmul.bf16.gmra.mxu0 %v3516
        %v3605 = vpop.f32.mrf.mxu0
        %v3606 = vadd.f32 0.0, %v3605
        %v3607 = vpop.f32.mrf.mxu0
        %v3608 = vadd.f32 0.0, %v3607
        %3609 = vmatmul.bf16.gmra.mxu0 %v3517
        %v3610 = vpop.f32.mrf.mxu0
        %v3611 = vadd.f32 0.0, %v3610
        %v3612 = vpop.f32.mrf.mxu0
        %v3613 = vadd.f32 0.0, %v3612
        %3614 = vmatmul.bf16.gmra.mxu0 %v3518
        %v3615 = vpop.f32.mrf.mxu0
        %v3616 = vadd.f32 0.0, %v3615
        %v3617 = vpop.f32.mrf.mxu0
        %v3618 = vadd.f32 0.0, %v3617
        %3619 = vmatmul.bf16.gmra.mxu0 %v3519
        %v3620 = vpop.f32.mrf.mxu0
        %v3621 = vadd.f32 0.0, %v3620
        %v3622 = vpop.f32.mrf.mxu0
        %v3623 = vadd.f32 0.0, %v3622
        %3624 = vmatmul.bf16.gmra.mxu0 %v3520
        %v3625 = vpop.f32.mrf.mxu0
        %v3626 = vadd.f32 0.0, %v3625
        %v3627 = vpop.f32.mrf.mxu0
        %v3628 = vadd.f32 0.0, %v3627
        %3629 = vmatmul.bf16.gmra.mxu0 %v3521
        %v3630 = vpop.f32.mrf.mxu0
        %v3631 = vadd.f32 0.0, %v3630
        %v3632 = vpop.f32.mrf.mxu0
        %v3633 = vadd.f32 0.0, %v3632
        %3634 = vdwg.mxu0
        %v3635 = vadd.f32 %v3418, %v3596
        %v3636 = vadd.f32 %v3419, %v3598
        %v3637 = vadd.f32 %v3420, %v3601
        %v3638 = vadd.f32 %v3421, %v3603
        %v3639 = vadd.f32 %v3422, %v3606
        %v3640 = vadd.f32 %v3423, %v3608
        %v3641 = vadd.f32 %v3424, %v3611
        %v3642 = vadd.f32 %v3425, %v3613
        %v3643 = vadd.f32 %v3426, %v3616
        %v3644 = vadd.f32 %v3427, %v3618
        %v3645 = vadd.f32 %v3428, %v3621
        %v3646 = vadd.f32 %v3429, %v3623
        %v3647 = vadd.f32 %v3430, %v3626
        %v3648 = vadd.f32 %v3431, %v3628
        %v3649 = vadd.f32 %v3432, %v3631
        %v3650 = vadd.f32 %v3433, %v3633
        %v3651 = vrot.slane %v3273, 2
        %v3652 = vrot.slane %v3274, 2
        %v3653 = vsel %vm753, %v3651, %v3652
        %v3654 = vrot.slane %v3275, 2
        %v3655 = vsel %vm753, %v3652, %v3654
        %v3656 = vrot.slane %v3276, 2
        %v3657 = vrot.slane %v3277, 2
        %v3658 = vsel %vm753, %v3656, %v3657
        %v3659 = vrot.slane %v3278, 2
        %v3660 = vsel %vm753, %v3657, %v3659
        %v3661 = vrot.slane %v3279, 2
        %v3662 = vrot.slane %v3280, 2
        %v3663 = vsel %vm753, %v3661, %v3662
        %v3664 = vrot.slane %v3281, 2
        %v3665 = vsel %vm753, %v3662, %v3664
        %v3666 = vrot.slane %v3282, 2
        %v3667 = vrot.slane %v3283, 2
        %v3668 = vsel %vm753, %v3666, %v3667
        %v3669 = vrot.slane %v3284, 2
        %v3670 = vsel %vm753, %v3667, %v3669
        %v3671 = vrot.slane %v3285, 2
        %v3672 = vrot.slane %v3286, 2
        %v3673 = vsel %vm753, %v3671, %v3672
        %v3674 = vrot.slane %v3287, 2
        %v3675 = vsel %vm753, %v3672, %v3674
        %v3676 = vrot.slane %v3288, 2
        %v3677 = vrot.slane %v3289, 2
        %v3678 = vsel %vm753, %v3676, %v3677
        %v3679 = vrot.slane %v3290, 2
        %v3680 = vsel %vm753, %v3677, %v3679
        %v3681 = vrot.slane %v3291, 2
        %v3682 = vrot.slane %v3292, 2
        %v3683 = vsel %vm753, %v3681, %v3682
        %v3684 = vrot.slane %v3293, 2
        %v3685 = vsel %vm753, %v3682, %v3684
        %v3686 = vrot.slane %v3294, 2
        %v3687 = vrot.slane %v3295, 2
        %v3688 = vsel %vm753, %v3686, %v3687
        %v3689 = vrot.slane %v3296, 2
        %v3690 = vsel %vm753, %v3687, %v3689
        %v3707 = vpack.c.bf16 %v3655, %v3653
        %v3708 = vpack.c.bf16 %v3660, %v3658
        %v3709 = vpack.c.bf16 %v3665, %v3663
        %v3710 = vpack.c.bf16 %v3670, %v3668
        %v3711 = vpack.c.bf16 %v3675, %v3673
        %v3712 = vpack.c.bf16 %v3680, %v3678
        %v3713 = vpack.c.bf16 %v3685, %v3683
        %v3714 = vpack.c.bf16 %v3690, %v3688
        %v3715 = vld [vmem:[%s1967] sm:$0xf]
        %v3716 = vld [vmem:[%s1967 + $0x4] sm:$0xf]
        %v3717 = vld [vmem:[%s1967 + $0x8] sm:$0xf]
        %v3718 = vld [vmem:[%s1967 + $0xc] sm:$0xf]
        %v3719 = vld [vmem:[%s1967 + $0x10] sm:$0xf]
        %v3720 = vld [vmem:[%s1967 + $0x14] sm:$0xf]
        %v3721 = vld [vmem:[%s1967 + $0x18] sm:$0xf]
        %v3722 = vld [vmem:[%s1967 + $0x1c] sm:$0xf]
        %v3723 = vld [vmem:[%s1967 + $0x20] sm:$0xf]
        %v3724 = vld [vmem:[%s1967 + $0x24] sm:$0xf]
        %v3725 = vld [vmem:[%s1967 + $0x28] sm:$0xf]
        %v3726 = vld [vmem:[%s1967 + $0x2c] sm:$0xf]
        %v3727 = vld [vmem:[%s1967 + $0x30] sm:$0xf]
        %v3728 = vld [vmem:[%s1967 + $0x34] sm:$0xf]
        %v3729 = vld [vmem:[%s1967 + $0x38] sm:$0xf]
        %v3730 = vld [vmem:[%s1967 + $0x3c] sm:$0xf]
        %v3747 = vunpack.c.l.b16 %v3715
        %v3748 = vunpack.c.l.b16 %v3716
        %v3749 = vunpack.c.l.b16 %v3717
        %v3750 = vunpack.c.l.b16 %v3718
        %v3751 = vunpack.c.l.b16 %v3719
        %v3752 = vunpack.c.l.b16 %v3720
        %v3753 = vunpack.c.l.b16 %v3721
        %v3754 = vunpack.c.l.b16 %v3722
        %v3755 = vunpack.c.l.b16 %v3723
        %v3756 = vunpack.c.l.b16 %v3724
        %v3757 = vunpack.c.l.b16 %v3725
        %v3758 = vunpack.c.l.b16 %v3726
        %v3759 = vunpack.c.l.b16 %v3727
        %v3760 = vunpack.c.l.b16 %v3728
        %v3761 = vunpack.c.l.b16 %v3729
        %v3762 = vunpack.c.l.b16 %v3730
        %v3763 = vpack.c.b16 %v3748, %v3747
        %v3764 = vpack.c.b16 %v3750, %v3749
        %v3765 = vpack.c.b16 %v3752, %v3751
        %v3766 = vpack.c.b16 %v3754, %v3753
        %v3767 = vpack.c.b16 %v3756, %v3755
        %v3768 = vpack.c.b16 %v3758, %v3757
        %v3769 = vpack.c.b16 %v3760, %v3759
        %v3770 = vpack.c.b16 %v3762, %v3761
        %3779 = vmatpush.bf16.msra.mxu0 %v3770
        %3780 = vmatpush.bf16.msra.mxu0 %v3769
        %3781 = vmatpush.bf16.msra.mxu0 %v3768
        %3782 = vmatpush.bf16.msra.mxu0 %v3767
        %3783 = vmatpush.bf16.msra.mxu0 %v3766
        %3784 = vmatpush.bf16.msra.mxu0 %v3765
        %3785 = vmatpush.bf16.msra.mxu0 %v3764
        %3786 = vmatpush.bf16.msra.mxu0 %v3763
        %3787 = vmatmul.bf16.gmra.mxu0 %v3707
        %v3788 = vpop.f32.mrf.mxu0
        %v3789 = vadd.f32 0.0, %v3788
        %v3790 = vpop.f32.mrf.mxu0
        %v3791 = vadd.f32 0.0, %v3790
        %3792 = vmatmul.bf16.gmra.mxu0 %v3708
        %v3793 = vpop.f32.mrf.mxu0
        %v3794 = vadd.f32 0.0, %v3793
        %v3795 = vpop.f32.mrf.mxu0
        %v3796 = vadd.f32 0.0, %v3795
        %3797 = vmatmul.bf16.gmra.mxu0 %v3709
        %v3798 = vpop.f32.mrf.mxu0
        %v3799 = vadd.f32 0.0, %v3798
        %v3800 = vpop.f32.mrf.mxu0
        %v3801 = vadd.f32 0.0, %v3800
        %3802 = vmatmul.bf16.gmra.mxu0 %v3710
        %v3803 = vpop.f32.mrf.mxu0
        %v3804 = vadd.f32 0.0, %v3803
        %v3805 = vpop.f32.mrf.mxu0
        %v3806 = vadd.f32 0.0, %v3805
        %3807 = vmatmul.bf16.gmra.mxu0 %v3711
        %v3808 = vpop.f32.mrf.mxu0
        %v3809 = vadd.f32 0.0, %v3808
        %v3810 = vpop.f32.mrf.mxu0
        %v3811 = vadd.f32 0.0, %v3810
        %3812 = vmatmul.bf16.gmra.mxu0 %v3712
        %v3813 = vpop.f32.mrf.mxu0
        %v3814 = vadd.f32 0.0, %v3813
        %v3815 = vpop.f32.mrf.mxu0
        %v3816 = vadd.f32 0.0, %v3815
        %3817 = vmatmul.bf16.gmra.mxu0 %v3713
        %v3818 = vpop.f32.mrf.mxu0
        %v3819 = vadd.f32 0.0, %v3818
        %v3820 = vpop.f32.mrf.mxu0
        %v3821 = vadd.f32 0.0, %v3820
        %3822 = vmatmul.bf16.gmra.mxu0 %v3714
        %v3823 = vpop.f32.mrf.mxu0
        %v3824 = vadd.f32 0.0, %v3823
        %v3825 = vpop.f32.mrf.mxu0
        %v3826 = vadd.f32 0.0, %v3825
        %3827 = vdwg.mxu0
        %v3828 = vadd.f32 %v3635, %v3789
        %v3829 = vadd.f32 %v3636, %v3791
        %v3830 = vadd.f32 %v3637, %v3794
        %v3831 = vadd.f32 %v3638, %v3796
        %v3832 = vadd.f32 %v3639, %v3799
        %v3833 = vadd.f32 %v3640, %v3801
        %v3834 = vadd.f32 %v3641, %v3804
        %v3835 = vadd.f32 %v3642, %v3806
        %v3836 = vadd.f32 %v3643, %v3809
        %v3837 = vadd.f32 %v3644, %v3811
        %v3838 = vadd.f32 %v3645, %v3814
        %v3839 = vadd.f32 %v3646, %v3816
        %v3840 = vadd.f32 %v3647, %v3819
        %v3841 = vadd.f32 %v3648, %v3821
        %v3842 = vadd.f32 %v3649, %v3824
        %v3843 = vadd.f32 %v3650, %v3826
        %v3844 = vmax.f32 %v3828, 0.0
        %v3845 = vmax.f32 %v3829, 0.0
        %v3846 = vmax.f32 %v3830, 0.0
        %v3847 = vmax.f32 %v3831, 0.0
        %v3848 = vmax.f32 %v3832, 0.0
        %v3849 = vmax.f32 %v3833, 0.0
        %v3850 = vmax.f32 %v3834, 0.0
        %v3851 = vmax.f32 %v3835, 0.0
        %v3852 = vmax.f32 %v3836, 0.0
        %v3853 = vmax.f32 %v3837, 0.0
        %v3854 = vmax.f32 %v3838, 0.0
        %v3855 = vmax.f32 %v3839, 0.0
        %v3856 = vmax.f32 %v3840, 0.0
        %v3857 = vmax.f32 %v3841, 0.0
        %v3858 = vmax.f32 %v3842, 0.0
        %v3859 = vmax.f32 %v3843, 0.0
        %s3860 = scalar_lea.vmem [#allocation3], 216
        %3861 = vst [vmem:[%s3860 + $0x1] sm:$0xff] %v3844
        %3862 = vst [vmem:[%s3860 + $0x9] sm:$0xff] %v3845
        %3863 = vst [vmem:[%s3860 + $0x19] sm:$0xff] %v3846
        %3864 = vst [vmem:[%s3860 + $0x21] sm:$0xff] %v3847
        %3865 = vst [vmem:[%s3860 + $0x31] sm:$0xff] %v3848
        %3866 = vst [vmem:[%s3860 + $0x39] sm:$0xff] %v3849
        %3867 = vst [vmem:[%s3860 + $0x49] sm:$0xff] %v3850
        %3868 = vst [vmem:[%s3860 + $0x51] sm:$0xff] %v3851
        %3869 = vst [vmem:[%s3860 + $0x61] sm:$0xff] %v3852
        %3870 = vst [vmem:[%s3860 + $0x69] sm:$0xff] %v3853
        %3871 = vst [vmem:[%s3860 + $0x79] sm:$0xff] %v3854
        %3872 = vst [vmem:[%s3860 + $0x81] sm:$0xff] %v3855
        %3873 = vst [vmem:[%s3860 + $0x91] sm:$0xff] %v3856
        %3874 = vst [vmem:[%s3860 + $0x99] sm:$0xff] %v3857
        %3875 = vst [vmem:[%s3860 + $0xa9] sm:$0xff] %v3858
        %3876 = vst [vmem:[%s3860 + $0xb1] sm:$0xff] %v3859
        %v3877 = vld [vmem:[%s4] sm:$0x1]
        %v3879 = vperm.slane %v3877, 0
        %v3881 = vld [vmem:[#allocation3] sm:$0xff]
        %v3882 = vld [vmem:[#allocation3 + $0x8] sm:$0xff]
        %v3883 = vld [vmem:[#allocation3 + $0x10] sm:$0x3]
        %v3884 = vld [vmem:[#allocation3 + $0x18] sm:$0xff]
        %v3885 = vld [vmem:[#allocation3 + $0x20] sm:$0xff]
        %v3886 = vld [vmem:[#allocation3 + $0x28] sm:$0x3]
        %v3887 = vld [vmem:[#allocation3 + $0x30] sm:$0xff]
        %v3888 = vld [vmem:[#allocation3 + $0x38] sm:$0xff]
        %v3889 = vld [vmem:[#allocation3 + $0x40] sm:$0x3]
        %v3890 = vld [vmem:[#allocation3 + $0x48] sm:$0xff]
        %v3891 = vld [vmem:[#allocation3 + $0x50] sm:$0xff]
        %v3892 = vld [vmem:[#allocation3 + $0x58] sm:$0x3]
        %v3893 = vld [vmem:[#allocation3 + $0x60] sm:$0xff]
        %v3894 = vld [vmem:[#allocation3 + $0x68] sm:$0xff]
        %v3895 = vld [vmem:[#allocation3 + $0x70] sm:$0x3]
        %v3896 = vld [vmem:[#allocation3 + $0x78] sm:$0xff]
        %v3897 = vld [vmem:[#allocation3 + $0x80] sm:$0xff]
        %v3898 = vld [vmem:[#allocation3 + $0x88] sm:$0x3]
        %v3899 = vld [vmem:[#allocation3 + $0x90] sm:$0xff]
        %v3900 = vld [vmem:[#allocation3 + $0x98] sm:$0xff]
        %v3901 = vld [vmem:[#allocation3 + $0xa0] sm:$0x3]
        %v3902 = vld [vmem:[#allocation3 + $0xa8] sm:$0xff]
        %v3903 = vld [vmem:[#allocation3 + $0xb0] sm:$0xff]
        %v3904 = vld [vmem:[#allocation3 + $0xb8] sm:$0x3]
        %v3905 = vpack.c.bf16 %v3882, %v3881
        %v3906 = vpack.c.bf16 %v3885, %v3884
        %v3907 = vpack.c.bf16 %v3888, %v3887
        %v3908 = vpack.c.bf16 %v3891, %v3890
        %v3909 = vpack.c.bf16 %v3894, %v3893
        %v3910 = vpack.c.bf16 %v3897, %v3896
        %v3911 = vpack.c.bf16 %v3900, %v3899
        %v3912 = vpack.c.bf16 %v3903, %v3902
        %v3913 = vld [vmem:[%s3] sm:$0xf]
        %v3914 = vld [vmem:[%s3 + $0x4] sm:$0xf]
        %v3915 = vld [vmem:[%s3 + $0x8] sm:$0xf]
        %v3916 = vld [vmem:[%s3 + $0xc] sm:$0xf]
        %v3917 = vld [vmem:[%s3 + $0x10] sm:$0xf]
        %v3918 = vld [vmem:[%s3 + $0x14] sm:$0xf]
        %v3919 = vld [vmem:[%s3 + $0x18] sm:$0xf]
        %v3920 = vld [vmem:[%s3 + $0x1c] sm:$0xf]
        %v3921 = vld [vmem:[%s3 + $0x20] sm:$0xf]
        %v3922 = vld [vmem:[%s3 + $0x24] sm:$0xf]
        %v3923 = vld [vmem:[%s3 + $0x28] sm:$0xf]
        %v3924 = vld [vmem:[%s3 + $0x2c] sm:$0xf]
        %v3925 = vld [vmem:[%s3 + $0x30] sm:$0xf]
        %v3926 = vld [vmem:[%s3 + $0x34] sm:$0xf]
        %v3927 = vld [vmem:[%s3 + $0x38] sm:$0xf]
        %v3928 = vld [vmem:[%s3 + $0x3c] sm:$0xf]
        %v3945 = vunpack.c.l.b16 %v3913
        %v3946 = vunpack.c.l.b16 %v3914
        %v3947 = vunpack.c.l.b16 %v3915
        %v3948 = vunpack.c.l.b16 %v3916
        %v3949 = vunpack.c.l.b16 %v3917
        %v3950 = vunpack.c.l.b16 %v3918
        %v3951 = vunpack.c.l.b16 %v3919
        %v3952 = vunpack.c.l.b16 %v3920
        %v3953 = vunpack.c.l.b16 %v3921
        %v3954 = vunpack.c.l.b16 %v3922
        %v3955 = vunpack.c.l.b16 %v3923
        %v3956 = vunpack.c.l.b16 %v3924
        %v3957 = vunpack.c.l.b16 %v3925
        %v3958 = vunpack.c.l.b16 %v3926
        %v3959 = vunpack.c.l.b16 %v3927
        %v3960 = vunpack.c.l.b16 %v3928
        %v3961 = vpack.c.b16 %v3946, %v3945
        %v3962 = vpack.c.b16 %v3948, %v3947
        %v3963 = vpack.c.b16 %v3950, %v3949
        %v3964 = vpack.c.b16 %v3952, %v3951
        %v3965 = vpack.c.b16 %v3954, %v3953
        %v3966 = vpack.c.b16 %v3956, %v3955
        %v3967 = vpack.c.b16 %v3958, %v3957
        %v3968 = vpack.c.b16 %v3960, %v3959
        %3977 = vmatpush.bf16.msra.mxu0 %v3968
        %3978 = vmatpush.bf16.msra.mxu0 %v3967
        %3979 = vmatpush.bf16.msra.mxu0 %v3966
        %3980 = vmatpush.bf16.msra.mxu0 %v3965
        %3981 = vmatpush.bf16.msra.mxu0 %v3964
        %3982 = vmatpush.bf16.msra.mxu0 %v3963
        %3983 = vmatpush.bf16.msra.mxu0 %v3962
        %3984 = vmatpush.bf16.msra.mxu0 %v3961
        %3985 = vmatmul.bf16.gmra.mxu0 %v3905
        %v3986 = vpop.f32.mrf.mxu0
        %v3987 = vadd.f32 0.0, %v3986
        %v3988 = vpop.f32.mrf.mxu0
        %v3989 = vadd.f32 0.0, %v3988
        %3990 = vmatmul.bf16.gmra.mxu0 %v3906
        %v3991 = vpop.f32.mrf.mxu0
        %v3992 = vadd.f32 0.0, %v3991
        %v3993 = vpop.f32.mrf.mxu0
        %v3994 = vadd.f32 0.0, %v3993
        %3995 = vmatmul.bf16.gmra.mxu0 %v3907
        %v3996 = vpop.f32.mrf.mxu0
        %v3997 = vadd.f32 0.0, %v3996
        %v3998 = vpop.f32.mrf.mxu0
        %v3999 = vadd.f32 0.0, %v3998
        %4000 = vmatmul.bf16.gmra.mxu0 %v3908
        %v4001 = vpop.f32.mrf.mxu0
        %v4002 = vadd.f32 0.0, %v4001
        %v4003 = vpop.f32.mrf.mxu0
        %v4004 = vadd.f32 0.0, %v4003
        %4005 = vmatmul.bf16.gmra.mxu0 %v3909
        %v4006 = vpop.f32.mrf.mxu0
        %v4007 = vadd.f32 0.0, %v4006
        %v4008 = vpop.f32.mrf.mxu0
        %v4009 = vadd.f32 0.0, %v4008
        %4010 = vmatmul.bf16.gmra.mxu0 %v3910
        %v4011 = vpop.f32.mrf.mxu0
        %v4012 = vadd.f32 0.0, %v4011
        %v4013 = vpop.f32.mrf.mxu0
        %v4014 = vadd.f32 0.0, %v4013
        %4015 = vmatmul.bf16.gmra.mxu0 %v3911
        %v4016 = vpop.f32.mrf.mxu0
        %v4017 = vadd.f32 0.0, %v4016
        %v4018 = vpop.f32.mrf.mxu0
        %v4019 = vadd.f32 0.0, %v4018
        %4020 = vmatmul.bf16.gmra.mxu0 %v3912
        %v4021 = vpop.f32.mrf.mxu0
        %v4022 = vadd.f32 0.0, %v4021
        %v4023 = vpop.f32.mrf.mxu0
        %v4024 = vadd.f32 0.0, %v4023
        %4025 = vdwg.mxu0
        %v4026 = vadd.f32 %v3879, %v3987
        %v4027 = vadd.f32 %v3879, %v3989
        %v4028 = vadd.f32 %v3879, %v3992
        %v4029 = vadd.f32 %v3879, %v3994
        %v4030 = vadd.f32 %v3879, %v3997
        %v4031 = vadd.f32 %v3879, %v3999
        %v4032 = vadd.f32 %v3879, %v4002
        %v4033 = vadd.f32 %v3879, %v4004
        %v4034 = vadd.f32 %v3879, %v4007
        %v4035 = vadd.f32 %v3879, %v4009
        %v4036 = vadd.f32 %v3879, %v4012
        %v4037 = vadd.f32 %v3879, %v4014
        %v4038 = vadd.f32 %v3879, %v4017
        %v4039 = vadd.f32 %v3879, %v4019
        %v4040 = vadd.f32 %v3879, %v4022
        %v4041 = vadd.f32 %v3879, %v4024
        %v4066 = vrot.slane %v3881, 1
        %v4067 = vrot.slane %v3882, 1
        %v4068 = vsel %vm558, %v4066, %v4067
        %v4069 = vrot.slane %v3883, 1
        %v4070 = vsel %vm558, %v4067, %v4069
        %v4071 = vrot.slane %v3884, 1
        %v4072 = vrot.slane %v3885, 1
        %v4073 = vsel %vm558, %v4071, %v4072
        %v4074 = vrot.slane %v3886, 1
        %v4075 = vsel %vm558, %v4072, %v4074
        %v4076 = vrot.slane %v3887, 1
        %v4077 = vrot.slane %v3888, 1
        %v4078 = vsel %vm558, %v4076, %v4077
        %v4079 = vrot.slane %v3889, 1
        %v4080 = vsel %vm558, %v4077, %v4079
        %v4081 = vrot.slane %v3890, 1
        %v4082 = vrot.slane %v3891, 1
        %v4083 = vsel %vm558, %v4081, %v4082
        %v4084 = vrot.slane %v3892, 1
        %v4085 = vsel %vm558, %v4082, %v4084
        %v4086 = vrot.slane %v3893, 1
        %v4087 = vrot.slane %v3894, 1
        %v4088 = vsel %vm558, %v4086, %v4087
        %v4089 = vrot.slane %v3895, 1
        %v4090 = vsel %vm558, %v4087, %v4089
        %v4091 = vrot.slane %v3896, 1
        %v4092 = vrot.slane %v3897, 1
        %v4093 = vsel %vm558, %v4091, %v4092
        %v4094 = vrot.slane %v3898, 1
        %v4095 = vsel %vm558, %v4092, %v4094
        %v4096 = vrot.slane %v3899, 1
        %v4097 = vrot.slane %v3900, 1
        %v4098 = vsel %vm558, %v4096, %v4097
        %v4099 = vrot.slane %v3901, 1
        %v4100 = vsel %vm558, %v4097, %v4099
        %v4101 = vrot.slane %v3902, 1
        %v4102 = vrot.slane %v3903, 1
        %v4103 = vsel %vm558, %v4101, %v4102
        %v4104 = vrot.slane %v3904, 1
        %v4105 = vsel %vm558, %v4102, %v4104
        %v4122 = vpack.c.bf16 %v4070, %v4068
        %v4123 = vpack.c.bf16 %v4075, %v4073
        %v4124 = vpack.c.bf16 %v4080, %v4078
        %v4125 = vpack.c.bf16 %v4085, %v4083
        %v4126 = vpack.c.bf16 %v4090, %v4088
        %v4127 = vpack.c.bf16 %v4095, %v4093
        %v4128 = vpack.c.bf16 %v4100, %v4098
        %v4129 = vpack.c.bf16 %v4105, %v4103
        %s4130 = scalar_lea.vmem %s3, 64
        %v4131 = vld [vmem:[%s4130] sm:$0xf]
        %v4132 = vld [vmem:[%s4130 + $0x4] sm:$0xf]
        %v4133 = vld [vmem:[%s4130 + $0x8] sm:$0xf]
        %v4134 = vld [vmem:[%s4130 + $0xc] sm:$0xf]
        %v4135 = vld [vmem:[%s4130 + $0x10] sm:$0xf]
        %v4136 = vld [vmem:[%s4130 + $0x14] sm:$0xf]
        %v4137 = vld [vmem:[%s4130 + $0x18] sm:$0xf]
        %v4138 = vld [vmem:[%s4130 + $0x1c] sm:$0xf]
        %v4139 = vld [vmem:[%s4130 + $0x20] sm:$0xf]
        %v4140 = vld [vmem:[%s4130 + $0x24] sm:$0xf]
        %v4141 = vld [vmem:[%s4130 + $0x28] sm:$0xf]
        %v4142 = vld [vmem:[%s4130 + $0x2c] sm:$0xf]
        %v4143 = vld [vmem:[%s4130 + $0x30] sm:$0xf]
        %v4144 = vld [vmem:[%s4130 + $0x34] sm:$0xf]
        %v4145 = vld [vmem:[%s4130 + $0x38] sm:$0xf]
        %v4146 = vld [vmem:[%s4130 + $0x3c] sm:$0xf]
        %v4163 = vunpack.c.l.b16 %v4131
        %v4164 = vunpack.c.l.b16 %v4132
        %v4165 = vunpack.c.l.b16 %v4133
        %v4166 = vunpack.c.l.b16 %v4134
        %v4167 = vunpack.c.l.b16 %v4135
        %v4168 = vunpack.c.l.b16 %v4136
        %v4169 = vunpack.c.l.b16 %v4137
        %v4170 = vunpack.c.l.b16 %v4138
        %v4171 = vunpack.c.l.b16 %v4139
        %v4172 = vunpack.c.l.b16 %v4140
        %v4173 = vunpack.c.l.b16 %v4141
        %v4174 = vunpack.c.l.b16 %v4142
        %v4175 = vunpack.c.l.b16 %v4143
        %v4176 = vunpack.c.l.b16 %v4144
        %v4177 = vunpack.c.l.b16 %v4145
        %v4178 = vunpack.c.l.b16 %v4146
        %v4179 = vpack.c.b16 %v4164, %v4163
        %v4180 = vpack.c.b16 %v4166, %v4165
        %v4181 = vpack.c.b16 %v4168, %v4167
        %v4182 = vpack.c.b16 %v4170, %v4169
        %v4183 = vpack.c.b16 %v4172, %v4171
        %v4184 = vpack.c.b16 %v4174, %v4173
        %v4185 = vpack.c.b16 %v4176, %v4175
        %v4186 = vpack.c.b16 %v4178, %v4177
        %4195 = vmatpush.bf16.msra.mxu0 %v4186
        %4196 = vmatpush.bf16.msra.mxu0 %v4185
        %4197 = vmatpush.bf16.msra.mxu0 %v4184
        %4198 = vmatpush.bf16.msra.mxu0 %v4183
        %4199 = vmatpush.bf16.msra.mxu0 %v4182
        %4200 = vmatpush.bf16.msra.mxu0 %v4181
        %4201 = vmatpush.bf16.msra.mxu0 %v4180
        %4202 = vmatpush.bf16.msra.mxu0 %v4179
        %4203 = vmatmul.bf16.gmra.mxu0 %v4122
        %v4204 = vpop.f32.mrf.mxu0
        %v4205 = vadd.f32 0.0, %v4204
        %v4206 = vpop.f32.mrf.mxu0
        %v4207 = vadd.f32 0.0, %v4206
        %4208 = vmatmul.bf16.gmra.mxu0 %v4123
        %v4209 = vpop.f32.mrf.mxu0
        %v4210 = vadd.f32 0.0, %v4209
        %v4211 = vpop.f32.mrf.mxu0
        %v4212 = vadd.f32 0.0, %v4211
        %4213 = vmatmul.bf16.gmra.mxu0 %v4124
        %v4214 = vpop.f32.mrf.mxu0
        %v4215 = vadd.f32 0.0, %v4214
        %v4216 = vpop.f32.mrf.mxu0
        %v4217 = vadd.f32 0.0, %v4216
        %4218 = vmatmul.bf16.gmra.mxu0 %v4125
        %v4219 = vpop.f32.mrf.mxu0
        %v4220 = vadd.f32 0.0, %v4219
        %v4221 = vpop.f32.mrf.mxu0
        %v4222 = vadd.f32 0.0, %v4221
        %4223 = vmatmul.bf16.gmra.mxu0 %v4126
        %v4224 = vpop.f32.mrf.mxu0
        %v4225 = vadd.f32 0.0, %v4224
        %v4226 = vpop.f32.mrf.mxu0
        %v4227 = vadd.f32 0.0, %v4226
        %4228 = vmatmul.bf16.gmra.mxu0 %v4127
        %v4229 = vpop.f32.mrf.mxu0
        %v4230 = vadd.f32 0.0, %v4229
        %v4231 = vpop.f32.mrf.mxu0
        %v4232 = vadd.f32 0.0, %v4231
        %4233 = vmatmul.bf16.gmra.mxu0 %v4128
        %v4234 = vpop.f32.mrf.mxu0
        %v4235 = vadd.f32 0.0, %v4234
        %v4236 = vpop.f32.mrf.mxu0
        %v4237 = vadd.f32 0.0, %v4236
        %4238 = vmatmul.bf16.gmra.mxu0 %v4129
        %v4239 = vpop.f32.mrf.mxu0
        %v4240 = vadd.f32 0.0, %v4239
        %v4241 = vpop.f32.mrf.mxu0
        %v4242 = vadd.f32 0.0, %v4241
        %4243 = vdwg.mxu0
        %v4244 = vadd.f32 %v4026, %v4205
        %v4245 = vadd.f32 %v4027, %v4207
        %v4246 = vadd.f32 %v4028, %v4210
        %v4247 = vadd.f32 %v4029, %v4212
        %v4248 = vadd.f32 %v4030, %v4215
        %v4249 = vadd.f32 %v4031, %v4217
        %v4250 = vadd.f32 %v4032, %v4220
        %v4251 = vadd.f32 %v4033, %v4222
        %v4252 = vadd.f32 %v4034, %v4225
        %v4253 = vadd.f32 %v4035, %v4227
        %v4254 = vadd.f32 %v4036, %v4230
        %v4255 = vadd.f32 %v4037, %v4232
        %v4256 = vadd.f32 %v4038, %v4235
        %v4257 = vadd.f32 %v4039, %v4237
        %v4258 = vadd.f32 %v4040, %v4240
        %v4259 = vadd.f32 %v4041, %v4242
        %v4260 = vrot.slane %v3881, 2
        %v4261 = vrot.slane %v3882, 2
        %v4262 = vsel %vm753, %v4260, %v4261
        %v4263 = vrot.slane %v3883, 2
        %v4264 = vsel %vm753, %v4261, %v4263
        %v4265 = vrot.slane %v3884, 2
        %v4266 = vrot.slane %v3885, 2
        %v4267 = vsel %vm753, %v4265, %v4266
        %v4268 = vrot.slane %v3886, 2
        %v4269 = vsel %vm753, %v4266, %v4268
        %v4270 = vrot.slane %v3887, 2
        %v4271 = vrot.slane %v3888, 2
        %v4272 = vsel %vm753, %v4270, %v4271
        %v4273 = vrot.slane %v3889, 2
        %v4274 = vsel %vm753, %v4271, %v4273
        %v4275 = vrot.slane %v3890, 2
        %v4276 = vrot.slane %v3891, 2
        %v4277 = vsel %vm753, %v4275, %v4276
        %v4278 = vrot.slane %v3892, 2
        %v4279 = vsel %vm753, %v4276, %v4278
        %v4280 = vrot.slane %v3893, 2
        %v4281 = vrot.slane %v3894, 2
        %v4282 = vsel %vm753, %v4280, %v4281
        %v4283 = vrot.slane %v3895, 2
        %v4284 = vsel %vm753, %v4281, %v4283
        %v4285 = vrot.slane %v3896, 2
        %v4286 = vrot.slane %v3897, 2
        %v4287 = vsel %vm753, %v4285, %v4286
        %v4288 = vrot.slane %v3898, 2
        %v4289 = vsel %vm753, %v4286, %v4288
        %v4290 = vrot.slane %v3899, 2
        %v4291 = vrot.slane %v3900, 2
        %v4292 = vsel %vm753, %v4290, %v4291
        %v4293 = vrot.slane %v3901, 2
        %v4294 = vsel %vm753, %v4291, %v4293
        %v4295 = vrot.slane %v3902, 2
        %v4296 = vrot.slane %v3903, 2
        %v4297 = vsel %vm753, %v4295, %v4296
        %v4298 = vrot.slane %v3904, 2
        %v4299 = vsel %vm753, %v4296, %v4298
        %v4316 = vpack.c.bf16 %v4264, %v4262
        %v4317 = vpack.c.bf16 %v4269, %v4267
        %v4318 = vpack.c.bf16 %v4274, %v4272
        %v4319 = vpack.c.bf16 %v4279, %v4277
        %v4320 = vpack.c.bf16 %v4284, %v4282
        %v4321 = vpack.c.bf16 %v4289, %v4287
        %v4322 = vpack.c.bf16 %v4294, %v4292
        %v4323 = vpack.c.bf16 %v4299, %v4297
        %s4324 = scalar_lea.vmem %s3, 128
        %v4325 = vld [vmem:[%s4324] sm:$0xf]
        %v4326 = vld [vmem:[%s4324 + $0x4] sm:$0xf]
        %v4327 = vld [vmem:[%s4324 + $0x8] sm:$0xf]
        %v4328 = vld [vmem:[%s4324 + $0xc] sm:$0xf]
        %v4329 = vld [vmem:[%s4324 + $0x10] sm:$0xf]
        %v4330 = vld [vmem:[%s4324 + $0x14] sm:$0xf]
        %v4331 = vld [vmem:[%s4324 + $0x18] sm:$0xf]
        %v4332 = vld [vmem:[%s4324 + $0x1c] sm:$0xf]
        %v4333 = vld [vmem:[%s4324 + $0x20] sm:$0xf]
        %v4334 = vld [vmem:[%s4324 + $0x24] sm:$0xf]
        %v4335 = vld [vmem:[%s4324 + $0x28] sm:$0xf]
        %v4336 = vld [vmem:[%s4324 + $0x2c] sm:$0xf]
        %v4337 = vld [vmem:[%s4324 + $0x30] sm:$0xf]
        %v4338 = vld [vmem:[%s4324 + $0x34] sm:$0xf]
        %v4339 = vld [vmem:[%s4324 + $0x38] sm:$0xf]
        %v4340 = vld [vmem:[%s4324 + $0x3c] sm:$0xf]
        %v4357 = vunpack.c.l.b16 %v4325
        %v4358 = vunpack.c.l.b16 %v4326
        %v4359 = vunpack.c.l.b16 %v4327
        %v4360 = vunpack.c.l.b16 %v4328
        %v4361 = vunpack.c.l.b16 %v4329
        %v4362 = vunpack.c.l.b16 %v4330
        %v4363 = vunpack.c.l.b16 %v4331
        %v4364 = vunpack.c.l.b16 %v4332
        %v4365 = vunpack.c.l.b16 %v4333
        %v4366 = vunpack.c.l.b16 %v4334
        %v4367 = vunpack.c.l.b16 %v4335
        %v4368 = vunpack.c.l.b16 %v4336
        %v4369 = vunpack.c.l.b16 %v4337
        %v4370 = vunpack.c.l.b16 %v4338
        %v4371 = vunpack.c.l.b16 %v4339
        %v4372 = vunpack.c.l.b16 %v4340
        %v4373 = vpack.c.b16 %v4358, %v4357
        %v4374 = vpack.c.b16 %v4360, %v4359
        %v4375 = vpack.c.b16 %v4362, %v4361
        %v4376 = vpack.c.b16 %v4364, %v4363
        %v4377 = vpack.c.b16 %v4366, %v4365
        %v4378 = vpack.c.b16 %v4368, %v4367
        %v4379 = vpack.c.b16 %v4370, %v4369
        %v4380 = vpack.c.b16 %v4372, %v4371
        %4389 = vmatpush.bf16.msra.mxu0 %v4380
        %4390 = vmatpush.bf16.msra.mxu0 %v4379
        %4391 = vmatpush.bf16.msra.mxu0 %v4378
        %4392 = vmatpush.bf16.msra.mxu0 %v4377
        %4393 = vmatpush.bf16.msra.mxu0 %v4376
        %4394 = vmatpush.bf16.msra.mxu0 %v4375
        %4395 = vmatpush.bf16.msra.mxu0 %v4374
        %4396 = vmatpush.bf16.msra.mxu0 %v4373
        %4397 = vmatmul.bf16.gmra.mxu0 %v4316
        %v4398 = vpop.f32.mrf.mxu0
        %v4399 = vadd.f32 0.0, %v4398
        %v4400 = vpop.f32.mrf.mxu0
        %v4401 = vadd.f32 0.0, %v4400
        %4402 = vmatmul.bf16.gmra.mxu0 %v4317
        %v4403 = vpop.f32.mrf.mxu0
        %v4404 = vadd.f32 0.0, %v4403
        %v4405 = vpop.f32.mrf.mxu0
        %v4406 = vadd.f32 0.0, %v4405
        %4407 = vmatmul.bf16.gmra.mxu0 %v4318
        %v4408 = vpop.f32.mrf.mxu0
        %v4409 = vadd.f32 0.0, %v4408
        %v4410 = vpop.f32.mrf.mxu0
        %v4411 = vadd.f32 0.0, %v4410
        %4412 = vmatmul.bf16.gmra.mxu0 %v4319
        %v4413 = vpop.f32.mrf.mxu0
        %v4414 = vadd.f32 0.0, %v4413
        %v4415 = vpop.f32.mrf.mxu0
        %v4416 = vadd.f32 0.0, %v4415
        %4417 = vmatmul.bf16.gmra.mxu0 %v4320
        %v4418 = vpop.f32.mrf.mxu0
        %v4419 = vadd.f32 0.0, %v4418
        %v4420 = vpop.f32.mrf.mxu0
        %v4421 = vadd.f32 0.0, %v4420
        %4422 = vmatmul.bf16.gmra.mxu0 %v4321
        %v4423 = vpop.f32.mrf.mxu0
        %v4424 = vadd.f32 0.0, %v4423
        %v4425 = vpop.f32.mrf.mxu0
        %v4426 = vadd.f32 0.0, %v4425
        %4427 = vmatmul.bf16.gmra.mxu0 %v4322
        %v4428 = vpop.f32.mrf.mxu0
        %v4429 = vadd.f32 0.0, %v4428
        %v4430 = vpop.f32.mrf.mxu0
        %v4431 = vadd.f32 0.0, %v4430
        %4432 = vmatmul.bf16.gmra.mxu0 %v4323
        %v4433 = vpop.f32.mrf.mxu0
        %v4434 = vadd.f32 0.0, %v4433
        %v4435 = vpop.f32.mrf.mxu0
        %v4436 = vadd.f32 0.0, %v4435
        %4437 = vdwg.mxu0
        %v4438 = vadd.f32 %v4244, %v4399
        %v4439 = vadd.f32 %v4245, %v4401
        %v4440 = vadd.f32 %v4246, %v4404
        %v4441 = vadd.f32 %v4247, %v4406
        %v4442 = vadd.f32 %v4248, %v4409
        %v4443 = vadd.f32 %v4249, %v4411
        %v4444 = vadd.f32 %v4250, %v4414
        %v4445 = vadd.f32 %v4251, %v4416
        %v4446 = vadd.f32 %v4252, %v4419
        %v4447 = vadd.f32 %v4253, %v4421
        %v4448 = vadd.f32 %v4254, %v4424
        %v4449 = vadd.f32 %v4255, %v4426
        %v4450 = vadd.f32 %v4256, %v4429
        %v4451 = vadd.f32 %v4257, %v4431
        %v4452 = vadd.f32 %v4258, %v4434
        %v4453 = vadd.f32 %v4259, %v4436
        %v4454 = vld [vmem:[%s270] sm:$0xff]
        %v4455 = vld [vmem:[%s270 + $0x8] sm:$0xff]
        %v4456 = vld [vmem:[%s270 + $0x10] sm:$0x3]
        %v4457 = vld [vmem:[%s270 + $0x18] sm:$0xff]
        %v4458 = vld [vmem:[%s270 + $0x20] sm:$0xff]
        %v4459 = vld [vmem:[%s270 + $0x28] sm:$0x3]
        %v4460 = vld [vmem:[%s270 + $0x30] sm:$0xff]
        %v4461 = vld [vmem:[%s270 + $0x38] sm:$0xff]
        %v4462 = vld [vmem:[%s270 + $0x40] sm:$0x3]
        %v4463 = vld [vmem:[%s270 + $0x48] sm:$0xff]
        %v4464 = vld [vmem:[%s270 + $0x50] sm:$0xff]
        %v4465 = vld [vmem:[%s270 + $0x58] sm:$0x3]
        %v4466 = vld [vmem:[%s270 + $0x60] sm:$0xff]
        %v4467 = vld [vmem:[%s270 + $0x68] sm:$0xff]
        %v4468 = vld [vmem:[%s270 + $0x70] sm:$0x3]
        %v4469 = vld [vmem:[%s270 + $0x78] sm:$0xff]
        %v4470 = vld [vmem:[%s270 + $0x80] sm:$0xff]
        %v4471 = vld [vmem:[%s270 + $0x88] sm:$0x3]
        %v4472 = vld [vmem:[%s270 + $0x90] sm:$0xff]
        %v4473 = vld [vmem:[%s270 + $0x98] sm:$0xff]
        %v4474 = vld [vmem:[%s270 + $0xa0] sm:$0x3]
        %v4475 = vld [vmem:[%s270 + $0xa8] sm:$0xff]
        %v4476 = vld [vmem:[%s270 + $0xb0] sm:$0xff]
        %v4477 = vld [vmem:[%s270 + $0xb8] sm:$0x3]
        %v4478 = vpack.c.bf16 %v4455, %v4454
        %v4479 = vpack.c.bf16 %v4458, %v4457
        %v4480 = vpack.c.bf16 %v4461, %v4460
        %v4481 = vpack.c.bf16 %v4464, %v4463
        %v4482 = vpack.c.bf16 %v4467, %v4466
        %v4483 = vpack.c.bf16 %v4470, %v4469
        %v4484 = vpack.c.bf16 %v4473, %v4472
        %v4485 = vpack.c.bf16 %v4476, %v4475
        %s4486 = scalar_lea.vmem %s3, 192
        %v4487 = vld [vmem:[%s4486] sm:$0xf]
        %v4488 = vld [vmem:[%s4486 + $0x4] sm:$0xf]
        %v4489 = vld [vmem:[%s4486 + $0x8] sm:$0xf]
        %v4490 = vld [vmem:[%s4486 + $0xc] sm:$0xf]
        %v4491 = vld [vmem:[%s4486 + $0x10] sm:$0xf]
        %v4492 = vld [vmem:[%s4486 + $0x14] sm:$0xf]
        %v4493 = vld [vmem:[%s4486 + $0x18] sm:$0xf]
        %v4494 = vld [vmem:[%s4486 + $0x1c] sm:$0xf]
        %v4495 = vld [vmem:[%s4486 + $0x20] sm:$0xf]
        %v4496 = vld [vmem:[%s4486 + $0x24] sm:$0xf]
        %v4497 = vld [vmem:[%s4486 + $0x28] sm:$0xf]
        %v4498 = vld [vmem:[%s4486 + $0x2c] sm:$0xf]
        %v4499 = vld [vmem:[%s4486 + $0x30] sm:$0xf]
        %v4500 = vld [vmem:[%s4486 + $0x34] sm:$0xf]
        %v4501 = vld [vmem:[%s4486 + $0x38] sm:$0xf]
        %v4502 = vld [vmem:[%s4486 + $0x3c] sm:$0xf]
        %v4519 = vunpack.c.l.b16 %v4487
        %v4520 = vunpack.c.l.b16 %v4488
        %v4521 = vunpack.c.l.b16 %v4489
        %v4522 = vunpack.c.l.b16 %v4490
        %v4523 = vunpack.c.l.b16 %v4491
        %v4524 = vunpack.c.l.b16 %v4492
        %v4525 = vunpack.c.l.b16 %v4493
        %v4526 = vunpack.c.l.b16 %v4494
        %v4527 = vunpack.c.l.b16 %v4495
        %v4528 = vunpack.c.l.b16 %v4496
        %v4529 = vunpack.c.l.b16 %v4497
        %v4530 = vunpack.c.l.b16 %v4498
        %v4531 = vunpack.c.l.b16 %v4499
        %v4532 = vunpack.c.l.b16 %v4500
        %v4533 = vunpack.c.l.b16 %v4501
        %v4534 = vunpack.c.l.b16 %v4502
        %v4535 = vpack.c.b16 %v4520, %v4519
        %v4536 = vpack.c.b16 %v4522, %v4521
        %v4537 = vpack.c.b16 %v4524, %v4523
        %v4538 = vpack.c.b16 %v4526, %v4525
        %v4539 = vpack.c.b16 %v4528, %v4527
        %v4540 = vpack.c.b16 %v4530, %v4529
        %v4541 = vpack.c.b16 %v4532, %v4531
        %v4542 = vpack.c.b16 %v4534, %v4533
        %4551 = vmatpush.bf16.msra.mxu0 %v4542
        %4552 = vmatpush.bf16.msra.mxu0 %v4541
        %4553 = vmatpush.bf16.msra.mxu0 %v4540
        %4554 = vmatpush.bf16.msra.mxu0 %v4539
        %4555 = vmatpush.bf16.msra.mxu0 %v4538
        %4556 = vmatpush.bf16.msra.mxu0 %v4537
        %4557 = vmatpush.bf16.msra.mxu0 %v4536
        %4558 = vmatpush.bf16.msra.mxu0 %v4535
        %4559 = vmatmul.bf16.gmra.mxu0 %v4478
        %v4560 = vpop.f32.mrf.mxu0
        %v4561 = vadd.f32 0.0, %v4560
        %v4562 = vpop.f32.mrf.mxu0
        %v4563 = vadd.f32 0.0, %v4562
        %4564 = vmatmul.bf16.gmra.mxu0 %v4479
        %v4565 = vpop.f32.mrf.mxu0
        %v4566 = vadd.f32 0.0, %v4565
        %v4567 = vpop.f32.mrf.mxu0
        %v4568 = vadd.f32 0.0, %v4567
        %4569 = vmatmul.bf16.gmra.mxu0 %v4480
        %v4570 = vpop.f32.mrf.mxu0
        %v4571 = vadd.f32 0.0, %v4570
        %v4572 = vpop.f32.mrf.mxu0
        %v4573 = vadd.f32 0.0, %v4572
        %4574 = vmatmul.bf16.gmra.mxu0 %v4481
        %v4575 = vpop.f32.mrf.mxu0
        %v4576 = vadd.f32 0.0, %v4575
        %v4577 = vpop.f32.mrf.mxu0
        %v4578 = vadd.f32 0.0, %v4577
        %4579 = vmatmul.bf16.gmra.mxu0 %v4482
        %v4580 = vpop.f32.mrf.mxu0
        %v4581 = vadd.f32 0.0, %v4580
        %v4582 = vpop.f32.mrf.mxu0
        %v4583 = vadd.f32 0.0, %v4582
        %4584 = vmatmul.bf16.gmra.mxu0 %v4483
        %v4585 = vpop.f32.mrf.mxu0
        %v4586 = vadd.f32 0.0, %v4585
        %v4587 = vpop.f32.mrf.mxu0
        %v4588 = vadd.f32 0.0, %v4587
        %4589 = vmatmul.bf16.gmra.mxu0 %v4484
        %v4590 = vpop.f32.mrf.mxu0
        %v4591 = vadd.f32 0.0, %v4590
        %v4592 = vpop.f32.mrf.mxu0
        %v4593 = vadd.f32 0.0, %v4592
        %4594 = vmatmul.bf16.gmra.mxu0 %v4485
        %v4595 = vpop.f32.mrf.mxu0
        %v4596 = vadd.f32 0.0, %v4595
        %v4597 = vpop.f32.mrf.mxu0
        %v4598 = vadd.f32 0.0, %v4597
        %4599 = vdwg.mxu0
        %v4600 = vadd.f32 %v4438, %v4561
        %v4601 = vadd.f32 %v4439, %v4563
        %v4602 = vadd.f32 %v4440, %v4566
        %v4603 = vadd.f32 %v4441, %v4568
        %v4604 = vadd.f32 %v4442, %v4571
        %v4605 = vadd.f32 %v4443, %v4573
        %v4606 = vadd.f32 %v4444, %v4576
        %v4607 = vadd.f32 %v4445, %v4578
        %v4608 = vadd.f32 %v4446, %v4581
        %v4609 = vadd.f32 %v4447, %v4583
        %v4610 = vadd.f32 %v4448, %v4586
        %v4611 = vadd.f32 %v4449, %v4588
        %v4612 = vadd.f32 %v4450, %v4591
        %v4613 = vadd.f32 %v4451, %v4593
        %v4614 = vadd.f32 %v4452, %v4596
        %v4615 = vadd.f32 %v4453, %v4598
        %v4640 = vrot.slane %v4454, 1
        %v4641 = vrot.slane %v4455, 1
        %v4642 = vsel %vm558, %v4640, %v4641
        %v4643 = vrot.slane %v4456, 1
        %v4644 = vsel %vm558, %v4641, %v4643
        %v4645 = vrot.slane %v4457, 1
        %v4646 = vrot.slane %v4458, 1
        %v4647 = vsel %vm558, %v4645, %v4646
        %v4648 = vrot.slane %v4459, 1
        %v4649 = vsel %vm558, %v4646, %v4648
        %v4650 = vrot.slane %v4460, 1
        %v4651 = vrot.slane %v4461, 1
        %v4652 = vsel %vm558, %v4650, %v4651
        %v4653 = vrot.slane %v4462, 1
        %v4654 = vsel %vm558, %v4651, %v4653
        %v4655 = vrot.slane %v4463, 1
        %v4656 = vrot.slane %v4464, 1
        %v4657 = vsel %vm558, %v4655, %v4656
        %v4658 = vrot.slane %v4465, 1
        %v4659 = vsel %vm558, %v4656, %v4658
        %v4660 = vrot.slane %v4466, 1
        %v4661 = vrot.slane %v4467, 1
        %v4662 = vsel %vm558, %v4660, %v4661
        %v4663 = vrot.slane %v4468, 1
        %v4664 = vsel %vm558, %v4661, %v4663
        %v4665 = vrot.slane %v4469, 1
        %v4666 = vrot.slane %v4470, 1
        %v4667 = vsel %vm558, %v4665, %v4666
        %v4668 = vrot.slane %v4471, 1
        %v4669 = vsel %vm558, %v4666, %v4668
        %v4670 = vrot.slane %v4472, 1
        %v4671 = vrot.slane %v4473, 1
        %v4672 = vsel %vm558, %v4670, %v4671
        %v4673 = vrot.slane %v4474, 1
        %v4674 = vsel %vm558, %v4671, %v4673
        %v4675 = vrot.slane %v4475, 1
        %v4676 = vrot.slane %v4476, 1
        %v4677 = vsel %vm558, %v4675, %v4676
        %v4678 = vrot.slane %v4477, 1
        %v4679 = vsel %vm558, %v4676, %v4678
        %v4696 = vpack.c.bf16 %v4644, %v4642
        %v4697 = vpack.c.bf16 %v4649, %v4647
        %v4698 = vpack.c.bf16 %v4654, %v4652
        %v4699 = vpack.c.bf16 %v4659, %v4657
        %v4700 = vpack.c.bf16 %v4664, %v4662
        %v4701 = vpack.c.bf16 %v4669, %v4667
        %v4702 = vpack.c.bf16 %v4674, %v4672
        %v4703 = vpack.c.bf16 %v4679, %v4677
        %s4704 = scalar_lea.vmem %s3, 256
        %v4705 = vld [vmem:[%s4704] sm:$0xf]
        %v4706 = vld [vmem:[%s4704 + $0x4] sm:$0xf]
        %v4707 = vld [vmem:[%s4704 + $0x8] sm:$0xf]
        %v4708 = vld [vmem:[%s4704 + $0xc] sm:$0xf]
        %v4709 = vld [vmem:[%s4704 + $0x10] sm:$0xf]
        %v4710 = vld [vmem:[%s4704 + $0x14] sm:$0xf]
        %v4711 = vld [vmem:[%s4704 + $0x18] sm:$0xf]
        %v4712 = vld [vmem:[%s4704 + $0x1c] sm:$0xf]
        %v4713 = vld [vmem:[%s4704 + $0x20] sm:$0xf]
        %v4714 = vld [vmem:[%s4704 + $0x24] sm:$0xf]
        %v4715 = vld [vmem:[%s4704 + $0x28] sm:$0xf]
        %v4716 = vld [vmem:[%s4704 + $0x2c] sm:$0xf]
        %v4717 = vld [vmem:[%s4704 + $0x30] sm:$0xf]
        %v4718 = vld [vmem:[%s4704 + $0x34] sm:$0xf]
        %v4719 = vld [vmem:[%s4704 + $0x38] sm:$0xf]
        %v4720 = vld [vmem:[%s4704 + $0x3c] sm:$0xf]
        %v4737 = vunpack.c.l.b16 %v4705
        %v4738 = vunpack.c.l.b16 %v4706
        %v4739 = vunpack.c.l.b16 %v4707
        %v4740 = vunpack.c.l.b16 %v4708
        %v4741 = vunpack.c.l.b16 %v4709
        %v4742 = vunpack.c.l.b16 %v4710
        %v4743 = vunpack.c.l.b16 %v4711
        %v4744 = vunpack.c.l.b16 %v4712
        %v4745 = vunpack.c.l.b16 %v4713
        %v4746 = vunpack.c.l.b16 %v4714
        %v4747 = vunpack.c.l.b16 %v4715
        %v4748 = vunpack.c.l.b16 %v4716
        %v4749 = vunpack.c.l.b16 %v4717
        %v4750 = vunpack.c.l.b16 %v4718
        %v4751 = vunpack.c.l.b16 %v4719
        %v4752 = vunpack.c.l.b16 %v4720
        %v4753 = vpack.c.b16 %v4738, %v4737
        %v4754 = vpack.c.b16 %v4740, %v4739
        %v4755 = vpack.c.b16 %v4742, %v4741
        %v4756 = vpack.c.b16 %v4744, %v4743
        %v4757 = vpack.c.b16 %v4746, %v4745
        %v4758 = vpack.c.b16 %v4748, %v4747
        %v4759 = vpack.c.b16 %v4750, %v4749
        %v4760 = vpack.c.b16 %v4752, %v4751
        %4769 = vmatpush.bf16.msra.mxu0 %v4760
        %4770 = vmatpush.bf16.msra.mxu0 %v4759
        %4771 = vmatpush.bf16.msra.mxu0 %v4758
        %4772 = vmatpush.bf16.msra.mxu0 %v4757
        %4773 = vmatpush.bf16.msra.mxu0 %v4756
        %4774 = vmatpush.bf16.msra.mxu0 %v4755
        %4775 = vmatpush.bf16.msra.mxu0 %v4754
        %4776 = vmatpush.bf16.msra.mxu0 %v4753
        %4777 = vmatmul.bf16.gmra.mxu0 %v4696
        %v4778 = vpop.f32.mrf.mxu0
        %v4779 = vadd.f32 0.0, %v4778
        %v4780 = vpop.f32.mrf.mxu0
        %v4781 = vadd.f32 0.0, %v4780
        %4782 = vmatmul.bf16.gmra.mxu0 %v4697
        %v4783 = vpop.f32.mrf.mxu0
        %v4784 = vadd.f32 0.0, %v4783
        %v4785 = vpop.f32.mrf.mxu0
        %v4786 = vadd.f32 0.0, %v4785
        %4787 = vmatmul.bf16.gmra.mxu0 %v4698
        %v4788 = vpop.f32.mrf.mxu0
        %v4789 = vadd.f32 0.0, %v4788
        %v4790 = vpop.f32.mrf.mxu0
        %v4791 = vadd.f32 0.0, %v4790
        %4792 = vmatmul.bf16.gmra.mxu0 %v4699
        %v4793 = vpop.f32.mrf.mxu0
        %v4794 = vadd.f32 0.0, %v4793
        %v4795 = vpop.f32.mrf.mxu0
        %v4796 = vadd.f32 0.0, %v4795
        %4797 = vmatmul.bf16.gmra.mxu0 %v4700
        %v4798 = vpop.f32.mrf.mxu0
        %v4799 = vadd.f32 0.0, %v4798
        %v4800 = vpop.f32.mrf.mxu0
        %v4801 = vadd.f32 0.0, %v4800
        %4802 = vmatmul.bf16.gmra.mxu0 %v4701
        %v4803 = vpop.f32.mrf.mxu0
        %v4804 = vadd.f32 0.0, %v4803
        %v4805 = vpop.f32.mrf.mxu0
        %v4806 = vadd.f32 0.0, %v4805
        %4807 = vmatmul.bf16.gmra.mxu0 %v4702
        %v4808 = vpop.f32.mrf.mxu0
        %v4809 = vadd.f32 0.0, %v4808
        %v4810 = vpop.f32.mrf.mxu0
        %v4811 = vadd.f32 0.0, %v4810
        %4812 = vmatmul.bf16.gmra.mxu0 %v4703
        %v4813 = vpop.f32.mrf.mxu0
        %v4814 = vadd.f32 0.0, %v4813
        %v4815 = vpop.f32.mrf.mxu0
        %v4816 = vadd.f32 0.0, %v4815
        %4817 = vdwg.mxu0
        %v4818 = vadd.f32 %v4600, %v4779
        %v4819 = vadd.f32 %v4601, %v4781
        %v4820 = vadd.f32 %v4602, %v4784
        %v4821 = vadd.f32 %v4603, %v4786
        %v4822 = vadd.f32 %v4604, %v4789
        %v4823 = vadd.f32 %v4605, %v4791
        %v4824 = vadd.f32 %v4606, %v4794
        %v4825 = vadd.f32 %v4607, %v4796
        %v4826 = vadd.f32 %v4608, %v4799
        %v4827 = vadd.f32 %v4609, %v4801
        %v4828 = vadd.f32 %v4610, %v4804
        %v4829 = vadd.f32 %v4611, %v4806
        %v4830 = vadd.f32 %v4612, %v4809
        %v4831 = vadd.f32 %v4613, %v4811
        %v4832 = vadd.f32 %v4614, %v4814
        %v4833 = vadd.f32 %v4615, %v4816
        %v4834 = vrot.slane %v4454, 2
        %v4835 = vrot.slane %v4455, 2
        %v4836 = vsel %vm753, %v4834, %v4835
        %v4837 = vrot.slane %v4456, 2
        %v4838 = vsel %vm753, %v4835, %v4837
        %v4839 = vrot.slane %v4457, 2
        %v4840 = vrot.slane %v4458, 2
        %v4841 = vsel %vm753, %v4839, %v4840
        %v4842 = vrot.slane %v4459, 2
        %v4843 = vsel %vm753, %v4840, %v4842
        %v4844 = vrot.slane %v4460, 2
        %v4845 = vrot.slane %v4461, 2
        %v4846 = vsel %vm753, %v4844, %v4845
        %v4847 = vrot.slane %v4462, 2
        %v4848 = vsel %vm753, %v4845, %v4847
        %v4849 = vrot.slane %v4463, 2
        %v4850 = vrot.slane %v4464, 2
        %v4851 = vsel %vm753, %v4849, %v4850
        %v4852 = vrot.slane %v4465, 2
        %v4853 = vsel %vm753, %v4850, %v4852
        %v4854 = vrot.slane %v4466, 2
        %v4855 = vrot.slane %v4467, 2
        %v4856 = vsel %vm753, %v4854, %v4855
        %v4857 = vrot.slane %v4468, 2
        %v4858 = vsel %vm753, %v4855, %v4857
        %v4859 = vrot.slane %v4469, 2
        %v4860 = vrot.slane %v4470, 2
        %v4861 = vsel %vm753, %v4859, %v4860
        %v4862 = vrot.slane %v4471, 2
        %v4863 = vsel %vm753, %v4860, %v4862
        %v4864 = vrot.slane %v4472, 2
        %v4865 = vrot.slane %v4473, 2
        %v4866 = vsel %vm753, %v4864, %v4865
        %v4867 = vrot.slane %v4474, 2
        %v4868 = vsel %vm753, %v4865, %v4867
        %v4869 = vrot.slane %v4475, 2
        %v4870 = vrot.slane %v4476, 2
        %v4871 = vsel %vm753, %v4869, %v4870
        %v4872 = vrot.slane %v4477, 2
        %v4873 = vsel %vm753, %v4870, %v4872
        %v4890 = vpack.c.bf16 %v4838, %v4836
        %v4891 = vpack.c.bf16 %v4843, %v4841
        %v4892 = vpack.c.bf16 %v4848, %v4846
        %v4893 = vpack.c.bf16 %v4853, %v4851
        %v4894 = vpack.c.bf16 %v4858, %v4856
        %v4895 = vpack.c.bf16 %v4863, %v4861
        %v4896 = vpack.c.bf16 %v4868, %v4866
        %v4897 = vpack.c.bf16 %v4873, %v4871
        %s4898 = scalar_lea.vmem %s3, 320
        %v4899 = vld [vmem:[%s4898] sm:$0xf]
        %v4900 = vld [vmem:[%s4898 + $0x4] sm:$0xf]
        %v4901 = vld [vmem:[%s4898 + $0x8] sm:$0xf]
        %v4902 = vld [vmem:[%s4898 + $0xc] sm:$0xf]
        %v4903 = vld [vmem:[%s4898 + $0x10] sm:$0xf]
        %v4904 = vld [vmem:[%s4898 + $0x14] sm:$0xf]
        %v4905 = vld [vmem:[%s4898 + $0x18] sm:$0xf]
        %v4906 = vld [vmem:[%s4898 + $0x1c] sm:$0xf]
        %v4907 = vld [vmem:[%s4898 + $0x20] sm:$0xf]
        %v4908 = vld [vmem:[%s4898 + $0x24] sm:$0xf]
        %v4909 = vld [vmem:[%s4898 + $0x28] sm:$0xf]
        %v4910 = vld [vmem:[%s4898 + $0x2c] sm:$0xf]
        %v4911 = vld [vmem:[%s4898 + $0x30] sm:$0xf]
        %v4912 = vld [vmem:[%s4898 + $0x34] sm:$0xf]
        %v4913 = vld [vmem:[%s4898 + $0x38] sm:$0xf]
        %v4914 = vld [vmem:[%s4898 + $0x3c] sm:$0xf]
        %v4931 = vunpack.c.l.b16 %v4899
        %v4932 = vunpack.c.l.b16 %v4900
        %v4933 = vunpack.c.l.b16 %v4901
        %v4934 = vunpack.c.l.b16 %v4902
        %v4935 = vunpack.c.l.b16 %v4903
        %v4936 = vunpack.c.l.b16 %v4904
        %v4937 = vunpack.c.l.b16 %v4905
        %v4938 = vunpack.c.l.b16 %v4906
        %v4939 = vunpack.c.l.b16 %v4907
        %v4940 = vunpack.c.l.b16 %v4908
        %v4941 = vunpack.c.l.b16 %v4909
        %v4942 = vunpack.c.l.b16 %v4910
        %v4943 = vunpack.c.l.b16 %v4911
        %v4944 = vunpack.c.l.b16 %v4912
        %v4945 = vunpack.c.l.b16 %v4913
        %v4946 = vunpack.c.l.b16 %v4914
        %v4947 = vpack.c.b16 %v4932, %v4931
        %v4948 = vpack.c.b16 %v4934, %v4933
        %v4949 = vpack.c.b16 %v4936, %v4935
        %v4950 = vpack.c.b16 %v4938, %v4937
        %v4951 = vpack.c.b16 %v4940, %v4939
        %v4952 = vpack.c.b16 %v4942, %v4941
        %v4953 = vpack.c.b16 %v4944, %v4943
        %v4954 = vpack.c.b16 %v4946, %v4945
        %4963 = vmatpush.bf16.msra.mxu0 %v4954
        %4964 = vmatpush.bf16.msra.mxu0 %v4953
        %4965 = vmatpush.bf16.msra.mxu0 %v4952
        %4966 = vmatpush.bf16.msra.mxu0 %v4951
        %4967 = vmatpush.bf16.msra.mxu0 %v4950
        %4968 = vmatpush.bf16.msra.mxu0 %v4949
        %4969 = vmatpush.bf16.msra.mxu0 %v4948
        %4970 = vmatpush.bf16.msra.mxu0 %v4947
        %4971 = vmatmul.bf16.gmra.mxu0 %v4890
        %v4972 = vpop.f32.mrf.mxu0
        %v4973 = vadd.f32 0.0, %v4972
        %v4974 = vpop.f32.mrf.mxu0
        %v4975 = vadd.f32 0.0, %v4974
        %4976 = vmatmul.bf16.gmra.mxu0 %v4891
        %v4977 = vpop.f32.mrf.mxu0
        %v4978 = vadd.f32 0.0, %v4977
        %v4979 = vpop.f32.mrf.mxu0
        %v4980 = vadd.f32 0.0, %v4979
        %4981 = vmatmul.bf16.gmra.mxu0 %v4892
        %v4982 = vpop.f32.mrf.mxu0
        %v4983 = vadd.f32 0.0, %v4982
        %v4984 = vpop.f32.mrf.mxu0
        %v4985 = vadd.f32 0.0, %v4984
        %4986 = vmatmul.bf16.gmra.mxu0 %v4893
        %v4987 = vpop.f32.mrf.mxu0
        %v4988 = vadd.f32 0.0, %v4987
        %v4989 = vpop.f32.mrf.mxu0
        %v4990 = vadd.f32 0.0, %v4989
        %4991 = vmatmul.bf16.gmra.mxu0 %v4894
        %v4992 = vpop.f32.mrf.mxu0
        %v4993 = vadd.f32 0.0, %v4992
        %v4994 = vpop.f32.mrf.mxu0
        %v4995 = vadd.f32 0.0, %v4994
        %4996 = vmatmul.bf16.gmra.mxu0 %v4895
        %v4997 = vpop.f32.mrf.mxu0
        %v4998 = vadd.f32 0.0, %v4997
        %v4999 = vpop.f32.mrf.mxu0
        %v5000 = vadd.f32 0.0, %v4999
        %5001 = vmatmul.bf16.gmra.mxu0 %v4896
        %v5002 = vpop.f32.mrf.mxu0
        %v5003 = vadd.f32 0.0, %v5002
        %v5004 = vpop.f32.mrf.mxu0
        %v5005 = vadd.f32 0.0, %v5004
        %5006 = vmatmul.bf16.gmra.mxu0 %v4897
        %v5007 = vpop.f32.mrf.mxu0
        %v5008 = vadd.f32 0.0, %v5007
        %v5009 = vpop.f32.mrf.mxu0
        %v5010 = vadd.f32 0.0, %v5009
        %5011 = vdwg.mxu0
        %v5012 = vadd.f32 %v4818, %v4973
        %v5013 = vadd.f32 %v4819, %v4975
        %v5014 = vadd.f32 %v4820, %v4978
        %v5015 = vadd.f32 %v4821, %v4980
        %v5016 = vadd.f32 %v4822, %v4983
        %v5017 = vadd.f32 %v4823, %v4985
        %v5018 = vadd.f32 %v4824, %v4988
        %v5019 = vadd.f32 %v4825, %v4990
        %v5020 = vadd.f32 %v4826, %v4993
        %v5021 = vadd.f32 %v4827, %v4995
        %v5022 = vadd.f32 %v4828, %v4998
        %v5023 = vadd.f32 %v4829, %v5000
        %v5024 = vadd.f32 %v4830, %v5003
        %v5025 = vadd.f32 %v4831, %v5005
        %v5026 = vadd.f32 %v4832, %v5008
        %v5027 = vadd.f32 %v4833, %v5010
        %s5028 = scalar_lea.vmem [#allocation3], 48
        %v5029 = vld [vmem:[%s5028] sm:$0xff]
        %v5030 = vld [vmem:[%s5028 + $0x8] sm:$0xff]
        %v5031 = vld [vmem:[%s5028 + $0x10] sm:$0x3]
        %v5032 = vld [vmem:[%s5028 + $0x18] sm:$0xff]
        %v5033 = vld [vmem:[%s5028 + $0x20] sm:$0xff]
        %v5034 = vld [vmem:[%s5028 + $0x28] sm:$0x3]
        %v5035 = vld [vmem:[%s5028 + $0x30] sm:$0xff]
        %v5036 = vld [vmem:[%s5028 + $0x38] sm:$0xff]
        %v5037 = vld [vmem:[%s5028 + $0x40] sm:$0x3]
        %v5038 = vld [vmem:[%s5028 + $0x48] sm:$0xff]
        %v5039 = vld [vmem:[%s5028 + $0x50] sm:$0xff]
        %v5040 = vld [vmem:[%s5028 + $0x58] sm:$0x3]
        %v5041 = vld [vmem:[%s5028 + $0x60] sm:$0xff]
        %v5042 = vld [vmem:[%s5028 + $0x68] sm:$0xff]
        %v5043 = vld [vmem:[%s5028 + $0x70] sm:$0x3]
        %v5044 = vld [vmem:[%s5028 + $0x78] sm:$0xff]
        %v5045 = vld [vmem:[%s5028 + $0x80] sm:$0xff]
        %v5046 = vld [vmem:[%s5028 + $0x88] sm:$0x3]
        %v5047 = vld [vmem:[%s5028 + $0x90] sm:$0xff]
        %v5048 = vld [vmem:[%s5028 + $0x98] sm:$0xff]
        %v5049 = vld [vmem:[%s5028 + $0xa0] sm:$0x3]
        %v5050 = vld [vmem:[%s5028 + $0xa8] sm:$0xff]
        %v5051 = vld [vmem:[%s5028 + $0xb0] sm:$0xff]
        %v5052 = vld [vmem:[%s5028 + $0xb8] sm:$0x3]
        %v5053 = vpack.c.bf16 %v5030, %v5029
        %v5054 = vpack.c.bf16 %v5033, %v5032
        %v5055 = vpack.c.bf16 %v5036, %v5035
        %v5056 = vpack.c.bf16 %v5039, %v5038
        %v5057 = vpack.c.bf16 %v5042, %v5041
        %v5058 = vpack.c.bf16 %v5045, %v5044
        %v5059 = vpack.c.bf16 %v5048, %v5047
        %v5060 = vpack.c.bf16 %v5051, %v5050
        %s5061 = scalar_lea.vmem %s3, 384
        %v5062 = vld [vmem:[%s5061] sm:$0xf]
        %v5063 = vld [vmem:[%s5061 + $0x4] sm:$0xf]
        %v5064 = vld [vmem:[%s5061 + $0x8] sm:$0xf]
        %v5065 = vld [vmem:[%s5061 + $0xc] sm:$0xf]
        %v5066 = vld [vmem:[%s5061 + $0x10] sm:$0xf]
        %v5067 = vld [vmem:[%s5061 + $0x14] sm:$0xf]
        %v5068 = vld [vmem:[%s5061 + $0x18] sm:$0xf]
        %v5069 = vld [vmem:[%s5061 + $0x1c] sm:$0xf]
        %v5070 = vld [vmem:[%s5061 + $0x20] sm:$0xf]
        %v5071 = vld [vmem:[%s5061 + $0x24] sm:$0xf]
        %v5072 = vld [vmem:[%s5061 + $0x28] sm:$0xf]
        %v5073 = vld [vmem:[%s5061 + $0x2c] sm:$0xf]
        %v5074 = vld [vmem:[%s5061 + $0x30] sm:$0xf]
        %v5075 = vld [vmem:[%s5061 + $0x34] sm:$0xf]
        %v5076 = vld [vmem:[%s5061 + $0x38] sm:$0xf]
        %v5077 = vld [vmem:[%s5061 + $0x3c] sm:$0xf]
        %v5094 = vunpack.c.l.b16 %v5062
        %v5095 = vunpack.c.l.b16 %v5063
        %v5096 = vunpack.c.l.b16 %v5064
        %v5097 = vunpack.c.l.b16 %v5065
        %v5098 = vunpack.c.l.b16 %v5066
        %v5099 = vunpack.c.l.b16 %v5067
        %v5100 = vunpack.c.l.b16 %v5068
        %v5101 = vunpack.c.l.b16 %v5069
        %v5102 = vunpack.c.l.b16 %v5070
        %v5103 = vunpack.c.l.b16 %v5071
        %v5104 = vunpack.c.l.b16 %v5072
        %v5105 = vunpack.c.l.b16 %v5073
        %v5106 = vunpack.c.l.b16 %v5074
        %v5107 = vunpack.c.l.b16 %v5075
        %v5108 = vunpack.c.l.b16 %v5076
        %v5109 = vunpack.c.l.b16 %v5077
        %v5110 = vpack.c.b16 %v5095, %v5094
        %v5111 = vpack.c.b16 %v5097, %v5096
        %v5112 = vpack.c.b16 %v5099, %v5098
        %v5113 = vpack.c.b16 %v5101, %v5100
        %v5114 = vpack.c.b16 %v5103, %v5102
        %v5115 = vpack.c.b16 %v5105, %v5104
        %v5116 = vpack.c.b16 %v5107, %v5106
        %v5117 = vpack.c.b16 %v5109, %v5108
        %5126 = vmatpush.bf16.msra.mxu0 %v5117
        %5127 = vmatpush.bf16.msra.mxu0 %v5116
        %5128 = vmatpush.bf16.msra.mxu0 %v5115
        %5129 = vmatpush.bf16.msra.mxu0 %v5114
        %5130 = vmatpush.bf16.msra.mxu0 %v5113
        %5131 = vmatpush.bf16.msra.mxu0 %v5112
        %5132 = vmatpush.bf16.msra.mxu0 %v5111
        %5133 = vmatpush.bf16.msra.mxu0 %v5110
        %5134 = vmatmul.bf16.gmra.mxu0 %v5053
        %v5135 = vpop.f32.mrf.mxu0
        %v5136 = vadd.f32 0.0, %v5135
        %v5137 = vpop.f32.mrf.mxu0
        %v5138 = vadd.f32 0.0, %v5137
        %5139 = vmatmul.bf16.gmra.mxu0 %v5054
        %v5140 = vpop.f32.mrf.mxu0
        %v5141 = vadd.f32 0.0, %v5140
        %v5142 = vpop.f32.mrf.mxu0
        %v5143 = vadd.f32 0.0, %v5142
        %5144 = vmatmul.bf16.gmra.mxu0 %v5055
        %v5145 = vpop.f32.mrf.mxu0
        %v5146 = vadd.f32 0.0, %v5145
        %v5147 = vpop.f32.mrf.mxu0
        %v5148 = vadd.f32 0.0, %v5147
        %5149 = vmatmul.bf16.gmra.mxu0 %v5056
        %v5150 = vpop.f32.mrf.mxu0
        %v5151 = vadd.f32 0.0, %v5150
        %v5152 = vpop.f32.mrf.mxu0
        %v5153 = vadd.f32 0.0, %v5152
        %5154 = vmatmul.bf16.gmra.mxu0 %v5057
        %v5155 = vpop.f32.mrf.mxu0
        %v5156 = vadd.f32 0.0, %v5155
        %v5157 = vpop.f32.mrf.mxu0
        %v5158 = vadd.f32 0.0, %v5157
        %5159 = vmatmul.bf16.gmra.mxu0 %v5058
        %v5160 = vpop.f32.mrf.mxu0
        %v5161 = vadd.f32 0.0, %v5160
        %v5162 = vpop.f32.mrf.mxu0
        %v5163 = vadd.f32 0.0, %v5162
        %5164 = vmatmul.bf16.gmra.mxu0 %v5059
        %v5165 = vpop.f32.mrf.mxu0
        %v5166 = vadd.f32 0.0, %v5165
        %v5167 = vpop.f32.mrf.mxu0
        %v5168 = vadd.f32 0.0, %v5167
        %5169 = vmatmul.bf16.gmra.mxu0 %v5060
        %v5170 = vpop.f32.mrf.mxu0
        %v5171 = vadd.f32 0.0, %v5170
        %v5172 = vpop.f32.mrf.mxu0
        %v5173 = vadd.f32 0.0, %v5172
        %5174 = vdwg.mxu0
        %v5175 = vadd.f32 %v5012, %v5136
        %v5176 = vadd.f32 %v5013, %v5138
        %v5177 = vadd.f32 %v5014, %v5141
        %v5178 = vadd.f32 %v5015, %v5143
        %v5179 = vadd.f32 %v5016, %v5146
        %v5180 = vadd.f32 %v5017, %v5148
        %v5181 = vadd.f32 %v5018, %v5151
        %v5182 = vadd.f32 %v5019, %v5153
        %v5183 = vadd.f32 %v5020, %v5156
        %v5184 = vadd.f32 %v5021, %v5158
        %v5185 = vadd.f32 %v5022, %v5161
        %v5186 = vadd.f32 %v5023, %v5163
        %v5187 = vadd.f32 %v5024, %v5166
        %v5188 = vadd.f32 %v5025, %v5168
        %v5189 = vadd.f32 %v5026, %v5171
        %v5190 = vadd.f32 %v5027, %v5173
        %v5215 = vrot.slane %v5029, 1
        %v5216 = vrot.slane %v5030, 1
        %v5217 = vsel %vm558, %v5215, %v5216
        %v5218 = vrot.slane %v5031, 1
        %v5219 = vsel %vm558, %v5216, %v5218
        %v5220 = vrot.slane %v5032, 1
        %v5221 = vrot.slane %v5033, 1
        %v5222 = vsel %vm558, %v5220, %v5221
        %v5223 = vrot.slane %v5034, 1
        %v5224 = vsel %vm558, %v5221, %v5223
        %v5225 = vrot.slane %v5035, 1
        %v5226 = vrot.slane %v5036, 1
        %v5227 = vsel %vm558, %v5225, %v5226
        %v5228 = vrot.slane %v5037, 1
        %v5229 = vsel %vm558, %v5226, %v5228
        %v5230 = vrot.slane %v5038, 1
        %v5231 = vrot.slane %v5039, 1
        %v5232 = vsel %vm558, %v5230, %v5231
        %v5233 = vrot.slane %v5040, 1
        %v5234 = vsel %vm558, %v5231, %v5233
        %v5235 = vrot.slane %v5041, 1
        %v5236 = vrot.slane %v5042, 1
        %v5237 = vsel %vm558, %v5235, %v5236
        %v5238 = vrot.slane %v5043, 1
        %v5239 = vsel %vm558, %v5236, %v5238
        %v5240 = vrot.slane %v5044, 1
        %v5241 = vrot.slane %v5045, 1
        %v5242 = vsel %vm558, %v5240, %v5241
        %v5243 = vrot.slane %v5046, 1
        %v5244 = vsel %vm558, %v5241, %v5243
        %v5245 = vrot.slane %v5047, 1
        %v5246 = vrot.slane %v5048, 1
        %v5247 = vsel %vm558, %v5245, %v5246
        %v5248 = vrot.slane %v5049, 1
        %v5249 = vsel %vm558, %v5246, %v5248
        %v5250 = vrot.slane %v5050, 1
        %v5251 = vrot.slane %v5051, 1
        %v5252 = vsel %vm558, %v5250, %v5251
        %v5253 = vrot.slane %v5052, 1
        %v5254 = vsel %vm558, %v5251, %v5253
        %v5271 = vpack.c.bf16 %v5219, %v5217
        %v5272 = vpack.c.bf16 %v5224, %v5222
        %v5273 = vpack.c.bf16 %v5229, %v5227
        %v5274 = vpack.c.bf16 %v5234, %v5232
        %v5275 = vpack.c.bf16 %v5239, %v5237
        %v5276 = vpack.c.bf16 %v5244, %v5242
        %v5277 = vpack.c.bf16 %v5249, %v5247
        %v5278 = vpack.c.bf16 %v5254, %v5252
        %s5279 = scalar_lea.vmem %s3, 448
        %v5280 = vld [vmem:[%s5279] sm:$0xf]
        %v5281 = vld [vmem:[%s5279 + $0x4] sm:$0xf]
        %v5282 = vld [vmem:[%s5279 + $0x8] sm:$0xf]
        %v5283 = vld [vmem:[%s5279 + $0xc] sm:$0xf]
        %v5284 = vld [vmem:[%s5279 + $0x10] sm:$0xf]
        %v5285 = vld [vmem:[%s5279 + $0x14] sm:$0xf]
        %v5286 = vld [vmem:[%s5279 + $0x18] sm:$0xf]
        %v5287 = vld [vmem:[%s5279 + $0x1c] sm:$0xf]
        %v5288 = vld [vmem:[%s5279 + $0x20] sm:$0xf]
        %v5289 = vld [vmem:[%s5279 + $0x24] sm:$0xf]
        %v5290 = vld [vmem:[%s5279 + $0x28] sm:$0xf]
        %v5291 = vld [vmem:[%s5279 + $0x2c] sm:$0xf]
        %v5292 = vld [vmem:[%s5279 + $0x30] sm:$0xf]
        %v5293 = vld [vmem:[%s5279 + $0x34] sm:$0xf]
        %v5294 = vld [vmem:[%s5279 + $0x38] sm:$0xf]
        %v5295 = vld [vmem:[%s5279 + $0x3c] sm:$0xf]
        %v5312 = vunpack.c.l.b16 %v5280
        %v5313 = vunpack.c.l.b16 %v5281
        %v5314 = vunpack.c.l.b16 %v5282
        %v5315 = vunpack.c.l.b16 %v5283
        %v5316 = vunpack.c.l.b16 %v5284
        %v5317 = vunpack.c.l.b16 %v5285
        %v5318 = vunpack.c.l.b16 %v5286
        %v5319 = vunpack.c.l.b16 %v5287
        %v5320 = vunpack.c.l.b16 %v5288
        %v5321 = vunpack.c.l.b16 %v5289
        %v5322 = vunpack.c.l.b16 %v5290
        %v5323 = vunpack.c.l.b16 %v5291
        %v5324 = vunpack.c.l.b16 %v5292
        %v5325 = vunpack.c.l.b16 %v5293
        %v5326 = vunpack.c.l.b16 %v5294
        %v5327 = vunpack.c.l.b16 %v5295
        %v5328 = vpack.c.b16 %v5313, %v5312
        %v5329 = vpack.c.b16 %v5315, %v5314
        %v5330 = vpack.c.b16 %v5317, %v5316
        %v5331 = vpack.c.b16 %v5319, %v5318
        %v5332 = vpack.c.b16 %v5321, %v5320
        %v5333 = vpack.c.b16 %v5323, %v5322
        %v5334 = vpack.c.b16 %v5325, %v5324
        %v5335 = vpack.c.b16 %v5327, %v5326
        %5344 = vmatpush.bf16.msra.mxu0 %v5335
        %5345 = vmatpush.bf16.msra.mxu0 %v5334
        %5346 = vmatpush.bf16.msra.mxu0 %v5333
        %5347 = vmatpush.bf16.msra.mxu0 %v5332
        %5348 = vmatpush.bf16.msra.mxu0 %v5331
        %5349 = vmatpush.bf16.msra.mxu0 %v5330
        %5350 = vmatpush.bf16.msra.mxu0 %v5329
        %5351 = vmatpush.bf16.msra.mxu0 %v5328
        %5352 = vmatmul.bf16.gmra.mxu0 %v5271
        %v5353 = vpop.f32.mrf.mxu0
        %v5354 = vadd.f32 0.0, %v5353
        %v5355 = vpop.f32.mrf.mxu0
        %v5356 = vadd.f32 0.0, %v5355
        %5357 = vmatmul.bf16.gmra.mxu0 %v5272
        %v5358 = vpop.f32.mrf.mxu0
        %v5359 = vadd.f32 0.0, %v5358
        %v5360 = vpop.f32.mrf.mxu0
        %v5361 = vadd.f32 0.0, %v5360
        %5362 = vmatmul.bf16.gmra.mxu0 %v5273
        %v5363 = vpop.f32.mrf.mxu0
        %v5364 = vadd.f32 0.0, %v5363
        %v5365 = vpop.f32.mrf.mxu0
        %v5366 = vadd.f32 0.0, %v5365
        %5367 = vmatmul.bf16.gmra.mxu0 %v5274
        %v5368 = vpop.f32.mrf.mxu0
        %v5369 = vadd.f32 0.0, %v5368
        %v5370 = vpop.f32.mrf.mxu0
        %v5371 = vadd.f32 0.0, %v5370
        %5372 = vmatmul.bf16.gmra.mxu0 %v5275
        %v5373 = vpop.f32.mrf.mxu0
        %v5374 = vadd.f32 0.0, %v5373
        %v5375 = vpop.f32.mrf.mxu0
        %v5376 = vadd.f32 0.0, %v5375
        %5377 = vmatmul.bf16.gmra.mxu0 %v5276
        %v5378 = vpop.f32.mrf.mxu0
        %v5379 = vadd.f32 0.0, %v5378
        %v5380 = vpop.f32.mrf.mxu0
        %v5381 = vadd.f32 0.0, %v5380
        %5382 = vmatmul.bf16.gmra.mxu0 %v5277
        %v5383 = vpop.f32.mrf.mxu0
        %v5384 = vadd.f32 0.0, %v5383
        %v5385 = vpop.f32.mrf.mxu0
        %v5386 = vadd.f32 0.0, %v5385
        %5387 = vmatmul.bf16.gmra.mxu0 %v5278
        %v5388 = vpop.f32.mrf.mxu0
        %v5389 = vadd.f32 0.0, %v5388
        %v5390 = vpop.f32.mrf.mxu0
        %v5391 = vadd.f32 0.0, %v5390
        %5392 = vdwg.mxu0
        %v5393 = vadd.f32 %v5175, %v5354
        %v5394 = vadd.f32 %v5176, %v5356
        %v5395 = vadd.f32 %v5177, %v5359
        %v5396 = vadd.f32 %v5178, %v5361
        %v5397 = vadd.f32 %v5179, %v5364
        %v5398 = vadd.f32 %v5180, %v5366
        %v5399 = vadd.f32 %v5181, %v5369
        %v5400 = vadd.f32 %v5182, %v5371
        %v5401 = vadd.f32 %v5183, %v5374
        %v5402 = vadd.f32 %v5184, %v5376
        %v5403 = vadd.f32 %v5185, %v5379
        %v5404 = vadd.f32 %v5186, %v5381
        %v5405 = vadd.f32 %v5187, %v5384
        %v5406 = vadd.f32 %v5188, %v5386
        %v5407 = vadd.f32 %v5189, %v5389
        %v5408 = vadd.f32 %v5190, %v5391
        %v5409 = vrot.slane %v5029, 2
        %v5410 = vrot.slane %v5030, 2
        %v5411 = vsel %vm753, %v5409, %v5410
        %v5412 = vrot.slane %v5031, 2
        %v5413 = vsel %vm753, %v5410, %v5412
        %v5414 = vrot.slane %v5032, 2
        %v5415 = vrot.slane %v5033, 2
        %v5416 = vsel %vm753, %v5414, %v5415
        %v5417 = vrot.slane %v5034, 2
        %v5418 = vsel %vm753, %v5415, %v5417
        %v5419 = vrot.slane %v5035, 2
        %v5420 = vrot.slane %v5036, 2
        %v5421 = vsel %vm753, %v5419, %v5420
        %v5422 = vrot.slane %v5037, 2
        %v5423 = vsel %vm753, %v5420, %v5422
        %v5424 = vrot.slane %v5038, 2
        %v5425 = vrot.slane %v5039, 2
        %v5426 = vsel %vm753, %v5424, %v5425
        %v5427 = vrot.slane %v5040, 2
        %v5428 = vsel %vm753, %v5425, %v5427
        %v5429 = vrot.slane %v5041, 2
        %v5430 = vrot.slane %v5042, 2
        %v5431 = vsel %vm753, %v5429, %v5430
        %v5432 = vrot.slane %v5043, 2
        %v5433 = vsel %vm753, %v5430, %v5432
        %v5434 = vrot.slane %v5044, 2
        %v5435 = vrot.slane %v5045, 2
        %v5436 = vsel %vm753, %v5434, %v5435
        %v5437 = vrot.slane %v5046, 2
        %v5438 = vsel %vm753, %v5435, %v5437
        %v5439 = vrot.slane %v5047, 2
        %v5440 = vrot.slane %v5048, 2
        %v5441 = vsel %vm753, %v5439, %v5440
        %v5442 = vrot.slane %v5049, 2
        %v5443 = vsel %vm753, %v5440, %v5442
        %v5444 = vrot.slane %v5050, 2
        %v5445 = vrot.slane %v5051, 2
        %v5446 = vsel %vm753, %v5444, %v5445
        %v5447 = vrot.slane %v5052, 2
        %v5448 = vsel %vm753, %v5445, %v5447
        %v5465 = vpack.c.bf16 %v5413, %v5411
        %v5466 = vpack.c.bf16 %v5418, %v5416
        %v5467 = vpack.c.bf16 %v5423, %v5421
        %v5468 = vpack.c.bf16 %v5428, %v5426
        %v5469 = vpack.c.bf16 %v5433, %v5431
        %v5470 = vpack.c.bf16 %v5438, %v5436
        %v5471 = vpack.c.bf16 %v5443, %v5441
        %v5472 = vpack.c.bf16 %v5448, %v5446
        %s5473 = scalar_lea.vmem %s3, 512
        %v5474 = vld [vmem:[%s5473] sm:$0xf]
        %v5475 = vld [vmem:[%s5473 + $0x4] sm:$0xf]
        %v5476 = vld [vmem:[%s5473 + $0x8] sm:$0xf]
        %v5477 = vld [vmem:[%s5473 + $0xc] sm:$0xf]
        %v5478 = vld [vmem:[%s5473 + $0x10] sm:$0xf]
        %v5479 = vld [vmem:[%s5473 + $0x14] sm:$0xf]
        %v5480 = vld [vmem:[%s5473 + $0x18] sm:$0xf]
        %v5481 = vld [vmem:[%s5473 + $0x1c] sm:$0xf]
        %v5482 = vld [vmem:[%s5473 + $0x20] sm:$0xf]
        %v5483 = vld [vmem:[%s5473 + $0x24] sm:$0xf]
        %v5484 = vld [vmem:[%s5473 + $0x28] sm:$0xf]
        %v5485 = vld [vmem:[%s5473 + $0x2c] sm:$0xf]
        %v5486 = vld [vmem:[%s5473 + $0x30] sm:$0xf]
        %v5487 = vld [vmem:[%s5473 + $0x34] sm:$0xf]
        %v5488 = vld [vmem:[%s5473 + $0x38] sm:$0xf]
        %v5489 = vld [vmem:[%s5473 + $0x3c] sm:$0xf]
        %v5506 = vunpack.c.l.b16 %v5474
        %v5507 = vunpack.c.l.b16 %v5475
        %v5508 = vunpack.c.l.b16 %v5476
        %v5509 = vunpack.c.l.b16 %v5477
        %v5510 = vunpack.c.l.b16 %v5478
        %v5511 = vunpack.c.l.b16 %v5479
        %v5512 = vunpack.c.l.b16 %v5480
        %v5513 = vunpack.c.l.b16 %v5481
        %v5514 = vunpack.c.l.b16 %v5482
        %v5515 = vunpack.c.l.b16 %v5483
        %v5516 = vunpack.c.l.b16 %v5484
        %v5517 = vunpack.c.l.b16 %v5485
        %v5518 = vunpack.c.l.b16 %v5486
        %v5519 = vunpack.c.l.b16 %v5487
        %v5520 = vunpack.c.l.b16 %v5488
        %v5521 = vunpack.c.l.b16 %v5489
        %v5522 = vpack.c.b16 %v5507, %v5506
        %v5523 = vpack.c.b16 %v5509, %v5508
        %v5524 = vpack.c.b16 %v5511, %v5510
        %v5525 = vpack.c.b16 %v5513, %v5512
        %v5526 = vpack.c.b16 %v5515, %v5514
        %v5527 = vpack.c.b16 %v5517, %v5516
        %v5528 = vpack.c.b16 %v5519, %v5518
        %v5529 = vpack.c.b16 %v5521, %v5520
        %5538 = vmatpush.bf16.msra.mxu0 %v5529
        %5539 = vmatpush.bf16.msra.mxu0 %v5528
        %5540 = vmatpush.bf16.msra.mxu0 %v5527
        %5541 = vmatpush.bf16.msra.mxu0 %v5526
        %5542 = vmatpush.bf16.msra.mxu0 %v5525
        %5543 = vmatpush.bf16.msra.mxu0 %v5524
        %5544 = vmatpush.bf16.msra.mxu0 %v5523
        %5545 = vmatpush.bf16.msra.mxu0 %v5522
        %5546 = vmatmul.bf16.gmra.mxu0 %v5465
        %v5547 = vpop.f32.mrf.mxu0
        %v5548 = vadd.f32 0.0, %v5547
        %v5549 = vpop.f32.mrf.mxu0
        %v5550 = vadd.f32 0.0, %v5549
        %5551 = vmatmul.bf16.gmra.mxu0 %v5466
        %v5552 = vpop.f32.mrf.mxu0
        %v5553 = vadd.f32 0.0, %v5552
        %v5554 = vpop.f32.mrf.mxu0
        %v5555 = vadd.f32 0.0, %v5554
        %5556 = vmatmul.bf16.gmra.mxu0 %v5467
        %v5557 = vpop.f32.mrf.mxu0
        %v5558 = vadd.f32 0.0, %v5557
        %v5559 = vpop.f32.mrf.mxu0
        %v5560 = vadd.f32 0.0, %v5559
        %5561 = vmatmul.bf16.gmra.mxu0 %v5468
        %v5562 = vpop.f32.mrf.mxu0
        %v5563 = vadd.f32 0.0, %v5562
        %v5564 = vpop.f32.mrf.mxu0
        %v5565 = vadd.f32 0.0, %v5564
        %5566 = vmatmul.bf16.gmra.mxu0 %v5469
        %v5567 = vpop.f32.mrf.mxu0
        %v5568 = vadd.f32 0.0, %v5567
        %v5569 = vpop.f32.mrf.mxu0
        %v5570 = vadd.f32 0.0, %v5569
        %5571 = vmatmul.bf16.gmra.mxu0 %v5470
        %v5572 = vpop.f32.mrf.mxu0
        %v5573 = vadd.f32 0.0, %v5572
        %v5574 = vpop.f32.mrf.mxu0
        %v5575 = vadd.f32 0.0, %v5574
        %5576 = vmatmul.bf16.gmra.mxu0 %v5471
        %v5577 = vpop.f32.mrf.mxu0
        %v5578 = vadd.f32 0.0, %v5577
        %v5579 = vpop.f32.mrf.mxu0
        %v5580 = vadd.f32 0.0, %v5579
        %5581 = vmatmul.bf16.gmra.mxu0 %v5472
        %v5582 = vpop.f32.mrf.mxu0
        %v5583 = vadd.f32 0.0, %v5582
        %v5584 = vpop.f32.mrf.mxu0
        %v5585 = vadd.f32 0.0, %v5584
        %5586 = vdwg.mxu0
        %v5587 = vadd.f32 %v5393, %v5548
        %v5588 = vadd.f32 %v5394, %v5550
        %v5589 = vadd.f32 %v5395, %v5553
        %v5590 = vadd.f32 %v5396, %v5555
        %v5591 = vadd.f32 %v5397, %v5558
        %v5592 = vadd.f32 %v5398, %v5560
        %v5593 = vadd.f32 %v5399, %v5563
        %v5594 = vadd.f32 %v5400, %v5565
        %v5595 = vadd.f32 %v5401, %v5568
        %v5596 = vadd.f32 %v5402, %v5570
        %v5597 = vadd.f32 %v5403, %v5573
        %v5598 = vadd.f32 %v5404, %v5575
        %v5599 = vadd.f32 %v5405, %v5578
        %v5600 = vadd.f32 %v5406, %v5580
        %v5601 = vadd.f32 %v5407, %v5583
        %v5602 = vadd.f32 %v5408, %v5585
        %v5603 = vld [vmem:[%s222] sm:$0xff]
        %v5604 = vld [vmem:[%s222 + $0x8] sm:$0xff]
        %v5605 = vld [vmem:[%s222 + $0x10] sm:$0xff]
        %v5606 = vld [vmem:[%s222 + $0x18] sm:$0xff]
        %v5607 = vld [vmem:[%s222 + $0x20] sm:$0xff]
        %v5608 = vld [vmem:[%s222 + $0x28] sm:$0xff]
        %v5609 = vld [vmem:[%s222 + $0x30] sm:$0xff]
        %v5610 = vld [vmem:[%s222 + $0x38] sm:$0xff]
        %v5611 = vld [vmem:[%s222 + $0x40] sm:$0xff]
        %v5612 = vld [vmem:[%s222 + $0x48] sm:$0xff]
        %v5613 = vld [vmem:[%s222 + $0x50] sm:$0xff]
        %v5614 = vld [vmem:[%s222 + $0x58] sm:$0xff]
        %v5615 = vld [vmem:[%s222 + $0x60] sm:$0xff]
        %v5616 = vld [vmem:[%s222 + $0x68] sm:$0xff]
        %v5617 = vld [vmem:[%s222 + $0x70] sm:$0xff]
        %v5618 = vld [vmem:[%s222 + $0x78] sm:$0xff]
        %v5619 = vadd.f32 %v5587, %v5603
        %v5620 = vadd.f32 %v5588, %v5604
        %v5621 = vadd.f32 %v5589, %v5605
        %v5622 = vadd.f32 %v5590, %v5606
        %v5623 = vadd.f32 %v5591, %v5607
        %v5624 = vadd.f32 %v5592, %v5608
        %v5625 = vadd.f32 %v5593, %v5609
        %v5626 = vadd.f32 %v5594, %v5610
        %v5627 = vadd.f32 %v5595, %v5611
        %v5628 = vadd.f32 %v5596, %v5612
        %v5629 = vadd.f32 %v5597, %v5613
        %v5630 = vadd.f32 %v5598, %v5614
        %v5631 = vadd.f32 %v5599, %v5615
        %v5632 = vadd.f32 %v5600, %v5616
        %v5633 = vadd.f32 %v5601, %v5617
        %v5634 = vadd.f32 %v5602, %v5618
        %5635 = vst [vmem:[%s217] sm:$0xff] %v5619
        %5636 = vst [vmem:[%s217 + $0x8] sm:$0xff] %v5620
        %5637 = vst [vmem:[%s217 + $0x10] sm:$0xff] %v5621
        %5638 = vst [vmem:[%s217 + $0x18] sm:$0xff] %v5622
        %5639 = vst [vmem:[%s217 + $0x20] sm:$0xff] %v5623
        %5640 = vst [vmem:[%s217 + $0x28] sm:$0xff] %v5624
        %5641 = vst [vmem:[%s217 + $0x30] sm:$0xff] %v5625
        %5642 = vst [vmem:[%s217 + $0x38] sm:$0xff] %v5626
        %5643 = vst [vmem:[%s217 + $0x40] sm:$0xff] %v5627
        %5644 = vst [vmem:[%s217 + $0x48] sm:$0xff] %v5628
        %5645 = vst [vmem:[%s217 + $0x50] sm:$0xff] %v5629
        %5646 = vst [vmem:[%s217 + $0x58] sm:$0xff] %v5630
        %5647 = vst [vmem:[%s217 + $0x60] sm:$0xff] %v5631
        %5648 = vst [vmem:[%s217 + $0x68] sm:$0xff] %v5632
        %5649 = vst [vmem:[%s217 + $0x70] sm:$0xff] %v5633
        %5650 = vst [vmem:[%s217 + $0x78] sm:$0xff] %v5634
        %s5651 = scalar_lea.vmem [#allocation3], 192
        %v5652 = vld [vmem:[%s5651] sm:$0xff]
        %v5653 = vld [vmem:[%s5651 + $0x8] sm:$0xff]
        %v5654 = vld [vmem:[%s5651 + $0x10] sm:$0x3]
        %v5655 = vld [vmem:[%s5651 + $0x18] sm:$0xff]
        %v5656 = vld [vmem:[%s5651 + $0x20] sm:$0xff]
        %v5657 = vld [vmem:[%s5651 + $0x28] sm:$0x3]
        %v5658 = vld [vmem:[%s5651 + $0x30] sm:$0xff]
        %v5659 = vld [vmem:[%s5651 + $0x38] sm:$0xff]
        %v5660 = vld [vmem:[%s5651 + $0x40] sm:$0x3]
        %v5661 = vld [vmem:[%s5651 + $0x48] sm:$0xff]
        %v5662 = vld [vmem:[%s5651 + $0x50] sm:$0xff]
        %v5663 = vld [vmem:[%s5651 + $0x58] sm:$0x3]
        %v5664 = vld [vmem:[%s5651 + $0x60] sm:$0xff]
        %v5665 = vld [vmem:[%s5651 + $0x68] sm:$0xff]
        %v5666 = vld [vmem:[%s5651 + $0x70] sm:$0x3]
        %v5667 = vld [vmem:[%s5651 + $0x78] sm:$0xff]
        %v5668 = vld [vmem:[%s5651 + $0x80] sm:$0xff]
        %v5669 = vld [vmem:[%s5651 + $0x88] sm:$0x3]
        %v5670 = vld [vmem:[%s5651 + $0x90] sm:$0xff]
        %v5671 = vld [vmem:[%s5651 + $0x98] sm:$0xff]
        %v5672 = vld [vmem:[%s5651 + $0xa0] sm:$0x3]
        %v5673 = vld [vmem:[%s5651 + $0xa8] sm:$0xff]
        %v5674 = vld [vmem:[%s5651 + $0xb0] sm:$0xff]
        %v5675 = vld [vmem:[%s5651 + $0xb8] sm:$0x3]
        %v5676 = vpack.c.bf16 %v5653, %v5652
        %v5677 = vpack.c.bf16 %v5656, %v5655
        %v5678 = vpack.c.bf16 %v5659, %v5658
        %v5679 = vpack.c.bf16 %v5662, %v5661
        %v5680 = vpack.c.bf16 %v5665, %v5664
        %v5681 = vpack.c.bf16 %v5668, %v5667
        %v5682 = vpack.c.bf16 %v5671, %v5670
        %v5683 = vpack.c.bf16 %v5674, %v5673
        %v5684 = vld [vmem:[%s3] sm:$0xf]
        %v5685 = vld [vmem:[%s3 + $0x4] sm:$0xf]
        %v5686 = vld [vmem:[%s3 + $0x8] sm:$0xf]
        %v5687 = vld [vmem:[%s3 + $0xc] sm:$0xf]
        %v5688 = vld [vmem:[%s3 + $0x10] sm:$0xf]
        %v5689 = vld [vmem:[%s3 + $0x14] sm:$0xf]
        %v5690 = vld [vmem:[%s3 + $0x18] sm:$0xf]
        %v5691 = vld [vmem:[%s3 + $0x1c] sm:$0xf]
        %v5692 = vld [vmem:[%s3 + $0x20] sm:$0xf]
        %v5693 = vld [vmem:[%s3 + $0x24] sm:$0xf]
        %v5694 = vld [vmem:[%s3 + $0x28] sm:$0xf]
        %v5695 = vld [vmem:[%s3 + $0x2c] sm:$0xf]
        %v5696 = vld [vmem:[%s3 + $0x30] sm:$0xf]
        %v5697 = vld [vmem:[%s3 + $0x34] sm:$0xf]
        %v5698 = vld [vmem:[%s3 + $0x38] sm:$0xf]
        %v5699 = vld [vmem:[%s3 + $0x3c] sm:$0xf]
        %v5716 = vunpack.c.l.b16 %v5684
        %v5717 = vunpack.c.l.b16 %v5685
        %v5718 = vunpack.c.l.b16 %v5686
        %v5719 = vunpack.c.l.b16 %v5687
        %v5720 = vunpack.c.l.b16 %v5688
        %v5721 = vunpack.c.l.b16 %v5689
        %v5722 = vunpack.c.l.b16 %v5690
        %v5723 = vunpack.c.l.b16 %v5691
        %v5724 = vunpack.c.l.b16 %v5692
        %v5725 = vunpack.c.l.b16 %v5693
        %v5726 = vunpack.c.l.b16 %v5694
        %v5727 = vunpack.c.l.b16 %v5695
        %v5728 = vunpack.c.l.b16 %v5696
        %v5729 = vunpack.c.l.b16 %v5697
        %v5730 = vunpack.c.l.b16 %v5698
        %v5731 = vunpack.c.l.b16 %v5699
        %v5732 = vpack.c.b16 %v5717, %v5716
        %v5733 = vpack.c.b16 %v5719, %v5718
        %v5734 = vpack.c.b16 %v5721, %v5720
        %v5735 = vpack.c.b16 %v5723, %v5722
        %v5736 = vpack.c.b16 %v5725, %v5724
        %v5737 = vpack.c.b16 %v5727, %v5726
        %v5738 = vpack.c.b16 %v5729, %v5728
        %v5739 = vpack.c.b16 %v5731, %v5730
        %5748 = vmatpush.bf16.msra.mxu0 %v5739
        %5749 = vmatpush.bf16.msra.mxu0 %v5738
        %5750 = vmatpush.bf16.msra.mxu0 %v5737
        %5751 = vmatpush.bf16.msra.mxu0 %v5736
        %5752 = vmatpush.bf16.msra.mxu0 %v5735
        %5753 = vmatpush.bf16.msra.mxu0 %v5734
        %5754 = vmatpush.bf16.msra.mxu0 %v5733
        %5755 = vmatpush.bf16.msra.mxu0 %v5732
        %5756 = vmatmul.bf16.gmra.mxu0 %v5676
        %v5757 = vpop.f32.mrf.mxu0
        %v5758 = vadd.f32 0.0, %v5757
        %v5759 = vpop.f32.mrf.mxu0
        %v5760 = vadd.f32 0.0, %v5759
        %5761 = vmatmul.bf16.gmra.mxu0 %v5677
        %v5762 = vpop.f32.mrf.mxu0
        %v5763 = vadd.f32 0.0, %v5762
        %v5764 = vpop.f32.mrf.mxu0
        %v5765 = vadd.f32 0.0, %v5764
        %5766 = vmatmul.bf16.gmra.mxu0 %v5678
        %v5767 = vpop.f32.mrf.mxu0
        %v5768 = vadd.f32 0.0, %v5767
        %v5769 = vpop.f32.mrf.mxu0
        %v5770 = vadd.f32 0.0, %v5769
        %5771 = vmatmul.bf16.gmra.mxu0 %v5679
        %v5772 = vpop.f32.mrf.mxu0
        %v5773 = vadd.f32 0.0, %v5772
        %v5774 = vpop.f32.mrf.mxu0
        %v5775 = vadd.f32 0.0, %v5774
        %5776 = vmatmul.bf16.gmra.mxu0 %v5680
        %v5777 = vpop.f32.mrf.mxu0
        %v5778 = vadd.f32 0.0, %v5777
        %v5779 = vpop.f32.mrf.mxu0
        %v5780 = vadd.f32 0.0, %v5779
        %5781 = vmatmul.bf16.gmra.mxu0 %v5681
        %v5782 = vpop.f32.mrf.mxu0
        %v5783 = vadd.f32 0.0, %v5782
        %v5784 = vpop.f32.mrf.mxu0
        %v5785 = vadd.f32 0.0, %v5784
        %5786 = vmatmul.bf16.gmra.mxu0 %v5682
        %v5787 = vpop.f32.mrf.mxu0
        %v5788 = vadd.f32 0.0, %v5787
        %v5789 = vpop.f32.mrf.mxu0
        %v5790 = vadd.f32 0.0, %v5789
        %5791 = vmatmul.bf16.gmra.mxu0 %v5683
        %v5792 = vpop.f32.mrf.mxu0
        %v5793 = vadd.f32 0.0, %v5792
        %v5794 = vpop.f32.mrf.mxu0
        %v5795 = vadd.f32 0.0, %v5794
        %5796 = vdwg.mxu0
        %v5797 = vadd.f32 %v3879, %v5758
        %v5798 = vadd.f32 %v3879, %v5760
        %v5799 = vadd.f32 %v3879, %v5763
        %v5800 = vadd.f32 %v3879, %v5765
        %v5801 = vadd.f32 %v3879, %v5768
        %v5802 = vadd.f32 %v3879, %v5770
        %v5803 = vadd.f32 %v3879, %v5773
        %v5804 = vadd.f32 %v3879, %v5775
        %v5805 = vadd.f32 %v3879, %v5778
        %v5806 = vadd.f32 %v3879, %v5780
        %v5807 = vadd.f32 %v3879, %v5783
        %v5808 = vadd.f32 %v3879, %v5785
        %v5809 = vadd.f32 %v3879, %v5788
        %v5810 = vadd.f32 %v3879, %v5790
        %v5811 = vadd.f32 %v3879, %v5793
        %v5812 = vadd.f32 %v3879, %v5795
        %v5837 = vrot.slane %v5652, 1
        %v5838 = vrot.slane %v5653, 1
        %v5839 = vsel %vm558, %v5837, %v5838
        %v5840 = vrot.slane %v5654, 1
        %v5841 = vsel %vm558, %v5838, %v5840
        %v5842 = vrot.slane %v5655, 1
        %v5843 = vrot.slane %v5656, 1
        %v5844 = vsel %vm558, %v5842, %v5843
        %v5845 = vrot.slane %v5657, 1
        %v5846 = vsel %vm558, %v5843, %v5845
        %v5847 = vrot.slane %v5658, 1
        %v5848 = vrot.slane %v5659, 1
        %v5849 = vsel %vm558, %v5847, %v5848
        %v5850 = vrot.slane %v5660, 1
        %v5851 = vsel %vm558, %v5848, %v5850
        %v5852 = vrot.slane %v5661, 1
        %v5853 = vrot.slane %v5662, 1
        %v5854 = vsel %vm558, %v5852, %v5853
        %v5855 = vrot.slane %v5663, 1
        %v5856 = vsel %vm558, %v5853, %v5855
        %v5857 = vrot.slane %v5664, 1
        %v5858 = vrot.slane %v5665, 1
        %v5859 = vsel %vm558, %v5857, %v5858
        %v5860 = vrot.slane %v5666, 1
        %v5861 = vsel %vm558, %v5858, %v5860
        %v5862 = vrot.slane %v5667, 1
        %v5863 = vrot.slane %v5668, 1
        %v5864 = vsel %vm558, %v5862, %v5863
        %v5865 = vrot.slane %v5669, 1
        %v5866 = vsel %vm558, %v5863, %v5865
        %v5867 = vrot.slane %v5670, 1
        %v5868 = vrot.slane %v5671, 1
        %v5869 = vsel %vm558, %v5867, %v5868
        %v5870 = vrot.slane %v5672, 1
        %v5871 = vsel %vm558, %v5868, %v5870
        %v5872 = vrot.slane %v5673, 1
        %v5873 = vrot.slane %v5674, 1
        %v5874 = vsel %vm558, %v5872, %v5873
        %v5875 = vrot.slane %v5675, 1
        %v5876 = vsel %vm558, %v5873, %v5875
        %v5893 = vpack.c.bf16 %v5841, %v5839
        %v5894 = vpack.c.bf16 %v5846, %v5844
        %v5895 = vpack.c.bf16 %v5851, %v5849
        %v5896 = vpack.c.bf16 %v5856, %v5854
        %v5897 = vpack.c.bf16 %v5861, %v5859
        %v5898 = vpack.c.bf16 %v5866, %v5864
        %v5899 = vpack.c.bf16 %v5871, %v5869
        %v5900 = vpack.c.bf16 %v5876, %v5874
        %v5901 = vld [vmem:[%s4130] sm:$0xf]
        %v5902 = vld [vmem:[%s4130 + $0x4] sm:$0xf]
        %v5903 = vld [vmem:[%s4130 + $0x8] sm:$0xf]
        %v5904 = vld [vmem:[%s4130 + $0xc] sm:$0xf]
        %v5905 = vld [vmem:[%s4130 + $0x10] sm:$0xf]
        %v5906 = vld [vmem:[%s4130 + $0x14] sm:$0xf]
        %v5907 = vld [vmem:[%s4130 + $0x18] sm:$0xf]
        %v5908 = vld [vmem:[%s4130 + $0x1c] sm:$0xf]
        %v5909 = vld [vmem:[%s4130 + $0x20] sm:$0xf]
        %v5910 = vld [vmem:[%s4130 + $0x24] sm:$0xf]
        %v5911 = vld [vmem:[%s4130 + $0x28] sm:$0xf]
        %v5912 = vld [vmem:[%s4130 + $0x2c] sm:$0xf]
        %v5913 = vld [vmem:[%s4130 + $0x30] sm:$0xf]
        %v5914 = vld [vmem:[%s4130 + $0x34] sm:$0xf]
        %v5915 = vld [vmem:[%s4130 + $0x38] sm:$0xf]
        %v5916 = vld [vmem:[%s4130 + $0x3c] sm:$0xf]
        %v5933 = vunpack.c.l.b16 %v5901
        %v5934 = vunpack.c.l.b16 %v5902
        %v5935 = vunpack.c.l.b16 %v5903
        %v5936 = vunpack.c.l.b16 %v5904
        %v5937 = vunpack.c.l.b16 %v5905
        %v5938 = vunpack.c.l.b16 %v5906
        %v5939 = vunpack.c.l.b16 %v5907
        %v5940 = vunpack.c.l.b16 %v5908
        %v5941 = vunpack.c.l.b16 %v5909
        %v5942 = vunpack.c.l.b16 %v5910
        %v5943 = vunpack.c.l.b16 %v5911
        %v5944 = vunpack.c.l.b16 %v5912
        %v5945 = vunpack.c.l.b16 %v5913
        %v5946 = vunpack.c.l.b16 %v5914
        %v5947 = vunpack.c.l.b16 %v5915
        %v5948 = vunpack.c.l.b16 %v5916
        %v5949 = vpack.c.b16 %v5934, %v5933
        %v5950 = vpack.c.b16 %v5936, %v5935
        %v5951 = vpack.c.b16 %v5938, %v5937
        %v5952 = vpack.c.b16 %v5940, %v5939
        %v5953 = vpack.c.b16 %v5942, %v5941
        %v5954 = vpack.c.b16 %v5944, %v5943
        %v5955 = vpack.c.b16 %v5946, %v5945
        %v5956 = vpack.c.b16 %v5948, %v5947
        %5965 = vmatpush.bf16.msra.mxu0 %v5956
        %5966 = vmatpush.bf16.msra.mxu0 %v5955
        %5967 = vmatpush.bf16.msra.mxu0 %v5954
        %5968 = vmatpush.bf16.msra.mxu0 %v5953
        %5969 = vmatpush.bf16.msra.mxu0 %v5952
        %5970 = vmatpush.bf16.msra.mxu0 %v5951
        %5971 = vmatpush.bf16.msra.mxu0 %v5950
        %5972 = vmatpush.bf16.msra.mxu0 %v5949
        %5973 = vmatmul.bf16.gmra.mxu0 %v5893
        %v5974 = vpop.f32.mrf.mxu0
        %v5975 = vadd.f32 0.0, %v5974
        %v5976 = vpop.f32.mrf.mxu0
        %v5977 = vadd.f32 0.0, %v5976
        %5978 = vmatmul.bf16.gmra.mxu0 %v5894
        %v5979 = vpop.f32.mrf.mxu0
        %v5980 = vadd.f32 0.0, %v5979
        %v5981 = vpop.f32.mrf.mxu0
        %v5982 = vadd.f32 0.0, %v5981
        %5983 = vmatmul.bf16.gmra.mxu0 %v5895
        %v5984 = vpop.f32.mrf.mxu0
        %v5985 = vadd.f32 0.0, %v5984
        %v5986 = vpop.f32.mrf.mxu0
        %v5987 = vadd.f32 0.0, %v5986
        %5988 = vmatmul.bf16.gmra.mxu0 %v5896
        %v5989 = vpop.f32.mrf.mxu0
        %v5990 = vadd.f32 0.0, %v5989
        %v5991 = vpop.f32.mrf.mxu0
        %v5992 = vadd.f32 0.0, %v5991
        %5993 = vmatmul.bf16.gmra.mxu0 %v5897
        %v5994 = vpop.f32.mrf.mxu0
        %v5995 = vadd.f32 0.0, %v5994
        %v5996 = vpop.f32.mrf.mxu0
        %v5997 = vadd.f32 0.0, %v5996
        %5998 = vmatmul.bf16.gmra.mxu0 %v5898
        %v5999 = vpop.f32.mrf.mxu0
        %v6000 = vadd.f32 0.0, %v5999
        %v6001 = vpop.f32.mrf.mxu0
        %v6002 = vadd.f32 0.0, %v6001
        %6003 = vmatmul.bf16.gmra.mxu0 %v5899
        %v6004 = vpop.f32.mrf.mxu0
        %v6005 = vadd.f32 0.0, %v6004
        %v6006 = vpop.f32.mrf.mxu0
        %v6007 = vadd.f32 0.0, %v6006
        %6008 = vmatmul.bf16.gmra.mxu0 %v5900
        %v6009 = vpop.f32.mrf.mxu0
        %v6010 = vadd.f32 0.0, %v6009
        %v6011 = vpop.f32.mrf.mxu0
        %v6012 = vadd.f32 0.0, %v6011
        %6013 = vdwg.mxu0
        %v6014 = vadd.f32 %v5797, %v5975
        %v6015 = vadd.f32 %v5798, %v5977
        %v6016 = vadd.f32 %v5799, %v5980
        %v6017 = vadd.f32 %v5800, %v5982
        %v6018 = vadd.f32 %v5801, %v5985
        %v6019 = vadd.f32 %v5802, %v5987
        %v6020 = vadd.f32 %v5803, %v5990
        %v6021 = vadd.f32 %v5804, %v5992
        %v6022 = vadd.f32 %v5805, %v5995
        %v6023 = vadd.f32 %v5806, %v5997
        %v6024 = vadd.f32 %v5807, %v6000
        %v6025 = vadd.f32 %v5808, %v6002
        %v6026 = vadd.f32 %v5809, %v6005
        %v6027 = vadd.f32 %v5810, %v6007
        %v6028 = vadd.f32 %v5811, %v6010
        %v6029 = vadd.f32 %v5812, %v6012
        %v6030 = vrot.slane %v5652, 2
        %v6031 = vrot.slane %v5653, 2
        %v6032 = vsel %vm753, %v6030, %v6031
        %v6033 = vrot.slane %v5654, 2
        %v6034 = vsel %vm753, %v6031, %v6033
        %v6035 = vrot.slane %v5655, 2
        %v6036 = vrot.slane %v5656, 2
        %v6037 = vsel %vm753, %v6035, %v6036
        %v6038 = vrot.slane %v5657, 2
        %v6039 = vsel %vm753, %v6036, %v6038
        %v6040 = vrot.slane %v5658, 2
        %v6041 = vrot.slane %v5659, 2
        %v6042 = vsel %vm753, %v6040, %v6041
        %v6043 = vrot.slane %v5660, 2
        %v6044 = vsel %vm753, %v6041, %v6043
        %v6045 = vrot.slane %v5661, 2
        %v6046 = vrot.slane %v5662, 2
        %v6047 = vsel %vm753, %v6045, %v6046
        %v6048 = vrot.slane %v5663, 2
        %v6049 = vsel %vm753, %v6046, %v6048
        %v6050 = vrot.slane %v5664, 2
        %v6051 = vrot.slane %v5665, 2
        %v6052 = vsel %vm753, %v6050, %v6051
        %v6053 = vrot.slane %v5666, 2
        %v6054 = vsel %vm753, %v6051, %v6053
        %v6055 = vrot.slane %v5667, 2
        %v6056 = vrot.slane %v5668, 2
        %v6057 = vsel %vm753, %v6055, %v6056
        %v6058 = vrot.slane %v5669, 2
        %v6059 = vsel %vm753, %v6056, %v6058
        %v6060 = vrot.slane %v5670, 2
        %v6061 = vrot.slane %v5671, 2
        %v6062 = vsel %vm753, %v6060, %v6061
        %v6063 = vrot.slane %v5672, 2
        %v6064 = vsel %vm753, %v6061, %v6063
        %v6065 = vrot.slane %v5673, 2
        %v6066 = vrot.slane %v5674, 2
        %v6067 = vsel %vm753, %v6065, %v6066
        %v6068 = vrot.slane %v5675, 2
        %v6069 = vsel %vm753, %v6066, %v6068
        %v6086 = vpack.c.bf16 %v6034, %v6032
        %v6087 = vpack.c.bf16 %v6039, %v6037
        %v6088 = vpack.c.bf16 %v6044, %v6042
        %v6089 = vpack.c.bf16 %v6049, %v6047
        %v6090 = vpack.c.bf16 %v6054, %v6052
        %v6091 = vpack.c.bf16 %v6059, %v6057
        %v6092 = vpack.c.bf16 %v6064, %v6062
        %v6093 = vpack.c.bf16 %v6069, %v6067
        %v6094 = vld [vmem:[%s4324] sm:$0xf]
        %v6095 = vld [vmem:[%s4324 + $0x4] sm:$0xf]
        %v6096 = vld [vmem:[%s4324 + $0x8] sm:$0xf]
        %v6097 = vld [vmem:[%s4324 + $0xc] sm:$0xf]
        %v6098 = vld [vmem:[%s4324 + $0x10] sm:$0xf]
        %v6099 = vld [vmem:[%s4324 + $0x14] sm:$0xf]
        %v6100 = vld [vmem:[%s4324 + $0x18] sm:$0xf]
        %v6101 = vld [vmem:[%s4324 + $0x1c] sm:$0xf]
        %v6102 = vld [vmem:[%s4324 + $0x20] sm:$0xf]
        %v6103 = vld [vmem:[%s4324 + $0x24] sm:$0xf]
        %v6104 = vld [vmem:[%s4324 + $0x28] sm:$0xf]
        %v6105 = vld [vmem:[%s4324 + $0x2c] sm:$0xf]
        %v6106 = vld [vmem:[%s4324 + $0x30] sm:$0xf]
        %v6107 = vld [vmem:[%s4324 + $0x34] sm:$0xf]
        %v6108 = vld [vmem:[%s4324 + $0x38] sm:$0xf]
        %v6109 = vld [vmem:[%s4324 + $0x3c] sm:$0xf]
        %v6126 = vunpack.c.l.b16 %v6094
        %v6127 = vunpack.c.l.b16 %v6095
        %v6128 = vunpack.c.l.b16 %v6096
        %v6129 = vunpack.c.l.b16 %v6097
        %v6130 = vunpack.c.l.b16 %v6098
        %v6131 = vunpack.c.l.b16 %v6099
        %v6132 = vunpack.c.l.b16 %v6100
        %v6133 = vunpack.c.l.b16 %v6101
        %v6134 = vunpack.c.l.b16 %v6102
        %v6135 = vunpack.c.l.b16 %v6103
        %v6136 = vunpack.c.l.b16 %v6104
        %v6137 = vunpack.c.l.b16 %v6105
        %v6138 = vunpack.c.l.b16 %v6106
        %v6139 = vunpack.c.l.b16 %v6107
        %v6140 = vunpack.c.l.b16 %v6108
        %v6141 = vunpack.c.l.b16 %v6109
        %v6142 = vpack.c.b16 %v6127, %v6126
        %v6143 = vpack.c.b16 %v6129, %v6128
        %v6144 = vpack.c.b16 %v6131, %v6130
        %v6145 = vpack.c.b16 %v6133, %v6132
        %v6146 = vpack.c.b16 %v6135, %v6134
        %v6147 = vpack.c.b16 %v6137, %v6136
        %v6148 = vpack.c.b16 %v6139, %v6138
        %v6149 = vpack.c.b16 %v6141, %v6140
        %6158 = vmatpush.bf16.msra.mxu0 %v6149
        %6159 = vmatpush.bf16.msra.mxu0 %v6148
        %6160 = vmatpush.bf16.msra.mxu0 %v6147
        %6161 = vmatpush.bf16.msra.mxu0 %v6146
        %6162 = vmatpush.bf16.msra.mxu0 %v6145
        %6163 = vmatpush.bf16.msra.mxu0 %v6144
        %6164 = vmatpush.bf16.msra.mxu0 %v6143
        %6165 = vmatpush.bf16.msra.mxu0 %v6142
        %6166 = vmatmul.bf16.gmra.mxu0 %v6086
        %v6167 = vpop.f32.mrf.mxu0
        %v6168 = vadd.f32 0.0, %v6167
        %v6169 = vpop.f32.mrf.mxu0
        %v6170 = vadd.f32 0.0, %v6169
        %6171 = vmatmul.bf16.gmra.mxu0 %v6087
        %v6172 = vpop.f32.mrf.mxu0
        %v6173 = vadd.f32 0.0, %v6172
        %v6174 = vpop.f32.mrf.mxu0
        %v6175 = vadd.f32 0.0, %v6174
        %6176 = vmatmul.bf16.gmra.mxu0 %v6088
        %v6177 = vpop.f32.mrf.mxu0
        %v6178 = vadd.f32 0.0, %v6177
        %v6179 = vpop.f32.mrf.mxu0
        %v6180 = vadd.f32 0.0, %v6179
        %6181 = vmatmul.bf16.gmra.mxu0 %v6089
        %v6182 = vpop.f32.mrf.mxu0
        %v6183 = vadd.f32 0.0, %v6182
        %v6184 = vpop.f32.mrf.mxu0
        %v6185 = vadd.f32 0.0, %v6184
        %6186 = vmatmul.bf16.gmra.mxu0 %v6090
        %v6187 = vpop.f32.mrf.mxu0
        %v6188 = vadd.f32 0.0, %v6187
        %v6189 = vpop.f32.mrf.mxu0
        %v6190 = vadd.f32 0.0, %v6189
        %6191 = vmatmul.bf16.gmra.mxu0 %v6091
        %v6192 = vpop.f32.mrf.mxu0
        %v6193 = vadd.f32 0.0, %v6192
        %v6194 = vpop.f32.mrf.mxu0
        %v6195 = vadd.f32 0.0, %v6194
        %6196 = vmatmul.bf16.gmra.mxu0 %v6092
        %v6197 = vpop.f32.mrf.mxu0
        %v6198 = vadd.f32 0.0, %v6197
        %v6199 = vpop.f32.mrf.mxu0
        %v6200 = vadd.f32 0.0, %v6199
        %6201 = vmatmul.bf16.gmra.mxu0 %v6093
        %v6202 = vpop.f32.mrf.mxu0
        %v6203 = vadd.f32 0.0, %v6202
        %v6204 = vpop.f32.mrf.mxu0
        %v6205 = vadd.f32 0.0, %v6204
        %6206 = vdwg.mxu0
        %v6207 = vadd.f32 %v6014, %v6168
        %v6208 = vadd.f32 %v6015, %v6170
        %v6209 = vadd.f32 %v6016, %v6173
        %v6210 = vadd.f32 %v6017, %v6175
        %v6211 = vadd.f32 %v6018, %v6178
        %v6212 = vadd.f32 %v6019, %v6180
        %v6213 = vadd.f32 %v6020, %v6183
        %v6214 = vadd.f32 %v6021, %v6185
        %v6215 = vadd.f32 %v6022, %v6188
        %v6216 = vadd.f32 %v6023, %v6190
        %v6217 = vadd.f32 %v6024, %v6193
        %v6218 = vadd.f32 %v6025, %v6195
        %v6219 = vadd.f32 %v6026, %v6198
        %v6220 = vadd.f32 %v6027, %v6200
        %v6221 = vadd.f32 %v6028, %v6203
        %v6222 = vadd.f32 %v6029, %v6205
        %v6223 = vld [vmem:[%s3860] sm:$0xff]
        %v6224 = vld [vmem:[%s3860 + $0x8] sm:$0xff]
        %v6225 = vld [vmem:[%s3860 + $0x10] sm:$0x3]
        %v6226 = vld [vmem:[%s3860 + $0x18] sm:$0xff]
        %v6227 = vld [vmem:[%s3860 + $0x20] sm:$0xff]
        %v6228 = vld [vmem:[%s3860 + $0x28] sm:$0x3]
        %v6229 = vld [vmem:[%s3860 + $0x30] sm:$0xff]
        %v6230 = vld [vmem:[%s3860 + $0x38] sm:$0xff]
        %v6231 = vld [vmem:[%s3860 + $0x40] sm:$0x3]
        %v6232 = vld [vmem:[%s3860 + $0x48] sm:$0xff]
        %v6233 = vld [vmem:[%s3860 + $0x50] sm:$0xff]
        %v6234 = vld [vmem:[%s3860 + $0x58] sm:$0x3]
        %v6235 = vld [vmem:[%s3860 + $0x60] sm:$0xff]
        %v6236 = vld [vmem:[%s3860 + $0x68] sm:$0xff]
        %v6237 = vld [vmem:[%s3860 + $0x70] sm:$0x3]
        %v6238 = vld [vmem:[%s3860 + $0x78] sm:$0xff]
        %v6239 = vld [vmem:[%s3860 + $0x80] sm:$0xff]
        %v6240 = vld [vmem:[%s3860 + $0x88] sm:$0x3]
        %v6241 = vld [vmem:[%s3860 + $0x90] sm:$0xff]
        %v6242 = vld [vmem:[%s3860 + $0x98] sm:$0xff]
        %v6243 = vld [vmem:[%s3860 + $0xa0] sm:$0x3]
        %v6244 = vld [vmem:[%s3860 + $0xa8] sm:$0xff]
        %v6245 = vld [vmem:[%s3860 + $0xb0] sm:$0xff]
        %v6246 = vld [vmem:[%s3860 + $0xb8] sm:$0x3]
        %v6247 = vpack.c.bf16 %v6224, %v6223
        %v6248 = vpack.c.bf16 %v6227, %v6226
        %v6249 = vpack.c.bf16 %v6230, %v6229
        %v6250 = vpack.c.bf16 %v6233, %v6232
        %v6251 = vpack.c.bf16 %v6236, %v6235
        %v6252 = vpack.c.bf16 %v6239, %v6238
        %v6253 = vpack.c.bf16 %v6242, %v6241
        %v6254 = vpack.c.bf16 %v6245, %v6244
        %v6255 = vld [vmem:[%s4486] sm:$0xf]
        %v6256 = vld [vmem:[%s4486 + $0x4] sm:$0xf]
        %v6257 = vld [vmem:[%s4486 + $0x8] sm:$0xf]
        %v6258 = vld [vmem:[%s4486 + $0xc] sm:$0xf]
        %v6259 = vld [vmem:[%s4486 + $0x10] sm:$0xf]
        %v6260 = vld [vmem:[%s4486 + $0x14] sm:$0xf]
        %v6261 = vld [vmem:[%s4486 + $0x18] sm:$0xf]
        %v6262 = vld [vmem:[%s4486 + $0x1c] sm:$0xf]
        %v6263 = vld [vmem:[%s4486 + $0x20] sm:$0xf]
        %v6264 = vld [vmem:[%s4486 + $0x24] sm:$0xf]
        %v6265 = vld [vmem:[%s4486 + $0x28] sm:$0xf]
        %v6266 = vld [vmem:[%s4486 + $0x2c] sm:$0xf]
        %v6267 = vld [vmem:[%s4486 + $0x30] sm:$0xf]
        %v6268 = vld [vmem:[%s4486 + $0x34] sm:$0xf]
        %v6269 = vld [vmem:[%s4486 + $0x38] sm:$0xf]
        %v6270 = vld [vmem:[%s4486 + $0x3c] sm:$0xf]
        %v6287 = vunpack.c.l.b16 %v6255
        %v6288 = vunpack.c.l.b16 %v6256
        %v6289 = vunpack.c.l.b16 %v6257
        %v6290 = vunpack.c.l.b16 %v6258
        %v6291 = vunpack.c.l.b16 %v6259
        %v6292 = vunpack.c.l.b16 %v6260
        %v6293 = vunpack.c.l.b16 %v6261
        %v6294 = vunpack.c.l.b16 %v6262
        %v6295 = vunpack.c.l.b16 %v6263
        %v6296 = vunpack.c.l.b16 %v6264
        %v6297 = vunpack.c.l.b16 %v6265
        %v6298 = vunpack.c.l.b16 %v6266
        %v6299 = vunpack.c.l.b16 %v6267
        %v6300 = vunpack.c.l.b16 %v6268
        %v6301 = vunpack.c.l.b16 %v6269
        %v6302 = vunpack.c.l.b16 %v6270
        %v6303 = vpack.c.b16 %v6288, %v6287
        %v6304 = vpack.c.b16 %v6290, %v6289
        %v6305 = vpack.c.b16 %v6292, %v6291
        %v6306 = vpack.c.b16 %v6294, %v6293
        %v6307 = vpack.c.b16 %v6296, %v6295
        %v6308 = vpack.c.b16 %v6298, %v6297
        %v6309 = vpack.c.b16 %v6300, %v6299
        %v6310 = vpack.c.b16 %v6302, %v6301
        %6319 = vmatpush.bf16.msra.mxu0 %v6310
        %6320 = vmatpush.bf16.msra.mxu0 %v6309
        %6321 = vmatpush.bf16.msra.mxu0 %v6308
        %6322 = vmatpush.bf16.msra.mxu0 %v6307
        %6323 = vmatpush.bf16.msra.mxu0 %v6306
        %6324 = vmatpush.bf16.msra.mxu0 %v6305
        %6325 = vmatpush.bf16.msra.mxu0 %v6304
        %6326 = vmatpush.bf16.msra.mxu0 %v6303
        %6327 = vmatmul.bf16.gmra.mxu0 %v6247
        %v6328 = vpop.f32.mrf.mxu0
        %v6329 = vadd.f32 0.0, %v6328
        %v6330 = vpop.f32.mrf.mxu0
        %v6331 = vadd.f32 0.0, %v6330
        %6332 = vmatmul.bf16.gmra.mxu0 %v6248
        %v6333 = vpop.f32.mrf.mxu0
        %v6334 = vadd.f32 0.0, %v6333
        %v6335 = vpop.f32.mrf.mxu0
        %v6336 = vadd.f32 0.0, %v6335
        %6337 = vmatmul.bf16.gmra.mxu0 %v6249
        %v6338 = vpop.f32.mrf.mxu0
        %v6339 = vadd.f32 0.0, %v6338
        %v6340 = vpop.f32.mrf.mxu0
        %v6341 = vadd.f32 0.0, %v6340
        %6342 = vmatmul.bf16.gmra.mxu0 %v6250
        %v6343 = vpop.f32.mrf.mxu0
        %v6344 = vadd.f32 0.0, %v6343
        %v6345 = vpop.f32.mrf.mxu0
        %v6346 = vadd.f32 0.0, %v6345
        %6347 = vmatmul.bf16.gmra.mxu0 %v6251
        %v6348 = vpop.f32.mrf.mxu0
        %v6349 = vadd.f32 0.0, %v6348
        %v6350 = vpop.f32.mrf.mxu0
        %v6351 = vadd.f32 0.0, %v6350
        %6352 = vmatmul.bf16.gmra.mxu0 %v6252
        %v6353 = vpop.f32.mrf.mxu0
        %v6354 = vadd.f32 0.0, %v6353
        %v6355 = vpop.f32.mrf.mxu0
        %v6356 = vadd.f32 0.0, %v6355
        %6357 = vmatmul.bf16.gmra.mxu0 %v6253
        %v6358 = vpop.f32.mrf.mxu0
        %v6359 = vadd.f32 0.0, %v6358
        %v6360 = vpop.f32.mrf.mxu0
        %v6361 = vadd.f32 0.0, %v6360
        %6362 = vmatmul.bf16.gmra.mxu0 %v6254
        %v6363 = vpop.f32.mrf.mxu0
        %v6364 = vadd.f32 0.0, %v6363
        %v6365 = vpop.f32.mrf.mxu0
        %v6366 = vadd.f32 0.0, %v6365
        %6367 = vdwg.mxu0
        %v6368 = vadd.f32 %v6207, %v6329
        %v6369 = vadd.f32 %v6208, %v6331
        %v6370 = vadd.f32 %v6209, %v6334
        %v6371 = vadd.f32 %v6210, %v6336
        %v6372 = vadd.f32 %v6211, %v6339
        %v6373 = vadd.f32 %v6212, %v6341
        %v6374 = vadd.f32 %v6213, %v6344
        %v6375 = vadd.f32 %v6214, %v6346
        %v6376 = vadd.f32 %v6215, %v6349
        %v6377 = vadd.f32 %v6216, %v6351
        %v6378 = vadd.f32 %v6217, %v6354
        %v6379 = vadd.f32 %v6218, %v6356
        %v6380 = vadd.f32 %v6219, %v6359
        %v6381 = vadd.f32 %v6220, %v6361
        %v6382 = vadd.f32 %v6221, %v6364
        %v6383 = vadd.f32 %v6222, %v6366
        %v6408 = vrot.slane %v6223, 1
        %v6409 = vrot.slane %v6224, 1
        %v6410 = vsel %vm558, %v6408, %v6409
        %v6411 = vrot.slane %v6225, 1
        %v6412 = vsel %vm558, %v6409, %v6411
        %v6413 = vrot.slane %v6226, 1
        %v6414 = vrot.slane %v6227, 1
        %v6415 = vsel %vm558, %v6413, %v6414
        %v6416 = vrot.slane %v6228, 1
        %v6417 = vsel %vm558, %v6414, %v6416
        %v6418 = vrot.slane %v6229, 1
        %v6419 = vrot.slane %v6230, 1
        %v6420 = vsel %vm558, %v6418, %v6419
        %v6421 = vrot.slane %v6231, 1
        %v6422 = vsel %vm558, %v6419, %v6421
        %v6423 = vrot.slane %v6232, 1
        %v6424 = vrot.slane %v6233, 1
        %v6425 = vsel %vm558, %v6423, %v6424
        %v6426 = vrot.slane %v6234, 1
        %v6427 = vsel %vm558, %v6424, %v6426
        %v6428 = vrot.slane %v6235, 1
        %v6429 = vrot.slane %v6236, 1
        %v6430 = vsel %vm558, %v6428, %v6429
        %v6431 = vrot.slane %v6237, 1
        %v6432 = vsel %vm558, %v6429, %v6431
        %v6433 = vrot.slane %v6238, 1
        %v6434 = vrot.slane %v6239, 1
        %v6435 = vsel %vm558, %v6433, %v6434
        %v6436 = vrot.slane %v6240, 1
        %v6437 = vsel %vm558, %v6434, %v6436
        %v6438 = vrot.slane %v6241, 1
        %v6439 = vrot.slane %v6242, 1
        %v6440 = vsel %vm558, %v6438, %v6439
        %v6441 = vrot.slane %v6243, 1
        %v6442 = vsel %vm558, %v6439, %v6441
        %v6443 = vrot.slane %v6244, 1
        %v6444 = vrot.slane %v6245, 1
        %v6445 = vsel %vm558, %v6443, %v6444
        %v6446 = vrot.slane %v6246, 1
        %v6447 = vsel %vm558, %v6444, %v6446
        %v6464 = vpack.c.bf16 %v6412, %v6410
        %v6465 = vpack.c.bf16 %v6417, %v6415
        %v6466 = vpack.c.bf16 %v6422, %v6420
        %v6467 = vpack.c.bf16 %v6427, %v6425
        %v6468 = vpack.c.bf16 %v6432, %v6430
        %v6469 = vpack.c.bf16 %v6437, %v6435
        %v6470 = vpack.c.bf16 %v6442, %v6440
        %v6471 = vpack.c.bf16 %v6447, %v6445
        %v6472 = vld [vmem:[%s4704] sm:$0xf]
        %v6473 = vld [vmem:[%s4704 + $0x4] sm:$0xf]
        %v6474 = vld [vmem:[%s4704 + $0x8] sm:$0xf]
        %v6475 = vld [vmem:[%s4704 + $0xc] sm:$0xf]
        %v6476 = vld [vmem:[%s4704 + $0x10] sm:$0xf]
        %v6477 = vld [vmem:[%s4704 + $0x14] sm:$0xf]
        %v6478 = vld [vmem:[%s4704 + $0x18] sm:$0xf]
        %v6479 = vld [vmem:[%s4704 + $0x1c] sm:$0xf]
        %v6480 = vld [vmem:[%s4704 + $0x20] sm:$0xf]
        %v6481 = vld [vmem:[%s4704 + $0x24] sm:$0xf]
        %v6482 = vld [vmem:[%s4704 + $0x28] sm:$0xf]
        %v6483 = vld [vmem:[%s4704 + $0x2c] sm:$0xf]
        %v6484 = vld [vmem:[%s4704 + $0x30] sm:$0xf]
        %v6485 = vld [vmem:[%s4704 + $0x34] sm:$0xf]
        %v6486 = vld [vmem:[%s4704 + $0x38] sm:$0xf]
        %v6487 = vld [vmem:[%s4704 + $0x3c] sm:$0xf]
        %v6504 = vunpack.c.l.b16 %v6472
        %v6505 = vunpack.c.l.b16 %v6473
        %v6506 = vunpack.c.l.b16 %v6474
        %v6507 = vunpack.c.l.b16 %v6475
        %v6508 = vunpack.c.l.b16 %v6476
        %v6509 = vunpack.c.l.b16 %v6477
        %v6510 = vunpack.c.l.b16 %v6478
        %v6511 = vunpack.c.l.b16 %v6479
        %v6512 = vunpack.c.l.b16 %v6480
        %v6513 = vunpack.c.l.b16 %v6481
        %v6514 = vunpack.c.l.b16 %v6482
        %v6515 = vunpack.c.l.b16 %v6483
        %v6516 = vunpack.c.l.b16 %v6484
        %v6517 = vunpack.c.l.b16 %v6485
        %v6518 = vunpack.c.l.b16 %v6486
        %v6519 = vunpack.c.l.b16 %v6487
        %v6520 = vpack.c.b16 %v6505, %v6504
        %v6521 = vpack.c.b16 %v6507, %v6506
        %v6522 = vpack.c.b16 %v6509, %v6508
        %v6523 = vpack.c.b16 %v6511, %v6510
        %v6524 = vpack.c.b16 %v6513, %v6512
        %v6525 = vpack.c.b16 %v6515, %v6514
        %v6526 = vpack.c.b16 %v6517, %v6516
        %v6527 = vpack.c.b16 %v6519, %v6518
        %6536 = vmatpush.bf16.msra.mxu0 %v6527
        %6537 = vmatpush.bf16.msra.mxu0 %v6526
        %6538 = vmatpush.bf16.msra.mxu0 %v6525
        %6539 = vmatpush.bf16.msra.mxu0 %v6524
        %6540 = vmatpush.bf16.msra.mxu0 %v6523
        %6541 = vmatpush.bf16.msra.mxu0 %v6522
        %6542 = vmatpush.bf16.msra.mxu0 %v6521
        %6543 = vmatpush.bf16.msra.mxu0 %v6520
        %6544 = vmatmul.bf16.gmra.mxu0 %v6464
        %v6545 = vpop.f32.mrf.mxu0
        %v6546 = vadd.f32 0.0, %v6545
        %v6547 = vpop.f32.mrf.mxu0
        %v6548 = vadd.f32 0.0, %v6547
        %6549 = vmatmul.bf16.gmra.mxu0 %v6465
        %v6550 = vpop.f32.mrf.mxu0
        %v6551 = vadd.f32 0.0, %v6550
        %v6552 = vpop.f32.mrf.mxu0
        %v6553 = vadd.f32 0.0, %v6552
        %6554 = vmatmul.bf16.gmra.mxu0 %v6466
        %v6555 = vpop.f32.mrf.mxu0
        %v6556 = vadd.f32 0.0, %v6555
        %v6557 = vpop.f32.mrf.mxu0
        %v6558 = vadd.f32 0.0, %v6557
        %6559 = vmatmul.bf16.gmra.mxu0 %v6467
        %v6560 = vpop.f32.mrf.mxu0
        %v6561 = vadd.f32 0.0, %v6560
        %v6562 = vpop.f32.mrf.mxu0
        %v6563 = vadd.f32 0.0, %v6562
        %6564 = vmatmul.bf16.gmra.mxu0 %v6468
        %v6565 = vpop.f32.mrf.mxu0
        %v6566 = vadd.f32 0.0, %v6565
        %v6567 = vpop.f32.mrf.mxu0
        %v6568 = vadd.f32 0.0, %v6567
        %6569 = vmatmul.bf16.gmra.mxu0 %v6469
        %v6570 = vpop.f32.mrf.mxu0
        %v6571 = vadd.f32 0.0, %v6570
        %v6572 = vpop.f32.mrf.mxu0
        %v6573 = vadd.f32 0.0, %v6572
        %6574 = vmatmul.bf16.gmra.mxu0 %v6470
        %v6575 = vpop.f32.mrf.mxu0
        %v6576 = vadd.f32 0.0, %v6575
        %v6577 = vpop.f32.mrf.mxu0
        %v6578 = vadd.f32 0.0, %v6577
        %6579 = vmatmul.bf16.gmra.mxu0 %v6471
        %v6580 = vpop.f32.mrf.mxu0
        %v6581 = vadd.f32 0.0, %v6580
        %v6582 = vpop.f32.mrf.mxu0
        %v6583 = vadd.f32 0.0, %v6582
        %6584 = vdwg.mxu0
        %v6585 = vadd.f32 %v6368, %v6546
        %v6586 = vadd.f32 %v6369, %v6548
        %v6587 = vadd.f32 %v6370, %v6551
        %v6588 = vadd.f32 %v6371, %v6553
        %v6589 = vadd.f32 %v6372, %v6556
        %v6590 = vadd.f32 %v6373, %v6558
        %v6591 = vadd.f32 %v6374, %v6561
        %v6592 = vadd.f32 %v6375, %v6563
        %v6593 = vadd.f32 %v6376, %v6566
        %v6594 = vadd.f32 %v6377, %v6568
        %v6595 = vadd.f32 %v6378, %v6571
        %v6596 = vadd.f32 %v6379, %v6573
        %v6597 = vadd.f32 %v6380, %v6576
        %v6598 = vadd.f32 %v6381, %v6578
        %v6599 = vadd.f32 %v6382, %v6581
        %v6600 = vadd.f32 %v6383, %v6583
        %v6601 = vrot.slane %v6223, 2
        %v6602 = vrot.slane %v6224, 2
        %v6603 = vsel %vm753, %v6601, %v6602
        %v6604 = vrot.slane %v6225, 2
        %v6605 = vsel %vm753, %v6602, %v6604
        %v6606 = vrot.slane %v6226, 2
        %v6607 = vrot.slane %v6227, 2
        %v6608 = vsel %vm753, %v6606, %v6607
        %v6609 = vrot.slane %v6228, 2
        %v6610 = vsel %vm753, %v6607, %v6609
        %v6611 = vrot.slane %v6229, 2
        %v6612 = vrot.slane %v6230, 2
        %v6613 = vsel %vm753, %v6611, %v6612
        %v6614 = vrot.slane %v6231, 2
        %v6615 = vsel %vm753, %v6612, %v6614
        %v6616 = vrot.slane %v6232, 2
        %v6617 = vrot.slane %v6233, 2
        %v6618 = vsel %vm753, %v6616, %v6617
        %v6619 = vrot.slane %v6234, 2
        %v6620 = vsel %vm753, %v6617, %v6619
        %v6621 = vrot.slane %v6235, 2
        %v6622 = vrot.slane %v6236, 2
        %v6623 = vsel %vm753, %v6621, %v6622
        %v6624 = vrot.slane %v6237, 2
        %v6625 = vsel %vm753, %v6622, %v6624
        %v6626 = vrot.slane %v6238, 2
        %v6627 = vrot.slane %v6239, 2
        %v6628 = vsel %vm753, %v6626, %v6627
        %v6629 = vrot.slane %v6240, 2
        %v6630 = vsel %vm753, %v6627, %v6629
        %v6631 = vrot.slane %v6241, 2
        %v6632 = vrot.slane %v6242, 2
        %v6633 = vsel %vm753, %v6631, %v6632
        %v6634 = vrot.slane %v6243, 2
        %v6635 = vsel %vm753, %v6632, %v6634
        %v6636 = vrot.slane %v6244, 2
        %v6637 = vrot.slane %v6245, 2
        %v6638 = vsel %vm753, %v6636, %v6637
        %v6639 = vrot.slane %v6246, 2
        %v6640 = vsel %vm753, %v6637, %v6639
        %v6657 = vpack.c.bf16 %v6605, %v6603
        %v6658 = vpack.c.bf16 %v6610, %v6608
        %v6659 = vpack.c.bf16 %v6615, %v6613
        %v6660 = vpack.c.bf16 %v6620, %v6618
        %v6661 = vpack.c.bf16 %v6625, %v6623
        %v6662 = vpack.c.bf16 %v6630, %v6628
        %v6663 = vpack.c.bf16 %v6635, %v6633
        %v6664 = vpack.c.bf16 %v6640, %v6638
        %v6665 = vld [vmem:[%s4898] sm:$0xf]
        %v6666 = vld [vmem:[%s4898 + $0x4] sm:$0xf]
        %v6667 = vld [vmem:[%s4898 + $0x8] sm:$0xf]
        %v6668 = vld [vmem:[%s4898 + $0xc] sm:$0xf]
        %v6669 = vld [vmem:[%s4898 + $0x10] sm:$0xf]
        %v6670 = vld [vmem:[%s4898 + $0x14] sm:$0xf]
        %v6671 = vld [vmem:[%s4898 + $0x18] sm:$0xf]
        %v6672 = vld [vmem:[%s4898 + $0x1c] sm:$0xf]
        %v6673 = vld [vmem:[%s4898 + $0x20] sm:$0xf]
        %v6674 = vld [vmem:[%s4898 + $0x24] sm:$0xf]
        %v6675 = vld [vmem:[%s4898 + $0x28] sm:$0xf]
        %v6676 = vld [vmem:[%s4898 + $0x2c] sm:$0xf]
        %v6677 = vld [vmem:[%s4898 + $0x30] sm:$0xf]
        %v6678 = vld [vmem:[%s4898 + $0x34] sm:$0xf]
        %v6679 = vld [vmem:[%s4898 + $0x38] sm:$0xf]
        %v6680 = vld [vmem:[%s4898 + $0x3c] sm:$0xf]
        %v6697 = vunpack.c.l.b16 %v6665
        %v6698 = vunpack.c.l.b16 %v6666
        %v6699 = vunpack.c.l.b16 %v6667
        %v6700 = vunpack.c.l.b16 %v6668
        %v6701 = vunpack.c.l.b16 %v6669
        %v6702 = vunpack.c.l.b16 %v6670
        %v6703 = vunpack.c.l.b16 %v6671
        %v6704 = vunpack.c.l.b16 %v6672
        %v6705 = vunpack.c.l.b16 %v6673
        %v6706 = vunpack.c.l.b16 %v6674
        %v6707 = vunpack.c.l.b16 %v6675
        %v6708 = vunpack.c.l.b16 %v6676
        %v6709 = vunpack.c.l.b16 %v6677
        %v6710 = vunpack.c.l.b16 %v6678
        %v6711 = vunpack.c.l.b16 %v6679
        %v6712 = vunpack.c.l.b16 %v6680
        %v6713 = vpack.c.b16 %v6698, %v6697
        %v6714 = vpack.c.b16 %v6700, %v6699
        %v6715 = vpack.c.b16 %v6702, %v6701
        %v6716 = vpack.c.b16 %v6704, %v6703
        %v6717 = vpack.c.b16 %v6706, %v6705
        %v6718 = vpack.c.b16 %v6708, %v6707
        %v6719 = vpack.c.b16 %v6710, %v6709
        %v6720 = vpack.c.b16 %v6712, %v6711
        %6729 = vmatpush.bf16.msra.mxu0 %v6720
        %6730 = vmatpush.bf16.msra.mxu0 %v6719
        %6731 = vmatpush.bf16.msra.mxu0 %v6718
        %6732 = vmatpush.bf16.msra.mxu0 %v6717
        %6733 = vmatpush.bf16.msra.mxu0 %v6716
        %6734 = vmatpush.bf16.msra.mxu0 %v6715
        %6735 = vmatpush.bf16.msra.mxu0 %v6714
        %6736 = vmatpush.bf16.msra.mxu0 %v6713
        %6737 = vmatmul.bf16.gmra.mxu0 %v6657
        %v6738 = vpop.f32.mrf.mxu0
        %v6739 = vadd.f32 0.0, %v6738
        %v6740 = vpop.f32.mrf.mxu0
        %v6741 = vadd.f32 0.0, %v6740
        %6742 = vmatmul.bf16.gmra.mxu0 %v6658
        %v6743 = vpop.f32.mrf.mxu0
        %v6744 = vadd.f32 0.0, %v6743
        %v6745 = vpop.f32.mrf.mxu0
        %v6746 = vadd.f32 0.0, %v6745
        %6747 = vmatmul.bf16.gmra.mxu0 %v6659
        %v6748 = vpop.f32.mrf.mxu0
        %v6749 = vadd.f32 0.0, %v6748
        %v6750 = vpop.f32.mrf.mxu0
        %v6751 = vadd.f32 0.0, %v6750
        %6752 = vmatmul.bf16.gmra.mxu0 %v6660
        %v6753 = vpop.f32.mrf.mxu0
        %v6754 = vadd.f32 0.0, %v6753
        %v6755 = vpop.f32.mrf.mxu0
        %v6756 = vadd.f32 0.0, %v6755
        %6757 = vmatmul.bf16.gmra.mxu0 %v6661
        %v6758 = vpop.f32.mrf.mxu0
        %v6759 = vadd.f32 0.0, %v6758
        %v6760 = vpop.f32.mrf.mxu0
        %v6761 = vadd.f32 0.0, %v6760
        %6762 = vmatmul.bf16.gmra.mxu0 %v6662
        %v6763 = vpop.f32.mrf.mxu0
        %v6764 = vadd.f32 0.0, %v6763
        %v6765 = vpop.f32.mrf.mxu0
        %v6766 = vadd.f32 0.0, %v6765
        %6767 = vmatmul.bf16.gmra.mxu0 %v6663
        %v6768 = vpop.f32.mrf.mxu0
        %v6769 = vadd.f32 0.0, %v6768
        %v6770 = vpop.f32.mrf.mxu0
        %v6771 = vadd.f32 0.0, %v6770
        %6772 = vmatmul.bf16.gmra.mxu0 %v6664
        %v6773 = vpop.f32.mrf.mxu0
        %v6774 = vadd.f32 0.0, %v6773
        %v6775 = vpop.f32.mrf.mxu0
        %v6776 = vadd.f32 0.0, %v6775
        %6777 = vdwg.mxu0
        %v6778 = vadd.f32 %v6585, %v6739
        %v6779 = vadd.f32 %v6586, %v6741
        %v6780 = vadd.f32 %v6587, %v6744
        %v6781 = vadd.f32 %v6588, %v6746
        %v6782 = vadd.f32 %v6589, %v6749
        %v6783 = vadd.f32 %v6590, %v6751
        %v6784 = vadd.f32 %v6591, %v6754
        %v6785 = vadd.f32 %v6592, %v6756
        %v6786 = vadd.f32 %v6593, %v6759
        %v6787 = vadd.f32 %v6594, %v6761
        %v6788 = vadd.f32 %v6595, %v6764
        %v6789 = vadd.f32 %v6596, %v6766
        %v6790 = vadd.f32 %v6597, %v6769
        %v6791 = vadd.f32 %v6598, %v6771
        %v6792 = vadd.f32 %v6599, %v6774
        %v6793 = vadd.f32 %v6600, %v6776
        %s6794 = scalar_lea.vmem [#allocation3], 240
        %v6795 = vld [vmem:[%s6794] sm:$0xff]
        %v6796 = vld [vmem:[%s6794 + $0x8] sm:$0xff]
        %v6797 = vld [vmem:[%s6794 + $0x10] sm:$0x3]
        %v6798 = vld [vmem:[%s6794 + $0x18] sm:$0xff]
        %v6799 = vld [vmem:[%s6794 + $0x20] sm:$0xff]
        %v6800 = vld [vmem:[%s6794 + $0x28] sm:$0x3]
        %v6801 = vld [vmem:[%s6794 + $0x30] sm:$0xff]
        %v6802 = vld [vmem:[%s6794 + $0x38] sm:$0xff]
        %v6803 = vld [vmem:[%s6794 + $0x40] sm:$0x3]
        %v6804 = vld [vmem:[%s6794 + $0x48] sm:$0xff]
        %v6805 = vld [vmem:[%s6794 + $0x50] sm:$0xff]
        %v6806 = vld [vmem:[%s6794 + $0x58] sm:$0x3]
        %v6807 = vld [vmem:[%s6794 + $0x60] sm:$0xff]
        %v6808 = vld [vmem:[%s6794 + $0x68] sm:$0xff]
        %v6809 = vld [vmem:[%s6794 + $0x70] sm:$0x3]
        %v6810 = vld [vmem:[%s6794 + $0x78] sm:$0xff]
        %v6811 = vld [vmem:[%s6794 + $0x80] sm:$0xff]
        %v6812 = vld [vmem:[%s6794 + $0x88] sm:$0x3]
        %v6813 = vld [vmem:[%s6794 + $0x90] sm:$0xff]
        %v6814 = vld [vmem:[%s6794 + $0x98] sm:$0xff]
        %v6815 = vld [vmem:[%s6794 + $0xa0] sm:$0x3]
        %v6816 = vld [vmem:[%s6794 + $0xa8] sm:$0xff]
        %v6817 = vld [vmem:[%s6794 + $0xb0] sm:$0xff]
        %v6818 = vld [vmem:[%s6794 + $0xb8] sm:$0x3]
        %v6819 = vpack.c.bf16 %v6796, %v6795
        %v6820 = vpack.c.bf16 %v6799, %v6798
        %v6821 = vpack.c.bf16 %v6802, %v6801
        %v6822 = vpack.c.bf16 %v6805, %v6804
        %v6823 = vpack.c.bf16 %v6808, %v6807
        %v6824 = vpack.c.bf16 %v6811, %v6810
        %v6825 = vpack.c.bf16 %v6814, %v6813
        %v6826 = vpack.c.bf16 %v6817, %v6816
        %v6827 = vld [vmem:[%s5061] sm:$0xf]
        %v6828 = vld [vmem:[%s5061 + $0x4] sm:$0xf]
        %v6829 = vld [vmem:[%s5061 + $0x8] sm:$0xf]
        %v6830 = vld [vmem:[%s5061 + $0xc] sm:$0xf]
        %v6831 = vld [vmem:[%s5061 + $0x10] sm:$0xf]
        %v6832 = vld [vmem:[%s5061 + $0x14] sm:$0xf]
        %v6833 = vld [vmem:[%s5061 + $0x18] sm:$0xf]
        %v6834 = vld [vmem:[%s5061 + $0x1c] sm:$0xf]
        %v6835 = vld [vmem:[%s5061 + $0x20] sm:$0xf]
        %v6836 = vld [vmem:[%s5061 + $0x24] sm:$0xf]
        %v6837 = vld [vmem:[%s5061 + $0x28] sm:$0xf]
        %v6838 = vld [vmem:[%s5061 + $0x2c] sm:$0xf]
        %v6839 = vld [vmem:[%s5061 + $0x30] sm:$0xf]
        %v6840 = vld [vmem:[%s5061 + $0x34] sm:$0xf]
        %v6841 = vld [vmem:[%s5061 + $0x38] sm:$0xf]
        %v6842 = vld [vmem:[%s5061 + $0x3c] sm:$0xf]
        %v6859 = vunpack.c.l.b16 %v6827
        %v6860 = vunpack.c.l.b16 %v6828
        %v6861 = vunpack.c.l.b16 %v6829
        %v6862 = vunpack.c.l.b16 %v6830
        %v6863 = vunpack.c.l.b16 %v6831
        %v6864 = vunpack.c.l.b16 %v6832
        %v6865 = vunpack.c.l.b16 %v6833
        %v6866 = vunpack.c.l.b16 %v6834
        %v6867 = vunpack.c.l.b16 %v6835
        %v6868 = vunpack.c.l.b16 %v6836
        %v6869 = vunpack.c.l.b16 %v6837
        %v6870 = vunpack.c.l.b16 %v6838
        %v6871 = vunpack.c.l.b16 %v6839
        %v6872 = vunpack.c.l.b16 %v6840
        %v6873 = vunpack.c.l.b16 %v6841
        %v6874 = vunpack.c.l.b16 %v6842
        %v6875 = vpack.c.b16 %v6860, %v6859
        %v6876 = vpack.c.b16 %v6862, %v6861
        %v6877 = vpack.c.b16 %v6864, %v6863
        %v6878 = vpack.c.b16 %v6866, %v6865
        %v6879 = vpack.c.b16 %v6868, %v6867
        %v6880 = vpack.c.b16 %v6870, %v6869
        %v6881 = vpack.c.b16 %v6872, %v6871
        %v6882 = vpack.c.b16 %v6874, %v6873
        %6891 = vmatpush.bf16.msra.mxu0 %v6882
        %6892 = vmatpush.bf16.msra.mxu0 %v6881
        %6893 = vmatpush.bf16.msra.mxu0 %v6880
        %6894 = vmatpush.bf16.msra.mxu0 %v6879
        %6895 = vmatpush.bf16.msra.mxu0 %v6878
        %6896 = vmatpush.bf16.msra.mxu0 %v6877
        %6897 = vmatpush.bf16.msra.mxu0 %v6876
        %6898 = vmatpush.bf16.msra.mxu0 %v6875
        %6899 = vmatmul.bf16.gmra.mxu0 %v6819
        %v6900 = vpop.f32.mrf.mxu0
        %v6901 = vadd.f32 0.0, %v6900
        %v6902 = vpop.f32.mrf.mxu0
        %v6903 = vadd.f32 0.0, %v6902
        %6904 = vmatmul.bf16.gmra.mxu0 %v6820
        %v6905 = vpop.f32.mrf.mxu0
        %v6906 = vadd.f32 0.0, %v6905
        %v6907 = vpop.f32.mrf.mxu0
        %v6908 = vadd.f32 0.0, %v6907
        %6909 = vmatmul.bf16.gmra.mxu0 %v6821
        %v6910 = vpop.f32.mrf.mxu0
        %v6911 = vadd.f32 0.0, %v6910
        %v6912 = vpop.f32.mrf.mxu0
        %v6913 = vadd.f32 0.0, %v6912
        %6914 = vmatmul.bf16.gmra.mxu0 %v6822
        %v6915 = vpop.f32.mrf.mxu0
        %v6916 = vadd.f32 0.0, %v6915
        %v6917 = vpop.f32.mrf.mxu0
        %v6918 = vadd.f32 0.0, %v6917
        %6919 = vmatmul.bf16.gmra.mxu0 %v6823
        %v6920 = vpop.f32.mrf.mxu0
        %v6921 = vadd.f32 0.0, %v6920
        %v6922 = vpop.f32.mrf.mxu0
        %v6923 = vadd.f32 0.0, %v6922
        %6924 = vmatmul.bf16.gmra.mxu0 %v6824
        %v6925 = vpop.f32.mrf.mxu0
        %v6926 = vadd.f32 0.0, %v6925
        %v6927 = vpop.f32.mrf.mxu0
        %v6928 = vadd.f32 0.0, %v6927
        %6929 = vmatmul.bf16.gmra.mxu0 %v6825
        %v6930 = vpop.f32.mrf.mxu0
        %v6931 = vadd.f32 0.0, %v6930
        %v6932 = vpop.f32.mrf.mxu0
        %v6933 = vadd.f32 0.0, %v6932
        %6934 = vmatmul.bf16.gmra.mxu0 %v6826
        %v6935 = vpop.f32.mrf.mxu0
        %v6936 = vadd.f32 0.0, %v6935
        %v6937 = vpop.f32.mrf.mxu0
        %v6938 = vadd.f32 0.0, %v6937
        %6939 = vdwg.mxu0
        %v6940 = vadd.f32 %v6778, %v6901
        %v6941 = vadd.f32 %v6779, %v6903
        %v6942 = vadd.f32 %v6780, %v6906
        %v6943 = vadd.f32 %v6781, %v6908
        %v6944 = vadd.f32 %v6782, %v6911
        %v6945 = vadd.f32 %v6783, %v6913
        %v6946 = vadd.f32 %v6784, %v6916
        %v6947 = vadd.f32 %v6785, %v6918
        %v6948 = vadd.f32 %v6786, %v6921
        %v6949 = vadd.f32 %v6787, %v6923
        %v6950 = vadd.f32 %v6788, %v6926
        %v6951 = vadd.f32 %v6789, %v6928
        %v6952 = vadd.f32 %v6790, %v6931
        %v6953 = vadd.f32 %v6791, %v6933
        %v6954 = vadd.f32 %v6792, %v6936
        %v6955 = vadd.f32 %v6793, %v6938
        %v6980 = vrot.slane %v6795, 1
        %v6981 = vrot.slane %v6796, 1
        %v6982 = vsel %vm558, %v6980, %v6981
        %v6983 = vrot.slane %v6797, 1
        %v6984 = vsel %vm558, %v6981, %v6983
        %v6985 = vrot.slane %v6798, 1
        %v6986 = vrot.slane %v6799, 1
        %v6987 = vsel %vm558, %v6985, %v6986
        %v6988 = vrot.slane %v6800, 1
        %v6989 = vsel %vm558, %v6986, %v6988
        %v6990 = vrot.slane %v6801, 1
        %v6991 = vrot.slane %v6802, 1
        %v6992 = vsel %vm558, %v6990, %v6991
        %v6993 = vrot.slane %v6803, 1
        %v6994 = vsel %vm558, %v6991, %v6993
        %v6995 = vrot.slane %v6804, 1
        %v6996 = vrot.slane %v6805, 1
        %v6997 = vsel %vm558, %v6995, %v6996
        %v6998 = vrot.slane %v6806, 1
        %v6999 = vsel %vm558, %v6996, %v6998
        %v7000 = vrot.slane %v6807, 1
        %v7001 = vrot.slane %v6808, 1
        %v7002 = vsel %vm558, %v7000, %v7001
        %v7003 = vrot.slane %v6809, 1
        %v7004 = vsel %vm558, %v7001, %v7003
        %v7005 = vrot.slane %v6810, 1
        %v7006 = vrot.slane %v6811, 1
        %v7007 = vsel %vm558, %v7005, %v7006
        %v7008 = vrot.slane %v6812, 1
        %v7009 = vsel %vm558, %v7006, %v7008
        %v7010 = vrot.slane %v6813, 1
        %v7011 = vrot.slane %v6814, 1
        %v7012 = vsel %vm558, %v7010, %v7011
        %v7013 = vrot.slane %v6815, 1
        %v7014 = vsel %vm558, %v7011, %v7013
        %v7015 = vrot.slane %v6816, 1
        %v7016 = vrot.slane %v6817, 1
        %v7017 = vsel %vm558, %v7015, %v7016
        %v7018 = vrot.slane %v6818, 1
        %v7019 = vsel %vm558, %v7016, %v7018
        %v7036 = vpack.c.bf16 %v6984, %v6982
        %v7037 = vpack.c.bf16 %v6989, %v6987
        %v7038 = vpack.c.bf16 %v6994, %v6992
        %v7039 = vpack.c.bf16 %v6999, %v6997
        %v7040 = vpack.c.bf16 %v7004, %v7002
        %v7041 = vpack.c.bf16 %v7009, %v7007
        %v7042 = vpack.c.bf16 %v7014, %v7012
        %v7043 = vpack.c.bf16 %v7019, %v7017
        %v7044 = vld [vmem:[%s5279] sm:$0xf]
        %v7045 = vld [vmem:[%s5279 + $0x4] sm:$0xf]
        %v7046 = vld [vmem:[%s5279 + $0x8] sm:$0xf]
        %v7047 = vld [vmem:[%s5279 + $0xc] sm:$0xf]
        %v7048 = vld [vmem:[%s5279 + $0x10] sm:$0xf]
        %v7049 = vld [vmem:[%s5279 + $0x14] sm:$0xf]
        %v7050 = vld [vmem:[%s5279 + $0x18] sm:$0xf]
        %v7051 = vld [vmem:[%s5279 + $0x1c] sm:$0xf]
        %v7052 = vld [vmem:[%s5279 + $0x20] sm:$0xf]
        %v7053 = vld [vmem:[%s5279 + $0x24] sm:$0xf]
        %v7054 = vld [vmem:[%s5279 + $0x28] sm:$0xf]
        %v7055 = vld [vmem:[%s5279 + $0x2c] sm:$0xf]
        %v7056 = vld [vmem:[%s5279 + $0x30] sm:$0xf]
        %v7057 = vld [vmem:[%s5279 + $0x34] sm:$0xf]
        %v7058 = vld [vmem:[%s5279 + $0x38] sm:$0xf]
        %v7059 = vld [vmem:[%s5279 + $0x3c] sm:$0xf]
        %v7076 = vunpack.c.l.b16 %v7044
        %v7077 = vunpack.c.l.b16 %v7045
        %v7078 = vunpack.c.l.b16 %v7046
        %v7079 = vunpack.c.l.b16 %v7047
        %v7080 = vunpack.c.l.b16 %v7048
        %v7081 = vunpack.c.l.b16 %v7049
        %v7082 = vunpack.c.l.b16 %v7050
        %v7083 = vunpack.c.l.b16 %v7051
        %v7084 = vunpack.c.l.b16 %v7052
        %v7085 = vunpack.c.l.b16 %v7053
        %v7086 = vunpack.c.l.b16 %v7054
        %v7087 = vunpack.c.l.b16 %v7055
        %v7088 = vunpack.c.l.b16 %v7056
        %v7089 = vunpack.c.l.b16 %v7057
        %v7090 = vunpack.c.l.b16 %v7058
        %v7091 = vunpack.c.l.b16 %v7059
        %v7092 = vpack.c.b16 %v7077, %v7076
        %v7093 = vpack.c.b16 %v7079, %v7078
        %v7094 = vpack.c.b16 %v7081, %v7080
        %v7095 = vpack.c.b16 %v7083, %v7082
        %v7096 = vpack.c.b16 %v7085, %v7084
        %v7097 = vpack.c.b16 %v7087, %v7086
        %v7098 = vpack.c.b16 %v7089, %v7088
        %v7099 = vpack.c.b16 %v7091, %v7090
        %7108 = vmatpush.bf16.msra.mxu0 %v7099
        %7109 = vmatpush.bf16.msra.mxu0 %v7098
        %7110 = vmatpush.bf16.msra.mxu0 %v7097
        %7111 = vmatpush.bf16.msra.mxu0 %v7096
        %7112 = vmatpush.bf16.msra.mxu0 %v7095
        %7113 = vmatpush.bf16.msra.mxu0 %v7094
        %7114 = vmatpush.bf16.msra.mxu0 %v7093
        %7115 = vmatpush.bf16.msra.mxu0 %v7092
        %7116 = vmatmul.bf16.gmra.mxu0 %v7036
        %v7117 = vpop.f32.mrf.mxu0
        %v7118 = vadd.f32 0.0, %v7117
        %v7119 = vpop.f32.mrf.mxu0
        %v7120 = vadd.f32 0.0, %v7119
        %7121 = vmatmul.bf16.gmra.mxu0 %v7037
        %v7122 = vpop.f32.mrf.mxu0
        %v7123 = vadd.f32 0.0, %v7122
        %v7124 = vpop.f32.mrf.mxu0
        %v7125 = vadd.f32 0.0, %v7124
        %7126 = vmatmul.bf16.gmra.mxu0 %v7038
        %v7127 = vpop.f32.mrf.mxu0
        %v7128 = vadd.f32 0.0, %v7127
        %v7129 = vpop.f32.mrf.mxu0
        %v7130 = vadd.f32 0.0, %v7129
        %7131 = vmatmul.bf16.gmra.mxu0 %v7039
        %v7132 = vpop.f32.mrf.mxu0
        %v7133 = vadd.f32 0.0, %v7132
        %v7134 = vpop.f32.mrf.mxu0
        %v7135 = vadd.f32 0.0, %v7134
        %7136 = vmatmul.bf16.gmra.mxu0 %v7040
        %v7137 = vpop.f32.mrf.mxu0
        %v7138 = vadd.f32 0.0, %v7137
        %v7139 = vpop.f32.mrf.mxu0
        %v7140 = vadd.f32 0.0, %v7139
        %7141 = vmatmul.bf16.gmra.mxu0 %v7041
        %v7142 = vpop.f32.mrf.mxu0
        %v7143 = vadd.f32 0.0, %v7142
        %v7144 = vpop.f32.mrf.mxu0
        %v7145 = vadd.f32 0.0, %v7144
        %7146 = vmatmul.bf16.gmra.mxu0 %v7042
        %v7147 = vpop.f32.mrf.mxu0
        %v7148 = vadd.f32 0.0, %v7147
        %v7149 = vpop.f32.mrf.mxu0
        %v7150 = vadd.f32 0.0, %v7149
        %7151 = vmatmul.bf16.gmra.mxu0 %v7043
        %v7152 = vpop.f32.mrf.mxu0
        %v7153 = vadd.f32 0.0, %v7152
        %v7154 = vpop.f32.mrf.mxu0
        %v7155 = vadd.f32 0.0, %v7154
        %7156 = vdwg.mxu0
        %v7157 = vadd.f32 %v6940, %v7118
        %v7158 = vadd.f32 %v6941, %v7120
        %v7159 = vadd.f32 %v6942, %v7123
        %v7160 = vadd.f32 %v6943, %v7125
        %v7161 = vadd.f32 %v6944, %v7128
        %v7162 = vadd.f32 %v6945, %v7130
        %v7163 = vadd.f32 %v6946, %v7133
        %v7164 = vadd.f32 %v6947, %v7135
        %v7165 = vadd.f32 %v6948, %v7138
        %v7166 = vadd.f32 %v6949, %v7140
        %v7167 = vadd.f32 %v6950, %v7143
        %v7168 = vadd.f32 %v6951, %v7145
        %v7169 = vadd.f32 %v6952, %v7148
        %v7170 = vadd.f32 %v6953, %v7150
        %v7171 = vadd.f32 %v6954, %v7153
        %v7172 = vadd.f32 %v6955, %v7155
        %v7173 = vrot.slane %v6795, 2
        %v7174 = vrot.slane %v6796, 2
        %v7175 = vsel %vm753, %v7173, %v7174
        %v7176 = vrot.slane %v6797, 2
        %v7177 = vsel %vm753, %v7174, %v7176
        %v7178 = vrot.slane %v6798, 2
        %v7179 = vrot.slane %v6799, 2
        %v7180 = vsel %vm753, %v7178, %v7179
        %v7181 = vrot.slane %v6800, 2
        %v7182 = vsel %vm753, %v7179, %v7181
        %v7183 = vrot.slane %v6801, 2
        %v7184 = vrot.slane %v6802, 2
        %v7185 = vsel %vm753, %v7183, %v7184
        %v7186 = vrot.slane %v6803, 2
        %v7187 = vsel %vm753, %v7184, %v7186
        %v7188 = vrot.slane %v6804, 2
        %v7189 = vrot.slane %v6805, 2
        %v7190 = vsel %vm753, %v7188, %v7189
        %v7191 = vrot.slane %v6806, 2
        %v7192 = vsel %vm753, %v7189, %v7191
        %v7193 = vrot.slane %v6807, 2
        %v7194 = vrot.slane %v6808, 2
        %v7195 = vsel %vm753, %v7193, %v7194
        %v7196 = vrot.slane %v6809, 2
        %v7197 = vsel %vm753, %v7194, %v7196
        %v7198 = vrot.slane %v6810, 2
        %v7199 = vrot.slane %v6811, 2
        %v7200 = vsel %vm753, %v7198, %v7199
        %v7201 = vrot.slane %v6812, 2
        %v7202 = vsel %vm753, %v7199, %v7201
        %v7203 = vrot.slane %v6813, 2
        %v7204 = vrot.slane %v6814, 2
        %v7205 = vsel %vm753, %v7203, %v7204
        %v7206 = vrot.slane %v6815, 2
        %v7207 = vsel %vm753, %v7204, %v7206
        %v7208 = vrot.slane %v6816, 2
        %v7209 = vrot.slane %v6817, 2
        %v7210 = vsel %vm753, %v7208, %v7209
        %v7211 = vrot.slane %v6818, 2
        %v7212 = vsel %vm753, %v7209, %v7211
        %v7229 = vpack.c.bf16 %v7177, %v7175
        %v7230 = vpack.c.bf16 %v7182, %v7180
        %v7231 = vpack.c.bf16 %v7187, %v7185
        %v7232 = vpack.c.bf16 %v7192, %v7190
        %v7233 = vpack.c.bf16 %v7197, %v7195
        %v7234 = vpack.c.bf16 %v7202, %v7200
        %v7235 = vpack.c.bf16 %v7207, %v7205
        %v7236 = vpack.c.bf16 %v7212, %v7210
        %v7237 = vld [vmem:[%s5473] sm:$0xf]
        %v7238 = vld [vmem:[%s5473 + $0x4] sm:$0xf]
        %v7239 = vld [vmem:[%s5473 + $0x8] sm:$0xf]
        %v7240 = vld [vmem:[%s5473 + $0xc] sm:$0xf]
        %v7241 = vld [vmem:[%s5473 + $0x10] sm:$0xf]
        %v7242 = vld [vmem:[%s5473 + $0x14] sm:$0xf]
        %v7243 = vld [vmem:[%s5473 + $0x18] sm:$0xf]
        %v7244 = vld [vmem:[%s5473 + $0x1c] sm:$0xf]
        %v7245 = vld [vmem:[%s5473 + $0x20] sm:$0xf]
        %v7246 = vld [vmem:[%s5473 + $0x24] sm:$0xf]
        %v7247 = vld [vmem:[%s5473 + $0x28] sm:$0xf]
        %v7248 = vld [vmem:[%s5473 + $0x2c] sm:$0xf]
        %v7249 = vld [vmem:[%s5473 + $0x30] sm:$0xf]
        %v7250 = vld [vmem:[%s5473 + $0x34] sm:$0xf]
        %v7251 = vld [vmem:[%s5473 + $0x38] sm:$0xf]
        %v7252 = vld [vmem:[%s5473 + $0x3c] sm:$0xf]
        %v7269 = vunpack.c.l.b16 %v7237
        %v7270 = vunpack.c.l.b16 %v7238
        %v7271 = vunpack.c.l.b16 %v7239
        %v7272 = vunpack.c.l.b16 %v7240
        %v7273 = vunpack.c.l.b16 %v7241
        %v7274 = vunpack.c.l.b16 %v7242
        %v7275 = vunpack.c.l.b16 %v7243
        %v7276 = vunpack.c.l.b16 %v7244
        %v7277 = vunpack.c.l.b16 %v7245
        %v7278 = vunpack.c.l.b16 %v7246
        %v7279 = vunpack.c.l.b16 %v7247
        %v7280 = vunpack.c.l.b16 %v7248
        %v7281 = vunpack.c.l.b16 %v7249
        %v7282 = vunpack.c.l.b16 %v7250
        %v7283 = vunpack.c.l.b16 %v7251
        %v7284 = vunpack.c.l.b16 %v7252
        %v7285 = vpack.c.b16 %v7270, %v7269
        %v7286 = vpack.c.b16 %v7272, %v7271
        %v7287 = vpack.c.b16 %v7274, %v7273
        %v7288 = vpack.c.b16 %v7276, %v7275
        %v7289 = vpack.c.b16 %v7278, %v7277
        %v7290 = vpack.c.b16 %v7280, %v7279
        %v7291 = vpack.c.b16 %v7282, %v7281
        %v7292 = vpack.c.b16 %v7284, %v7283
        %7301 = vmatpush.bf16.msra.mxu0 %v7292
        %7302 = vmatpush.bf16.msra.mxu0 %v7291
        %7303 = vmatpush.bf16.msra.mxu0 %v7290
        %7304 = vmatpush.bf16.msra.mxu0 %v7289
        %7305 = vmatpush.bf16.msra.mxu0 %v7288
        %7306 = vmatpush.bf16.msra.mxu0 %v7287
        %7307 = vmatpush.bf16.msra.mxu0 %v7286
        %7308 = vmatpush.bf16.msra.mxu0 %v7285
        %7309 = vmatmul.bf16.gmra.mxu0 %v7229
        %v7310 = vpop.f32.mrf.mxu0
        %v7311 = vadd.f32 0.0, %v7310
        %v7312 = vpop.f32.mrf.mxu0
        %v7313 = vadd.f32 0.0, %v7312
        %7314 = vmatmul.bf16.gmra.mxu0 %v7230
        %v7315 = vpop.f32.mrf.mxu0
        %v7316 = vadd.f32 0.0, %v7315
        %v7317 = vpop.f32.mrf.mxu0
        %v7318 = vadd.f32 0.0, %v7317
        %7319 = vmatmul.bf16.gmra.mxu0 %v7231
        %v7320 = vpop.f32.mrf.mxu0
        %v7321 = vadd.f32 0.0, %v7320
        %v7322 = vpop.f32.mrf.mxu0
        %v7323 = vadd.f32 0.0, %v7322
        %7324 = vmatmul.bf16.gmra.mxu0 %v7232
        %v7325 = vpop.f32.mrf.mxu0
        %v7326 = vadd.f32 0.0, %v7325
        %v7327 = vpop.f32.mrf.mxu0
        %v7328 = vadd.f32 0.0, %v7327
        %7329 = vmatmul.bf16.gmra.mxu0 %v7233
        %v7330 = vpop.f32.mrf.mxu0
        %v7331 = vadd.f32 0.0, %v7330
        %v7332 = vpop.f32.mrf.mxu0
        %v7333 = vadd.f32 0.0, %v7332
        %7334 = vmatmul.bf16.gmra.mxu0 %v7234
        %v7335 = vpop.f32.mrf.mxu0
        %v7336 = vadd.f32 0.0, %v7335
        %v7337 = vpop.f32.mrf.mxu0
        %v7338 = vadd.f32 0.0, %v7337
        %7339 = vmatmul.bf16.gmra.mxu0 %v7235
        %v7340 = vpop.f32.mrf.mxu0
        %v7341 = vadd.f32 0.0, %v7340
        %v7342 = vpop.f32.mrf.mxu0
        %v7343 = vadd.f32 0.0, %v7342
        %7344 = vmatmul.bf16.gmra.mxu0 %v7236
        %v7345 = vpop.f32.mrf.mxu0
        %v7346 = vadd.f32 0.0, %v7345
        %v7347 = vpop.f32.mrf.mxu0
        %v7348 = vadd.f32 0.0, %v7347
        %7349 = vdwg.mxu0
        %v7350 = vadd.f32 %v7157, %v7311
        %v7351 = vadd.f32 %v7158, %v7313
        %v7352 = vadd.f32 %v7159, %v7316
        %v7353 = vadd.f32 %v7160, %v7318
        %v7354 = vadd.f32 %v7161, %v7321
        %v7355 = vadd.f32 %v7162, %v7323
        %v7356 = vadd.f32 %v7163, %v7326
        %v7357 = vadd.f32 %v7164, %v7328
        %v7358 = vadd.f32 %v7165, %v7331
        %v7359 = vadd.f32 %v7166, %v7333
        %v7360 = vadd.f32 %v7167, %v7336
        %v7361 = vadd.f32 %v7168, %v7338
        %v7362 = vadd.f32 %v7169, %v7341
        %v7363 = vadd.f32 %v7170, %v7343
        %v7364 = vadd.f32 %v7171, %v7346
        %v7365 = vadd.f32 %v7172, %v7348
        %v7366 = vld [vmem:[%s335] sm:$0xff]
        %v7367 = vld [vmem:[%s335 + $0x8] sm:$0xff]
        %v7368 = vld [vmem:[%s335 + $0x10] sm:$0xff]
        %v7369 = vld [vmem:[%s335 + $0x18] sm:$0xff]
        %v7370 = vld [vmem:[%s335 + $0x20] sm:$0xff]
        %v7371 = vld [vmem:[%s335 + $0x28] sm:$0xff]
        %v7372 = vld [vmem:[%s335 + $0x30] sm:$0xff]
        %v7373 = vld [vmem:[%s335 + $0x38] sm:$0xff]
        %v7374 = vld [vmem:[%s335 + $0x40] sm:$0xff]
        %v7375 = vld [vmem:[%s335 + $0x48] sm:$0xff]
        %v7376 = vld [vmem:[%s335 + $0x50] sm:$0xff]
        %v7377 = vld [vmem:[%s335 + $0x58] sm:$0xff]
        %v7378 = vld [vmem:[%s335 + $0x60] sm:$0xff]
        %v7379 = vld [vmem:[%s335 + $0x68] sm:$0xff]
        %v7380 = vld [vmem:[%s335 + $0x70] sm:$0xff]
        %v7381 = vld [vmem:[%s335 + $0x78] sm:$0xff]
        %v7382 = vadd.f32 %v7350, %v7366
        %v7383 = vadd.f32 %v7351, %v7367
        %v7384 = vadd.f32 %v7352, %v7368
        %v7385 = vadd.f32 %v7353, %v7369
        %v7386 = vadd.f32 %v7354, %v7370
        %v7387 = vadd.f32 %v7355, %v7371
        %v7388 = vadd.f32 %v7356, %v7372
        %v7389 = vadd.f32 %v7357, %v7373
        %v7390 = vadd.f32 %v7358, %v7374
        %v7391 = vadd.f32 %v7359, %v7375
        %v7392 = vadd.f32 %v7360, %v7376
        %v7393 = vadd.f32 %v7361, %v7377
        %v7394 = vadd.f32 %v7362, %v7378
        %v7395 = vadd.f32 %v7363, %v7379
        %v7396 = vadd.f32 %v7364, %v7380
        %v7397 = vadd.f32 %v7365, %v7381
        %s7398 = scalar_lea.vmem %s217, 128 [#allocation4]
        %7399 = vst [vmem:[%s7398] sm:$0xff] %v7382
        %7400 = vst [vmem:[%s7398 + $0x8] sm:$0xff] %v7383
        %7401 = vst [vmem:[%s7398 + $0x10] sm:$0xff] %v7384
        %7402 = vst [vmem:[%s7398 + $0x18] sm:$0xff] %v7385
        %7403 = vst [vmem:[%s7398 + $0x20] sm:$0xff] %v7386
        %7404 = vst [vmem:[%s7398 + $0x28] sm:$0xff] %v7387
        %7405 = vst [vmem:[%s7398 + $0x30] sm:$0xff] %v7388
        %7406 = vst [vmem:[%s7398 + $0x38] sm:$0xff] %v7389
        %7407 = vst [vmem:[%s7398 + $0x40] sm:$0xff] %v7390
        %7408 = vst [vmem:[%s7398 + $0x48] sm:$0xff] %v7391
        %7409 = vst [vmem:[%s7398 + $0x50] sm:$0xff] %v7392
        %7410 = vst [vmem:[%s7398 + $0x58] sm:$0xff] %v7393
        %7411 = vst [vmem:[%s7398 + $0x60] sm:$0xff] %v7394
        %7412 = vst [vmem:[%s7398 + $0x68] sm:$0xff] %v7395
        %7413 = vst [vmem:[%s7398 + $0x70] sm:$0xff] %v7396
        %7414 = vst [vmem:[%s7398 + $0x78] sm:$0xff] %v7397
        %s7415 = sand.u32 %s137, 1
        %s7416 = scalar_lea.sflag [#allocation5], %s7415
        %s7417 = sand.u32 %s137, 1
        %s7418 = smul.addr %s7417, 256
        %s7419 = scalar_lea.vmem [#allocation4], %s7418
        // Predicated region
        $region41: #{resblock_forward_nhwc.1} parent=39 // pred_check
          %p7420 = pneg %p147
        $region42: #{resblock_forward_nhwc.1} parent=39 // pred_check_branch
          %7422 = sbr.rel (%p7420) target = $region44
        $region43: #{resblock_forward_nhwc.1} parent=39 // pred_region
          %7424 = vsyncadd %s7416, 0
          %s7425 = smul.addr %s19, 32
          %s7426 = smul.addr %s7425, 8
          %s7427 = scalar_lea.hbm %s5, %s7426
          %s7428 = sshll.u32 %s7419, 4
          %s7429 = int_to_ptr.vmem [resolvable:$true] %s7428
          %s7430 = sshll.u32 %s7427, 4
          %s7431 = int_to_ptr.hbm [resolvable:$true] %s7430
          %7436 = dma.vmem_to_hbm [thread:$0]  %s7429, 4096, %s7431, %s7416, 128, 128, 8
        $region44: #{resblock_forward_nhwc.1} parent=39 // pred_fallthru
          _
      $region40: #{resblock_forward_nhwc.1} parent=5 // pred_fallthru
        _
      %p7437 = scmp.le.s32.totalorder 2, %s14
      // Predicated region
      $region45: #{resblock_forward_nhwc.1} parent=5 // pred_check
        %p7438 = pneg %p7437
      $region46: #{resblock_forward_nhwc.1} parent=5 // pred_check_branch
        %7440 = sbr.rel (%p7438) target = $region48
      $region47: #{resblock_forward_nhwc.1} parent=5 // pred_region
        %s7441 = ssub.s32 %s14, 2
        // Predicated region
        $region49: #{resblock_forward_nhwc.1} parent=47 // pred_check
          %p7442 = pneg %p153
        $region50: #{resblock_forward_nhwc.1} parent=47 // pred_check_branch
          %7444 = sbr.rel (%p7442) target = $region52
        $region51: #{resblock_forward_nhwc.1} parent=47 // pred_region
          %s7445 = sand.u32 %s138, 1
          %s7446 = scalar_lea.sflag [#allocation5], %s7445
          %s7447 = sand.u32 %s138, 1
          %s7448 = smul.addr %s7447, 256
          %s7449 = scalar_lea.vmem [#allocation4], %s7448
          %7451 = dma.done %s7446, 4096
        $region52: #{resblock_forward_nhwc.1} parent=47 // pred_fallthru
          _
      $region48: #{resblock_forward_nhwc.1} parent=5 // pred_fallthru
        _
    $region6: #{resblock_forward_nhwc.1} parent=1 // loop_footer
      %s18 = sadd.s32 1, %s14
    $region7: #{resblock_forward_nhwc.1} parent=1 // loop_footer_branch
      %13 = sbr.rel target = $region3
    $region8: #{resblock_forward_nhwc.1} parent=1 // loop_exit
      _
    %7452 = vsyncpa [#allocation5], 1
    %s7453 = scalar_lea.sflag [#allocation5], 1
    %7454 = vsyncpa %s7453, 1

</llo_original>
